<compile_context>
chip_gen: v5e
topology: v5e:2x2
jax: 0.10.0
libtpu: 0.0.40
codegen_flags: <defaults>
</compile_context>

<pallas_src>
import numpy as np
import jax
import jax.numpy as jnp
from jax.experimental import pallas as pl
from jax.experimental.pallas import tpu as pltpu

_BN_EPS = 1e-5


# ------------------------------ fused kernel -------------------------------

def _bn_relu(y, p_ref, pt_ref, g_ref, be_ref, n_hw):
    """BatchNorm2d (batch stats) + ReLU on y laid out as (N, C*H*W).

    p_ref: (C*H*W, C) 0/1 selector; pt_ref its transpose.  They implement the
    per-channel reduction / broadcast over the lane axis as matmuls, keeping
    the kernel free of reshapes.
    """
    colsum = jnp.sum(y, axis=0, keepdims=True)             # (1, C*H*W)
    colsq = jnp.sum(y * y, axis=0, keepdims=True)          # (1, C*H*W)
    s1 = jnp.dot(colsum, p_ref[...], preferred_element_type=jnp.float32)  # (1, C)
    s2 = jnp.dot(colsq, p_ref[...], preferred_element_type=jnp.float32)   # (1, C)
    inv_n = 1.0 / n_hw
    mean = s1 * inv_n
    var = s2 * inv_n - mean * mean                         # biased var (torch fwd)
    scale = g_ref[...] * jax.lax.rsqrt(var + _BN_EPS)      # (1, C)
    shift = be_ref[...] - mean * scale                     # (1, C)
    scale_f = jnp.dot(scale, pt_ref[...], preferred_element_type=jnp.float32)
    shift_f = jnp.dot(shift, pt_ref[...], preferred_element_type=jnp.float32)
    return jnp.maximum(y * scale_f + shift_f, 0.0)


def _decoder_kernel(x_ref, w1_ref, b1_ref, w2_ref, b2_ref,
                    m1_ref, p1_ref, p1t_ref, g1_ref, be1_ref,
                    m2_ref, p2_ref, p2t_ref, g2_ref, be2_ref,
                    m3_ref, b3_ref, o_ref):
    n = x_ref.shape[0]

    # decoder_lin: Linear(d,128)+ReLU, Linear(128,288)+ReLU
    h = jnp.dot(x_ref[...], w1_ref[...], preferred_element_type=jnp.float32)
    h = jnp.maximum(h + b1_ref[...], 0.0)
    h = jnp.dot(h, w2_ref[...], preferred_element_type=jnp.float32)
    h = jnp.maximum(h + b2_ref[...], 0.0)                  # (N, 288) == (N, 32*3*3)

    # ConvTranspose2d(32,16,3,s=2) + BN + ReLU : 3x3 -> 7x7
    # (conv bias omitted: cancelled by the BN mean subtraction)
    y = jnp.dot(h.astype(m1_ref.dtype), m1_ref[...],
                preferred_element_type=jnp.float32)        # (N, 16*7*7)
    h = _bn_relu(y, p1_ref, p1t_ref, g1_ref, be1_ref, n * 49)

    # ConvTranspose2d(16,8,3,s=2,p=1,op=1) + BN + ReLU : 7x7 -> 14x14
    y = jnp.dot(h.astype(m2_ref.dtype), m2_ref[...],
                preferred_element_type=jnp.float32)        # (N, 8*14*14)
    h = _bn_relu(y, p2_ref, p2t_ref, g2_ref, be2_ref, n * 196)

    # ConvTranspose2d(8,1,3,s=2,p=1,op=1) + bias + sigmoid : 14x14 -> 28x28
    y = jnp.dot(h.astype(m3_ref.dtype), m3_ref[...],
                preferred_element_type=jnp.float32)        # (N, 784)
    y = y + b3_ref[...]                                    # pre-broadcast (1, 784)
    o_ref[...] = pl.reciprocal(1.0 + jnp.exp(-y), approx=True)


# ------------------------------ forward wrapper -----------------------------

def decoder_forward(x, params):
    n = x.shape[0]
    args = (x,
            params["w1"], params["b1"], params["w2"], params["b2"],
            params["m1"], params["p1"], params["p1t"], params["g1"], params["be1"],
            params["m2"], params["p2"], params["p2t"], params["g2"], params["be2"],
            params["m3"], params["b3"])
    out = pl.pallas_call(
        _decoder_kernel,
        out_shape=jax.ShapeDtypeStruct((n, 28 * 28), jnp.float32),
        in_specs=[pl.BlockSpec(memory_space=pltpu.MemorySpace.VMEM) for _ in args],
        out_specs=pl.BlockSpec(memory_space=pltpu.MemorySpace.VMEM),
        compiler_params=pltpu.CompilerParams(vmem_limit_bytes=32 * 1024 * 1024),
    )(*args)
    # TODO(synk): tile the batch/row dimension with a grid (rows multiple of 8,
    # two-pass BN) if batch grows beyond what fits VMEM (~6 MiB weights resident).
    return out.reshape(n, 1, 28, 28)                       # NCHW, (N, 1, 28, 28)


# --------------------- parameter / folded-matrix building -------------------

def _deconv_dense_matrix(w, hin, stride, padding, output_padding):
    """Fold a torch ConvTranspose2d weight (Cin, Cout, K, K) into a dense
    (Cin*Hin*Win, Cout*Hout*Wout) matrix acting on NCHW-flattened feature maps.
    out[co, ho, wo] += in[ci, hi, wi] * w[ci, co, kh, kw],
    ho = hi*stride - padding + kh, wo = wi*stride - padding + kw."""
    cin, cout, k, _ = w.shape
    win = hin
    hout = (hin - 1) * stride - 2 * padding + k + output_padding
    wout = hout
    m = np.zeros((cin, hin * win, cout, hout * wout), np.float32)
    for hi in range(hin):
        for kh in range(k):
            ho = hi * stride - padding + kh
            if not 0 <= ho < hout:
                continue
            for wi in range(win):
                for kw in range(k):
                    wo = wi * stride - padding + kw
                    if not 0 <= wo < wout:
                        continue
                    m[:, hi * win + wi, :, ho * wout + wo] += w[:, :, kh, kw]
    return m.reshape(cin * hin * win, cout * hout * wout), hout


def _channel_selector(c, hw):
    """(C*H*W, C) 0/1 matrix: column c selects channel c's H*W lane block."""
    return np.kron(np.eye(c, dtype=np.float32), np.ones((hw, 1), np.float32))


def init_params(key, encoded_space_dim):
    ks = jax.random.split(key, 8)

    def nrm(k, shape, scale=0.1):
        return np.asarray(scale * jax.random.normal(k, shape), dtype=np.float32)

    p = {}
    # decoder_lin weights stored pre-transposed: (in, out)
    p["w1"] = jnp.asarray(nrm(ks[0], (encoded_space_dim, 128)))
    p["b1"] = jnp.asarray(nrm(ks[1], (1, 128)))
    p["w2"] = jnp.asarray(nrm(ks[2], (128, 3 * 3 * 32)))
    p["b2"] = jnp.asarray(nrm(ks[3], (1, 3 * 3 * 32)))

    # ConvTranspose2d(32,16,3,s=2): 3x3 -> 7x7  (bias dropped: cancelled by BN)
    m1, h1 = _deconv_dense_matrix(nrm(ks[4], (32, 16, 3, 3)), 3, 2, 0, 0)
    sel1 = _channel_selector(16, h1 * h1)
    p["m1"] = jnp.asarray(m1, jnp.bfloat16)
    p["p1"] = jnp.asarray(sel1)
    p["p1t"] = jnp.asarray(sel1.T)
    p["g1"] = jnp.ones((1, 16), jnp.float32)
    p["be1"] = jnp.zeros((1, 16), jnp.float32)

    # ConvTranspose2d(16,8,3,s=2,p=1,op=1): 7x7 -> 14x14  (bias dropped)
    m2, h2 = _deconv_dense_matrix(nrm(ks[5], (16, 8, 3, 3)), h1, 2, 1, 1)
    sel2 = _channel_selector(8, h2 * h2)
    p["m2"] = jnp.asarray(m2, jnp.bfloat16)
    p["p2"] = jnp.asarray(sel2)
    p["p2t"] = jnp.asarray(sel2.T)
    p["g2"] = jnp.ones((1, 8), jnp.float32)
    p["be2"] = jnp.zeros((1, 8), jnp.float32)

    # ConvTranspose2d(8,1,3,s=2,p=1,op=1): 14x14 -> 28x28 (+ scalar bias, sigmoid)
    m3, h3 = _deconv_dense_matrix(nrm(ks[6], (8, 1, 3, 3)), h2, 2, 1, 1)
    assert h3 == 28
    p["m3"] = jnp.asarray(m3, jnp.bfloat16)
    b3 = nrm(ks[7], (1, 1))
    p["b3"] = jnp.asarray(np.broadcast_to(b3, (1, 28 * 28)))  # pre-broadcast
    return p


if __name__ == "__main__":
    key = jax.random.PRNGKey(0)
    k_in, k_p = jax.random.split(key)

    encoded_space_dim = 4
    batch = 2

    x = jax.random.normal(k_in, (batch, encoded_space_dim), dtype=jnp.float32)
    params = init_params(k_p, encoded_space_dim)

    out = jax.jit(decoder_forward)(x, params)
    jax.block_until_ready(out)

    assert out.shape == (batch, 1, 28, 28), out.shape
    assert out.dtype == jnp.float32
    assert bool(jnp.all(jnp.isfinite(out)))
    print("KERNEL_OK")
</pallas_src>

<mosaic_0001>
module attributes {stable_mosaic.version = 11 : i64} {
  func.func @_decoder_kernel(%arg0: memref<2x4xf32, #tpu.memory_space<vmem>>, %arg1: memref<4x128xf32, #tpu.memory_space<vmem>>, %arg2: memref<1x128xf32, #tpu.memory_space<vmem>>, %arg3: memref<128x288xf32, #tpu.memory_space<vmem>>, %arg4: memref<1x288xf32, #tpu.memory_space<vmem>>, %arg5: memref<288x784xbf16, #tpu.memory_space<vmem>>, %arg6: memref<784x16xf32, #tpu.memory_space<vmem>>, %arg7: memref<16x784xf32, #tpu.memory_space<vmem>>, %arg8: memref<1x16xf32, #tpu.memory_space<vmem>>, %arg9: memref<1x16xf32, #tpu.memory_space<vmem>>, %arg10: memref<784x1568xbf16, #tpu.memory_space<vmem>>, %arg11: memref<1568x8xf32, #tpu.memory_space<vmem>>, %arg12: memref<8x1568xf32, #tpu.memory_space<vmem>>, %arg13: memref<1x8xf32, #tpu.memory_space<vmem>>, %arg14: memref<1x8xf32, #tpu.memory_space<vmem>>, %arg15: memref<1568x784xbf16, #tpu.memory_space<vmem>>, %arg16: memref<1x784xf32, #tpu.memory_space<vmem>>, %arg17: memref<2x784xf32, #tpu.memory_space<vmem>>) attributes {dimension_semantics = [], scalar_prefetch = 0 : i64, scratch_operands = 0 : i64, tpu.core_type = #tpu.core_type<tc>} {
    %c0 = arith.constant 0 : index
    %c0_0 = arith.constant 0 : index
    %0 = vector.load %arg0[%c0, %c0_0] : memref<2x4xf32, #tpu.memory_space<vmem>>, vector<2x4xf32>
    %c0_1 = arith.constant 0 : index
    %c0_2 = arith.constant 0 : index
    %1 = vector.load %arg1[%c0_1, %c0_2] : memref<4x128xf32, #tpu.memory_space<vmem>>, vector<4x128xf32>
    %cst = arith.constant dense<0.000000e+00> : vector<2x128xf32>
    %2 = tpu.matmul %0, %1, %cst {dimension_numbers = #tpu.dot_dimension_numbers<[1], [0], [0], [1], [0, 0, 1, 1], [], []>} : vector<2x4xf32>, vector<4x128xf32>, vector<2x128xf32> -> vector<2x128xf32>
    %c0_3 = arith.constant 0 : index
    %c0_4 = arith.constant 0 : index
    %3 = vector.load %arg2[%c0_3, %c0_4] : memref<1x128xf32, #tpu.memory_space<vmem>>, vector<1x128xf32>
    %4 = vector.broadcast %3 : vector<1x128xf32> to vector<2x128xf32>
    %5 = arith.addf %2, %4 : vector<2x128xf32>
    %cst_5 = arith.constant 0.000000e+00 : f32
    %6 = vector.broadcast %cst_5 : f32 to vector<2x128xf32>
    %7 = arith.maximumf %5, %6 : vector<2x128xf32>
    %c0_6 = arith.constant 0 : index
    %c0_7 = arith.constant 0 : index
    %8 = vector.load %arg3[%c0_6, %c0_7] : memref<128x288xf32, #tpu.memory_space<vmem>>, vector<128x288xf32>
    %cst_8 = arith.constant dense<0.000000e+00> : vector<2x288xf32>
    %9 = tpu.matmul %7, %8, %cst_8 {dimension_numbers = #tpu.dot_dimension_numbers<[1], [0], [0], [1], [0, 0, 1, 1], [], []>} : vector<2x128xf32>, vector<128x288xf32>, vector<2x288xf32> -> vector<2x288xf32>
    %c0_9 = arith.constant 0 : index
    %c0_10 = arith.constant 0 : index
    %10 = vector.load %arg4[%c0_9, %c0_10] : memref<1x288xf32, #tpu.memory_space<vmem>>, vector<1x288xf32>
    %11 = vector.broadcast %10 : vector<1x288xf32> to vector<2x288xf32>
    %12 = arith.addf %9, %11 : vector<2x288xf32>
    %cst_11 = arith.constant 0.000000e+00 : f32
    %13 = vector.broadcast %cst_11 : f32 to vector<2x288xf32>
    %14 = arith.maximumf %12, %13 : vector<2x288xf32>
    %15 = arith.truncf %14 : vector<2x288xf32> to vector<2x288xbf16>
    %c0_12 = arith.constant 0 : index
    %c0_13 = arith.constant 0 : index
    %16 = vector.load %arg5[%c0_12, %c0_13] : memref<288x784xbf16, #tpu.memory_space<vmem>>, vector<288x784xbf16>
    %cst_14 = arith.constant dense<0.000000e+00> : vector<2x784xf32>
    %17 = tpu.matmul %15, %16, %cst_14 {dimension_numbers = #tpu.dot_dimension_numbers<[1], [0], [0], [1], [0, 0, 1, 1], [], []>} : vector<2x288xbf16>, vector<288x784xbf16>, vector<2x784xf32> -> vector<2x784xf32>
    %cst_15 = arith.constant dense<0.000000e+00> : vector<784xf32>
    %18 = vector.multi_reduction <add>, %17, %cst_15 [0] : vector<2x784xf32> to vector<784xf32>
    %19 = vector.shape_cast %18 : vector<784xf32> to vector<1x784xf32>
    %20 = arith.mulf %17, %17 : vector<2x784xf32>
    %cst_16 = arith.constant dense<0.000000e+00> : vector<784xf32>
    %21 = vector.multi_reduction <add>, %20, %cst_16 [0] : vector<2x784xf32> to vector<784xf32>
    %22 = vector.shape_cast %21 : vector<784xf32> to vector<1x784xf32>
    %c0_17 = arith.constant 0 : index
    %c0_18 = arith.constant 0 : index
    %23 = vector.load %arg6[%c0_17, %c0_18] : memref<784x16xf32, #tpu.memory_space<vmem>>, vector<784x16xf32>
    %cst_19 = arith.constant dense<0.000000e+00> : vector<1x16xf32>
    %24 = tpu.matmul %19, %23, %cst_19 {dimension_numbers = #tpu.dot_dimension_numbers<[1], [0], [0], [1], [0, 0, 1, 1], [], []>} : vector<1x784xf32>, vector<784x16xf32>, vector<1x16xf32> -> vector<1x16xf32>
    %c0_20 = arith.constant 0 : index
    %c0_21 = arith.constant 0 : index
    %25 = vector.load %arg6[%c0_20, %c0_21] : memref<784x16xf32, #tpu.memory_space<vmem>>, vector<784x16xf32>
    %cst_22 = arith.constant dense<0.000000e+00> : vector<1x16xf32>
    %26 = tpu.matmul %22, %25, %cst_22 {dimension_numbers = #tpu.dot_dimension_numbers<[1], [0], [0], [1], [0, 0, 1, 1], [], []>} : vector<1x784xf32>, vector<784x16xf32>, vector<1x16xf32> -> vector<1x16xf32>
    %cst_23 = arith.constant 0.0102040814 : f32
    %27 = vector.broadcast %cst_23 : f32 to vector<1x16xf32>
    %28 = arith.mulf %24, %27 : vector<1x16xf32>
    %cst_24 = arith.constant 0.0102040814 : f32
    %29 = vector.broadcast %cst_24 : f32 to vector<1x16xf32>
    %30 = arith.mulf %26, %29 : vector<1x16xf32>
    %31 = arith.mulf %28, %28 : vector<1x16xf32>
    %32 = arith.subf %30, %31 : vector<1x16xf32>
    %c0_25 = arith.constant 0 : index
    %c0_26 = arith.constant 0 : index
    %33 = vector.load %arg8[%c0_25, %c0_26] : memref<1x16xf32, #tpu.memory_space<vmem>>, vector<1x16xf32>
    %cst_27 = arith.constant 9.99999974E-6 : f32
    %34 = vector.broadcast %cst_27 : f32 to vector<1x16xf32>
    %35 = arith.addf %32, %34 : vector<1x16xf32>
    %36 = math.rsqrt %35 : vector<1x16xf32>
    %37 = arith.mulf %33, %36 : vector<1x16xf32>
    %c0_28 = arith.constant 0 : index
    %c0_29 = arith.constant 0 : index
    %38 = vector.load %arg9[%c0_28, %c0_29] : memref<1x16xf32, #tpu.memory_space<vmem>>, vector<1x16xf32>
    %39 = arith.mulf %28, %37 : vector<1x16xf32>
    %40 = arith.subf %38, %39 : vector<1x16xf32>
    %c0_30 = arith.constant 0 : index
    %c0_31 = arith.constant 0 : index
    %41 = vector.load %arg7[%c0_30, %c0_31] : memref<16x784xf32, #tpu.memory_space<vmem>>, vector<16x784xf32>
    %cst_32 = arith.constant dense<0.000000e+00> : vector<1x784xf32>
    %42 = tpu.matmul %37, %41, %cst_32 {dimension_numbers = #tpu.dot_dimension_numbers<[1], [0], [0], [1], [0, 0, 1, 1], [], []>} : vector<1x16xf32>, vector<16x784xf32>, vector<1x784xf32> -> vector<1x784xf32>
    %c0_33 = arith.constant 0 : index
    %c0_34 = arith.constant 0 : index
    %43 = vector.load %arg7[%c0_33, %c0_34] : memref<16x784xf32, #tpu.memory_space<vmem>>, vector<16x784xf32>
    %cst_35 = arith.constant dense<0.000000e+00> : vector<1x784xf32>
    %44 = tpu.matmul %40, %43, %cst_35 {dimension_numbers = #tpu.dot_dimension_numbers<[1], [0], [0], [1], [0, 0, 1, 1], [], []>} : vector<1x16xf32>, vector<16x784xf32>, vector<1x784xf32> -> vector<1x784xf32>
    %45 = vector.broadcast %42 : vector<1x784xf32> to vector<2x784xf32>
    %46 = arith.mulf %17, %45 : vector<2x784xf32>
    %47 = vector.broadcast %44 : vector<1x784xf32> to vector<2x784xf32>
    %48 = arith.addf %46, %47 : vector<2x784xf32>
    %cst_36 = arith.constant 0.000000e+00 : f32
    %49 = vector.broadcast %cst_36 : f32 to vector<2x784xf32>
    %50 = arith.maximumf %48, %49 : vector<2x784xf32>
    %51 = arith.truncf %50 : vector<2x784xf32> to vector<2x784xbf16>
    %c0_37 = arith.constant 0 : index
    %c0_38 = arith.constant 0 : index
    %52 = vector.load %arg10[%c0_37, %c0_38] : memref<784x1568xbf16, #tpu.memory_space<vmem>>, vector<784x1568xbf16>
    %cst_39 = arith.constant dense<0.000000e+00> : vector<2x1568xf32>
    %53 = tpu.matmul %51, %52, %cst_39 {dimension_numbers = #tpu.dot_dimension_numbers<[1], [0], [0], [1], [0, 0, 1, 1], [], []>} : vector<2x784xbf16>, vector<784x1568xbf16>, vector<2x1568xf32> -> vector<2x1568xf32>
    %cst_40 = arith.constant dense<0.000000e+00> : vector<1568xf32>
    %54 = vector.multi_reduction <add>, %53, %cst_40 [0] : vector<2x1568xf32> to vector<1568xf32>
    %55 = vector.shape_cast %54 : vector<1568xf32> to vector<1x1568xf32>
    %56 = arith.mulf %53, %53 : vector<2x1568xf32>
    %cst_41 = arith.constant dense<0.000000e+00> : vector<1568xf32>
    %57 = vector.multi_reduction <add>, %56, %cst_41 [0] : vector<2x1568xf32> to vector<1568xf32>
    %58 = vector.shape_cast %57 : vector<1568xf32> to vector<1x1568xf32>
    %c0_42 = arith.constant 0 : index
    %c0_43 = arith.constant 0 : index
    %59 = vector.load %arg11[%c0_42, %c0_43] : memref<1568x8xf32, #tpu.memory_space<vmem>>, vector<1568x8xf32>
    %cst_44 = arith.constant dense<0.000000e+00> : vector<1x8xf32>
    %60 = tpu.matmul %55, %59, %cst_44 {dimension_numbers = #tpu.dot_dimension_numbers<[1], [0], [0], [1], [0, 0, 1, 1], [], []>} : vector<1x1568xf32>, vector<1568x8xf32>, vector<1x8xf32> -> vector<1x8xf32>
    %c0_45 = arith.constant 0 : index
    %c0_46 = arith.constant 0 : index
    %61 = vector.load %arg11[%c0_45, %c0_46] : memref<1568x8xf32, #tpu.memory_space<vmem>>, vector<1568x8xf32>
    %cst_47 = arith.constant dense<0.000000e+00> : vector<1x8xf32>
    %62 = tpu.matmul %58, %61, %cst_47 {dimension_numbers = #tpu.dot_dimension_numbers<[1], [0], [0], [1], [0, 0, 1, 1], [], []>} : vector<1x1568xf32>, vector<1568x8xf32>, vector<1x8xf32> -> vector<1x8xf32>
    %cst_48 = arith.constant 0.00255102036 : f32
    %63 = vector.broadcast %cst_48 : f32 to vector<1x8xf32>
    %64 = arith.mulf %60, %63 : vector<1x8xf32>
    %cst_49 = arith.constant 0.00255102036 : f32
    %65 = vector.broadcast %cst_49 : f32 to vector<1x8xf32>
    %66 = arith.mulf %62, %65 : vector<1x8xf32>
    %67 = arith.mulf %64, %64 : vector<1x8xf32>
    %68 = arith.subf %66, %67 : vector<1x8xf32>
    %c0_50 = arith.constant 0 : index
    %c0_51 = arith.constant 0 : index
    %69 = vector.load %arg13[%c0_50, %c0_51] : memref<1x8xf32, #tpu.memory_space<vmem>>, vector<1x8xf32>
    %cst_52 = arith.constant 9.99999974E-6 : f32
    %70 = vector.broadcast %cst_52 : f32 to vector<1x8xf32>
    %71 = arith.addf %68, %70 : vector<1x8xf32>
    %72 = math.rsqrt %71 : vector<1x8xf32>
    %73 = arith.mulf %69, %72 : vector<1x8xf32>
    %c0_53 = arith.constant 0 : index
    %c0_54 = arith.constant 0 : index
    %74 = vector.load %arg14[%c0_53, %c0_54] : memref<1x8xf32, #tpu.memory_space<vmem>>, vector<1x8xf32>
    %75 = arith.mulf %64, %73 : vector<1x8xf32>
    %76 = arith.subf %74, %75 : vector<1x8xf32>
    %c0_55 = arith.constant 0 : index
    %c0_56 = arith.constant 0 : index
    %77 = vector.load %arg12[%c0_55, %c0_56] : memref<8x1568xf32, #tpu.memory_space<vmem>>, vector<8x1568xf32>
    %cst_57 = arith.constant dense<0.000000e+00> : vector<1x1568xf32>
    %78 = tpu.matmul %73, %77, %cst_57 {dimension_numbers = #tpu.dot_dimension_numbers<[1], [0], [0], [1], [0, 0, 1, 1], [], []>} : vector<1x8xf32>, vector<8x1568xf32>, vector<1x1568xf32> -> vector<1x1568xf32>
    %c0_58 = arith.constant 0 : index
    %c0_59 = arith.constant 0 : index
    %79 = vector.load %arg12[%c0_58, %c0_59] : memref<8x1568xf32, #tpu.memory_space<vmem>>, vector<8x1568xf32>
    %cst_60 = arith.constant dense<0.000000e+00> : vector<1x1568xf32>
    %80 = tpu.matmul %76, %79, %cst_60 {dimension_numbers = #tpu.dot_dimension_numbers<[1], [0], [0], [1], [0, 0, 1, 1], [], []>} : vector<1x8xf32>, vector<8x1568xf32>, vector<1x1568xf32> -> vector<1x1568xf32>
    %81 = vector.broadcast %78 : vector<1x1568xf32> to vector<2x1568xf32>
    %82 = arith.mulf %53, %81 : vector<2x1568xf32>
    %83 = vector.broadcast %80 : vector<1x1568xf32> to vector<2x1568xf32>
    %84 = arith.addf %82, %83 : vector<2x1568xf32>
    %cst_61 = arith.constant 0.000000e+00 : f32
    %85 = vector.broadcast %cst_61 : f32 to vector<2x1568xf32>
    %86 = arith.maximumf %84, %85 : vector<2x1568xf32>
    %87 = arith.truncf %86 : vector<2x1568xf32> to vector<2x1568xbf16>
    %c0_62 = arith.constant 0 : index
    %c0_63 = arith.constant 0 : index
    %88 = vector.load %arg15[%c0_62, %c0_63] : memref<1568x784xbf16, #tpu.memory_space<vmem>>, vector<1568x784xbf16>
    %cst_64 = arith.constant dense<0.000000e+00> : vector<2x784xf32>
    %89 = tpu.matmul %87, %88, %cst_64 {dimension_numbers = #tpu.dot_dimension_numbers<[1], [0], [0], [1], [0, 0, 1, 1], [], []>} : vector<2x1568xbf16>, vector<1568x784xbf16>, vector<2x784xf32> -> vector<2x784xf32>
    %c0_65 = arith.constant 0 : index
    %c0_66 = arith.constant 0 : index
    %90 = vector.load %arg16[%c0_65, %c0_66] : memref<1x784xf32, #tpu.memory_space<vmem>>, vector<1x784xf32>
    %91 = vector.broadcast %90 : vector<1x784xf32> to vector<2x784xf32>
    %92 = arith.addf %89, %91 : vector<2x784xf32>
    %cst_67 = arith.constant 0.000000e+00 : f32
    %93 = vector.broadcast %cst_67 : f32 to vector<2x784xf32>
    %94 = arith.subf %93, %92 : vector<2x784xf32>
    %95 = math.exp %94 : vector<2x784xf32>
    %cst_68 = arith.constant 1.000000e+00 : f32
    %96 = vector.broadcast %cst_68 : f32 to vector<2x784xf32>
    %97 = arith.addf %96, %95 : vector<2x784xf32>
    %98 = tpu.reciprocal %97 {approx = true} : vector<2x784xf32> -> vector<2x784xf32>
    %c0_69 = arith.constant 0 : index
    %c0_70 = arith.constant 0 : index
    %99 = vector.load %arg17[%c0_69, %c0_70] : memref<2x784xf32, #tpu.memory_space<vmem>>, vector<2x784xf32>
    tpu.vector_store %arg17[%c0_69, %c0_70], %98 {strides = array<i32>} : memref<2x784xf32, #tpu.memory_space<vmem>>, vector<2x784xf32>,
    return
  }
}

</mosaic_0001>

<llo_original>
// kernel: decoder_forward.1
$region0: #{decoder_forward.1}
  #allocation0 [shape = 'u32[]', space=smem, size = 0x4, offset = 0x4, fixed_abs, tag = 'smem constant byte address 0x4 - core index']
  #allocation1 [shape = 'u32[72,128]{1,0:T(1,128)}', space=vmem, size = 0x9000, scoped, tag = 'internal scratch']
  %s0 = inlined_call_operand.vmem [shape: f32[2,4], index: 0, kind: input, shape index: {}]
  %s1 = inlined_call_operand.vmem [shape: f32[4,128], index: 1, kind: input, shape index: {}]
  %s2 = inlined_call_operand.vmem [shape: f32[1,128], index: 2, kind: input, shape index: {}]
  %s3 = inlined_call_operand.vmem [shape: f32[128,288], index: 3, kind: input, shape index: {}]
  %s4 = inlined_call_operand.vmem [shape: f32[1,288], index: 4, kind: input, shape index: {}]
  %s5 = inlined_call_operand.vmem [shape: bf16[288,784], index: 5, kind: input, shape index: {}]
  %s6 = inlined_call_operand.vmem [shape: f32[784,16], index: 6, kind: input, shape index: {}]
  %s7 = inlined_call_operand.vmem [shape: f32[16,784], index: 7, kind: input, shape index: {}]
  %s8 = inlined_call_operand.vmem [shape: f32[1,16], index: 8, kind: input, shape index: {}]
  %s9 = inlined_call_operand.vmem [shape: f32[1,16], index: 9, kind: input, shape index: {}]
  %s10 = inlined_call_operand.vmem [shape: bf16[784,1568], index: 10, kind: input, shape index: {}]
  %s11 = inlined_call_operand.vmem [shape: f32[1568,8], index: 11, kind: input, shape index: {}]
  %s12 = inlined_call_operand.vmem [shape: f32[8,1568], index: 12, kind: input, shape index: {}]
  %s13 = inlined_call_operand.vmem [shape: f32[1,8], index: 13, kind: input, shape index: {}]
  %s14 = inlined_call_operand.vmem [shape: f32[1,8], index: 14, kind: input, shape index: {}]
  %s15 = inlined_call_operand.vmem [shape: bf16[1568,784], index: 15, kind: input, shape index: {}]
  %s16 = inlined_call_operand.vmem [shape: f32[1,784], index: 16, kind: input, shape index: {}]
  %s17 = inlined_call_operand.vmem [shape: f32[2,784], index: 17, kind: output, shape index: {}]
  %s18 = sld [smem:[#allocation0]]
  $region78: #{decoder_forward.1} parent=0
    _
  %s20 = ssub.s32 1, %s18
  %s21 = scalar_select 0, %s20, %s18
  // Predicated region
  $region2: #{decoder_forward.1} parent=0 // pred_check
    _
  $region3: #{decoder_forward.1} parent=0 // pred_check_branch
    %23 = sbr.rel (0) target = $region5
  $region4: #{decoder_forward.1} parent=0 // pred_region
    _
  $region5: #{decoder_forward.1} parent=0 // pred_fallthru
    _
  // Predicated region
  $region6: #{decoder_forward.1} parent=0 // pred_check
    _
  $region7: #{decoder_forward.1} parent=0 // pred_check_branch
    %25 = sbr.rel (0) target = $region9
  $region8: #{decoder_forward.1} parent=0 // pred_region
    _
  $region9: #{decoder_forward.1} parent=0 // pred_fallthru
    _
  // Predicated region
  $region10: #{decoder_forward.1} parent=0 // pred_check
    _
  $region11: #{decoder_forward.1} parent=0 // pred_check_branch
    %27 = sbr.rel (0) target = $region13
  $region12: #{decoder_forward.1} parent=0 // pred_region
    _
  $region13: #{decoder_forward.1} parent=0 // pred_fallthru
    _
  // Predicated region
  $region14: #{decoder_forward.1} parent=0 // pred_check
    _
  $region15: #{decoder_forward.1} parent=0 // pred_check_branch
    %29 = sbr.rel (0) target = $region17
  $region16: #{decoder_forward.1} parent=0 // pred_region
    _
  $region17: #{decoder_forward.1} parent=0 // pred_fallthru
    _
  // Predicated region
  $region18: #{decoder_forward.1} parent=0 // pred_check
    _
  $region19: #{decoder_forward.1} parent=0 // pred_check_branch
    %31 = sbr.rel (0) target = $region21
  $region20: #{decoder_forward.1} parent=0 // pred_region
    _
  $region21: #{decoder_forward.1} parent=0 // pred_fallthru
    _
  // Predicated region
  $region22: #{decoder_forward.1} parent=0 // pred_check
    _
  $region23: #{decoder_forward.1} parent=0 // pred_check_branch
    %33 = sbr.rel (0) target = $region25
  $region24: #{decoder_forward.1} parent=0 // pred_region
    _
  $region25: #{decoder_forward.1} parent=0 // pred_fallthru
    _
  // Predicated region
  $region26: #{decoder_forward.1} parent=0 // pred_check
    _
  $region27: #{decoder_forward.1} parent=0 // pred_check_branch
    %35 = sbr.rel (0) target = $region29
  $region28: #{decoder_forward.1} parent=0 // pred_region
    _
  $region29: #{decoder_forward.1} parent=0 // pred_fallthru
    _
  // Predicated region
  $region30: #{decoder_forward.1} parent=0 // pred_check
    _
  $region31: #{decoder_forward.1} parent=0 // pred_check_branch
    %37 = sbr.rel (0) target = $region33
  $region32: #{decoder_forward.1} parent=0 // pred_region
    _
  $region33: #{decoder_forward.1} parent=0 // pred_fallthru
    _
  // Predicated region
  $region34: #{decoder_forward.1} parent=0 // pred_check
    _
  $region35: #{decoder_forward.1} parent=0 // pred_check_branch
    %39 = sbr.rel (0) target = $region37
  $region36: #{decoder_forward.1} parent=0 // pred_region
    _
  $region37: #{decoder_forward.1} parent=0 // pred_fallthru
    _
  // Predicated region
  $region38: #{decoder_forward.1} parent=0 // pred_check
    _
  $region39: #{decoder_forward.1} parent=0 // pred_check_branch
    %41 = sbr.rel (0) target = $region41
  $region40: #{decoder_forward.1} parent=0 // pred_region
    _
  $region41: #{decoder_forward.1} parent=0 // pred_fallthru
    _
  // Predicated region
  $region42: #{decoder_forward.1} parent=0 // pred_check
    _
  $region43: #{decoder_forward.1} parent=0 // pred_check_branch
    %43 = sbr.rel (0) target = $region45
  $region44: #{decoder_forward.1} parent=0 // pred_region
    _
  $region45: #{decoder_forward.1} parent=0 // pred_fallthru
    _
  // Predicated region
  $region46: #{decoder_forward.1} parent=0 // pred_check
    _
  $region47: #{decoder_forward.1} parent=0 // pred_check_branch
    %45 = sbr.rel (0) target = $region49
  $region48: #{decoder_forward.1} parent=0 // pred_region
    _
  $region49: #{decoder_forward.1} parent=0 // pred_fallthru
    _
  // Predicated region
  $region50: #{decoder_forward.1} parent=0 // pred_check
    _
  $region51: #{decoder_forward.1} parent=0 // pred_check_branch
    %47 = sbr.rel (0) target = $region53
  $region52: #{decoder_forward.1} parent=0 // pred_region
    _
  $region53: #{decoder_forward.1} parent=0 // pred_fallthru
    _
  // Predicated region
  $region54: #{decoder_forward.1} parent=0 // pred_check
    _
  $region55: #{decoder_forward.1} parent=0 // pred_check_branch
    %49 = sbr.rel (0) target = $region57
  $region56: #{decoder_forward.1} parent=0 // pred_region
    _
  $region57: #{decoder_forward.1} parent=0 // pred_fallthru
    _
  // Predicated region
  $region58: #{decoder_forward.1} parent=0 // pred_check
    _
  $region59: #{decoder_forward.1} parent=0 // pred_check_branch
    %51 = sbr.rel (0) target = $region61
  $region60: #{decoder_forward.1} parent=0 // pred_region
    _
  $region61: #{decoder_forward.1} parent=0 // pred_fallthru
    _
  // Predicated region
  $region62: #{decoder_forward.1} parent=0 // pred_check
    _
  $region63: #{decoder_forward.1} parent=0 // pred_check_branch
    %53 = sbr.rel (0) target = $region65
  $region64: #{decoder_forward.1} parent=0 // pred_region
    _
  $region65: #{decoder_forward.1} parent=0 // pred_fallthru
    _
  // Predicated region
  $region66: #{decoder_forward.1} parent=0 // pred_check
    _
  $region67: #{decoder_forward.1} parent=0 // pred_check_branch
    %55 = sbr.rel (0) target = $region69
  $region68: #{decoder_forward.1} parent=0 // pred_region
    _
  $region69: #{decoder_forward.1} parent=0 // pred_fallthru
    _
  %v57 = vld [vmem:[%s0] sm:$0x3]
  %v58 = vld [vmem:[%s1] sm:$0xf]
  %v59 = vld [vmem:[%s2] sm:$0x1]
  %v61 = vperm.slane %v59, 0
  %vm63 = vcmask 31744
  %v65 = vsel %vm63, %v57, 0
  %vm67 = vcmask 1043456
  %v69 = vsel %vm67, %v58, 0
  %71 = vmatpush.msra.mxu0 0.0
  %72 = vmatpush.msra.mxu0 0.0
  %73 = vmatpush.msra.mxu0 0.0
  %74 = vmatpush.msra.mxu0 0.0
  %75 = vmatpush.msra.mxu0 0.0
  %76 = vmatpush.msra.mxu0 0.0
  %77 = vmatpush.msra.mxu0 0.0
  %78 = vmatpush.msra.mxu0 0.0
  %79 = vmatpush.msra.mxu0 0.0
  %80 = vmatpush.msra.mxu0 0.0
  %81 = vmatpush.msra.mxu0 0.0
  %82 = vmatpush.msra.mxu0 0.0
  %83 = vmatpush.msra.mxu0 0.0
  %84 = vmatpush.msra.mxu0 0.0
  %85 = vmatpush.msra.mxu0 0.0
  %86 = vmatpush.msra.mxu0 %v69
  %87 = vmatmul.f32.gmra.mxu0 %v65
  %v88 = vpop.f32.mrf.mxu0
  %v89 = vadd.f32 %v61, %v88
  %90 = vdwg.mxu0
  %v91 = vmax.f32 %v89, 0.0
  %v92 = vld [vmem:[%s3] sm:$0xff]
  %v93 = vld [vmem:[%s3 + $0x8] sm:$0xff]
  %v94 = vld [vmem:[%s3 + $0x10] sm:$0xff]
  %v95 = vld [vmem:[%s3 + $0x18] sm:$0xff]
  %v96 = vld [vmem:[%s3 + $0x20] sm:$0xff]
  %v97 = vld [vmem:[%s3 + $0x28] sm:$0xff]
  %v98 = vld [vmem:[%s3 + $0x30] sm:$0xff]
  %v99 = vld [vmem:[%s3 + $0x38] sm:$0xff]
  %v100 = vld [vmem:[%s3 + $0x40] sm:$0xff]
  %v101 = vld [vmem:[%s3 + $0x48] sm:$0xff]
  %v102 = vld [vmem:[%s3 + $0x50] sm:$0xff]
  %v103 = vld [vmem:[%s3 + $0x58] sm:$0xff]
  %v104 = vld [vmem:[%s3 + $0x60] sm:$0xff]
  %v105 = vld [vmem:[%s3 + $0x68] sm:$0xff]
  %v106 = vld [vmem:[%s3 + $0x70] sm:$0xff]
  %v107 = vld [vmem:[%s3 + $0x78] sm:$0xff]
  %v108 = vld [vmem:[%s3 + $0x80] sm:$0xff]
  %v109 = vld [vmem:[%s3 + $0x88] sm:$0xff]
  %v110 = vld [vmem:[%s3 + $0x90] sm:$0xff]
  %v111 = vld [vmem:[%s3 + $0x98] sm:$0xff]
  %v112 = vld [vmem:[%s3 + $0xa0] sm:$0xff]
  %v113 = vld [vmem:[%s3 + $0xa8] sm:$0xff]
  %v114 = vld [vmem:[%s3 + $0xb0] sm:$0xff]
  %v115 = vld [vmem:[%s3 + $0xb8] sm:$0xff]
  %v116 = vld [vmem:[%s3 + $0xc0] sm:$0xff]
  %v117 = vld [vmem:[%s3 + $0xc8] sm:$0xff]
  %v118 = vld [vmem:[%s3 + $0xd0] sm:$0xff]
  %v119 = vld [vmem:[%s3 + $0xd8] sm:$0xff]
  %v120 = vld [vmem:[%s3 + $0xe0] sm:$0xff]
  %v121 = vld [vmem:[%s3 + $0xe8] sm:$0xff]
  %v122 = vld [vmem:[%s3 + $0xf0] sm:$0xff]
  %v123 = vld [vmem:[%s3 + $0xf8] sm:$0xff]
  %v124 = vld [vmem:[%s3 + $0x100] sm:$0xff]
  %v125 = vld [vmem:[%s3 + $0x108] sm:$0xff]
  %v126 = vld [vmem:[%s3 + $0x110] sm:$0xff]
  %v127 = vld [vmem:[%s3 + $0x118] sm:$0xff]
  %v128 = vld [vmem:[%s3 + $0x120] sm:$0xff]
  %v129 = vld [vmem:[%s3 + $0x128] sm:$0xff]
  %v130 = vld [vmem:[%s3 + $0x130] sm:$0xff]
  %v131 = vld [vmem:[%s3 + $0x138] sm:$0xff]
  %v132 = vld [vmem:[%s3 + $0x140] sm:$0xff]
  %v133 = vld [vmem:[%s3 + $0x148] sm:$0xff]
  %v134 = vld [vmem:[%s3 + $0x150] sm:$0xff]
  %v135 = vld [vmem:[%s3 + $0x158] sm:$0xff]
  %v136 = vld [vmem:[%s3 + $0x160] sm:$0xff]
  %v137 = vld [vmem:[%s3 + $0x168] sm:$0xff]
  %v138 = vld [vmem:[%s3 + $0x170] sm:$0xff]
  %v139 = vld [vmem:[%s3 + $0x178] sm:$0xff]
  %v140 = vld [vmem:[%s4] sm:$0x7]
  %v142 = vperm.slane %v140, 0
  %v143 = vperm.slane %v140, 1
  %v144 = vperm.slane %v140, 2
  %148 = vmatpush.msra.mxu0 %v137
  %149 = vmatpush.msra.mxu0 %v134
  %150 = vmatpush.msra.mxu0 %v131
  %151 = vmatpush.msra.mxu0 %v128
  %152 = vmatpush.msra.mxu0 %v125
  %153 = vmatpush.msra.mxu0 %v122
  %154 = vmatpush.msra.mxu0 %v119
  %155 = vmatpush.msra.mxu0 %v116
  %156 = vmatpush.msra.mxu0 %v113
  %157 = vmatpush.msra.mxu0 %v110
  %158 = vmatpush.msra.mxu0 %v107
  %159 = vmatpush.msra.mxu0 %v104
  %160 = vmatpush.msra.mxu0 %v101
  %161 = vmatpush.msra.mxu0 %v98
  %162 = vmatpush.msra.mxu0 %v95
  %163 = vmatpush.msra.mxu0 %v92
  %164 = vmatmul.f32.gmra.mxu0 %v91
  %v165 = vpop.f32.mrf.mxu0
  %v166 = vadd.f32 %v142, %v165
  %167 = vdwg.mxu0
  %168 = vmatpush.msra.mxu0 %v138
  %169 = vmatpush.msra.mxu0 %v135
  %170 = vmatpush.msra.mxu0 %v132
  %171 = vmatpush.msra.mxu0 %v129
  %172 = vmatpush.msra.mxu0 %v126
  %173 = vmatpush.msra.mxu0 %v123
  %174 = vmatpush.msra.mxu0 %v120
  %175 = vmatpush.msra.mxu0 %v117
  %176 = vmatpush.msra.mxu0 %v114
  %177 = vmatpush.msra.mxu0 %v111
  %178 = vmatpush.msra.mxu0 %v108
  %179 = vmatpush.msra.mxu0 %v105
  %180 = vmatpush.msra.mxu0 %v102
  %181 = vmatpush.msra.mxu0 %v99
  %182 = vmatpush.msra.mxu0 %v96
  %183 = vmatpush.msra.mxu0 %v93
  %184 = vmatmul.f32.gmra.mxu0 %v91
  %v185 = vpop.f32.mrf.mxu0
  %v186 = vadd.f32 %v143, %v185
  %187 = vdwg.mxu0
  %188 = vmatpush.msra.mxu0 %v139
  %189 = vmatpush.msra.mxu0 %v136
  %190 = vmatpush.msra.mxu0 %v133
  %191 = vmatpush.msra.mxu0 %v130
  %192 = vmatpush.msra.mxu0 %v127
  %193 = vmatpush.msra.mxu0 %v124
  %194 = vmatpush.msra.mxu0 %v121
  %195 = vmatpush.msra.mxu0 %v118
  %196 = vmatpush.msra.mxu0 %v115
  %197 = vmatpush.msra.mxu0 %v112
  %198 = vmatpush.msra.mxu0 %v109
  %199 = vmatpush.msra.mxu0 %v106
  %200 = vmatpush.msra.mxu0 %v103
  %201 = vmatpush.msra.mxu0 %v100
  %202 = vmatpush.msra.mxu0 %v97
  %203 = vmatpush.msra.mxu0 %v94
  %204 = vmatmul.f32.gmra.mxu0 %v91
  %v205 = vpop.f32.mrf.mxu0
  %v206 = vadd.f32 %v144, %v205
  %207 = vdwg.mxu0
  %v208 = vmax.f32 %v166, 0.0
  %v209 = vmax.f32 %v186, 0.0
  %v210 = vmax.f32 %v206, 0.0
  %v211 = vpack.c.bf16 %v208, %v208
  %v212 = vpack.c.bf16 %v209, %v209
  %v213 = vpack.c.bf16 %v210, %v210
  %v214 = vld [vmem:[%s5] sm:$0xff]
  %v215 = vld [vmem:[%s5 + $0x8] sm:$0xff]
  %v216 = vld [vmem:[%s5 + $0x10] sm:$0xff]
  %v217 = vld [vmem:[%s5 + $0x18] sm:$0xf]
  %v218 = vld [vmem:[%s5 + $0x1c] sm:$0xff]
  %v219 = vld [vmem:[%s5 + $0x24] sm:$0xff]
  %v220 = vld [vmem:[%s5 + $0x2c] sm:$0xff]
  %v221 = vld [vmem:[%s5 + $0x34] sm:$0xf]
  %v222 = vld [vmem:[%s5 + $0x38] sm:$0xff]
  %v223 = vld [vmem:[%s5 + $0x40] sm:$0xff]
  %v224 = vld [vmem:[%s5 + $0x48] sm:$0xff]
  %v225 = vld [vmem:[%s5 + $0x50] sm:$0xf]
  %v226 = vld [vmem:[%s5 + $0x54] sm:$0xff]
  %v227 = vld [vmem:[%s5 + $0x5c] sm:$0xff]
  %v228 = vld [vmem:[%s5 + $0x64] sm:$0xff]
  %v229 = vld [vmem:[%s5 + $0x6c] sm:$0xf]
  %v230 = vld [vmem:[%s5 + $0x70] sm:$0xff]
  %v231 = vld [vmem:[%s5 + $0x78] sm:$0xff]
  %v232 = vld [vmem:[%s5 + $0x80] sm:$0xff]
  %v233 = vld [vmem:[%s5 + $0x88] sm:$0xf]
  %v234 = vld [vmem:[%s5 + $0x8c] sm:$0xff]
  %v235 = vld [vmem:[%s5 + $0x94] sm:$0xff]
  %v236 = vld [vmem:[%s5 + $0x9c] sm:$0xff]
  %v237 = vld [vmem:[%s5 + $0xa4] sm:$0xf]
  %v238 = vld [vmem:[%s5 + $0xa8] sm:$0xff]
  %v239 = vld [vmem:[%s5 + $0xb0] sm:$0xff]
  %v240 = vld [vmem:[%s5 + $0xb8] sm:$0xff]
  %v241 = vld [vmem:[%s5 + $0xc0] sm:$0xf]
  %v242 = vld [vmem:[%s5 + $0xc4] sm:$0xff]
  %v243 = vld [vmem:[%s5 + $0xcc] sm:$0xff]
  %v244 = vld [vmem:[%s5 + $0xd4] sm:$0xff]
  %v245 = vld [vmem:[%s5 + $0xdc] sm:$0xf]
  %v246 = vld [vmem:[%s5 + $0xe0] sm:$0xff]
  %v247 = vld [vmem:[%s5 + $0xe8] sm:$0xff]
  %v248 = vld [vmem:[%s5 + $0xf0] sm:$0xff]
  %v249 = vld [vmem:[%s5 + $0xf8] sm:$0xf]
  %v250 = vld [vmem:[%s5 + $0xfc] sm:$0xff]
  %v251 = vld [vmem:[%s5 + $0x104] sm:$0xff]
  %v252 = vld [vmem:[%s5 + $0x10c] sm:$0xff]
  %v253 = vld [vmem:[%s5 + $0x114] sm:$0xf]
  %v254 = vld [vmem:[%s5 + $0x118] sm:$0xff]
  %v255 = vld [vmem:[%s5 + $0x120] sm:$0xff]
  %v256 = vld [vmem:[%s5 + $0x128] sm:$0xff]
  %v257 = vld [vmem:[%s5 + $0x130] sm:$0xf]
  %v258 = vld [vmem:[%s5 + $0x134] sm:$0xff]
  %v259 = vld [vmem:[%s5 + $0x13c] sm:$0xff]
  %v260 = vld [vmem:[%s5 + $0x144] sm:$0xff]
  %v261 = vld [vmem:[%s5 + $0x14c] sm:$0xf]
  %v262 = vld [vmem:[%s5 + $0x150] sm:$0xff]
  %v263 = vld [vmem:[%s5 + $0x158] sm:$0xff]
  %v264 = vld [vmem:[%s5 + $0x160] sm:$0xff]
  %v265 = vld [vmem:[%s5 + $0x168] sm:$0xf]
  %v266 = vld [vmem:[%s5 + $0x16c] sm:$0xff]
  %v267 = vld [vmem:[%s5 + $0x174] sm:$0xff]
  %v268 = vld [vmem:[%s5 + $0x17c] sm:$0xff]
  %v269 = vld [vmem:[%s5 + $0x184] sm:$0xf]
  %v270 = vld [vmem:[%s5 + $0x188] sm:$0xff]
  %v271 = vld [vmem:[%s5 + $0x190] sm:$0xff]
  %v272 = vld [vmem:[%s5 + $0x198] sm:$0xff]
  %v273 = vld [vmem:[%s5 + $0x1a0] sm:$0xf]
  %v274 = vld [vmem:[%s5 + $0x1a4] sm:$0xff]
  %v275 = vld [vmem:[%s5 + $0x1ac] sm:$0xff]
  %v276 = vld [vmem:[%s5 + $0x1b4] sm:$0xff]
  %v277 = vld [vmem:[%s5 + $0x1bc] sm:$0xf]
  %v278 = vld [vmem:[%s5 + $0x1c0] sm:$0xff]
  %v279 = vld [vmem:[%s5 + $0x1c8] sm:$0xff]
  %v280 = vld [vmem:[%s5 + $0x1d0] sm:$0xff]
  %v281 = vld [vmem:[%s5 + $0x1d8] sm:$0xf]
  %v282 = vld [vmem:[%s5 + $0x1dc] sm:$0xff]
  %v283 = vld [vmem:[%s5 + $0x1e4] sm:$0xff]
  %v284 = vld [vmem:[%s5 + $0x1ec] sm:$0xff]
  %v285 = vld [vmem:[%s5 + $0x1f4] sm:$0xf]
  %v286 = vld [vmem:[%s5 + $0x1f8] sm:$0xff]
  %v287 = vld [vmem:[%s5 + $0x200] sm:$0xff]
  %v288 = vld [vmem:[%s5 + $0x208] sm:$0xff]
  %v289 = vld [vmem:[%s5 + $0x210] sm:$0xf]
  %v290 = vld [vmem:[%s5 + $0x214] sm:$0xff]
  %v291 = vld [vmem:[%s5 + $0x21c] sm:$0xff]
  %v292 = vld [vmem:[%s5 + $0x224] sm:$0xff]
  %v293 = vld [vmem:[%s5 + $0x22c] sm:$0xf]
  %v294 = vld [vmem:[%s5 + $0x230] sm:$0xff]
  %v295 = vld [vmem:[%s5 + $0x238] sm:$0xff]
  %v296 = vld [vmem:[%s5 + $0x240] sm:$0xff]
  %v297 = vld [vmem:[%s5 + $0x248] sm:$0xf]
  %v298 = vld [vmem:[%s5 + $0x24c] sm:$0xff]
  %v299 = vld [vmem:[%s5 + $0x254] sm:$0xff]
  %v300 = vld [vmem:[%s5 + $0x25c] sm:$0xff]
  %v301 = vld [vmem:[%s5 + $0x264] sm:$0xf]
  %v302 = vld [vmem:[%s5 + $0x268] sm:$0xff]
  %v303 = vld [vmem:[%s5 + $0x270] sm:$0xff]
  %v304 = vld [vmem:[%s5 + $0x278] sm:$0xff]
  %v305 = vld [vmem:[%s5 + $0x280] sm:$0xf]
  %v306 = vld [vmem:[%s5 + $0x284] sm:$0xff]
  %v307 = vld [vmem:[%s5 + $0x28c] sm:$0xff]
  %v308 = vld [vmem:[%s5 + $0x294] sm:$0xff]
  %v309 = vld [vmem:[%s5 + $0x29c] sm:$0xf]
  %v310 = vld [vmem:[%s5 + $0x2a0] sm:$0xff]
  %v311 = vld [vmem:[%s5 + $0x2a8] sm:$0xff]
  %v312 = vld [vmem:[%s5 + $0x2b0] sm:$0xff]
  %v313 = vld [vmem:[%s5 + $0x2b8] sm:$0xf]
  %v314 = vld [vmem:[%s5 + $0x2bc] sm:$0xff]
  %v315 = vld [vmem:[%s5 + $0x2c4] sm:$0xff]
  %v316 = vld [vmem:[%s5 + $0x2cc] sm:$0xff]
  %v317 = vld [vmem:[%s5 + $0x2d4] sm:$0xf]
  %v318 = vld [vmem:[%s5 + $0x2d8] sm:$0xff]
  %v319 = vld [vmem:[%s5 + $0x2e0] sm:$0xff]
  %v320 = vld [vmem:[%s5 + $0x2e8] sm:$0xff]
  %v321 = vld [vmem:[%s5 + $0x2f0] sm:$0xf]
  %v322 = vld [vmem:[%s5 + $0x2f4] sm:$0xff]
  %v323 = vld [vmem:[%s5 + $0x2fc] sm:$0xff]
  %v324 = vld [vmem:[%s5 + $0x304] sm:$0xff]
  %v325 = vld [vmem:[%s5 + $0x30c] sm:$0xf]
  %v326 = vld [vmem:[%s5 + $0x310] sm:$0xff]
  %v327 = vld [vmem:[%s5 + $0x318] sm:$0xff]
  %v328 = vld [vmem:[%s5 + $0x320] sm:$0xff]
  %v329 = vld [vmem:[%s5 + $0x328] sm:$0xf]
  %v330 = vld [vmem:[%s5 + $0x32c] sm:$0xff]
  %v331 = vld [vmem:[%s5 + $0x334] sm:$0xff]
  %v332 = vld [vmem:[%s5 + $0x33c] sm:$0xff]
  %v333 = vld [vmem:[%s5 + $0x344] sm:$0xf]
  %v334 = vld [vmem:[%s5 + $0x348] sm:$0xff]
  %v335 = vld [vmem:[%s5 + $0x350] sm:$0xff]
  %v336 = vld [vmem:[%s5 + $0x358] sm:$0xff]
  %v337 = vld [vmem:[%s5 + $0x360] sm:$0xf]
  %v338 = vld [vmem:[%s5 + $0x364] sm:$0xff]
  %v339 = vld [vmem:[%s5 + $0x36c] sm:$0xff]
  %v340 = vld [vmem:[%s5 + $0x374] sm:$0xff]
  %v341 = vld [vmem:[%s5 + $0x37c] sm:$0xf]
  %v342 = vld [vmem:[%s5 + $0x380] sm:$0xff]
  %v343 = vld [vmem:[%s5 + $0x388] sm:$0xff]
  %v344 = vld [vmem:[%s5 + $0x390] sm:$0xff]
  %v345 = vld [vmem:[%s5 + $0x398] sm:$0xf]
  %v346 = vld [vmem:[%s5 + $0x39c] sm:$0xff]
  %v347 = vld [vmem:[%s5 + $0x3a4] sm:$0xff]
  %v348 = vld [vmem:[%s5 + $0x3ac] sm:$0xff]
  %v349 = vld [vmem:[%s5 + $0x3b4] sm:$0xf]
  %v350 = vld [vmem:[%s5 + $0x3b8] sm:$0xff]
  %v351 = vld [vmem:[%s5 + $0x3c0] sm:$0xff]
  %v352 = vld [vmem:[%s5 + $0x3c8] sm:$0xff]
  %v353 = vld [vmem:[%s5 + $0x3d0] sm:$0xf]
  %v354 = vld [vmem:[%s5 + $0x3d4] sm:$0xff]
  %v355 = vld [vmem:[%s5 + $0x3dc] sm:$0xff]
  %v356 = vld [vmem:[%s5 + $0x3e4] sm:$0xff]
  %v357 = vld [vmem:[%s5 + $0x3ec] sm:$0xf]
  %v502 = vunpack.c.l.b16 %v214
  %v503 = vunpack.c.h.b16 %v214
  %v504 = vunpack.c.l.b16 %v215
  %v505 = vunpack.c.h.b16 %v215
  %v506 = vunpack.c.l.b16 %v216
  %v507 = vunpack.c.h.b16 %v216
  %v508 = vunpack.c.l.b16 %v217
  %v509 = vunpack.c.l.b16 %v218
  %v510 = vunpack.c.h.b16 %v218
  %v511 = vunpack.c.l.b16 %v219
  %v512 = vunpack.c.h.b16 %v219
  %v513 = vunpack.c.l.b16 %v220
  %v514 = vunpack.c.h.b16 %v220
  %v515 = vunpack.c.l.b16 %v221
  %v516 = vunpack.c.l.b16 %v222
  %v517 = vunpack.c.h.b16 %v222
  %v518 = vunpack.c.l.b16 %v223
  %v519 = vunpack.c.h.b16 %v223
  %v520 = vunpack.c.l.b16 %v224
  %v521 = vunpack.c.h.b16 %v224
  %v522 = vunpack.c.l.b16 %v225
  %v523 = vunpack.c.l.b16 %v226
  %v524 = vunpack.c.h.b16 %v226
  %v525 = vunpack.c.l.b16 %v227
  %v526 = vunpack.c.h.b16 %v227
  %v527 = vunpack.c.l.b16 %v228
  %v528 = vunpack.c.h.b16 %v228
  %v529 = vunpack.c.l.b16 %v229
  %v530 = vunpack.c.l.b16 %v230
  %v531 = vunpack.c.h.b16 %v230
  %v532 = vunpack.c.l.b16 %v231
  %v533 = vunpack.c.h.b16 %v231
  %v534 = vunpack.c.l.b16 %v232
  %v535 = vunpack.c.h.b16 %v232
  %v536 = vunpack.c.l.b16 %v233
  %v537 = vunpack.c.l.b16 %v234
  %v538 = vunpack.c.h.b16 %v234
  %v539 = vunpack.c.l.b16 %v235
  %v540 = vunpack.c.h.b16 %v235
  %v541 = vunpack.c.l.b16 %v236
  %v542 = vunpack.c.h.b16 %v236
  %v543 = vunpack.c.l.b16 %v237
  %v544 = vunpack.c.l.b16 %v238
  %v545 = vunpack.c.h.b16 %v238
  %v546 = vunpack.c.l.b16 %v239
  %v547 = vunpack.c.h.b16 %v239
  %v548 = vunpack.c.l.b16 %v240
  %v549 = vunpack.c.h.b16 %v240
  %v550 = vunpack.c.l.b16 %v241
  %v551 = vunpack.c.l.b16 %v242
  %v552 = vunpack.c.h.b16 %v242
  %v553 = vunpack.c.l.b16 %v243
  %v554 = vunpack.c.h.b16 %v243
  %v555 = vunpack.c.l.b16 %v244
  %v556 = vunpack.c.h.b16 %v244
  %v557 = vunpack.c.l.b16 %v245
  %v558 = vunpack.c.l.b16 %v246
  %v559 = vunpack.c.h.b16 %v246
  %v560 = vunpack.c.l.b16 %v247
  %v561 = vunpack.c.h.b16 %v247
  %v562 = vunpack.c.l.b16 %v248
  %v563 = vunpack.c.h.b16 %v248
  %v564 = vunpack.c.l.b16 %v249
  %v565 = vunpack.c.l.b16 %v250
  %v566 = vunpack.c.h.b16 %v250
  %v567 = vunpack.c.l.b16 %v251
  %v568 = vunpack.c.h.b16 %v251
  %v569 = vunpack.c.l.b16 %v252
  %v570 = vunpack.c.h.b16 %v252
  %v571 = vunpack.c.l.b16 %v253
  %v572 = vunpack.c.l.b16 %v254
  %v573 = vunpack.c.h.b16 %v254
  %v574 = vunpack.c.l.b16 %v255
  %v575 = vunpack.c.h.b16 %v255
  %v576 = vunpack.c.l.b16 %v256
  %v577 = vunpack.c.h.b16 %v256
  %v578 = vunpack.c.l.b16 %v257
  %v579 = vunpack.c.l.b16 %v258
  %v580 = vunpack.c.h.b16 %v258
  %v581 = vunpack.c.l.b16 %v259
  %v582 = vunpack.c.h.b16 %v259
  %v583 = vunpack.c.l.b16 %v260
  %v584 = vunpack.c.h.b16 %v260
  %v585 = vunpack.c.l.b16 %v261
  %v586 = vunpack.c.l.b16 %v262
  %v587 = vunpack.c.h.b16 %v262
  %v588 = vunpack.c.l.b16 %v263
  %v589 = vunpack.c.h.b16 %v263
  %v590 = vunpack.c.l.b16 %v264
  %v591 = vunpack.c.h.b16 %v264
  %v592 = vunpack.c.l.b16 %v265
  %v593 = vunpack.c.l.b16 %v266
  %v594 = vunpack.c.h.b16 %v266
  %v595 = vunpack.c.l.b16 %v267
  %v596 = vunpack.c.h.b16 %v267
  %v597 = vunpack.c.l.b16 %v268
  %v598 = vunpack.c.h.b16 %v268
  %v599 = vunpack.c.l.b16 %v269
  %v600 = vunpack.c.l.b16 %v270
  %v601 = vunpack.c.h.b16 %v270
  %v602 = vunpack.c.l.b16 %v271
  %v603 = vunpack.c.h.b16 %v271
  %v604 = vunpack.c.l.b16 %v272
  %v605 = vunpack.c.h.b16 %v272
  %v606 = vunpack.c.l.b16 %v273
  %v607 = vunpack.c.l.b16 %v274
  %v608 = vunpack.c.h.b16 %v274
  %v609 = vunpack.c.l.b16 %v275
  %v610 = vunpack.c.h.b16 %v275
  %v611 = vunpack.c.l.b16 %v276
  %v612 = vunpack.c.h.b16 %v276
  %v613 = vunpack.c.l.b16 %v277
  %v614 = vunpack.c.l.b16 %v278
  %v615 = vunpack.c.h.b16 %v278
  %v616 = vunpack.c.l.b16 %v279
  %v617 = vunpack.c.h.b16 %v279
  %v618 = vunpack.c.l.b16 %v280
  %v619 = vunpack.c.h.b16 %v280
  %v620 = vunpack.c.l.b16 %v281
  %v621 = vunpack.c.l.b16 %v282
  %v622 = vunpack.c.h.b16 %v282
  %v623 = vunpack.c.l.b16 %v283
  %v624 = vunpack.c.h.b16 %v283
  %v625 = vunpack.c.l.b16 %v284
  %v626 = vunpack.c.h.b16 %v284
  %v627 = vunpack.c.l.b16 %v285
  %v628 = vunpack.c.l.b16 %v286
  %v629 = vunpack.c.h.b16 %v286
  %v630 = vunpack.c.l.b16 %v287
  %v631 = vunpack.c.h.b16 %v287
  %v632 = vunpack.c.l.b16 %v288
  %v633 = vunpack.c.h.b16 %v288
  %v634 = vunpack.c.l.b16 %v289
  %v635 = vunpack.c.l.b16 %v290
  %v636 = vunpack.c.h.b16 %v290
  %v637 = vunpack.c.l.b16 %v291
  %v638 = vunpack.c.h.b16 %v291
  %v639 = vunpack.c.l.b16 %v292
  %v640 = vunpack.c.h.b16 %v292
  %v641 = vunpack.c.l.b16 %v293
  %v642 = vunpack.c.l.b16 %v294
  %v643 = vunpack.c.h.b16 %v294
  %v644 = vunpack.c.l.b16 %v295
  %v645 = vunpack.c.h.b16 %v295
  %v646 = vunpack.c.l.b16 %v296
  %v647 = vunpack.c.h.b16 %v296
  %v648 = vunpack.c.l.b16 %v297
  %v649 = vunpack.c.l.b16 %v298
  %v650 = vunpack.c.h.b16 %v298
  %v651 = vunpack.c.l.b16 %v299
  %v652 = vunpack.c.h.b16 %v299
  %v653 = vunpack.c.l.b16 %v300
  %v654 = vunpack.c.h.b16 %v300
  %v655 = vunpack.c.l.b16 %v301
  %v656 = vunpack.c.l.b16 %v302
  %v657 = vunpack.c.h.b16 %v302
  %v658 = vunpack.c.l.b16 %v303
  %v659 = vunpack.c.h.b16 %v303
  %v660 = vunpack.c.l.b16 %v304
  %v661 = vunpack.c.h.b16 %v304
  %v662 = vunpack.c.l.b16 %v305
  %v663 = vunpack.c.l.b16 %v306
  %v664 = vunpack.c.h.b16 %v306
  %v665 = vunpack.c.l.b16 %v307
  %v666 = vunpack.c.h.b16 %v307
  %v667 = vunpack.c.l.b16 %v308
  %v668 = vunpack.c.h.b16 %v308
  %v669 = vunpack.c.l.b16 %v309
  %v670 = vunpack.c.l.b16 %v310
  %v671 = vunpack.c.h.b16 %v310
  %v672 = vunpack.c.l.b16 %v311
  %v673 = vunpack.c.h.b16 %v311
  %v674 = vunpack.c.l.b16 %v312
  %v675 = vunpack.c.h.b16 %v312
  %v676 = vunpack.c.l.b16 %v313
  %v677 = vunpack.c.l.b16 %v314
  %v678 = vunpack.c.h.b16 %v314
  %v679 = vunpack.c.l.b16 %v315
  %v680 = vunpack.c.h.b16 %v315
  %v681 = vunpack.c.l.b16 %v316
  %v682 = vunpack.c.h.b16 %v316
  %v683 = vunpack.c.l.b16 %v317
  %v684 = vunpack.c.l.b16 %v318
  %v685 = vunpack.c.h.b16 %v318
  %v686 = vunpack.c.l.b16 %v319
  %v687 = vunpack.c.h.b16 %v319
  %v688 = vunpack.c.l.b16 %v320
  %v689 = vunpack.c.h.b16 %v320
  %v690 = vunpack.c.l.b16 %v321
  %v691 = vunpack.c.l.b16 %v322
  %v692 = vunpack.c.h.b16 %v322
  %v693 = vunpack.c.l.b16 %v323
  %v694 = vunpack.c.h.b16 %v323
  %v695 = vunpack.c.l.b16 %v324
  %v696 = vunpack.c.h.b16 %v324
  %v697 = vunpack.c.l.b16 %v325
  %v698 = vunpack.c.l.b16 %v326
  %v699 = vunpack.c.h.b16 %v326
  %v700 = vunpack.c.l.b16 %v327
  %v701 = vunpack.c.h.b16 %v327
  %v702 = vunpack.c.l.b16 %v328
  %v703 = vunpack.c.h.b16 %v328
  %v704 = vunpack.c.l.b16 %v329
  %v705 = vunpack.c.l.b16 %v330
  %v706 = vunpack.c.h.b16 %v330
  %v707 = vunpack.c.l.b16 %v331
  %v708 = vunpack.c.h.b16 %v331
  %v709 = vunpack.c.l.b16 %v332
  %v710 = vunpack.c.h.b16 %v332
  %v711 = vunpack.c.l.b16 %v333
  %v712 = vunpack.c.l.b16 %v334
  %v713 = vunpack.c.h.b16 %v334
  %v714 = vunpack.c.l.b16 %v335
  %v715 = vunpack.c.h.b16 %v335
  %v716 = vunpack.c.l.b16 %v336
  %v717 = vunpack.c.h.b16 %v336
  %v718 = vunpack.c.l.b16 %v337
  %v719 = vunpack.c.l.b16 %v338
  %v720 = vunpack.c.h.b16 %v338
  %v721 = vunpack.c.l.b16 %v339
  %v722 = vunpack.c.h.b16 %v339
  %v723 = vunpack.c.l.b16 %v340
  %v724 = vunpack.c.h.b16 %v340
  %v725 = vunpack.c.l.b16 %v341
  %v726 = vunpack.c.l.b16 %v342
  %v727 = vunpack.c.h.b16 %v342
  %v728 = vunpack.c.l.b16 %v343
  %v729 = vunpack.c.h.b16 %v343
  %v730 = vunpack.c.l.b16 %v344
  %v731 = vunpack.c.h.b16 %v344
  %v732 = vunpack.c.l.b16 %v345
  %v733 = vunpack.c.l.b16 %v346
  %v734 = vunpack.c.h.b16 %v346
  %v735 = vunpack.c.l.b16 %v347
  %v736 = vunpack.c.h.b16 %v347
  %v737 = vunpack.c.l.b16 %v348
  %v738 = vunpack.c.h.b16 %v348
  %v739 = vunpack.c.l.b16 %v349
  %v740 = vunpack.c.l.b16 %v350
  %v741 = vunpack.c.h.b16 %v350
  %v742 = vunpack.c.l.b16 %v351
  %v743 = vunpack.c.h.b16 %v351
  %v744 = vunpack.c.l.b16 %v352
  %v745 = vunpack.c.h.b16 %v352
  %v746 = vunpack.c.l.b16 %v353
  %v747 = vunpack.c.l.b16 %v354
  %v748 = vunpack.c.h.b16 %v354
  %v749 = vunpack.c.l.b16 %v355
  %v750 = vunpack.c.h.b16 %v355
  %v751 = vunpack.c.l.b16 %v356
  %v752 = vunpack.c.h.b16 %v356
  %v753 = vunpack.c.l.b16 %v357
  %v754 = vpack.c.b16 %v509, %v502
  %v755 = vpack.c.b16 %v510, %v503
  %v756 = vpack.c.b16 %v511, %v504
  %v757 = vpack.c.b16 %v512, %v505
  %v758 = vpack.c.b16 %v513, %v506
  %v759 = vpack.c.b16 %v514, %v507
  %v760 = vpack.c.b16 %v515, %v508
  %v761 = vpack.c.b16 %v523, %v516
  %v762 = vpack.c.b16 %v524, %v517
  %v763 = vpack.c.b16 %v525, %v518
  %v764 = vpack.c.b16 %v526, %v519
  %v765 = vpack.c.b16 %v527, %v520
  %v766 = vpack.c.b16 %v528, %v521
  %v767 = vpack.c.b16 %v529, %v522
  %v768 = vpack.c.b16 %v537, %v530
  %v769 = vpack.c.b16 %v538, %v531
  %v770 = vpack.c.b16 %v539, %v532
  %v771 = vpack.c.b16 %v540, %v533
  %v772 = vpack.c.b16 %v541, %v534
  %v773 = vpack.c.b16 %v542, %v535
  %v774 = vpack.c.b16 %v543, %v536
  %v775 = vpack.c.b16 %v551, %v544
  %v776 = vpack.c.b16 %v552, %v545
  %v777 = vpack.c.b16 %v553, %v546
  %v778 = vpack.c.b16 %v554, %v547
  %v779 = vpack.c.b16 %v555, %v548
  %v780 = vpack.c.b16 %v556, %v549
  %v781 = vpack.c.b16 %v557, %v550
  %v782 = vpack.c.b16 %v565, %v558
  %v783 = vpack.c.b16 %v566, %v559
  %v784 = vpack.c.b16 %v567, %v560
  %v785 = vpack.c.b16 %v568, %v561
  %v786 = vpack.c.b16 %v569, %v562
  %v787 = vpack.c.b16 %v570, %v563
  %v788 = vpack.c.b16 %v571, %v564
  %v789 = vpack.c.b16 %v579, %v572
  %v790 = vpack.c.b16 %v580, %v573
  %v791 = vpack.c.b16 %v581, %v574
  %v792 = vpack.c.b16 %v582, %v575
  %v793 = vpack.c.b16 %v583, %v576
  %v794 = vpack.c.b16 %v584, %v577
  %v795 = vpack.c.b16 %v585, %v578
  %v796 = vpack.c.b16 %v593, %v586
  %v797 = vpack.c.b16 %v594, %v587
  %v798 = vpack.c.b16 %v595, %v588
  %v799 = vpack.c.b16 %v596, %v589
  %v800 = vpack.c.b16 %v597, %v590
  %v801 = vpack.c.b16 %v598, %v591
  %v802 = vpack.c.b16 %v599, %v592
  %v803 = vpack.c.b16 %v607, %v600
  %v804 = vpack.c.b16 %v608, %v601
  %v805 = vpack.c.b16 %v609, %v602
  %v806 = vpack.c.b16 %v610, %v603
  %v807 = vpack.c.b16 %v611, %v604
  %v808 = vpack.c.b16 %v612, %v605
  %v809 = vpack.c.b16 %v613, %v606
  %v810 = vpack.c.b16 %v621, %v614
  %v811 = vpack.c.b16 %v622, %v615
  %v812 = vpack.c.b16 %v623, %v616
  %v813 = vpack.c.b16 %v624, %v617
  %v814 = vpack.c.b16 %v625, %v618
  %v815 = vpack.c.b16 %v626, %v619
  %v816 = vpack.c.b16 %v627, %v620
  %v817 = vpack.c.b16 %v635, %v628
  %v818 = vpack.c.b16 %v636, %v629
  %v819 = vpack.c.b16 %v637, %v630
  %v820 = vpack.c.b16 %v638, %v631
  %v821 = vpack.c.b16 %v639, %v632
  %v822 = vpack.c.b16 %v640, %v633
  %v823 = vpack.c.b16 %v641, %v634
  %v824 = vpack.c.b16 %v649, %v642
  %v825 = vpack.c.b16 %v650, %v643
  %v826 = vpack.c.b16 %v651, %v644
  %v827 = vpack.c.b16 %v652, %v645
  %v828 = vpack.c.b16 %v653, %v646
  %v829 = vpack.c.b16 %v654, %v647
  %v830 = vpack.c.b16 %v655, %v648
  %v831 = vpack.c.b16 %v663, %v656
  %v832 = vpack.c.b16 %v664, %v657
  %v833 = vpack.c.b16 %v665, %v658
  %v834 = vpack.c.b16 %v666, %v659
  %v835 = vpack.c.b16 %v667, %v660
  %v836 = vpack.c.b16 %v668, %v661
  %v837 = vpack.c.b16 %v669, %v662
  %v838 = vpack.c.b16 %v677, %v670
  %v839 = vpack.c.b16 %v678, %v671
  %v840 = vpack.c.b16 %v679, %v672
  %v841 = vpack.c.b16 %v680, %v673
  %v842 = vpack.c.b16 %v681, %v674
  %v843 = vpack.c.b16 %v682, %v675
  %v844 = vpack.c.b16 %v683, %v676
  %v845 = vpack.c.b16 %v691, %v684
  %v846 = vpack.c.b16 %v692, %v685
  %v847 = vpack.c.b16 %v693, %v686
  %v848 = vpack.c.b16 %v694, %v687
  %v849 = vpack.c.b16 %v695, %v688
  %v850 = vpack.c.b16 %v696, %v689
  %v851 = vpack.c.b16 %v697, %v690
  %v852 = vpack.c.b16 %v705, %v698
  %v853 = vpack.c.b16 %v706, %v699
  %v854 = vpack.c.b16 %v707, %v700
  %v855 = vpack.c.b16 %v708, %v701
  %v856 = vpack.c.b16 %v709, %v702
  %v857 = vpack.c.b16 %v710, %v703
  %v858 = vpack.c.b16 %v711, %v704
  %v859 = vpack.c.b16 %v719, %v712
  %v860 = vpack.c.b16 %v720, %v713
  %v861 = vpack.c.b16 %v721, %v714
  %v862 = vpack.c.b16 %v722, %v715
  %v863 = vpack.c.b16 %v723, %v716
  %v864 = vpack.c.b16 %v724, %v717
  %v865 = vpack.c.b16 %v725, %v718
  %v866 = vpack.c.b16 %v733, %v726
  %v867 = vpack.c.b16 %v734, %v727
  %v868 = vpack.c.b16 %v735, %v728
  %v869 = vpack.c.b16 %v736, %v729
  %v870 = vpack.c.b16 %v737, %v730
  %v871 = vpack.c.b16 %v738, %v731
  %v872 = vpack.c.b16 %v739, %v732
  %v873 = vpack.c.b16 %v747, %v740
  %v874 = vpack.c.b16 %v748, %v741
  %v875 = vpack.c.b16 %v749, %v742
  %v876 = vpack.c.b16 %v750, %v743
  %v877 = vpack.c.b16 %v751, %v744
  %v878 = vpack.c.b16 %v752, %v745
  %v879 = vpack.c.b16 %v753, %v746
  %vm1006 = vcmask 261120
  %v1008 = vsel %vm1006, %v213, 0
  %1010 = vmatpush.bf16.msra.mxu0 %v803
  %1011 = vmatpush.bf16.msra.mxu0 %v796
  %1012 = vmatpush.bf16.msra.mxu0 %v789
  %1013 = vmatpush.bf16.msra.mxu0 %v782
  %1014 = vmatpush.bf16.msra.mxu0 %v775
  %1015 = vmatpush.bf16.msra.mxu0 %v768
  %1016 = vmatpush.bf16.msra.mxu0 %v761
  %1017 = vmatpush.bf16.msra.mxu0 %v754
  %1018 = vmatmul.bf16.gmra.mxu0 %v211
  %v1019 = vpop.f32.mrf.mxu0
  %v1020 = vadd.f32 0.0, %v1019
  %v1021 = vpop.f32.mrf.mxu0
  %1022 = vdwg.mxu0
  %1023 = vmatpush.bf16.msra.mxu0 %v859
  %1024 = vmatpush.bf16.msra.mxu0 %v852
  %1025 = vmatpush.bf16.msra.mxu0 %v845
  %1026 = vmatpush.bf16.msra.mxu0 %v838
  %1027 = vmatpush.bf16.msra.mxu0 %v831
  %1028 = vmatpush.bf16.msra.mxu0 %v824
  %1029 = vmatpush.bf16.msra.mxu0 %v817
  %1030 = vmatpush.bf16.msra.mxu0 %v810
  %1031 = vmatmul.bf16.gmra.mxu0 %v212
  %v1032 = vpop.f32.mrf.mxu0
  %v1033 = vadd.f32 %v1020, %v1032
  %v1034 = vpop.f32.mrf.mxu0
  %1035 = vdwg.mxu0
  %1036 = vmatpush.bf16.msra.mxu0 0
  %1037 = vmatpush.bf16.msra.mxu0 0
  %1038 = vmatpush.bf16.msra.mxu0 0
  %1039 = vmatpush.bf16.msra.mxu0 0
  %1040 = vmatpush.bf16.msra.mxu0 0
  %1041 = vmatpush.bf16.msra.mxu0 0
  %1042 = vmatpush.bf16.msra.mxu0 %v873
  %1043 = vmatpush.bf16.msra.mxu0 %v866
  %1044 = vmatmul.bf16.gmra.mxu0 %v1008
  %v1045 = vpop.f32.mrf.mxu0
  %v1046 = vadd.f32 %v1033, %v1045
  %v1047 = vpop.f32.mrf.mxu0
  %1048 = vdwg.mxu0
  %1049 = vmatpush.bf16.msra.mxu0 %v804
  %1050 = vmatpush.bf16.msra.mxu0 %v797
  %1051 = vmatpush.bf16.msra.mxu0 %v790
  %1052 = vmatpush.bf16.msra.mxu0 %v783
  %1053 = vmatpush.bf16.msra.mxu0 %v776
  %1054 = vmatpush.bf16.msra.mxu0 %v769
  %1055 = vmatpush.bf16.msra.mxu0 %v762
  %1056 = vmatpush.bf16.msra.mxu0 %v755
  %1057 = vmatmul.bf16.gmra.mxu0 %v211
  %v1058 = vpop.f32.mrf.mxu0
  %v1059 = vadd.f32 0.0, %v1058
  %v1060 = vpop.f32.mrf.mxu0
  %1061 = vdwg.mxu0
  %1062 = vmatpush.bf16.msra.mxu0 %v860
  %1063 = vmatpush.bf16.msra.mxu0 %v853
  %1064 = vmatpush.bf16.msra.mxu0 %v846
  %1065 = vmatpush.bf16.msra.mxu0 %v839
  %1066 = vmatpush.bf16.msra.mxu0 %v832
  %1067 = vmatpush.bf16.msra.mxu0 %v825
  %1068 = vmatpush.bf16.msra.mxu0 %v818
  %1069 = vmatpush.bf16.msra.mxu0 %v811
  %1070 = vmatmul.bf16.gmra.mxu0 %v212
  %v1071 = vpop.f32.mrf.mxu0
  %v1072 = vadd.f32 %v1059, %v1071
  %v1073 = vpop.f32.mrf.mxu0
  %1074 = vdwg.mxu0
  %1075 = vmatpush.bf16.msra.mxu0 0
  %1076 = vmatpush.bf16.msra.mxu0 0
  %1077 = vmatpush.bf16.msra.mxu0 0
  %1078 = vmatpush.bf16.msra.mxu0 0
  %1079 = vmatpush.bf16.msra.mxu0 0
  %1080 = vmatpush.bf16.msra.mxu0 0
  %1081 = vmatpush.bf16.msra.mxu0 %v874
  %1082 = vmatpush.bf16.msra.mxu0 %v867
  %1083 = vmatmul.bf16.gmra.mxu0 %v1008
  %v1084 = vpop.f32.mrf.mxu0
  %v1085 = vadd.f32 %v1072, %v1084
  %v1086 = vpop.f32.mrf.mxu0
  %1087 = vdwg.mxu0
  %1088 = vmatpush.bf16.msra.mxu0 %v805
  %1089 = vmatpush.bf16.msra.mxu0 %v798
  %1090 = vmatpush.bf16.msra.mxu0 %v791
  %1091 = vmatpush.bf16.msra.mxu0 %v784
  %1092 = vmatpush.bf16.msra.mxu0 %v777
  %1093 = vmatpush.bf16.msra.mxu0 %v770
  %1094 = vmatpush.bf16.msra.mxu0 %v763
  %1095 = vmatpush.bf16.msra.mxu0 %v756
  %1096 = vmatmul.bf16.gmra.mxu0 %v211
  %v1097 = vpop.f32.mrf.mxu0
  %v1098 = vadd.f32 0.0, %v1097
  %v1099 = vpop.f32.mrf.mxu0
  %1100 = vdwg.mxu0
  %1101 = vmatpush.bf16.msra.mxu0 %v861
  %1102 = vmatpush.bf16.msra.mxu0 %v854
  %1103 = vmatpush.bf16.msra.mxu0 %v847
  %1104 = vmatpush.bf16.msra.mxu0 %v840
  %1105 = vmatpush.bf16.msra.mxu0 %v833
  %1106 = vmatpush.bf16.msra.mxu0 %v826
  %1107 = vmatpush.bf16.msra.mxu0 %v819
  %1108 = vmatpush.bf16.msra.mxu0 %v812
  %1109 = vmatmul.bf16.gmra.mxu0 %v212
  %v1110 = vpop.f32.mrf.mxu0
  %v1111 = vadd.f32 %v1098, %v1110
  %v1112 = vpop.f32.mrf.mxu0
  %1113 = vdwg.mxu0
  %1114 = vmatpush.bf16.msra.mxu0 0
  %1115 = vmatpush.bf16.msra.mxu0 0
  %1116 = vmatpush.bf16.msra.mxu0 0
  %1117 = vmatpush.bf16.msra.mxu0 0
  %1118 = vmatpush.bf16.msra.mxu0 0
  %1119 = vmatpush.bf16.msra.mxu0 0
  %1120 = vmatpush.bf16.msra.mxu0 %v875
  %1121 = vmatpush.bf16.msra.mxu0 %v868
  %1122 = vmatmul.bf16.gmra.mxu0 %v1008
  %v1123 = vpop.f32.mrf.mxu0
  %v1124 = vadd.f32 %v1111, %v1123
  %v1125 = vpop.f32.mrf.mxu0
  %1126 = vdwg.mxu0
  %1127 = vmatpush.bf16.msra.mxu0 %v806
  %1128 = vmatpush.bf16.msra.mxu0 %v799
  %1129 = vmatpush.bf16.msra.mxu0 %v792
  %1130 = vmatpush.bf16.msra.mxu0 %v785
  %1131 = vmatpush.bf16.msra.mxu0 %v778
  %1132 = vmatpush.bf16.msra.mxu0 %v771
  %1133 = vmatpush.bf16.msra.mxu0 %v764
  %1134 = vmatpush.bf16.msra.mxu0 %v757
  %1135 = vmatmul.bf16.gmra.mxu0 %v211
  %v1136 = vpop.f32.mrf.mxu0
  %v1137 = vadd.f32 0.0, %v1136
  %v1138 = vpop.f32.mrf.mxu0
  %1139 = vdwg.mxu0
  %1140 = vmatpush.bf16.msra.mxu0 %v862
  %1141 = vmatpush.bf16.msra.mxu0 %v855
  %1142 = vmatpush.bf16.msra.mxu0 %v848
  %1143 = vmatpush.bf16.msra.mxu0 %v841
  %1144 = vmatpush.bf16.msra.mxu0 %v834
  %1145 = vmatpush.bf16.msra.mxu0 %v827
  %1146 = vmatpush.bf16.msra.mxu0 %v820
  %1147 = vmatpush.bf16.msra.mxu0 %v813
  %1148 = vmatmul.bf16.gmra.mxu0 %v212
  %v1149 = vpop.f32.mrf.mxu0
  %v1150 = vadd.f32 %v1137, %v1149
  %v1151 = vpop.f32.mrf.mxu0
  %1152 = vdwg.mxu0
  %1153 = vmatpush.bf16.msra.mxu0 0
  %1154 = vmatpush.bf16.msra.mxu0 0
  %1155 = vmatpush.bf16.msra.mxu0 0
  %1156 = vmatpush.bf16.msra.mxu0 0
  %1157 = vmatpush.bf16.msra.mxu0 0
  %1158 = vmatpush.bf16.msra.mxu0 0
  %1159 = vmatpush.bf16.msra.mxu0 %v876
  %1160 = vmatpush.bf16.msra.mxu0 %v869
  %1161 = vmatmul.bf16.gmra.mxu0 %v1008
  %v1162 = vpop.f32.mrf.mxu0
  %v1163 = vadd.f32 %v1150, %v1162
  %v1164 = vpop.f32.mrf.mxu0
  %1165 = vdwg.mxu0
  %1166 = vmatpush.bf16.msra.mxu0 %v807
  %1167 = vmatpush.bf16.msra.mxu0 %v800
  %1168 = vmatpush.bf16.msra.mxu0 %v793
  %1169 = vmatpush.bf16.msra.mxu0 %v786
  %1170 = vmatpush.bf16.msra.mxu0 %v779
  %1171 = vmatpush.bf16.msra.mxu0 %v772
  %1172 = vmatpush.bf16.msra.mxu0 %v765
  %1173 = vmatpush.bf16.msra.mxu0 %v758
  %1174 = vmatmul.bf16.gmra.mxu0 %v211
  %v1175 = vpop.f32.mrf.mxu0
  %v1176 = vadd.f32 0.0, %v1175
  %v1177 = vpop.f32.mrf.mxu0
  %1178 = vdwg.mxu0
  %1179 = vmatpush.bf16.msra.mxu0 %v863
  %1180 = vmatpush.bf16.msra.mxu0 %v856
  %1181 = vmatpush.bf16.msra.mxu0 %v849
  %1182 = vmatpush.bf16.msra.mxu0 %v842
  %1183 = vmatpush.bf16.msra.mxu0 %v835
  %1184 = vmatpush.bf16.msra.mxu0 %v828
  %1185 = vmatpush.bf16.msra.mxu0 %v821
  %1186 = vmatpush.bf16.msra.mxu0 %v814
  %1187 = vmatmul.bf16.gmra.mxu0 %v212
  %v1188 = vpop.f32.mrf.mxu0
  %v1189 = vadd.f32 %v1176, %v1188
  %v1190 = vpop.f32.mrf.mxu0
  %1191 = vdwg.mxu0
  %1192 = vmatpush.bf16.msra.mxu0 0
  %1193 = vmatpush.bf16.msra.mxu0 0
  %1194 = vmatpush.bf16.msra.mxu0 0
  %1195 = vmatpush.bf16.msra.mxu0 0
  %1196 = vmatpush.bf16.msra.mxu0 0
  %1197 = vmatpush.bf16.msra.mxu0 0
  %1198 = vmatpush.bf16.msra.mxu0 %v877
  %1199 = vmatpush.bf16.msra.mxu0 %v870
  %1200 = vmatmul.bf16.gmra.mxu0 %v1008
  %v1201 = vpop.f32.mrf.mxu0
  %v1202 = vadd.f32 %v1189, %v1201
  %v1203 = vpop.f32.mrf.mxu0
  %1204 = vdwg.mxu0
  %1205 = vmatpush.bf16.msra.mxu0 %v808
  %1206 = vmatpush.bf16.msra.mxu0 %v801
  %1207 = vmatpush.bf16.msra.mxu0 %v794
  %1208 = vmatpush.bf16.msra.mxu0 %v787
  %1209 = vmatpush.bf16.msra.mxu0 %v780
  %1210 = vmatpush.bf16.msra.mxu0 %v773
  %1211 = vmatpush.bf16.msra.mxu0 %v766
  %1212 = vmatpush.bf16.msra.mxu0 %v759
  %1213 = vmatmul.bf16.gmra.mxu0 %v211
  %v1214 = vpop.f32.mrf.mxu0
  %v1215 = vadd.f32 0.0, %v1214
  %v1216 = vpop.f32.mrf.mxu0
  %1217 = vdwg.mxu0
  %1218 = vmatpush.bf16.msra.mxu0 %v864
  %1219 = vmatpush.bf16.msra.mxu0 %v857
  %1220 = vmatpush.bf16.msra.mxu0 %v850
  %1221 = vmatpush.bf16.msra.mxu0 %v843
  %1222 = vmatpush.bf16.msra.mxu0 %v836
  %1223 = vmatpush.bf16.msra.mxu0 %v829
  %1224 = vmatpush.bf16.msra.mxu0 %v822
  %1225 = vmatpush.bf16.msra.mxu0 %v815
  %1226 = vmatmul.bf16.gmra.mxu0 %v212
  %v1227 = vpop.f32.mrf.mxu0
  %v1228 = vadd.f32 %v1215, %v1227
  %v1229 = vpop.f32.mrf.mxu0
  %1230 = vdwg.mxu0
  %1231 = vmatpush.bf16.msra.mxu0 0
  %1232 = vmatpush.bf16.msra.mxu0 0
  %1233 = vmatpush.bf16.msra.mxu0 0
  %1234 = vmatpush.bf16.msra.mxu0 0
  %1235 = vmatpush.bf16.msra.mxu0 0
  %1236 = vmatpush.bf16.msra.mxu0 0
  %1237 = vmatpush.bf16.msra.mxu0 %v878
  %1238 = vmatpush.bf16.msra.mxu0 %v871
  %1239 = vmatmul.bf16.gmra.mxu0 %v1008
  %v1240 = vpop.f32.mrf.mxu0
  %v1241 = vadd.f32 %v1228, %v1240
  %v1242 = vpop.f32.mrf.mxu0
  %1243 = vdwg.mxu0
  %1244 = vmatpush.bf16.msra.mxu0 %v809
  %1245 = vmatpush.bf16.msra.mxu0 %v802
  %1246 = vmatpush.bf16.msra.mxu0 %v795
  %1247 = vmatpush.bf16.msra.mxu0 %v788
  %1248 = vmatpush.bf16.msra.mxu0 %v781
  %1249 = vmatpush.bf16.msra.mxu0 %v774
  %1250 = vmatpush.bf16.msra.mxu0 %v767
  %1251 = vmatpush.bf16.msra.mxu0 %v760
  %1252 = vmatmul.bf16.gmra.mxu0 %v211
  %v1253 = vpop.f32.mrf.mxu0
  %v1254 = vadd.f32 0.0, %v1253
  %v1255 = vpop.f32.mrf.mxu0
  %1256 = vdwg.mxu0
  %1257 = vmatpush.bf16.msra.mxu0 %v865
  %1258 = vmatpush.bf16.msra.mxu0 %v858
  %1259 = vmatpush.bf16.msra.mxu0 %v851
  %1260 = vmatpush.bf16.msra.mxu0 %v844
  %1261 = vmatpush.bf16.msra.mxu0 %v837
  %1262 = vmatpush.bf16.msra.mxu0 %v830
  %1263 = vmatpush.bf16.msra.mxu0 %v823
  %1264 = vmatpush.bf16.msra.mxu0 %v816
  %1265 = vmatmul.bf16.gmra.mxu0 %v212
  %v1266 = vpop.f32.mrf.mxu0
  %v1267 = vadd.f32 %v1254, %v1266
  %v1268 = vpop.f32.mrf.mxu0
  %1269 = vdwg.mxu0
  %1270 = vmatpush.bf16.msra.mxu0 0
  %1271 = vmatpush.bf16.msra.mxu0 0
  %1272 = vmatpush.bf16.msra.mxu0 0
  %1273 = vmatpush.bf16.msra.mxu0 0
  %1274 = vmatpush.bf16.msra.mxu0 0
  %1275 = vmatpush.bf16.msra.mxu0 0
  %1276 = vmatpush.bf16.msra.mxu0 %v879
  %1277 = vmatpush.bf16.msra.mxu0 %v872
  %1278 = vmatmul.bf16.gmra.mxu0 %v1008
  %v1279 = vpop.f32.mrf.mxu0
  %v1280 = vadd.f32 %v1267, %v1279
  %v1281 = vpop.f32.mrf.mxu0
  %1282 = vdwg.mxu0
  %vm1283 = vcmask 1041408
  %v1284 = vsel %vm1283, %v1046, 0.0
  %v1285 = vrot.slane %v1284, 4
  %v1286 = vadd.f32 %v1284, %v1285
  %v1287 = vrot.slane %v1286, 2
  %v1288 = vadd.f32 %v1286, %v1287
  %v1289 = vrot.slane %v1288, 1
  %v1290 = vadd.f32 %v1288, %v1289
  %v1291 = vsel %vm1283, %v1085, 0.0
  %v1292 = vrot.slane %v1291, 4
  %v1293 = vadd.f32 %v1291, %v1292
  %v1294 = vrot.slane %v1293, 2
  %v1295 = vadd.f32 %v1293, %v1294
  %v1296 = vrot.slane %v1295, 1
  %v1297 = vadd.f32 %v1295, %v1296
  %v1298 = vsel %vm1283, %v1124, 0.0
  %v1299 = vrot.slane %v1298, 4
  %v1300 = vadd.f32 %v1298, %v1299
  %v1301 = vrot.slane %v1300, 2
  %v1302 = vadd.f32 %v1300, %v1301
  %v1303 = vrot.slane %v1302, 1
  %v1304 = vadd.f32 %v1302, %v1303
  %v1305 = vsel %vm1283, %v1163, 0.0
  %v1306 = vrot.slane %v1305, 4
  %v1307 = vadd.f32 %v1305, %v1306
  %v1308 = vrot.slane %v1307, 2
  %v1309 = vadd.f32 %v1307, %v1308
  %v1310 = vrot.slane %v1309, 1
  %v1311 = vadd.f32 %v1309, %v1310
  %v1312 = vsel %vm1283, %v1202, 0.0
  %v1313 = vrot.slane %v1312, 4
  %v1314 = vadd.f32 %v1312, %v1313
  %v1315 = vrot.slane %v1314, 2
  %v1316 = vadd.f32 %v1314, %v1315
  %v1317 = vrot.slane %v1316, 1
  %v1318 = vadd.f32 %v1316, %v1317
  %v1319 = vsel %vm1283, %v1241, 0.0
  %v1320 = vrot.slane %v1319, 4
  %v1321 = vadd.f32 %v1319, %v1320
  %v1322 = vrot.slane %v1321, 2
  %v1323 = vadd.f32 %v1321, %v1322
  %v1324 = vrot.slane %v1323, 1
  %v1325 = vadd.f32 %v1323, %v1324
  %vm1326 = vcmask 123904
  %v1327 = vsel %vm1326, %v1280, 0.0
  %v1328 = vrot.slane %v1327, 4
  %v1329 = vadd.f32 %v1327, %v1328
  %v1330 = vrot.slane %v1329, 2
  %v1331 = vadd.f32 %v1329, %v1330
  %v1332 = vrot.slane %v1331, 1
  %v1333 = vadd.f32 %v1331, %v1332
  %v1334 = vmul.f32 %v1046, %v1046
  %v1335 = vmul.f32 %v1085, %v1085
  %v1336 = vmul.f32 %v1124, %v1124
  %v1337 = vmul.f32 %v1163, %v1163
  %v1338 = vmul.f32 %v1202, %v1202
  %v1339 = vmul.f32 %v1241, %v1241
  %v1340 = vmul.f32 %v1280, %v1280
  %v1341 = vsel %vm1283, %v1334, 0.0
  %v1342 = vrot.slane %v1341, 4
  %v1343 = vadd.f32 %v1341, %v1342
  %v1344 = vrot.slane %v1343, 2
  %v1345 = vadd.f32 %v1343, %v1344
  %v1346 = vrot.slane %v1345, 1
  %v1347 = vadd.f32 %v1345, %v1346
  %v1348 = vsel %vm1283, %v1335, 0.0
  %v1349 = vrot.slane %v1348, 4
  %v1350 = vadd.f32 %v1348, %v1349
  %v1351 = vrot.slane %v1350, 2
  %v1352 = vadd.f32 %v1350, %v1351
  %v1353 = vrot.slane %v1352, 1
  %v1354 = vadd.f32 %v1352, %v1353
  %v1355 = vsel %vm1283, %v1336, 0.0
  %v1356 = vrot.slane %v1355, 4
  %v1357 = vadd.f32 %v1355, %v1356
  %v1358 = vrot.slane %v1357, 2
  %v1359 = vadd.f32 %v1357, %v1358
  %v1360 = vrot.slane %v1359, 1
  %v1361 = vadd.f32 %v1359, %v1360
  %v1362 = vsel %vm1283, %v1337, 0.0
  %v1363 = vrot.slane %v1362, 4
  %v1364 = vadd.f32 %v1362, %v1363
  %v1365 = vrot.slane %v1364, 2
  %v1366 = vadd.f32 %v1364, %v1365
  %v1367 = vrot.slane %v1366, 1
  %v1368 = vadd.f32 %v1366, %v1367
  %v1369 = vsel %vm1283, %v1338, 0.0
  %v1370 = vrot.slane %v1369, 4
  %v1371 = vadd.f32 %v1369, %v1370
  %v1372 = vrot.slane %v1371, 2
  %v1373 = vadd.f32 %v1371, %v1372
  %v1374 = vrot.slane %v1373, 1
  %v1375 = vadd.f32 %v1373, %v1374
  %v1376 = vsel %vm1283, %v1339, 0.0
  %v1377 = vrot.slane %v1376, 4
  %v1378 = vadd.f32 %v1376, %v1377
  %v1379 = vrot.slane %v1378, 2
  %v1380 = vadd.f32 %v1378, %v1379
  %v1381 = vrot.slane %v1380, 1
  %v1382 = vadd.f32 %v1380, %v1381
  %v1383 = vsel %vm1326, %v1340, 0.0
  %v1384 = vrot.slane %v1383, 4
  %v1385 = vadd.f32 %v1383, %v1384
  %v1386 = vrot.slane %v1385, 2
  %v1387 = vadd.f32 %v1385, %v1386
  %v1388 = vrot.slane %v1387, 1
  %v1389 = vadd.f32 %v1387, %v1388
  %v1390 = vld [vmem:[%s6] sm:$0xff]
  %v1391 = vld [vmem:[%s6 + $0x8] sm:$0xff]
  %v1392 = vld [vmem:[%s6 + $0x10] sm:$0xff]
  %v1393 = vld [vmem:[%s6 + $0x18] sm:$0xff]
  %v1394 = vld [vmem:[%s6 + $0x20] sm:$0xff]
  %v1395 = vld [vmem:[%s6 + $0x28] sm:$0xff]
  %v1396 = vld [vmem:[%s6 + $0x30] sm:$0xff]
  %v1397 = vld [vmem:[%s6 + $0x38] sm:$0xff]
  %v1398 = vld [vmem:[%s6 + $0x40] sm:$0xff]
  %v1399 = vld [vmem:[%s6 + $0x48] sm:$0xff]
  %v1400 = vld [vmem:[%s6 + $0x50] sm:$0xff]
  %v1401 = vld [vmem:[%s6 + $0x58] sm:$0xff]
  %v1402 = vld [vmem:[%s6 + $0x60] sm:$0xff]
  %v1403 = vld [vmem:[%s6 + $0x68] sm:$0xff]
  %v1404 = vld [vmem:[%s6 + $0x70] sm:$0xff]
  %v1405 = vld [vmem:[%s6 + $0x78] sm:$0xff]
  %v1406 = vld [vmem:[%s6 + $0x80] sm:$0xff]
  %v1407 = vld [vmem:[%s6 + $0x88] sm:$0xff]
  %v1408 = vld [vmem:[%s6 + $0x90] sm:$0xff]
  %v1409 = vld [vmem:[%s6 + $0x98] sm:$0xff]
  %v1410 = vld [vmem:[%s6 + $0xa0] sm:$0xff]
  %v1411 = vld [vmem:[%s6 + $0xa8] sm:$0xff]
  %v1412 = vld [vmem:[%s6 + $0xb0] sm:$0xff]
  %v1413 = vld [vmem:[%s6 + $0xb8] sm:$0xff]
  %v1414 = vld [vmem:[%s6 + $0xc0] sm:$0xff]
  %v1415 = vld [vmem:[%s6 + $0xc8] sm:$0xff]
  %v1416 = vld [vmem:[%s6 + $0xd0] sm:$0xff]
  %v1417 = vld [vmem:[%s6 + $0xd8] sm:$0xff]
  %v1418 = vld [vmem:[%s6 + $0xe0] sm:$0xff]
  %v1419 = vld [vmem:[%s6 + $0xe8] sm:$0xff]
  %v1420 = vld [vmem:[%s6 + $0xf0] sm:$0xff]
  %v1421 = vld [vmem:[%s6 + $0xf8] sm:$0xff]
  %v1422 = vld [vmem:[%s6 + $0x100] sm:$0xff]
  %v1423 = vld [vmem:[%s6 + $0x108] sm:$0xff]
  %v1424 = vld [vmem:[%s6 + $0x110] sm:$0xff]
  %v1425 = vld [vmem:[%s6 + $0x118] sm:$0xff]
  %v1426 = vld [vmem:[%s6 + $0x120] sm:$0xff]
  %v1427 = vld [vmem:[%s6 + $0x128] sm:$0xff]
  %v1428 = vld [vmem:[%s6 + $0x130] sm:$0xff]
  %v1429 = vld [vmem:[%s6 + $0x138] sm:$0xff]
  %v1430 = vld [vmem:[%s6 + $0x140] sm:$0xff]
  %v1431 = vld [vmem:[%s6 + $0x148] sm:$0xff]
  %v1432 = vld [vmem:[%s6 + $0x150] sm:$0xff]
  %v1433 = vld [vmem:[%s6 + $0x158] sm:$0xff]
  %v1434 = vld [vmem:[%s6 + $0x160] sm:$0xff]
  %v1435 = vld [vmem:[%s6 + $0x168] sm:$0xff]
  %v1436 = vld [vmem:[%s6 + $0x170] sm:$0xff]
  %v1437 = vld [vmem:[%s6 + $0x178] sm:$0xff]
  %v1438 = vld [vmem:[%s6 + $0x180] sm:$0xff]
  %v1439 = vld [vmem:[%s6 + $0x188] sm:$0xff]
  %v1440 = vld [vmem:[%s6 + $0x190] sm:$0xff]
  %v1441 = vld [vmem:[%s6 + $0x198] sm:$0xff]
  %v1442 = vld [vmem:[%s6 + $0x1a0] sm:$0xff]
  %v1443 = vld [vmem:[%s6 + $0x1a8] sm:$0xff]
  %v1444 = vld [vmem:[%s6 + $0x1b0] sm:$0xff]
  %v1445 = vld [vmem:[%s6 + $0x1b8] sm:$0xff]
  %v1446 = vld [vmem:[%s6 + $0x1c0] sm:$0xff]
  %v1447 = vld [vmem:[%s6 + $0x1c8] sm:$0xff]
  %v1448 = vld [vmem:[%s6 + $0x1d0] sm:$0xff]
  %v1449 = vld [vmem:[%s6 + $0x1d8] sm:$0xff]
  %v1450 = vld [vmem:[%s6 + $0x1e0] sm:$0xff]
  %v1451 = vld [vmem:[%s6 + $0x1e8] sm:$0xff]
  %v1452 = vld [vmem:[%s6 + $0x1f0] sm:$0xff]
  %v1453 = vld [vmem:[%s6 + $0x1f8] sm:$0xff]
  %v1454 = vld [vmem:[%s6 + $0x200] sm:$0xff]
  %v1455 = vld [vmem:[%s6 + $0x208] sm:$0xff]
  %v1456 = vld [vmem:[%s6 + $0x210] sm:$0xff]
  %v1457 = vld [vmem:[%s6 + $0x218] sm:$0xff]
  %v1458 = vld [vmem:[%s6 + $0x220] sm:$0xff]
  %v1459 = vld [vmem:[%s6 + $0x228] sm:$0xff]
  %v1460 = vld [vmem:[%s6 + $0x230] sm:$0xff]
  %v1461 = vld [vmem:[%s6 + $0x238] sm:$0xff]
  %v1462 = vld [vmem:[%s6 + $0x240] sm:$0xff]
  %v1463 = vld [vmem:[%s6 + $0x248] sm:$0xff]
  %v1464 = vld [vmem:[%s6 + $0x250] sm:$0xff]
  %v1465 = vld [vmem:[%s6 + $0x258] sm:$0xff]
  %v1466 = vld [vmem:[%s6 + $0x260] sm:$0xff]
  %v1467 = vld [vmem:[%s6 + $0x268] sm:$0xff]
  %v1468 = vld [vmem:[%s6 + $0x270] sm:$0xff]
  %v1469 = vld [vmem:[%s6 + $0x278] sm:$0xff]
  %v1470 = vld [vmem:[%s6 + $0x280] sm:$0xff]
  %v1471 = vld [vmem:[%s6 + $0x288] sm:$0xff]
  %v1472 = vld [vmem:[%s6 + $0x290] sm:$0xff]
  %v1473 = vld [vmem:[%s6 + $0x298] sm:$0xff]
  %v1474 = vld [vmem:[%s6 + $0x2a0] sm:$0xff]
  %v1475 = vld [vmem:[%s6 + $0x2a8] sm:$0xff]
  %v1476 = vld [vmem:[%s6 + $0x2b0] sm:$0xff]
  %v1477 = vld [vmem:[%s6 + $0x2b8] sm:$0xff]
  %v1478 = vld [vmem:[%s6 + $0x2c0] sm:$0xff]
  %v1479 = vld [vmem:[%s6 + $0x2c8] sm:$0xff]
  %v1480 = vld [vmem:[%s6 + $0x2d0] sm:$0xff]
  %v1481 = vld [vmem:[%s6 + $0x2d8] sm:$0xff]
  %v1482 = vld [vmem:[%s6 + $0x2e0] sm:$0xff]
  %v1483 = vld [vmem:[%s6 + $0x2e8] sm:$0xff]
  %v1484 = vld [vmem:[%s6 + $0x2f0] sm:$0xff]
  %v1485 = vld [vmem:[%s6 + $0x2f8] sm:$0xff]
  %v1486 = vld [vmem:[%s6 + $0x300] sm:$0xff]
  %v1487 = vld [vmem:[%s6 + $0x308] sm:$0xff]
  %vm1488 = vcmask 130048
  %v1490 = vsel %vm1488, %v1333, 0
  %1492 = vmatpush.msra.mxu0 %v1405
  %1493 = vmatpush.msra.mxu0 %v1404
  %1494 = vmatpush.msra.mxu0 %v1403
  %1495 = vmatpush.msra.mxu0 %v1402
  %1496 = vmatpush.msra.mxu0 %v1401
  %1497 = vmatpush.msra.mxu0 %v1400
  %1498 = vmatpush.msra.mxu0 %v1399
  %1499 = vmatpush.msra.mxu0 %v1398
  %1500 = vmatpush.msra.mxu0 %v1397
  %1501 = vmatpush.msra.mxu0 %v1396
  %1502 = vmatpush.msra.mxu0 %v1395
  %1503 = vmatpush.msra.mxu0 %v1394
  %1504 = vmatpush.msra.mxu0 %v1393
  %1505 = vmatpush.msra.mxu0 %v1392
  %1506 = vmatpush.msra.mxu0 %v1391
  %1507 = vmatpush.msra.mxu0 %v1390
  %1508 = vmatmul.f32.gmra.mxu0 %v1290
  %v1509 = vpop.f32.mrf.mxu0
  %v1510 = vadd.f32 0.0, %v1509
  %1511 = vdwg.mxu0
  %1512 = vmatpush.msra.mxu0 %v1421
  %1513 = vmatpush.msra.mxu0 %v1420
  %1514 = vmatpush.msra.mxu0 %v1419
  %1515 = vmatpush.msra.mxu0 %v1418
  %1516 = vmatpush.msra.mxu0 %v1417
  %1517 = vmatpush.msra.mxu0 %v1416
  %1518 = vmatpush.msra.mxu0 %v1415
  %1519 = vmatpush.msra.mxu0 %v1414
  %1520 = vmatpush.msra.mxu0 %v1413
  %1521 = vmatpush.msra.mxu0 %v1412
  %1522 = vmatpush.msra.mxu0 %v1411
  %1523 = vmatpush.msra.mxu0 %v1410
  %1524 = vmatpush.msra.mxu0 %v1409
  %1525 = vmatpush.msra.mxu0 %v1408
  %1526 = vmatpush.msra.mxu0 %v1407
  %1527 = vmatpush.msra.mxu0 %v1406
  %1528 = vmatmul.f32.gmra.mxu0 %v1297
  %v1529 = vpop.f32.mrf.mxu0
  %v1530 = vadd.f32 %v1510, %v1529
  %1531 = vdwg.mxu0
  %1532 = vmatpush.msra.mxu0 %v1437
  %1533 = vmatpush.msra.mxu0 %v1436
  %1534 = vmatpush.msra.mxu0 %v1435
  %1535 = vmatpush.msra.mxu0 %v1434
  %1536 = vmatpush.msra.mxu0 %v1433
  %1537 = vmatpush.msra.mxu0 %v1432
  %1538 = vmatpush.msra.mxu0 %v1431
  %1539 = vmatpush.msra.mxu0 %v1430
  %1540 = vmatpush.msra.mxu0 %v1429
  %1541 = vmatpush.msra.mxu0 %v1428
  %1542 = vmatpush.msra.mxu0 %v1427
  %1543 = vmatpush.msra.mxu0 %v1426
  %1544 = vmatpush.msra.mxu0 %v1425
  %1545 = vmatpush.msra.mxu0 %v1424
  %1546 = vmatpush.msra.mxu0 %v1423
  %1547 = vmatpush.msra.mxu0 %v1422
  %1548 = vmatmul.f32.gmra.mxu0 %v1304
  %v1549 = vpop.f32.mrf.mxu0
  %v1550 = vadd.f32 %v1530, %v1549
  %1551 = vdwg.mxu0
  %1552 = vmatpush.msra.mxu0 %v1453
  %1553 = vmatpush.msra.mxu0 %v1452
  %1554 = vmatpush.msra.mxu0 %v1451
  %1555 = vmatpush.msra.mxu0 %v1450
  %1556 = vmatpush.msra.mxu0 %v1449
  %1557 = vmatpush.msra.mxu0 %v1448
  %1558 = vmatpush.msra.mxu0 %v1447
  %1559 = vmatpush.msra.mxu0 %v1446
  %1560 = vmatpush.msra.mxu0 %v1445
  %1561 = vmatpush.msra.mxu0 %v1444
  %1562 = vmatpush.msra.mxu0 %v1443
  %1563 = vmatpush.msra.mxu0 %v1442
  %1564 = vmatpush.msra.mxu0 %v1441
  %1565 = vmatpush.msra.mxu0 %v1440
  %1566 = vmatpush.msra.mxu0 %v1439
  %1567 = vmatpush.msra.mxu0 %v1438
  %1568 = vmatmul.f32.gmra.mxu0 %v1311
  %v1569 = vpop.f32.mrf.mxu0
  %v1570 = vadd.f32 %v1550, %v1569
  %1571 = vdwg.mxu0
  %1572 = vmatpush.msra.mxu0 %v1469
  %1573 = vmatpush.msra.mxu0 %v1468
  %1574 = vmatpush.msra.mxu0 %v1467
  %1575 = vmatpush.msra.mxu0 %v1466
  %1576 = vmatpush.msra.mxu0 %v1465
  %1577 = vmatpush.msra.mxu0 %v1464
  %1578 = vmatpush.msra.mxu0 %v1463
  %1579 = vmatpush.msra.mxu0 %v1462
  %1580 = vmatpush.msra.mxu0 %v1461
  %1581 = vmatpush.msra.mxu0 %v1460
  %1582 = vmatpush.msra.mxu0 %v1459
  %1583 = vmatpush.msra.mxu0 %v1458
  %1584 = vmatpush.msra.mxu0 %v1457
  %1585 = vmatpush.msra.mxu0 %v1456
  %1586 = vmatpush.msra.mxu0 %v1455
  %1587 = vmatpush.msra.mxu0 %v1454
  %1588 = vmatmul.f32.gmra.mxu0 %v1318
  %v1589 = vpop.f32.mrf.mxu0
  %v1590 = vadd.f32 %v1570, %v1589
  %1591 = vdwg.mxu0
  %1592 = vmatpush.msra.mxu0 %v1485
  %1593 = vmatpush.msra.mxu0 %v1484
  %1594 = vmatpush.msra.mxu0 %v1483
  %1595 = vmatpush.msra.mxu0 %v1482
  %1596 = vmatpush.msra.mxu0 %v1481
  %1597 = vmatpush.msra.mxu0 %v1480
  %1598 = vmatpush.msra.mxu0 %v1479
  %1599 = vmatpush.msra.mxu0 %v1478
  %1600 = vmatpush.msra.mxu0 %v1477
  %1601 = vmatpush.msra.mxu0 %v1476
  %1602 = vmatpush.msra.mxu0 %v1475
  %1603 = vmatpush.msra.mxu0 %v1474
  %1604 = vmatpush.msra.mxu0 %v1473
  %1605 = vmatpush.msra.mxu0 %v1472
  %1606 = vmatpush.msra.mxu0 %v1471
  %1607 = vmatpush.msra.mxu0 %v1470
  %1608 = vmatmul.f32.gmra.mxu0 %v1325
  %v1609 = vpop.f32.mrf.mxu0
  %v1610 = vadd.f32 %v1590, %v1609
  %1611 = vdwg.mxu0
  %1612 = vmatpush.msra.mxu0 0.0
  %1613 = vmatpush.msra.mxu0 0.0
  %1614 = vmatpush.msra.mxu0 0.0
  %1615 = vmatpush.msra.mxu0 0.0
  %1616 = vmatpush.msra.mxu0 0.0
  %1617 = vmatpush.msra.mxu0 0.0
  %1618 = vmatpush.msra.mxu0 0.0
  %1619 = vmatpush.msra.mxu0 0.0
  %1620 = vmatpush.msra.mxu0 0.0
  %1621 = vmatpush.msra.mxu0 0.0
  %1622 = vmatpush.msra.mxu0 0.0
  %1623 = vmatpush.msra.mxu0 0.0
  %1624 = vmatpush.msra.mxu0 0.0
  %1625 = vmatpush.msra.mxu0 0.0
  %1626 = vmatpush.msra.mxu0 %v1487
  %1627 = vmatpush.msra.mxu0 %v1486
  %1628 = vmatmul.f32.gmra.mxu0 %v1490
  %v1629 = vpop.f32.mrf.mxu0
  %v1630 = vadd.f32 %v1610, %v1629
  %1631 = vdwg.mxu0
  %v1633 = vsel %vm1488, %v1389, 0
  %1635 = vmatpush.msra.mxu0 %v1405
  %1636 = vmatpush.msra.mxu0 %v1404
  %1637 = vmatpush.msra.mxu0 %v1403
  %1638 = vmatpush.msra.mxu0 %v1402
  %1639 = vmatpush.msra.mxu0 %v1401
  %1640 = vmatpush.msra.mxu0 %v1400
  %1641 = vmatpush.msra.mxu0 %v1399
  %1642 = vmatpush.msra.mxu0 %v1398
  %1643 = vmatpush.msra.mxu0 %v1397
  %1644 = vmatpush.msra.mxu0 %v1396
  %1645 = vmatpush.msra.mxu0 %v1395
  %1646 = vmatpush.msra.mxu0 %v1394
  %1647 = vmatpush.msra.mxu0 %v1393
  %1648 = vmatpush.msra.mxu0 %v1392
  %1649 = vmatpush.msra.mxu0 %v1391
  %1650 = vmatpush.msra.mxu0 %v1390
  %1651 = vmatmul.f32.gmra.mxu0 %v1347
  %v1652 = vpop.f32.mrf.mxu0
  %v1653 = vadd.f32 0.0, %v1652
  %1654 = vdwg.mxu0
  %1655 = vmatpush.msra.mxu0 %v1421
  %1656 = vmatpush.msra.mxu0 %v1420
  %1657 = vmatpush.msra.mxu0 %v1419
  %1658 = vmatpush.msra.mxu0 %v1418
  %1659 = vmatpush.msra.mxu0 %v1417
  %1660 = vmatpush.msra.mxu0 %v1416
  %1661 = vmatpush.msra.mxu0 %v1415
  %1662 = vmatpush.msra.mxu0 %v1414
  %1663 = vmatpush.msra.mxu0 %v1413
  %1664 = vmatpush.msra.mxu0 %v1412
  %1665 = vmatpush.msra.mxu0 %v1411
  %1666 = vmatpush.msra.mxu0 %v1410
  %1667 = vmatpush.msra.mxu0 %v1409
  %1668 = vmatpush.msra.mxu0 %v1408
  %1669 = vmatpush.msra.mxu0 %v1407
  %1670 = vmatpush.msra.mxu0 %v1406
  %1671 = vmatmul.f32.gmra.mxu0 %v1354
  %v1672 = vpop.f32.mrf.mxu0
  %v1673 = vadd.f32 %v1653, %v1672
  %1674 = vdwg.mxu0
  %1675 = vmatpush.msra.mxu0 %v1437
  %1676 = vmatpush.msra.mxu0 %v1436
  %1677 = vmatpush.msra.mxu0 %v1435
  %1678 = vmatpush.msra.mxu0 %v1434
  %1679 = vmatpush.msra.mxu0 %v1433
  %1680 = vmatpush.msra.mxu0 %v1432
  %1681 = vmatpush.msra.mxu0 %v1431
  %1682 = vmatpush.msra.mxu0 %v1430
  %1683 = vmatpush.msra.mxu0 %v1429
  %1684 = vmatpush.msra.mxu0 %v1428
  %1685 = vmatpush.msra.mxu0 %v1427
  %1686 = vmatpush.msra.mxu0 %v1426
  %1687 = vmatpush.msra.mxu0 %v1425
  %1688 = vmatpush.msra.mxu0 %v1424
  %1689 = vmatpush.msra.mxu0 %v1423
  %1690 = vmatpush.msra.mxu0 %v1422
  %1691 = vmatmul.f32.gmra.mxu0 %v1361
  %v1692 = vpop.f32.mrf.mxu0
  %v1693 = vadd.f32 %v1673, %v1692
  %1694 = vdwg.mxu0
  %1695 = vmatpush.msra.mxu0 %v1453
  %1696 = vmatpush.msra.mxu0 %v1452
  %1697 = vmatpush.msra.mxu0 %v1451
  %1698 = vmatpush.msra.mxu0 %v1450
  %1699 = vmatpush.msra.mxu0 %v1449
  %1700 = vmatpush.msra.mxu0 %v1448
  %1701 = vmatpush.msra.mxu0 %v1447
  %1702 = vmatpush.msra.mxu0 %v1446
  %1703 = vmatpush.msra.mxu0 %v1445
  %1704 = vmatpush.msra.mxu0 %v1444
  %1705 = vmatpush.msra.mxu0 %v1443
  %1706 = vmatpush.msra.mxu0 %v1442
  %1707 = vmatpush.msra.mxu0 %v1441
  %1708 = vmatpush.msra.mxu0 %v1440
  %1709 = vmatpush.msra.mxu0 %v1439
  %1710 = vmatpush.msra.mxu0 %v1438
  %1711 = vmatmul.f32.gmra.mxu0 %v1368
  %v1712 = vpop.f32.mrf.mxu0
  %v1713 = vadd.f32 %v1693, %v1712
  %1714 = vdwg.mxu0
  %1715 = vmatpush.msra.mxu0 %v1469
  %1716 = vmatpush.msra.mxu0 %v1468
  %1717 = vmatpush.msra.mxu0 %v1467
  %1718 = vmatpush.msra.mxu0 %v1466
  %1719 = vmatpush.msra.mxu0 %v1465
  %1720 = vmatpush.msra.mxu0 %v1464
  %1721 = vmatpush.msra.mxu0 %v1463
  %1722 = vmatpush.msra.mxu0 %v1462
  %1723 = vmatpush.msra.mxu0 %v1461
  %1724 = vmatpush.msra.mxu0 %v1460
  %1725 = vmatpush.msra.mxu0 %v1459
  %1726 = vmatpush.msra.mxu0 %v1458
  %1727 = vmatpush.msra.mxu0 %v1457
  %1728 = vmatpush.msra.mxu0 %v1456
  %1729 = vmatpush.msra.mxu0 %v1455
  %1730 = vmatpush.msra.mxu0 %v1454
  %1731 = vmatmul.f32.gmra.mxu0 %v1375
  %v1732 = vpop.f32.mrf.mxu0
  %v1733 = vadd.f32 %v1713, %v1732
  %1734 = vdwg.mxu0
  %1735 = vmatpush.msra.mxu0 %v1485
  %1736 = vmatpush.msra.mxu0 %v1484
  %1737 = vmatpush.msra.mxu0 %v1483
  %1738 = vmatpush.msra.mxu0 %v1482
  %1739 = vmatpush.msra.mxu0 %v1481
  %1740 = vmatpush.msra.mxu0 %v1480
  %1741 = vmatpush.msra.mxu0 %v1479
  %1742 = vmatpush.msra.mxu0 %v1478
  %1743 = vmatpush.msra.mxu0 %v1477
  %1744 = vmatpush.msra.mxu0 %v1476
  %1745 = vmatpush.msra.mxu0 %v1475
  %1746 = vmatpush.msra.mxu0 %v1474
  %1747 = vmatpush.msra.mxu0 %v1473
  %1748 = vmatpush.msra.mxu0 %v1472
  %1749 = vmatpush.msra.mxu0 %v1471
  %1750 = vmatpush.msra.mxu0 %v1470
  %1751 = vmatmul.f32.gmra.mxu0 %v1382
  %v1752 = vpop.f32.mrf.mxu0
  %v1753 = vadd.f32 %v1733, %v1752
  %1754 = vdwg.mxu0
  %1755 = vmatpush.msra.mxu0 0.0
  %1756 = vmatpush.msra.mxu0 0.0
  %1757 = vmatpush.msra.mxu0 0.0
  %1758 = vmatpush.msra.mxu0 0.0
  %1759 = vmatpush.msra.mxu0 0.0
  %1760 = vmatpush.msra.mxu0 0.0
  %1761 = vmatpush.msra.mxu0 0.0
  %1762 = vmatpush.msra.mxu0 0.0
  %1763 = vmatpush.msra.mxu0 0.0
  %1764 = vmatpush.msra.mxu0 0.0
  %1765 = vmatpush.msra.mxu0 0.0
  %1766 = vmatpush.msra.mxu0 0.0
  %1767 = vmatpush.msra.mxu0 0.0
  %1768 = vmatpush.msra.mxu0 0.0
  %1769 = vmatpush.msra.mxu0 %v1487
  %1770 = vmatpush.msra.mxu0 %v1486
  %1771 = vmatmul.f32.gmra.mxu0 %v1633
  %v1772 = vpop.f32.mrf.mxu0
  %v1773 = vadd.f32 %v1753, %v1772
  %1774 = vdwg.mxu0
  %v1775 = vmul.f32 %v1630, 0.010204081
  %v1776 = vmul.f32 %v1773, 0.010204081
  %v1777 = vmul.f32 %v1775, %v1775
  %v1778 = vsub.f32 %v1776, %v1777
  %v1779 = vld [vmem:[%s8] sm:$0x1]
  %v1780 = vadd.f32 %v1778, 1e-05
  %v1781 = vrsqrt.pop %v1780
  %v1782 = vmul.f32 %v1781, %v1780
  %v1783 = vmul.f32 %v1782, %v1781
  %v1784 = vmul.f32 0.5, %v1783
  %v1785 = vsub.f32 1.5, %v1784
  %v1786 = vmul.f32 %v1781, %v1785
  %vm1787 = vweird.f32 %v1780
  %vm1788 = vweird.f32 %v1781
  %vm1789 = vmor %vm1787, %vm1788
  %v1790 = vsel %vm1789, %v1781, %v1786
  %v1791 = vmul.f32 %v1779, %v1790
  %v1792 = vld [vmem:[%s9] sm:$0x1]
  %v1793 = vmul.f32 %v1775, %v1791
  %v1794 = vsub.f32 %v1792, %v1793
  %v1795 = vld [vmem:[%s7] sm:$0xff]
  %v1796 = vld [vmem:[%s7 + $0x8] sm:$0xff]
  %v1797 = vld [vmem:[%s7 + $0x10] sm:$0xff]
  %v1798 = vld [vmem:[%s7 + $0x18] sm:$0xff]
  %v1799 = vld [vmem:[%s7 + $0x20] sm:$0xff]
  %v1800 = vld [vmem:[%s7 + $0x28] sm:$0xff]
  %v1801 = vld [vmem:[%s7 + $0x30] sm:$0xff]
  %v1802 = vld [vmem:[%s7 + $0x38] sm:$0xff]
  %v1803 = vld [vmem:[%s7 + $0x40] sm:$0xff]
  %v1804 = vld [vmem:[%s7 + $0x48] sm:$0xff]
  %v1805 = vld [vmem:[%s7 + $0x50] sm:$0xff]
  %v1806 = vld [vmem:[%s7 + $0x58] sm:$0xff]
  %v1807 = vld [vmem:[%s7 + $0x60] sm:$0xff]
  %v1808 = vld [vmem:[%s7 + $0x68] sm:$0xff]
  %v1810 = vsel %vm1488, %v1791, 0
  %1812 = vmatpush.msra.mxu0 0.0
  %1813 = vmatpush.msra.mxu0 0.0
  %1814 = vmatpush.msra.mxu0 0.0
  %1815 = vmatpush.msra.mxu0 0.0
  %1816 = vmatpush.msra.mxu0 0.0
  %1817 = vmatpush.msra.mxu0 0.0
  %1818 = vmatpush.msra.mxu0 0.0
  %1819 = vmatpush.msra.mxu0 0.0
  %1820 = vmatpush.msra.mxu0 0.0
  %1821 = vmatpush.msra.mxu0 0.0
  %1822 = vmatpush.msra.mxu0 0.0
  %1823 = vmatpush.msra.mxu0 0.0
  %1824 = vmatpush.msra.mxu0 0.0
  %1825 = vmatpush.msra.mxu0 0.0
  %1826 = vmatpush.msra.mxu0 %v1802
  %1827 = vmatpush.msra.mxu0 %v1795
  %1828 = vmatmul.f32.gmra.mxu0 %v1810
  %v1829 = vpop.f32.mrf.mxu0
  %v1830 = vadd.f32 0.0, %v1829
  %1831 = vdwg.mxu0
  %1832 = vmatpush.msra.mxu0 0.0
  %1833 = vmatpush.msra.mxu0 0.0
  %1834 = vmatpush.msra.mxu0 0.0
  %1835 = vmatpush.msra.mxu0 0.0
  %1836 = vmatpush.msra.mxu0 0.0
  %1837 = vmatpush.msra.mxu0 0.0
  %1838 = vmatpush.msra.mxu0 0.0
  %1839 = vmatpush.msra.mxu0 0.0
  %1840 = vmatpush.msra.mxu0 0.0
  %1841 = vmatpush.msra.mxu0 0.0
  %1842 = vmatpush.msra.mxu0 0.0
  %1843 = vmatpush.msra.mxu0 0.0
  %1844 = vmatpush.msra.mxu0 0.0
  %1845 = vmatpush.msra.mxu0 0.0
  %1846 = vmatpush.msra.mxu0 %v1803
  %1847 = vmatpush.msra.mxu0 %v1796
  %1848 = vmatmul.f32.gmra.mxu0 %v1810
  %v1849 = vpop.f32.mrf.mxu0
  %v1850 = vadd.f32 0.0, %v1849
  %1851 = vdwg.mxu0
  %1852 = vmatpush.msra.mxu0 0.0
  %1853 = vmatpush.msra.mxu0 0.0
  %1854 = vmatpush.msra.mxu0 0.0
  %1855 = vmatpush.msra.mxu0 0.0
  %1856 = vmatpush.msra.mxu0 0.0
  %1857 = vmatpush.msra.mxu0 0.0
  %1858 = vmatpush.msra.mxu0 0.0
  %1859 = vmatpush.msra.mxu0 0.0
  %1860 = vmatpush.msra.mxu0 0.0
  %1861 = vmatpush.msra.mxu0 0.0
  %1862 = vmatpush.msra.mxu0 0.0
  %1863 = vmatpush.msra.mxu0 0.0
  %1864 = vmatpush.msra.mxu0 0.0
  %1865 = vmatpush.msra.mxu0 0.0
  %1866 = vmatpush.msra.mxu0 %v1804
  %1867 = vmatpush.msra.mxu0 %v1797
  %1868 = vmatmul.f32.gmra.mxu0 %v1810
  %v1869 = vpop.f32.mrf.mxu0
  %v1870 = vadd.f32 0.0, %v1869
  %1871 = vdwg.mxu0
  %1872 = vmatpush.msra.mxu0 0.0
  %1873 = vmatpush.msra.mxu0 0.0
  %1874 = vmatpush.msra.mxu0 0.0
  %1875 = vmatpush.msra.mxu0 0.0
  %1876 = vmatpush.msra.mxu0 0.0
  %1877 = vmatpush.msra.mxu0 0.0
  %1878 = vmatpush.msra.mxu0 0.0
  %1879 = vmatpush.msra.mxu0 0.0
  %1880 = vmatpush.msra.mxu0 0.0
  %1881 = vmatpush.msra.mxu0 0.0
  %1882 = vmatpush.msra.mxu0 0.0
  %1883 = vmatpush.msra.mxu0 0.0
  %1884 = vmatpush.msra.mxu0 0.0
  %1885 = vmatpush.msra.mxu0 0.0
  %1886 = vmatpush.msra.mxu0 %v1805
  %1887 = vmatpush.msra.mxu0 %v1798
  %1888 = vmatmul.f32.gmra.mxu0 %v1810
  %v1889 = vpop.f32.mrf.mxu0
  %v1890 = vadd.f32 0.0, %v1889
  %1891 = vdwg.mxu0
  %1892 = vmatpush.msra.mxu0 0.0
  %1893 = vmatpush.msra.mxu0 0.0
  %1894 = vmatpush.msra.mxu0 0.0
  %1895 = vmatpush.msra.mxu0 0.0
  %1896 = vmatpush.msra.mxu0 0.0
  %1897 = vmatpush.msra.mxu0 0.0
  %1898 = vmatpush.msra.mxu0 0.0
  %1899 = vmatpush.msra.mxu0 0.0
  %1900 = vmatpush.msra.mxu0 0.0
  %1901 = vmatpush.msra.mxu0 0.0
  %1902 = vmatpush.msra.mxu0 0.0
  %1903 = vmatpush.msra.mxu0 0.0
  %1904 = vmatpush.msra.mxu0 0.0
  %1905 = vmatpush.msra.mxu0 0.0
  %1906 = vmatpush.msra.mxu0 %v1806
  %1907 = vmatpush.msra.mxu0 %v1799
  %1908 = vmatmul.f32.gmra.mxu0 %v1810
  %v1909 = vpop.f32.mrf.mxu0
  %v1910 = vadd.f32 0.0, %v1909
  %1911 = vdwg.mxu0
  %1912 = vmatpush.msra.mxu0 0.0
  %1913 = vmatpush.msra.mxu0 0.0
  %1914 = vmatpush.msra.mxu0 0.0
  %1915 = vmatpush.msra.mxu0 0.0
  %1916 = vmatpush.msra.mxu0 0.0
  %1917 = vmatpush.msra.mxu0 0.0
  %1918 = vmatpush.msra.mxu0 0.0
  %1919 = vmatpush.msra.mxu0 0.0
  %1920 = vmatpush.msra.mxu0 0.0
  %1921 = vmatpush.msra.mxu0 0.0
  %1922 = vmatpush.msra.mxu0 0.0
  %1923 = vmatpush.msra.mxu0 0.0
  %1924 = vmatpush.msra.mxu0 0.0
  %1925 = vmatpush.msra.mxu0 0.0
  %1926 = vmatpush.msra.mxu0 %v1807
  %1927 = vmatpush.msra.mxu0 %v1800
  %1928 = vmatmul.f32.gmra.mxu0 %v1810
  %v1929 = vpop.f32.mrf.mxu0
  %v1930 = vadd.f32 0.0, %v1929
  %1931 = vdwg.mxu0
  %1932 = vmatpush.msra.mxu0 0.0
  %1933 = vmatpush.msra.mxu0 0.0
  %1934 = vmatpush.msra.mxu0 0.0
  %1935 = vmatpush.msra.mxu0 0.0
  %1936 = vmatpush.msra.mxu0 0.0
  %1937 = vmatpush.msra.mxu0 0.0
  %1938 = vmatpush.msra.mxu0 0.0
  %1939 = vmatpush.msra.mxu0 0.0
  %1940 = vmatpush.msra.mxu0 0.0
  %1941 = vmatpush.msra.mxu0 0.0
  %1942 = vmatpush.msra.mxu0 0.0
  %1943 = vmatpush.msra.mxu0 0.0
  %1944 = vmatpush.msra.mxu0 0.0
  %1945 = vmatpush.msra.mxu0 0.0
  %1946 = vmatpush.msra.mxu0 %v1808
  %1947 = vmatpush.msra.mxu0 %v1801
  %1948 = vmatmul.f32.gmra.mxu0 %v1810
  %v1949 = vpop.f32.mrf.mxu0
  %v1950 = vadd.f32 0.0, %v1949
  %1951 = vdwg.mxu0
  %v1953 = vsel %vm1488, %v1794, 0
  %1955 = vmatpush.msra.mxu0 0.0
  %1956 = vmatpush.msra.mxu0 0.0
  %1957 = vmatpush.msra.mxu0 0.0
  %1958 = vmatpush.msra.mxu0 0.0
  %1959 = vmatpush.msra.mxu0 0.0
  %1960 = vmatpush.msra.mxu0 0.0
  %1961 = vmatpush.msra.mxu0 0.0
  %1962 = vmatpush.msra.mxu0 0.0
  %1963 = vmatpush.msra.mxu0 0.0
  %1964 = vmatpush.msra.mxu0 0.0
  %1965 = vmatpush.msra.mxu0 0.0
  %1966 = vmatpush.msra.mxu0 0.0
  %1967 = vmatpush.msra.mxu0 0.0
  %1968 = vmatpush.msra.mxu0 0.0
  %1969 = vmatpush.msra.mxu0 %v1802
  %1970 = vmatpush.msra.mxu0 %v1795
  %1971 = vmatmul.f32.gmra.mxu0 %v1953
  %v1972 = vpop.f32.mrf.mxu0
  %v1973 = vadd.f32 0.0, %v1972
  %1974 = vdwg.mxu0
  %1975 = vmatpush.msra.mxu0 0.0
  %1976 = vmatpush.msra.mxu0 0.0
  %1977 = vmatpush.msra.mxu0 0.0
  %1978 = vmatpush.msra.mxu0 0.0
  %1979 = vmatpush.msra.mxu0 0.0
  %1980 = vmatpush.msra.mxu0 0.0
  %1981 = vmatpush.msra.mxu0 0.0
  %1982 = vmatpush.msra.mxu0 0.0
  %1983 = vmatpush.msra.mxu0 0.0
  %1984 = vmatpush.msra.mxu0 0.0
  %1985 = vmatpush.msra.mxu0 0.0
  %1986 = vmatpush.msra.mxu0 0.0
  %1987 = vmatpush.msra.mxu0 0.0
  %1988 = vmatpush.msra.mxu0 0.0
  %1989 = vmatpush.msra.mxu0 %v1803
  %1990 = vmatpush.msra.mxu0 %v1796
  %1991 = vmatmul.f32.gmra.mxu0 %v1953
  %v1992 = vpop.f32.mrf.mxu0
  %v1993 = vadd.f32 0.0, %v1992
  %1994 = vdwg.mxu0
  %1995 = vmatpush.msra.mxu0 0.0
  %1996 = vmatpush.msra.mxu0 0.0
  %1997 = vmatpush.msra.mxu0 0.0
  %1998 = vmatpush.msra.mxu0 0.0
  %1999 = vmatpush.msra.mxu0 0.0
  %2000 = vmatpush.msra.mxu0 0.0
  %2001 = vmatpush.msra.mxu0 0.0
  %2002 = vmatpush.msra.mxu0 0.0
  %2003 = vmatpush.msra.mxu0 0.0
  %2004 = vmatpush.msra.mxu0 0.0
  %2005 = vmatpush.msra.mxu0 0.0
  %2006 = vmatpush.msra.mxu0 0.0
  %2007 = vmatpush.msra.mxu0 0.0
  %2008 = vmatpush.msra.mxu0 0.0
  %2009 = vmatpush.msra.mxu0 %v1804
  %2010 = vmatpush.msra.mxu0 %v1797
  %2011 = vmatmul.f32.gmra.mxu0 %v1953
  %v2012 = vpop.f32.mrf.mxu0
  %v2013 = vadd.f32 0.0, %v2012
  %2014 = vdwg.mxu0
  %2015 = vmatpush.msra.mxu0 0.0
  %2016 = vmatpush.msra.mxu0 0.0
  %2017 = vmatpush.msra.mxu0 0.0
  %2018 = vmatpush.msra.mxu0 0.0
  %2019 = vmatpush.msra.mxu0 0.0
  %2020 = vmatpush.msra.mxu0 0.0
  %2021 = vmatpush.msra.mxu0 0.0
  %2022 = vmatpush.msra.mxu0 0.0
  %2023 = vmatpush.msra.mxu0 0.0
  %2024 = vmatpush.msra.mxu0 0.0
  %2025 = vmatpush.msra.mxu0 0.0
  %2026 = vmatpush.msra.mxu0 0.0
  %2027 = vmatpush.msra.mxu0 0.0
  %2028 = vmatpush.msra.mxu0 0.0
  %2029 = vmatpush.msra.mxu0 %v1805
  %2030 = vmatpush.msra.mxu0 %v1798
  %2031 = vmatmul.f32.gmra.mxu0 %v1953
  %v2032 = vpop.f32.mrf.mxu0
  %v2033 = vadd.f32 0.0, %v2032
  %2034 = vdwg.mxu0
  %2035 = vmatpush.msra.mxu0 0.0
  %2036 = vmatpush.msra.mxu0 0.0
  %2037 = vmatpush.msra.mxu0 0.0
  %2038 = vmatpush.msra.mxu0 0.0
  %2039 = vmatpush.msra.mxu0 0.0
  %2040 = vmatpush.msra.mxu0 0.0
  %2041 = vmatpush.msra.mxu0 0.0
  %2042 = vmatpush.msra.mxu0 0.0
  %2043 = vmatpush.msra.mxu0 0.0
  %2044 = vmatpush.msra.mxu0 0.0
  %2045 = vmatpush.msra.mxu0 0.0
  %2046 = vmatpush.msra.mxu0 0.0
  %2047 = vmatpush.msra.mxu0 0.0
  %2048 = vmatpush.msra.mxu0 0.0
  %2049 = vmatpush.msra.mxu0 %v1806
  %2050 = vmatpush.msra.mxu0 %v1799
  %2051 = vmatmul.f32.gmra.mxu0 %v1953
  %v2052 = vpop.f32.mrf.mxu0
  %v2053 = vadd.f32 0.0, %v2052
  %2054 = vdwg.mxu0
  %2055 = vmatpush.msra.mxu0 0.0
  %2056 = vmatpush.msra.mxu0 0.0
  %2057 = vmatpush.msra.mxu0 0.0
  %2058 = vmatpush.msra.mxu0 0.0
  %2059 = vmatpush.msra.mxu0 0.0
  %2060 = vmatpush.msra.mxu0 0.0
  %2061 = vmatpush.msra.mxu0 0.0
  %2062 = vmatpush.msra.mxu0 0.0
  %2063 = vmatpush.msra.mxu0 0.0
  %2064 = vmatpush.msra.mxu0 0.0
  %2065 = vmatpush.msra.mxu0 0.0
  %2066 = vmatpush.msra.mxu0 0.0
  %2067 = vmatpush.msra.mxu0 0.0
  %2068 = vmatpush.msra.mxu0 0.0
  %2069 = vmatpush.msra.mxu0 %v1807
  %2070 = vmatpush.msra.mxu0 %v1800
  %2071 = vmatmul.f32.gmra.mxu0 %v1953
  %v2072 = vpop.f32.mrf.mxu0
  %v2073 = vadd.f32 0.0, %v2072
  %2074 = vdwg.mxu0
  %2075 = vmatpush.msra.mxu0 0.0
  %2076 = vmatpush.msra.mxu0 0.0
  %2077 = vmatpush.msra.mxu0 0.0
  %2078 = vmatpush.msra.mxu0 0.0
  %2079 = vmatpush.msra.mxu0 0.0
  %2080 = vmatpush.msra.mxu0 0.0
  %2081 = vmatpush.msra.mxu0 0.0
  %2082 = vmatpush.msra.mxu0 0.0
  %2083 = vmatpush.msra.mxu0 0.0
  %2084 = vmatpush.msra.mxu0 0.0
  %2085 = vmatpush.msra.mxu0 0.0
  %2086 = vmatpush.msra.mxu0 0.0
  %2087 = vmatpush.msra.mxu0 0.0
  %2088 = vmatpush.msra.mxu0 0.0
  %2089 = vmatpush.msra.mxu0 %v1808
  %2090 = vmatpush.msra.mxu0 %v1801
  %2091 = vmatmul.f32.gmra.mxu0 %v1953
  %v2092 = vpop.f32.mrf.mxu0
  %v2093 = vadd.f32 0.0, %v2092
  %2094 = vdwg.mxu0
  %v2095 = vperm.slane %v1830, 0
  %v2096 = vperm.slane %v1850, 0
  %v2097 = vperm.slane %v1870, 0
  %v2098 = vperm.slane %v1890, 0
  %v2099 = vperm.slane %v1910, 0
  %v2100 = vperm.slane %v1930, 0
  %v2101 = vperm.slane %v1950, 0
  %v2102 = vmul.f32 %v1046, %v2095
  %v2103 = vmul.f32 %v1085, %v2096
  %v2104 = vmul.f32 %v1124, %v2097
  %v2105 = vmul.f32 %v1163, %v2098
  %v2106 = vmul.f32 %v1202, %v2099
  %v2107 = vmul.f32 %v1241, %v2100
  %v2108 = vmul.f32 %v1280, %v2101
  %v2109 = vperm.slane %v1973, 0
  %v2110 = vperm.slane %v1993, 0
  %v2111 = vperm.slane %v2013, 0
  %v2112 = vperm.slane %v2033, 0
  %v2113 = vperm.slane %v2053, 0
  %v2114 = vperm.slane %v2073, 0
  %v2115 = vperm.slane %v2093, 0
  %v2116 = vadd.f32 %v2102, %v2109
  %v2117 = vadd.f32 %v2103, %v2110
  %v2118 = vadd.f32 %v2104, %v2111
  %v2119 = vadd.f32 %v2105, %v2112
  %v2120 = vadd.f32 %v2106, %v2113
  %v2121 = vadd.f32 %v2107, %v2114
  %v2122 = vadd.f32 %v2108, %v2115
  %v2123 = vmax.f32 %v2116, 0.0
  %v2124 = vmax.f32 %v2117, 0.0
  %v2125 = vmax.f32 %v2118, 0.0
  %v2126 = vmax.f32 %v2119, 0.0
  %v2127 = vmax.f32 %v2120, 0.0
  %v2128 = vmax.f32 %v2121, 0.0
  %v2129 = vmax.f32 %v2122, 0.0
  %v2130 = vpack.c.bf16 %v2123, %v2123
  %v2131 = vpack.c.bf16 %v2124, %v2124
  %v2132 = vpack.c.bf16 %v2125, %v2125
  %v2133 = vpack.c.bf16 %v2126, %v2126
  %v2134 = vpack.c.bf16 %v2127, %v2127
  %v2135 = vpack.c.bf16 %v2128, %v2128
  %v2136 = vpack.c.bf16 %v2129, %v2129
  %v2137 = vld [vmem:[%s10] sm:$0xff]
  %v2138 = vld [vmem:[%s10 + $0x8] sm:$0xff]
  %v2139 = vld [vmem:[%s10 + $0x10] sm:$0xff]
  %v2140 = vld [vmem:[%s10 + $0x18] sm:$0xff]
  %v2141 = vld [vmem:[%s10 + $0x20] sm:$0xff]
  %v2142 = vld [vmem:[%s10 + $0x28] sm:$0xff]
  %v2143 = vld [vmem:[%s10 + $0x30] sm:$0xf]
  %v2144 = vld [vmem:[%s10 + $0x34] sm:$0xff]
  %v2145 = vld [vmem:[%s10 + $0x3c] sm:$0xff]
  %v2146 = vld [vmem:[%s10 + $0x44] sm:$0xff]
  %v2147 = vld [vmem:[%s10 + $0x4c] sm:$0xff]
  %v2148 = vld [vmem:[%s10 + $0x54] sm:$0xff]
  %v2149 = vld [vmem:[%s10 + $0x5c] sm:$0xff]
  %v2150 = vld [vmem:[%s10 + $0x64] sm:$0xf]
  %v2151 = vld [vmem:[%s10 + $0x68] sm:$0xff]
  %v2152 = vld [vmem:[%s10 + $0x70] sm:$0xff]
  %v2153 = vld [vmem:[%s10 + $0x78] sm:$0xff]
  %v2154 = vld [vmem:[%s10 + $0x80] sm:$0xff]
  %v2155 = vld [vmem:[%s10 + $0x88] sm:$0xff]
  %v2156 = vld [vmem:[%s10 + $0x90] sm:$0xff]
  %v2157 = vld [vmem:[%s10 + $0x98] sm:$0xf]
  %v2158 = vld [vmem:[%s10 + $0x9c] sm:$0xff]
  %v2159 = vld [vmem:[%s10 + $0xa4] sm:$0xff]
  %v2160 = vld [vmem:[%s10 + $0xac] sm:$0xff]
  %v2161 = vld [vmem:[%s10 + $0xb4] sm:$0xff]
  %v2162 = vld [vmem:[%s10 + $0xbc] sm:$0xff]
  %v2163 = vld [vmem:[%s10 + $0xc4] sm:$0xff]
  %v2164 = vld [vmem:[%s10 + $0xcc] sm:$0xf]
  %v2165 = vld [vmem:[%s10 + $0xd0] sm:$0xff]
  %v2166 = vld [vmem:[%s10 + $0xd8] sm:$0xff]
  %v2167 = vld [vmem:[%s10 + $0xe0] sm:$0xff]
  %v2168 = vld [vmem:[%s10 + $0xe8] sm:$0xff]
  %v2169 = vld [vmem:[%s10 + $0xf0] sm:$0xff]
  %v2170 = vld [vmem:[%s10 + $0xf8] sm:$0xff]
  %v2171 = vld [vmem:[%s10 + $0x100] sm:$0xf]
  %v2172 = vld [vmem:[%s10 + $0x104] sm:$0xff]
  %v2173 = vld [vmem:[%s10 + $0x10c] sm:$0xff]
  %v2174 = vld [vmem:[%s10 + $0x114] sm:$0xff]
  %v2175 = vld [vmem:[%s10 + $0x11c] sm:$0xff]
  %v2176 = vld [vmem:[%s10 + $0x124] sm:$0xff]
  %v2177 = vld [vmem:[%s10 + $0x12c] sm:$0xff]
  %v2178 = vld [vmem:[%s10 + $0x134] sm:$0xf]
  %v2179 = vld [vmem:[%s10 + $0x138] sm:$0xff]
  %v2180 = vld [vmem:[%s10 + $0x140] sm:$0xff]
  %v2181 = vld [vmem:[%s10 + $0x148] sm:$0xff]
  %v2182 = vld [vmem:[%s10 + $0x150] sm:$0xff]
  %v2183 = vld [vmem:[%s10 + $0x158] sm:$0xff]
  %v2184 = vld [vmem:[%s10 + $0x160] sm:$0xff]
  %v2185 = vld [vmem:[%s10 + $0x168] sm:$0xf]
  %v2186 = vld [vmem:[%s10 + $0x16c] sm:$0xff]
  %v2187 = vld [vmem:[%s10 + $0x174] sm:$0xff]
  %v2188 = vld [vmem:[%s10 + $0x17c] sm:$0xff]
  %v2189 = vld [vmem:[%s10 + $0x184] sm:$0xff]
  %v2190 = vld [vmem:[%s10 + $0x18c] sm:$0xff]
  %v2191 = vld [vmem:[%s10 + $0x194] sm:$0xff]
  %v2192 = vld [vmem:[%s10 + $0x19c] sm:$0xf]
  %v2193 = vld [vmem:[%s10 + $0x1a0] sm:$0xff]
  %v2194 = vld [vmem:[%s10 + $0x1a8] sm:$0xff]
  %v2195 = vld [vmem:[%s10 + $0x1b0] sm:$0xff]
  %v2196 = vld [vmem:[%s10 + $0x1b8] sm:$0xff]
  %v2197 = vld [vmem:[%s10 + $0x1c0] sm:$0xff]
  %v2198 = vld [vmem:[%s10 + $0x1c8] sm:$0xff]
  %v2199 = vld [vmem:[%s10 + $0x1d0] sm:$0xf]
  %v2200 = vld [vmem:[%s10 + $0x1d4] sm:$0xff]
  %v2201 = vld [vmem:[%s10 + $0x1dc] sm:$0xff]
  %v2202 = vld [vmem:[%s10 + $0x1e4] sm:$0xff]
  %v2203 = vld [vmem:[%s10 + $0x1ec] sm:$0xff]
  %v2204 = vld [vmem:[%s10 + $0x1f4] sm:$0xff]
  %v2205 = vld [vmem:[%s10 + $0x1fc] sm:$0xff]
  %v2206 = vld [vmem:[%s10 + $0x204] sm:$0xf]
  %v2207 = vld [vmem:[%s10 + $0x208] sm:$0xff]
  %v2208 = vld [vmem:[%s10 + $0x210] sm:$0xff]
  %v2209 = vld [vmem:[%s10 + $0x218] sm:$0xff]
  %v2210 = vld [vmem:[%s10 + $0x220] sm:$0xff]
  %v2211 = vld [vmem:[%s10 + $0x228] sm:$0xff]
  %v2212 = vld [vmem:[%s10 + $0x230] sm:$0xff]
  %v2213 = vld [vmem:[%s10 + $0x238] sm:$0xf]
  %v2214 = vld [vmem:[%s10 + $0x23c] sm:$0xff]
  %v2215 = vld [vmem:[%s10 + $0x244] sm:$0xff]
  %v2216 = vld [vmem:[%s10 + $0x24c] sm:$0xff]
  %v2217 = vld [vmem:[%s10 + $0x254] sm:$0xff]
  %v2218 = vld [vmem:[%s10 + $0x25c] sm:$0xff]
  %v2219 = vld [vmem:[%s10 + $0x264] sm:$0xff]
  %v2220 = vld [vmem:[%s10 + $0x26c] sm:$0xf]
  %v2221 = vld [vmem:[%s10 + $0x270] sm:$0xff]
  %v2222 = vld [vmem:[%s10 + $0x278] sm:$0xff]
  %v2223 = vld [vmem:[%s10 + $0x280] sm:$0xff]
  %v2224 = vld [vmem:[%s10 + $0x288] sm:$0xff]
  %v2225 = vld [vmem:[%s10 + $0x290] sm:$0xff]
  %v2226 = vld [vmem:[%s10 + $0x298] sm:$0xff]
  %v2227 = vld [vmem:[%s10 + $0x2a0] sm:$0xf]
  %v2228 = vld [vmem:[%s10 + $0x2a4] sm:$0xff]
  %v2229 = vld [vmem:[%s10 + $0x2ac] sm:$0xff]
  %v2230 = vld [vmem:[%s10 + $0x2b4] sm:$0xff]
  %v2231 = vld [vmem:[%s10 + $0x2bc] sm:$0xff]
  %v2232 = vld [vmem:[%s10 + $0x2c4] sm:$0xff]
  %v2233 = vld [vmem:[%s10 + $0x2cc] sm:$0xff]
  %v2234 = vld [vmem:[%s10 + $0x2d4] sm:$0xf]
  %v2235 = vld [vmem:[%s10 + $0x2d8] sm:$0xff]
  %v2236 = vld [vmem:[%s10 + $0x2e0] sm:$0xff]
  %v2237 = vld [vmem:[%s10 + $0x2e8] sm:$0xff]
  %v2238 = vld [vmem:[%s10 + $0x2f0] sm:$0xff]
  %v2239 = vld [vmem:[%s10 + $0x2f8] sm:$0xff]
  %v2240 = vld [vmem:[%s10 + $0x300] sm:$0xff]
  %v2241 = vld [vmem:[%s10 + $0x308] sm:$0xf]
  %v2242 = vld [vmem:[%s10 + $0x30c] sm:$0xff]
  %v2243 = vld [vmem:[%s10 + $0x314] sm:$0xff]
  %v2244 = vld [vmem:[%s10 + $0x31c] sm:$0xff]
  %v2245 = vld [vmem:[%s10 + $0x324] sm:$0xff]
  %v2246 = vld [vmem:[%s10 + $0x32c] sm:$0xff]
  %v2247 = vld [vmem:[%s10 + $0x334] sm:$0xff]
  %v2248 = vld [vmem:[%s10 + $0x33c] sm:$0xf]
  %v2249 = vld [vmem:[%s10 + $0x340] sm:$0xff]
  %v2250 = vld [vmem:[%s10 + $0x348] sm:$0xff]
  %v2251 = vld [vmem:[%s10 + $0x350] sm:$0xff]
  %v2252 = vld [vmem:[%s10 + $0x358] sm:$0xff]
  %v2253 = vld [vmem:[%s10 + $0x360] sm:$0xff]
  %v2254 = vld [vmem:[%s10 + $0x368] sm:$0xff]
  %v2255 = vld [vmem:[%s10 + $0x370] sm:$0xf]
  %v2256 = vld [vmem:[%s10 + $0x374] sm:$0xff]
  %v2257 = vld [vmem:[%s10 + $0x37c] sm:$0xff]
  %v2258 = vld [vmem:[%s10 + $0x384] sm:$0xff]
  %v2259 = vld [vmem:[%s10 + $0x38c] sm:$0xff]
  %v2260 = vld [vmem:[%s10 + $0x394] sm:$0xff]
  %v2261 = vld [vmem:[%s10 + $0x39c] sm:$0xff]
  %v2262 = vld [vmem:[%s10 + $0x3a4] sm:$0xf]
  %v2263 = vld [vmem:[%s10 + $0x3a8] sm:$0xff]
  %v2264 = vld [vmem:[%s10 + $0x3b0] sm:$0xff]
  %v2265 = vld [vmem:[%s10 + $0x3b8] sm:$0xff]
  %v2266 = vld [vmem:[%s10 + $0x3c0] sm:$0xff]
  %v2267 = vld [vmem:[%s10 + $0x3c8] sm:$0xff]
  %v2268 = vld [vmem:[%s10 + $0x3d0] sm:$0xff]
  %v2269 = vld [vmem:[%s10 + $0x3d8] sm:$0xf]
  %v2270 = vld [vmem:[%s10 + $0x3dc] sm:$0xff]
  %v2271 = vld [vmem:[%s10 + $0x3e4] sm:$0xff]
  %v2272 = vld [vmem:[%s10 + $0x3ec] sm:$0xff]
  %v2273 = vld [vmem:[%s10 + $0x3f4] sm:$0xff]
  %v2274 = vld [vmem:[%s10 + $0x3fc] sm:$0xff]
  %v2275 = vld [vmem:[%s10 + $0x404] sm:$0xff]
  %v2276 = vld [vmem:[%s10 + $0x40c] sm:$0xf]
  %v2277 = vld [vmem:[%s10 + $0x410] sm:$0xff]
  %v2278 = vld [vmem:[%s10 + $0x418] sm:$0xff]
  %v2279 = vld [vmem:[%s10 + $0x420] sm:$0xff]
  %v2280 = vld [vmem:[%s10 + $0x428] sm:$0xff]
  %v2281 = vld [vmem:[%s10 + $0x430] sm:$0xff]
  %v2282 = vld [vmem:[%s10 + $0x438] sm:$0xff]
  %v2283 = vld [vmem:[%s10 + $0x440] sm:$0xf]
  %v2284 = vld [vmem:[%s10 + $0x444] sm:$0xff]
  %v2285 = vld [vmem:[%s10 + $0x44c] sm:$0xff]
  %v2286 = vld [vmem:[%s10 + $0x454] sm:$0xff]
  %v2287 = vld [vmem:[%s10 + $0x45c] sm:$0xff]
  %v2288 = vld [vmem:[%s10 + $0x464] sm:$0xff]
  %v2289 = vld [vmem:[%s10 + $0x46c] sm:$0xff]
  %v2290 = vld [vmem:[%s10 + $0x474] sm:$0xf]
  %v2291 = vld [vmem:[%s10 + $0x478] sm:$0xff]
  %v2292 = vld [vmem:[%s10 + $0x480] sm:$0xff]
  %v2293 = vld [vmem:[%s10 + $0x488] sm:$0xff]
  %v2294 = vld [vmem:[%s10 + $0x490] sm:$0xff]
  %v2295 = vld [vmem:[%s10 + $0x498] sm:$0xff]
  %v2296 = vld [vmem:[%s10 + $0x4a0] sm:$0xff]
  %v2297 = vld [vmem:[%s10 + $0x4a8] sm:$0xf]
  %v2298 = vld [vmem:[%s10 + $0x4ac] sm:$0xff]
  %v2299 = vld [vmem:[%s10 + $0x4b4] sm:$0xff]
  %v2300 = vld [vmem:[%s10 + $0x4bc] sm:$0xff]
  %v2301 = vld [vmem:[%s10 + $0x4c4] sm:$0xff]
  %v2302 = vld [vmem:[%s10 + $0x4cc] sm:$0xff]
  %v2303 = vld [vmem:[%s10 + $0x4d4] sm:$0xff]
  %v2304 = vld [vmem:[%s10 + $0x4dc] sm:$0xf]
  %v2305 = vld [vmem:[%s10 + $0x4e0] sm:$0xff]
  %v2306 = vld [vmem:[%s10 + $0x4e8] sm:$0xff]
  %v2307 = vld [vmem:[%s10 + $0x4f0] sm:$0xff]
  %v2308 = vld [vmem:[%s10 + $0x4f8] sm:$0xff]
  %v2309 = vld [vmem:[%s10 + $0x500] sm:$0xff]
  %v2310 = vld [vmem:[%s10 + $0x508] sm:$0xff]
  %v2311 = vld [vmem:[%s10 + $0x510] sm:$0xf]
  %v2312 = vld [vmem:[%s10 + $0x514] sm:$0xff]
  %v2313 = vld [vmem:[%s10 + $0x51c] sm:$0xff]
  %v2314 = vld [vmem:[%s10 + $0x524] sm:$0xff]
  %v2315 = vld [vmem:[%s10 + $0x52c] sm:$0xff]
  %v2316 = vld [vmem:[%s10 + $0x534] sm:$0xff]
  %v2317 = vld [vmem:[%s10 + $0x53c] sm:$0xff]
  %v2318 = vld [vmem:[%s10 + $0x544] sm:$0xf]
  %v2319 = vld [vmem:[%s10 + $0x548] sm:$0xff]
  %v2320 = vld [vmem:[%s10 + $0x550] sm:$0xff]
  %v2321 = vld [vmem:[%s10 + $0x558] sm:$0xff]
  %v2322 = vld [vmem:[%s10 + $0x560] sm:$0xff]
  %v2323 = vld [vmem:[%s10 + $0x568] sm:$0xff]
  %v2324 = vld [vmem:[%s10 + $0x570] sm:$0xff]
  %v2325 = vld [vmem:[%s10 + $0x578] sm:$0xf]
  %v2326 = vld [vmem:[%s10 + $0x57c] sm:$0xff]
  %v2327 = vld [vmem:[%s10 + $0x584] sm:$0xff]
  %v2328 = vld [vmem:[%s10 + $0x58c] sm:$0xff]
  %v2329 = vld [vmem:[%s10 + $0x594] sm:$0xff]
  %v2330 = vld [vmem:[%s10 + $0x59c] sm:$0xff]
  %v2331 = vld [vmem:[%s10 + $0x5a4] sm:$0xff]
  %v2332 = vld [vmem:[%s10 + $0x5ac] sm:$0xf]
  %v2333 = vld [vmem:[%s10 + $0x5b0] sm:$0xff]
  %v2334 = vld [vmem:[%s10 + $0x5b8] sm:$0xff]
  %v2335 = vld [vmem:[%s10 + $0x5c0] sm:$0xff]
  %v2336 = vld [vmem:[%s10 + $0x5c8] sm:$0xff]
  %v2337 = vld [vmem:[%s10 + $0x5d0] sm:$0xff]
  %v2338 = vld [vmem:[%s10 + $0x5d8] sm:$0xff]
  %v2339 = vld [vmem:[%s10 + $0x5e0] sm:$0xf]
  %v2340 = vld [vmem:[%s10 + $0x5e4] sm:$0xff]
  %v2341 = vld [vmem:[%s10 + $0x5ec] sm:$0xff]
  %v2342 = vld [vmem:[%s10 + $0x5f4] sm:$0xff]
  %v2343 = vld [vmem:[%s10 + $0x5fc] sm:$0xff]
  %v2344 = vld [vmem:[%s10 + $0x604] sm:$0xff]
  %v2345 = vld [vmem:[%s10 + $0x60c] sm:$0xff]
  %v2346 = vld [vmem:[%s10 + $0x614] sm:$0xf]
  %v2347 = vld [vmem:[%s10 + $0x618] sm:$0xff]
  %v2348 = vld [vmem:[%s10 + $0x620] sm:$0xff]
  %v2349 = vld [vmem:[%s10 + $0x628] sm:$0xff]
  %v2350 = vld [vmem:[%s10 + $0x630] sm:$0xff]
  %v2351 = vld [vmem:[%s10 + $0x638] sm:$0xff]
  %v2352 = vld [vmem:[%s10 + $0x640] sm:$0xff]
  %v2353 = vld [vmem:[%s10 + $0x648] sm:$0xf]
  %v2354 = vld [vmem:[%s10 + $0x64c] sm:$0xff]
  %v2355 = vld [vmem:[%s10 + $0x654] sm:$0xff]
  %v2356 = vld [vmem:[%s10 + $0x65c] sm:$0xff]
  %v2357 = vld [vmem:[%s10 + $0x664] sm:$0xff]
  %v2358 = vld [vmem:[%s10 + $0x66c] sm:$0xff]
  %v2359 = vld [vmem:[%s10 + $0x674] sm:$0xff]
  %v2360 = vld [vmem:[%s10 + $0x67c] sm:$0xf]
  %v2361 = vld [vmem:[%s10 + $0x680] sm:$0xff]
  %v2362 = vld [vmem:[%s10 + $0x688] sm:$0xff]
  %v2363 = vld [vmem:[%s10 + $0x690] sm:$0xff]
  %v2364 = vld [vmem:[%s10 + $0x698] sm:$0xff]
  %v2365 = vld [vmem:[%s10 + $0x6a0] sm:$0xff]
  %v2366 = vld [vmem:[%s10 + $0x6a8] sm:$0xff]
  %v2367 = vld [vmem:[%s10 + $0x6b0] sm:$0xf]
  %v2368 = vld [vmem:[%s10 + $0x6b4] sm:$0xff]
  %v2369 = vld [vmem:[%s10 + $0x6bc] sm:$0xff]
  %v2370 = vld [vmem:[%s10 + $0x6c4] sm:$0xff]
  %v2371 = vld [vmem:[%s10 + $0x6cc] sm:$0xff]
  %v2372 = vld [vmem:[%s10 + $0x6d4] sm:$0xff]
  %v2373 = vld [vmem:[%s10 + $0x6dc] sm:$0xff]
  %v2374 = vld [vmem:[%s10 + $0x6e4] sm:$0xf]
  %v2375 = vld [vmem:[%s10 + $0x6e8] sm:$0xff]
  %v2376 = vld [vmem:[%s10 + $0x6f0] sm:$0xff]
  %v2377 = vld [vmem:[%s10 + $0x6f8] sm:$0xff]
  %v2378 = vld [vmem:[%s10 + $0x700] sm:$0xff]
  %v2379 = vld [vmem:[%s10 + $0x708] sm:$0xff]
  %v2380 = vld [vmem:[%s10 + $0x710] sm:$0xff]
  %v2381 = vld [vmem:[%s10 + $0x718] sm:$0xf]
  %v2382 = vld [vmem:[%s10 + $0x71c] sm:$0xff]
  %v2383 = vld [vmem:[%s10 + $0x724] sm:$0xff]
  %v2384 = vld [vmem:[%s10 + $0x72c] sm:$0xff]
  %v2385 = vld [vmem:[%s10 + $0x734] sm:$0xff]
  %v2386 = vld [vmem:[%s10 + $0x73c] sm:$0xff]
  %v2387 = vld [vmem:[%s10 + $0x744] sm:$0xff]
  %v2388 = vld [vmem:[%s10 + $0x74c] sm:$0xf]
  %v2389 = vld [vmem:[%s10 + $0x750] sm:$0xff]
  %v2390 = vld [vmem:[%s10 + $0x758] sm:$0xff]
  %v2391 = vld [vmem:[%s10 + $0x760] sm:$0xff]
  %v2392 = vld [vmem:[%s10 + $0x768] sm:$0xff]
  %v2393 = vld [vmem:[%s10 + $0x770] sm:$0xff]
  %v2394 = vld [vmem:[%s10 + $0x778] sm:$0xff]
  %v2395 = vld [vmem:[%s10 + $0x780] sm:$0xf]
  %v2396 = vld [vmem:[%s10 + $0x784] sm:$0xff]
  %v2397 = vld [vmem:[%s10 + $0x78c] sm:$0xff]
  %v2398 = vld [vmem:[%s10 + $0x794] sm:$0xff]
  %v2399 = vld [vmem:[%s10 + $0x79c] sm:$0xff]
  %v2400 = vld [vmem:[%s10 + $0x7a4] sm:$0xff]
  %v2401 = vld [vmem:[%s10 + $0x7ac] sm:$0xff]
  %v2402 = vld [vmem:[%s10 + $0x7b4] sm:$0xf]
  %v2403 = vld [vmem:[%s10 + $0x7b8] sm:$0xff]
  %v2404 = vld [vmem:[%s10 + $0x7c0] sm:$0xff]
  %v2405 = vld [vmem:[%s10 + $0x7c8] sm:$0xff]
  %v2406 = vld [vmem:[%s10 + $0x7d0] sm:$0xff]
  %v2407 = vld [vmem:[%s10 + $0x7d8] sm:$0xff]
  %v2408 = vld [vmem:[%s10 + $0x7e0] sm:$0xff]
  %v2409 = vld [vmem:[%s10 + $0x7e8] sm:$0xf]
  %v2410 = vld [vmem:[%s10 + $0x7ec] sm:$0xff]
  %v2411 = vld [vmem:[%s10 + $0x7f4] sm:$0xff]
  %v2412 = vld [vmem:[%s10 + $0x7fc] sm:$0xff]
  %v2413 = vld [vmem:[%s10 + $0x804] sm:$0xff]
  %v2414 = vld [vmem:[%s10 + $0x80c] sm:$0xff]
  %v2415 = vld [vmem:[%s10 + $0x814] sm:$0xff]
  %v2416 = vld [vmem:[%s10 + $0x81c] sm:$0xf]
  %v2417 = vld [vmem:[%s10 + $0x820] sm:$0xff]
  %v2418 = vld [vmem:[%s10 + $0x828] sm:$0xff]
  %v2419 = vld [vmem:[%s10 + $0x830] sm:$0xff]
  %v2420 = vld [vmem:[%s10 + $0x838] sm:$0xff]
  %v2421 = vld [vmem:[%s10 + $0x840] sm:$0xff]
  %v2422 = vld [vmem:[%s10 + $0x848] sm:$0xff]
  %v2423 = vld [vmem:[%s10 + $0x850] sm:$0xf]
  %v2424 = vld [vmem:[%s10 + $0x854] sm:$0xff]
  %v2425 = vld [vmem:[%s10 + $0x85c] sm:$0xff]
  %v2426 = vld [vmem:[%s10 + $0x864] sm:$0xff]
  %v2427 = vld [vmem:[%s10 + $0x86c] sm:$0xff]
  %v2428 = vld [vmem:[%s10 + $0x874] sm:$0xff]
  %v2429 = vld [vmem:[%s10 + $0x87c] sm:$0xff]
  %v2430 = vld [vmem:[%s10 + $0x884] sm:$0xf]
  %v2431 = vld [vmem:[%s10 + $0x888] sm:$0xff]
  %v2432 = vld [vmem:[%s10 + $0x890] sm:$0xff]
  %v2433 = vld [vmem:[%s10 + $0x898] sm:$0xff]
  %v2434 = vld [vmem:[%s10 + $0x8a0] sm:$0xff]
  %v2435 = vld [vmem:[%s10 + $0x8a8] sm:$0xff]
  %v2436 = vld [vmem:[%s10 + $0x8b0] sm:$0xff]
  %v2437 = vld [vmem:[%s10 + $0x8b8] sm:$0xf]
  %v2438 = vld [vmem:[%s10 + $0x8bc] sm:$0xff]
  %v2439 = vld [vmem:[%s10 + $0x8c4] sm:$0xff]
  %v2440 = vld [vmem:[%s10 + $0x8cc] sm:$0xff]
  %v2441 = vld [vmem:[%s10 + $0x8d4] sm:$0xff]
  %v2442 = vld [vmem:[%s10 + $0x8dc] sm:$0xff]
  %v2443 = vld [vmem:[%s10 + $0x8e4] sm:$0xff]
  %v2444 = vld [vmem:[%s10 + $0x8ec] sm:$0xf]
  %v2445 = vld [vmem:[%s10 + $0x8f0] sm:$0xff]
  %v2446 = vld [vmem:[%s10 + $0x8f8] sm:$0xff]
  %v2447 = vld [vmem:[%s10 + $0x900] sm:$0xff]
  %v2448 = vld [vmem:[%s10 + $0x908] sm:$0xff]
  %v2449 = vld [vmem:[%s10 + $0x910] sm:$0xff]
  %v2450 = vld [vmem:[%s10 + $0x918] sm:$0xff]
  %v2451 = vld [vmem:[%s10 + $0x920] sm:$0xf]
  %v2452 = vld [vmem:[%s10 + $0x924] sm:$0xff]
  %v2453 = vld [vmem:[%s10 + $0x92c] sm:$0xff]
  %v2454 = vld [vmem:[%s10 + $0x934] sm:$0xff]
  %v2455 = vld [vmem:[%s10 + $0x93c] sm:$0xff]
  %v2456 = vld [vmem:[%s10 + $0x944] sm:$0xff]
  %v2457 = vld [vmem:[%s10 + $0x94c] sm:$0xff]
  %v2458 = vld [vmem:[%s10 + $0x954] sm:$0xf]
  %v2459 = vld [vmem:[%s10 + $0x958] sm:$0xff]
  %v2460 = vld [vmem:[%s10 + $0x960] sm:$0xff]
  %v2461 = vld [vmem:[%s10 + $0x968] sm:$0xff]
  %v2462 = vld [vmem:[%s10 + $0x970] sm:$0xff]
  %v2463 = vld [vmem:[%s10 + $0x978] sm:$0xff]
  %v2464 = vld [vmem:[%s10 + $0x980] sm:$0xff]
  %v2465 = vld [vmem:[%s10 + $0x988] sm:$0xf]
  %v2466 = vld [vmem:[%s10 + $0x98c] sm:$0xff]
  %v2467 = vld [vmem:[%s10 + $0x994] sm:$0xff]
  %v2468 = vld [vmem:[%s10 + $0x99c] sm:$0xff]
  %v2469 = vld [vmem:[%s10 + $0x9a4] sm:$0xff]
  %v2470 = vld [vmem:[%s10 + $0x9ac] sm:$0xff]
  %v2471 = vld [vmem:[%s10 + $0x9b4] sm:$0xff]
  %v2472 = vld [vmem:[%s10 + $0x9bc] sm:$0xf]
  %v2473 = vld [vmem:[%s10 + $0x9c0] sm:$0xff]
  %v2474 = vld [vmem:[%s10 + $0x9c8] sm:$0xff]
  %v2475 = vld [vmem:[%s10 + $0x9d0] sm:$0xff]
  %v2476 = vld [vmem:[%s10 + $0x9d8] sm:$0xff]
  %v2477 = vld [vmem:[%s10 + $0x9e0] sm:$0xff]
  %v2478 = vld [vmem:[%s10 + $0x9e8] sm:$0xff]
  %v2479 = vld [vmem:[%s10 + $0x9f0] sm:$0xf]
  %v2480 = vld [vmem:[%s10 + $0x9f4] sm:$0xff]
  %v2481 = vld [vmem:[%s10 + $0x9fc] sm:$0xff]
  %v2482 = vld [vmem:[%s10 + $0xa04] sm:$0xff]
  %v2483 = vld [vmem:[%s10 + $0xa0c] sm:$0xff]
  %v2484 = vld [vmem:[%s10 + $0xa14] sm:$0xff]
  %v2485 = vld [vmem:[%s10 + $0xa1c] sm:$0xff]
  %v2486 = vld [vmem:[%s10 + $0xa24] sm:$0xf]
  %v2487 = vld [vmem:[%s10 + $0xa28] sm:$0xff]
  %v2488 = vld [vmem:[%s10 + $0xa30] sm:$0xff]
  %v2489 = vld [vmem:[%s10 + $0xa38] sm:$0xff]
  %v2490 = vld [vmem:[%s10 + $0xa40] sm:$0xff]
  %v2491 = vld [vmem:[%s10 + $0xa48] sm:$0xff]
  %v2492 = vld [vmem:[%s10 + $0xa50] sm:$0xff]
  %v2493 = vld [vmem:[%s10 + $0xa58] sm:$0xf]
  %v2494 = vld [vmem:[%s10 + $0xa5c] sm:$0xff]
  %v2495 = vld [vmem:[%s10 + $0xa64] sm:$0xff]
  %v2496 = vld [vmem:[%s10 + $0xa6c] sm:$0xff]
  %v2497 = vld [vmem:[%s10 + $0xa74] sm:$0xff]
  %v2498 = vld [vmem:[%s10 + $0xa7c] sm:$0xff]
  %v2499 = vld [vmem:[%s10 + $0xa84] sm:$0xff]
  %v2500 = vld [vmem:[%s10 + $0xa8c] sm:$0xf]
  %v2501 = vld [vmem:[%s10 + $0xa90] sm:$0xff]
  %v2502 = vld [vmem:[%s10 + $0xa98] sm:$0xff]
  %v2503 = vld [vmem:[%s10 + $0xaa0] sm:$0xff]
  %v2504 = vld [vmem:[%s10 + $0xaa8] sm:$0xff]
  %v2505 = vld [vmem:[%s10 + $0xab0] sm:$0xff]
  %v2506 = vld [vmem:[%s10 + $0xab8] sm:$0xff]
  %v2507 = vld [vmem:[%s10 + $0xac0] sm:$0xf]
  %v2508 = vld [vmem:[%s10 + $0xac4] sm:$0xff]
  %v2509 = vld [vmem:[%s10 + $0xacc] sm:$0xff]
  %v2510 = vld [vmem:[%s10 + $0xad4] sm:$0xff]
  %v2511 = vld [vmem:[%s10 + $0xadc] sm:$0xff]
  %v2512 = vld [vmem:[%s10 + $0xae4] sm:$0xff]
  %v2513 = vld [vmem:[%s10 + $0xaec] sm:$0xff]
  %v2514 = vld [vmem:[%s10 + $0xaf4] sm:$0xf]
  %v2515 = vld [vmem:[%s10 + $0xaf8] sm:$0xff]
  %v2516 = vld [vmem:[%s10 + $0xb00] sm:$0xff]
  %v2517 = vld [vmem:[%s10 + $0xb08] sm:$0xff]
  %v2518 = vld [vmem:[%s10 + $0xb10] sm:$0xff]
  %v2519 = vld [vmem:[%s10 + $0xb18] sm:$0xff]
  %v2520 = vld [vmem:[%s10 + $0xb20] sm:$0xff]
  %v2521 = vld [vmem:[%s10 + $0xb28] sm:$0xf]
  %v2522 = vld [vmem:[%s10 + $0xb2c] sm:$0xff]
  %v2523 = vld [vmem:[%s10 + $0xb34] sm:$0xff]
  %v2524 = vld [vmem:[%s10 + $0xb3c] sm:$0xff]
  %v2525 = vld [vmem:[%s10 + $0xb44] sm:$0xff]
  %v2526 = vld [vmem:[%s10 + $0xb4c] sm:$0xff]
  %v2527 = vld [vmem:[%s10 + $0xb54] sm:$0xff]
  %v2528 = vld [vmem:[%s10 + $0xb5c] sm:$0xf]
  %v2529 = vld [vmem:[%s10 + $0xb60] sm:$0xff]
  %v2530 = vld [vmem:[%s10 + $0xb68] sm:$0xff]
  %v2531 = vld [vmem:[%s10 + $0xb70] sm:$0xff]
  %v2532 = vld [vmem:[%s10 + $0xb78] sm:$0xff]
  %v2533 = vld [vmem:[%s10 + $0xb80] sm:$0xff]
  %v2534 = vld [vmem:[%s10 + $0xb88] sm:$0xff]
  %v2535 = vld [vmem:[%s10 + $0xb90] sm:$0xf]
  %v2536 = vld [vmem:[%s10 + $0xb94] sm:$0xff]
  %v2537 = vld [vmem:[%s10 + $0xb9c] sm:$0xff]
  %v2538 = vld [vmem:[%s10 + $0xba4] sm:$0xff]
  %v2539 = vld [vmem:[%s10 + $0xbac] sm:$0xff]
  %v2540 = vld [vmem:[%s10 + $0xbb4] sm:$0xff]
  %v2541 = vld [vmem:[%s10 + $0xbbc] sm:$0xff]
  %v2542 = vld [vmem:[%s10 + $0xbc4] sm:$0xf]
  %v2543 = vld [vmem:[%s10 + $0xbc8] sm:$0xff]
  %v2544 = vld [vmem:[%s10 + $0xbd0] sm:$0xff]
  %v2545 = vld [vmem:[%s10 + $0xbd8] sm:$0xff]
  %v2546 = vld [vmem:[%s10 + $0xbe0] sm:$0xff]
  %v2547 = vld [vmem:[%s10 + $0xbe8] sm:$0xff]
  %v2548 = vld [vmem:[%s10 + $0xbf0] sm:$0xff]
  %v2549 = vld [vmem:[%s10 + $0xbf8] sm:$0xf]
  %v2550 = vld [vmem:[%s10 + $0xbfc] sm:$0xff]
  %v2551 = vld [vmem:[%s10 + $0xc04] sm:$0xff]
  %v2552 = vld [vmem:[%s10 + $0xc0c] sm:$0xff]
  %v2553 = vld [vmem:[%s10 + $0xc14] sm:$0xff]
  %v2554 = vld [vmem:[%s10 + $0xc1c] sm:$0xff]
  %v2555 = vld [vmem:[%s10 + $0xc24] sm:$0xff]
  %v2556 = vld [vmem:[%s10 + $0xc2c] sm:$0xf]
  %v2557 = vld [vmem:[%s10 + $0xc30] sm:$0xff]
  %v2558 = vld [vmem:[%s10 + $0xc38] sm:$0xff]
  %v2559 = vld [vmem:[%s10 + $0xc40] sm:$0xff]
  %v2560 = vld [vmem:[%s10 + $0xc48] sm:$0xff]
  %v2561 = vld [vmem:[%s10 + $0xc50] sm:$0xff]
  %v2562 = vld [vmem:[%s10 + $0xc58] sm:$0xff]
  %v2563 = vld [vmem:[%s10 + $0xc60] sm:$0xf]
  %v2564 = vld [vmem:[%s10 + $0xc64] sm:$0xff]
  %v2565 = vld [vmem:[%s10 + $0xc6c] sm:$0xff]
  %v2566 = vld [vmem:[%s10 + $0xc74] sm:$0xff]
  %v2567 = vld [vmem:[%s10 + $0xc7c] sm:$0xff]
  %v2568 = vld [vmem:[%s10 + $0xc84] sm:$0xff]
  %v2569 = vld [vmem:[%s10 + $0xc8c] sm:$0xff]
  %v2570 = vld [vmem:[%s10 + $0xc94] sm:$0xf]
  %v2571 = vld [vmem:[%s10 + $0xc98] sm:$0xff]
  %v2572 = vld [vmem:[%s10 + $0xca0] sm:$0xff]
  %v2573 = vld [vmem:[%s10 + $0xca8] sm:$0xff]
  %v2574 = vld [vmem:[%s10 + $0xcb0] sm:$0xff]
  %v2575 = vld [vmem:[%s10 + $0xcb8] sm:$0xff]
  %v2576 = vld [vmem:[%s10 + $0xcc0] sm:$0xff]
  %v2577 = vld [vmem:[%s10 + $0xcc8] sm:$0xf]
  %v2578 = vld [vmem:[%s10 + $0xccc] sm:$0xff]
  %v2579 = vld [vmem:[%s10 + $0xcd4] sm:$0xff]
  %v2580 = vld [vmem:[%s10 + $0xcdc] sm:$0xff]
  %v2581 = vld [vmem:[%s10 + $0xce4] sm:$0xff]
  %v2582 = vld [vmem:[%s10 + $0xcec] sm:$0xff]
  %v2583 = vld [vmem:[%s10 + $0xcf4] sm:$0xff]
  %v2584 = vld [vmem:[%s10 + $0xcfc] sm:$0xf]
  %v2585 = vld [vmem:[%s10 + $0xd00] sm:$0xff]
  %v2586 = vld [vmem:[%s10 + $0xd08] sm:$0xff]
  %v2587 = vld [vmem:[%s10 + $0xd10] sm:$0xff]
  %v2588 = vld [vmem:[%s10 + $0xd18] sm:$0xff]
  %v2589 = vld [vmem:[%s10 + $0xd20] sm:$0xff]
  %v2590 = vld [vmem:[%s10 + $0xd28] sm:$0xff]
  %v2591 = vld [vmem:[%s10 + $0xd30] sm:$0xf]
  %v2592 = vld [vmem:[%s10 + $0xd34] sm:$0xff]
  %v2593 = vld [vmem:[%s10 + $0xd3c] sm:$0xff]
  %v2594 = vld [vmem:[%s10 + $0xd44] sm:$0xff]
  %v2595 = vld [vmem:[%s10 + $0xd4c] sm:$0xff]
  %v2596 = vld [vmem:[%s10 + $0xd54] sm:$0xff]
  %v2597 = vld [vmem:[%s10 + $0xd5c] sm:$0xff]
  %v2598 = vld [vmem:[%s10 + $0xd64] sm:$0xf]
  %v2599 = vld [vmem:[%s10 + $0xd68] sm:$0xff]
  %v2600 = vld [vmem:[%s10 + $0xd70] sm:$0xff]
  %v2601 = vld [vmem:[%s10 + $0xd78] sm:$0xff]
  %v2602 = vld [vmem:[%s10 + $0xd80] sm:$0xff]
  %v2603 = vld [vmem:[%s10 + $0xd88] sm:$0xff]
  %v2604 = vld [vmem:[%s10 + $0xd90] sm:$0xff]
  %v2605 = vld [vmem:[%s10 + $0xd98] sm:$0xf]
  %v2606 = vld [vmem:[%s10 + $0xd9c] sm:$0xff]
  %v2607 = vld [vmem:[%s10 + $0xda4] sm:$0xff]
  %v2608 = vld [vmem:[%s10 + $0xdac] sm:$0xff]
  %v2609 = vld [vmem:[%s10 + $0xdb4] sm:$0xff]
  %v2610 = vld [vmem:[%s10 + $0xdbc] sm:$0xff]
  %v2611 = vld [vmem:[%s10 + $0xdc4] sm:$0xff]
  %v2612 = vld [vmem:[%s10 + $0xdcc] sm:$0xf]
  %v2613 = vld [vmem:[%s10 + $0xdd0] sm:$0xff]
  %v2614 = vld [vmem:[%s10 + $0xdd8] sm:$0xff]
  %v2615 = vld [vmem:[%s10 + $0xde0] sm:$0xff]
  %v2616 = vld [vmem:[%s10 + $0xde8] sm:$0xff]
  %v2617 = vld [vmem:[%s10 + $0xdf0] sm:$0xff]
  %v2618 = vld [vmem:[%s10 + $0xdf8] sm:$0xff]
  %v2619 = vld [vmem:[%s10 + $0xe00] sm:$0xf]
  %v2620 = vld [vmem:[%s10 + $0xe04] sm:$0xff]
  %v2621 = vld [vmem:[%s10 + $0xe0c] sm:$0xff]
  %v2622 = vld [vmem:[%s10 + $0xe14] sm:$0xff]
  %v2623 = vld [vmem:[%s10 + $0xe1c] sm:$0xff]
  %v2624 = vld [vmem:[%s10 + $0xe24] sm:$0xff]
  %v2625 = vld [vmem:[%s10 + $0xe2c] sm:$0xff]
  %v2626 = vld [vmem:[%s10 + $0xe34] sm:$0xf]
  %v2627 = vld [vmem:[%s10 + $0xe38] sm:$0xff]
  %v2628 = vld [vmem:[%s10 + $0xe40] sm:$0xff]
  %v2629 = vld [vmem:[%s10 + $0xe48] sm:$0xff]
  %v2630 = vld [vmem:[%s10 + $0xe50] sm:$0xff]
  %v2631 = vld [vmem:[%s10 + $0xe58] sm:$0xff]
  %v2632 = vld [vmem:[%s10 + $0xe60] sm:$0xff]
  %v2633 = vld [vmem:[%s10 + $0xe68] sm:$0xf]
  %v2634 = vld [vmem:[%s10 + $0xe6c] sm:$0xff]
  %v2635 = vld [vmem:[%s10 + $0xe74] sm:$0xff]
  %v2636 = vld [vmem:[%s10 + $0xe7c] sm:$0xff]
  %v2637 = vld [vmem:[%s10 + $0xe84] sm:$0xff]
  %v2638 = vld [vmem:[%s10 + $0xe8c] sm:$0xff]
  %v2639 = vld [vmem:[%s10 + $0xe94] sm:$0xff]
  %v2640 = vld [vmem:[%s10 + $0xe9c] sm:$0xf]
  %v2641 = vld [vmem:[%s10 + $0xea0] sm:$0xff]
  %v2642 = vld [vmem:[%s10 + $0xea8] sm:$0xff]
  %v2643 = vld [vmem:[%s10 + $0xeb0] sm:$0xff]
  %v2644 = vld [vmem:[%s10 + $0xeb8] sm:$0xff]
  %v2645 = vld [vmem:[%s10 + $0xec0] sm:$0xff]
  %v2646 = vld [vmem:[%s10 + $0xec8] sm:$0xff]
  %v2647 = vld [vmem:[%s10 + $0xed0] sm:$0xf]
  %v2648 = vld [vmem:[%s10 + $0xed4] sm:$0xff]
  %v2649 = vld [vmem:[%s10 + $0xedc] sm:$0xff]
  %v2650 = vld [vmem:[%s10 + $0xee4] sm:$0xff]
  %v2651 = vld [vmem:[%s10 + $0xeec] sm:$0xff]
  %v2652 = vld [vmem:[%s10 + $0xef4] sm:$0xff]
  %v2653 = vld [vmem:[%s10 + $0xefc] sm:$0xff]
  %v2654 = vld [vmem:[%s10 + $0xf04] sm:$0xf]
  %v2655 = vld [vmem:[%s10 + $0xf08] sm:$0xff]
  %v2656 = vld [vmem:[%s10 + $0xf10] sm:$0xff]
  %v2657 = vld [vmem:[%s10 + $0xf18] sm:$0xff]
  %v2658 = vld [vmem:[%s10 + $0xf20] sm:$0xff]
  %v2659 = vld [vmem:[%s10 + $0xf28] sm:$0xff]
  %v2660 = vld [vmem:[%s10 + $0xf30] sm:$0xff]
  %v2661 = vld [vmem:[%s10 + $0xf38] sm:$0xf]
  %v2662 = vld [vmem:[%s10 + $0xf3c] sm:$0xff]
  %v2663 = vld [vmem:[%s10 + $0xf44] sm:$0xff]
  %v2664 = vld [vmem:[%s10 + $0xf4c] sm:$0xff]
  %v2665 = vld [vmem:[%s10 + $0xf54] sm:$0xff]
  %v2666 = vld [vmem:[%s10 + $0xf5c] sm:$0xff]
  %v2667 = vld [vmem:[%s10 + $0xf64] sm:$0xff]
  %v2668 = vld [vmem:[%s10 + $0xf6c] sm:$0xf]
  %v2669 = vld [vmem:[%s10 + $0xf70] sm:$0xff]
  %v2670 = vld [vmem:[%s10 + $0xf78] sm:$0xff]
  %v2671 = vld [vmem:[%s10 + $0xf80] sm:$0xff]
  %v2672 = vld [vmem:[%s10 + $0xf88] sm:$0xff]
  %v2673 = vld [vmem:[%s10 + $0xf90] sm:$0xff]
  %v2674 = vld [vmem:[%s10 + $0xf98] sm:$0xff]
  %v2675 = vld [vmem:[%s10 + $0xfa0] sm:$0xf]
  %v2676 = vld [vmem:[%s10 + $0xfa4] sm:$0xff]
  %v2677 = vld [vmem:[%s10 + $0xfac] sm:$0xff]
  %v2678 = vld [vmem:[%s10 + $0xfb4] sm:$0xff]
  %v2679 = vld [vmem:[%s10 + $0xfbc] sm:$0xff]
  %v2680 = vld [vmem:[%s10 + $0xfc4] sm:$0xff]
  %v2681 = vld [vmem:[%s10 + $0xfcc] sm:$0xff]
  %v2682 = vld [vmem:[%s10 + $0xfd4] sm:$0xf]
  %v2683 = vld [vmem:[%s10 + $0xfd8] sm:$0xff]
  %v2684 = vld [vmem:[%s10 + $0xfe0] sm:$0xff]
  %v2685 = vld [vmem:[%s10 + $0xfe8] sm:$0xff]
  %v2686 = vld [vmem:[%s10 + $0xff0] sm:$0xff]
  %v2687 = vld [vmem:[%s10 + $0xff8] sm:$0xff]
  %v2688 = vld [vmem:[%s10 + $0x1000] sm:$0xff]
  %v2689 = vld [vmem:[%s10 + $0x1008] sm:$0xf]
  %v2690 = vld [vmem:[%s10 + $0x100c] sm:$0xff]
  %v2691 = vld [vmem:[%s10 + $0x1014] sm:$0xff]
  %v2692 = vld [vmem:[%s10 + $0x101c] sm:$0xff]
  %v2693 = vld [vmem:[%s10 + $0x1024] sm:$0xff]
  %v2694 = vld [vmem:[%s10 + $0x102c] sm:$0xff]
  %v2695 = vld [vmem:[%s10 + $0x1034] sm:$0xff]
  %v2696 = vld [vmem:[%s10 + $0x103c] sm:$0xf]
  %v2697 = vld [vmem:[%s10 + $0x1040] sm:$0xff]
  %v2698 = vld [vmem:[%s10 + $0x1048] sm:$0xff]
  %v2699 = vld [vmem:[%s10 + $0x1050] sm:$0xff]
  %v2700 = vld [vmem:[%s10 + $0x1058] sm:$0xff]
  %v2701 = vld [vmem:[%s10 + $0x1060] sm:$0xff]
  %v2702 = vld [vmem:[%s10 + $0x1068] sm:$0xff]
  %v2703 = vld [vmem:[%s10 + $0x1070] sm:$0xf]
  %v2704 = vld [vmem:[%s10 + $0x1074] sm:$0xff]
  %v2705 = vld [vmem:[%s10 + $0x107c] sm:$0xff]
  %v2706 = vld [vmem:[%s10 + $0x1084] sm:$0xff]
  %v2707 = vld [vmem:[%s10 + $0x108c] sm:$0xff]
  %v2708 = vld [vmem:[%s10 + $0x1094] sm:$0xff]
  %v2709 = vld [vmem:[%s10 + $0x109c] sm:$0xff]
  %v2710 = vld [vmem:[%s10 + $0x10a4] sm:$0xf]
  %v2711 = vld [vmem:[%s10 + $0x10a8] sm:$0xff]
  %v2712 = vld [vmem:[%s10 + $0x10b0] sm:$0xff]
  %v2713 = vld [vmem:[%s10 + $0x10b8] sm:$0xff]
  %v2714 = vld [vmem:[%s10 + $0x10c0] sm:$0xff]
  %v2715 = vld [vmem:[%s10 + $0x10c8] sm:$0xff]
  %v2716 = vld [vmem:[%s10 + $0x10d0] sm:$0xff]
  %v2717 = vld [vmem:[%s10 + $0x10d8] sm:$0xf]
  %v2718 = vld [vmem:[%s10 + $0x10dc] sm:$0xff]
  %v2719 = vld [vmem:[%s10 + $0x10e4] sm:$0xff]
  %v2720 = vld [vmem:[%s10 + $0x10ec] sm:$0xff]
  %v2721 = vld [vmem:[%s10 + $0x10f4] sm:$0xff]
  %v2722 = vld [vmem:[%s10 + $0x10fc] sm:$0xff]
  %v2723 = vld [vmem:[%s10 + $0x1104] sm:$0xff]
  %v2724 = vld [vmem:[%s10 + $0x110c] sm:$0xf]
  %v2725 = vld [vmem:[%s10 + $0x1110] sm:$0xff]
  %v2726 = vld [vmem:[%s10 + $0x1118] sm:$0xff]
  %v2727 = vld [vmem:[%s10 + $0x1120] sm:$0xff]
  %v2728 = vld [vmem:[%s10 + $0x1128] sm:$0xff]
  %v2729 = vld [vmem:[%s10 + $0x1130] sm:$0xff]
  %v2730 = vld [vmem:[%s10 + $0x1138] sm:$0xff]
  %v2731 = vld [vmem:[%s10 + $0x1140] sm:$0xf]
  %v2732 = vld [vmem:[%s10 + $0x1144] sm:$0xff]
  %v2733 = vld [vmem:[%s10 + $0x114c] sm:$0xff]
  %v2734 = vld [vmem:[%s10 + $0x1154] sm:$0xff]
  %v2735 = vld [vmem:[%s10 + $0x115c] sm:$0xff]
  %v2736 = vld [vmem:[%s10 + $0x1164] sm:$0xff]
  %v2737 = vld [vmem:[%s10 + $0x116c] sm:$0xff]
  %v2738 = vld [vmem:[%s10 + $0x1174] sm:$0xf]
  %v2739 = vld [vmem:[%s10 + $0x1178] sm:$0xff]
  %v2740 = vld [vmem:[%s10 + $0x1180] sm:$0xff]
  %v2741 = vld [vmem:[%s10 + $0x1188] sm:$0xff]
  %v2742 = vld [vmem:[%s10 + $0x1190] sm:$0xff]
  %v2743 = vld [vmem:[%s10 + $0x1198] sm:$0xff]
  %v2744 = vld [vmem:[%s10 + $0x11a0] sm:$0xff]
  %v2745 = vld [vmem:[%s10 + $0x11a8] sm:$0xf]
  %v2746 = vld [vmem:[%s10 + $0x11ac] sm:$0xff]
  %v2747 = vld [vmem:[%s10 + $0x11b4] sm:$0xff]
  %v2748 = vld [vmem:[%s10 + $0x11bc] sm:$0xff]
  %v2749 = vld [vmem:[%s10 + $0x11c4] sm:$0xff]
  %v2750 = vld [vmem:[%s10 + $0x11cc] sm:$0xff]
  %v2751 = vld [vmem:[%s10 + $0x11d4] sm:$0xff]
  %v2752 = vld [vmem:[%s10 + $0x11dc] sm:$0xf]
  %v2753 = vld [vmem:[%s10 + $0x11e0] sm:$0xff]
  %v2754 = vld [vmem:[%s10 + $0x11e8] sm:$0xff]
  %v2755 = vld [vmem:[%s10 + $0x11f0] sm:$0xff]
  %v2756 = vld [vmem:[%s10 + $0x11f8] sm:$0xff]
  %v2757 = vld [vmem:[%s10 + $0x1200] sm:$0xff]
  %v2758 = vld [vmem:[%s10 + $0x1208] sm:$0xff]
  %v2759 = vld [vmem:[%s10 + $0x1210] sm:$0xf]
  %v2760 = vld [vmem:[%s10 + $0x1214] sm:$0xff]
  %v2761 = vld [vmem:[%s10 + $0x121c] sm:$0xff]
  %v2762 = vld [vmem:[%s10 + $0x1224] sm:$0xff]
  %v2763 = vld [vmem:[%s10 + $0x122c] sm:$0xff]
  %v2764 = vld [vmem:[%s10 + $0x1234] sm:$0xff]
  %v2765 = vld [vmem:[%s10 + $0x123c] sm:$0xff]
  %v2766 = vld [vmem:[%s10 + $0x1244] sm:$0xf]
  %v2767 = vld [vmem:[%s10 + $0x1248] sm:$0xff]
  %v2768 = vld [vmem:[%s10 + $0x1250] sm:$0xff]
  %v2769 = vld [vmem:[%s10 + $0x1258] sm:$0xff]
  %v2770 = vld [vmem:[%s10 + $0x1260] sm:$0xff]
  %v2771 = vld [vmem:[%s10 + $0x1268] sm:$0xff]
  %v2772 = vld [vmem:[%s10 + $0x1270] sm:$0xff]
  %v2773 = vld [vmem:[%s10 + $0x1278] sm:$0xf]
  %v2774 = vld [vmem:[%s10 + $0x127c] sm:$0xff]
  %v2775 = vld [vmem:[%s10 + $0x1284] sm:$0xff]
  %v2776 = vld [vmem:[%s10 + $0x128c] sm:$0xff]
  %v2777 = vld [vmem:[%s10 + $0x1294] sm:$0xff]
  %v2778 = vld [vmem:[%s10 + $0x129c] sm:$0xff]
  %v2779 = vld [vmem:[%s10 + $0x12a4] sm:$0xff]
  %v2780 = vld [vmem:[%s10 + $0x12ac] sm:$0xf]
  %v2781 = vld [vmem:[%s10 + $0x12b0] sm:$0xff]
  %v2782 = vld [vmem:[%s10 + $0x12b8] sm:$0xff]
  %v2783 = vld [vmem:[%s10 + $0x12c0] sm:$0xff]
  %v2784 = vld [vmem:[%s10 + $0x12c8] sm:$0xff]
  %v2785 = vld [vmem:[%s10 + $0x12d0] sm:$0xff]
  %v2786 = vld [vmem:[%s10 + $0x12d8] sm:$0xff]
  %v2787 = vld [vmem:[%s10 + $0x12e0] sm:$0xf]
  %v2788 = vld [vmem:[%s10 + $0x12e4] sm:$0xff]
  %v2789 = vld [vmem:[%s10 + $0x12ec] sm:$0xff]
  %v2790 = vld [vmem:[%s10 + $0x12f4] sm:$0xff]
  %v2791 = vld [vmem:[%s10 + $0x12fc] sm:$0xff]
  %v2792 = vld [vmem:[%s10 + $0x1304] sm:$0xff]
  %v2793 = vld [vmem:[%s10 + $0x130c] sm:$0xff]
  %v2794 = vld [vmem:[%s10 + $0x1314] sm:$0xf]
  %v2795 = vld [vmem:[%s10 + $0x1318] sm:$0xff]
  %v2796 = vld [vmem:[%s10 + $0x1320] sm:$0xff]
  %v2797 = vld [vmem:[%s10 + $0x1328] sm:$0xff]
  %v2798 = vld [vmem:[%s10 + $0x1330] sm:$0xff]
  %v2799 = vld [vmem:[%s10 + $0x1338] sm:$0xff]
  %v2800 = vld [vmem:[%s10 + $0x1340] sm:$0xff]
  %v2801 = vld [vmem:[%s10 + $0x1348] sm:$0xf]
  %v2802 = vld [vmem:[%s10 + $0x134c] sm:$0xff]
  %v2803 = vld [vmem:[%s10 + $0x1354] sm:$0xff]
  %v2804 = vld [vmem:[%s10 + $0x135c] sm:$0xff]
  %v2805 = vld [vmem:[%s10 + $0x1364] sm:$0xff]
  %v2806 = vld [vmem:[%s10 + $0x136c] sm:$0xff]
  %v2807 = vld [vmem:[%s10 + $0x1374] sm:$0xff]
  %v2808 = vld [vmem:[%s10 + $0x137c] sm:$0xf]
  %v2809 = vld [vmem:[%s10 + $0x1380] sm:$0xff]
  %v2810 = vld [vmem:[%s10 + $0x1388] sm:$0xff]
  %v2811 = vld [vmem:[%s10 + $0x1390] sm:$0xff]
  %v2812 = vld [vmem:[%s10 + $0x1398] sm:$0xff]
  %v2813 = vld [vmem:[%s10 + $0x13a0] sm:$0xff]
  %v2814 = vld [vmem:[%s10 + $0x13a8] sm:$0xff]
  %v2815 = vld [vmem:[%s10 + $0x13b0] sm:$0xf]
  %v2816 = vld [vmem:[%s10 + $0x13b4] sm:$0xff]
  %v2817 = vld [vmem:[%s10 + $0x13bc] sm:$0xff]
  %v2818 = vld [vmem:[%s10 + $0x13c4] sm:$0xff]
  %v2819 = vld [vmem:[%s10 + $0x13cc] sm:$0xff]
  %v2820 = vld [vmem:[%s10 + $0x13d4] sm:$0xff]
  %v2821 = vld [vmem:[%s10 + $0x13dc] sm:$0xff]
  %v2822 = vld [vmem:[%s10 + $0x13e4] sm:$0xf]
  %v3509 = vunpack.c.l.b16 %v2137
  %v3510 = vunpack.c.h.b16 %v2137
  %v3511 = vunpack.c.l.b16 %v2138
  %v3512 = vunpack.c.h.b16 %v2138
  %v3513 = vunpack.c.l.b16 %v2139
  %v3514 = vunpack.c.h.b16 %v2139
  %v3515 = vunpack.c.l.b16 %v2140
  %v3516 = vunpack.c.h.b16 %v2140
  %v3517 = vunpack.c.l.b16 %v2141
  %v3518 = vunpack.c.h.b16 %v2141
  %v3519 = vunpack.c.l.b16 %v2142
  %v3520 = vunpack.c.h.b16 %v2142
  %v3521 = vunpack.c.l.b16 %v2143
  %v3522 = vunpack.c.l.b16 %v2144
  %v3523 = vunpack.c.h.b16 %v2144
  %v3524 = vunpack.c.l.b16 %v2145
  %v3525 = vunpack.c.h.b16 %v2145
  %v3526 = vunpack.c.l.b16 %v2146
  %v3527 = vunpack.c.h.b16 %v2146
  %v3528 = vunpack.c.l.b16 %v2147
  %v3529 = vunpack.c.h.b16 %v2147
  %v3530 = vunpack.c.l.b16 %v2148
  %v3531 = vunpack.c.h.b16 %v2148
  %v3532 = vunpack.c.l.b16 %v2149
  %v3533 = vunpack.c.h.b16 %v2149
  %v3534 = vunpack.c.l.b16 %v2150
  %v3535 = vunpack.c.l.b16 %v2151
  %v3536 = vunpack.c.h.b16 %v2151
  %v3537 = vunpack.c.l.b16 %v2152
  %v3538 = vunpack.c.h.b16 %v2152
  %v3539 = vunpack.c.l.b16 %v2153
  %v3540 = vunpack.c.h.b16 %v2153
  %v3541 = vunpack.c.l.b16 %v2154
  %v3542 = vunpack.c.h.b16 %v2154
  %v3543 = vunpack.c.l.b16 %v2155
  %v3544 = vunpack.c.h.b16 %v2155
  %v3545 = vunpack.c.l.b16 %v2156
  %v3546 = vunpack.c.h.b16 %v2156
  %v3547 = vunpack.c.l.b16 %v2157
  %v3548 = vunpack.c.l.b16 %v2158
  %v3549 = vunpack.c.h.b16 %v2158
  %v3550 = vunpack.c.l.b16 %v2159
  %v3551 = vunpack.c.h.b16 %v2159
  %v3552 = vunpack.c.l.b16 %v2160
  %v3553 = vunpack.c.h.b16 %v2160
  %v3554 = vunpack.c.l.b16 %v2161
  %v3555 = vunpack.c.h.b16 %v2161
  %v3556 = vunpack.c.l.b16 %v2162
  %v3557 = vunpack.c.h.b16 %v2162
  %v3558 = vunpack.c.l.b16 %v2163
  %v3559 = vunpack.c.h.b16 %v2163
  %v3560 = vunpack.c.l.b16 %v2164
  %v3561 = vunpack.c.l.b16 %v2165
  %v3562 = vunpack.c.h.b16 %v2165
  %v3563 = vunpack.c.l.b16 %v2166
  %v3564 = vunpack.c.h.b16 %v2166
  %v3565 = vunpack.c.l.b16 %v2167
  %v3566 = vunpack.c.h.b16 %v2167
  %v3567 = vunpack.c.l.b16 %v2168
  %v3568 = vunpack.c.h.b16 %v2168
  %v3569 = vunpack.c.l.b16 %v2169
  %v3570 = vunpack.c.h.b16 %v2169
  %v3571 = vunpack.c.l.b16 %v2170
  %v3572 = vunpack.c.h.b16 %v2170
  %v3573 = vunpack.c.l.b16 %v2171
  %v3574 = vunpack.c.l.b16 %v2172
  %v3575 = vunpack.c.h.b16 %v2172
  %v3576 = vunpack.c.l.b16 %v2173
  %v3577 = vunpack.c.h.b16 %v2173
  %v3578 = vunpack.c.l.b16 %v2174
  %v3579 = vunpack.c.h.b16 %v2174
  %v3580 = vunpack.c.l.b16 %v2175
  %v3581 = vunpack.c.h.b16 %v2175
  %v3582 = vunpack.c.l.b16 %v2176
  %v3583 = vunpack.c.h.b16 %v2176
  %v3584 = vunpack.c.l.b16 %v2177
  %v3585 = vunpack.c.h.b16 %v2177
  %v3586 = vunpack.c.l.b16 %v2178
  %v3587 = vunpack.c.l.b16 %v2179
  %v3588 = vunpack.c.h.b16 %v2179
  %v3589 = vunpack.c.l.b16 %v2180
  %v3590 = vunpack.c.h.b16 %v2180
  %v3591 = vunpack.c.l.b16 %v2181
  %v3592 = vunpack.c.h.b16 %v2181
  %v3593 = vunpack.c.l.b16 %v2182
  %v3594 = vunpack.c.h.b16 %v2182
  %v3595 = vunpack.c.l.b16 %v2183
  %v3596 = vunpack.c.h.b16 %v2183
  %v3597 = vunpack.c.l.b16 %v2184
  %v3598 = vunpack.c.h.b16 %v2184
  %v3599 = vunpack.c.l.b16 %v2185
  %v3600 = vunpack.c.l.b16 %v2186
  %v3601 = vunpack.c.h.b16 %v2186
  %v3602 = vunpack.c.l.b16 %v2187
  %v3603 = vunpack.c.h.b16 %v2187
  %v3604 = vunpack.c.l.b16 %v2188
  %v3605 = vunpack.c.h.b16 %v2188
  %v3606 = vunpack.c.l.b16 %v2189
  %v3607 = vunpack.c.h.b16 %v2189
  %v3608 = vunpack.c.l.b16 %v2190
  %v3609 = vunpack.c.h.b16 %v2190
  %v3610 = vunpack.c.l.b16 %v2191
  %v3611 = vunpack.c.h.b16 %v2191
  %v3612 = vunpack.c.l.b16 %v2192
  %v3613 = vunpack.c.l.b16 %v2193
  %v3614 = vunpack.c.h.b16 %v2193
  %v3615 = vunpack.c.l.b16 %v2194
  %v3616 = vunpack.c.h.b16 %v2194
  %v3617 = vunpack.c.l.b16 %v2195
  %v3618 = vunpack.c.h.b16 %v2195
  %v3619 = vunpack.c.l.b16 %v2196
  %v3620 = vunpack.c.h.b16 %v2196
  %v3621 = vunpack.c.l.b16 %v2197
  %v3622 = vunpack.c.h.b16 %v2197
  %v3623 = vunpack.c.l.b16 %v2198
  %v3624 = vunpack.c.h.b16 %v2198
  %v3625 = vunpack.c.l.b16 %v2199
  %v3626 = vunpack.c.l.b16 %v2200
  %v3627 = vunpack.c.h.b16 %v2200
  %v3628 = vunpack.c.l.b16 %v2201
  %v3629 = vunpack.c.h.b16 %v2201
  %v3630 = vunpack.c.l.b16 %v2202
  %v3631 = vunpack.c.h.b16 %v2202
  %v3632 = vunpack.c.l.b16 %v2203
  %v3633 = vunpack.c.h.b16 %v2203
  %v3634 = vunpack.c.l.b16 %v2204
  %v3635 = vunpack.c.h.b16 %v2204
  %v3636 = vunpack.c.l.b16 %v2205
  %v3637 = vunpack.c.h.b16 %v2205
  %v3638 = vunpack.c.l.b16 %v2206
  %v3639 = vunpack.c.l.b16 %v2207
  %v3640 = vunpack.c.h.b16 %v2207
  %v3641 = vunpack.c.l.b16 %v2208
  %v3642 = vunpack.c.h.b16 %v2208
  %v3643 = vunpack.c.l.b16 %v2209
  %v3644 = vunpack.c.h.b16 %v2209
  %v3645 = vunpack.c.l.b16 %v2210
  %v3646 = vunpack.c.h.b16 %v2210
  %v3647 = vunpack.c.l.b16 %v2211
  %v3648 = vunpack.c.h.b16 %v2211
  %v3649 = vunpack.c.l.b16 %v2212
  %v3650 = vunpack.c.h.b16 %v2212
  %v3651 = vunpack.c.l.b16 %v2213
  %v3652 = vunpack.c.l.b16 %v2214
  %v3653 = vunpack.c.h.b16 %v2214
  %v3654 = vunpack.c.l.b16 %v2215
  %v3655 = vunpack.c.h.b16 %v2215
  %v3656 = vunpack.c.l.b16 %v2216
  %v3657 = vunpack.c.h.b16 %v2216
  %v3658 = vunpack.c.l.b16 %v2217
  %v3659 = vunpack.c.h.b16 %v2217
  %v3660 = vunpack.c.l.b16 %v2218
  %v3661 = vunpack.c.h.b16 %v2218
  %v3662 = vunpack.c.l.b16 %v2219
  %v3663 = vunpack.c.h.b16 %v2219
  %v3664 = vunpack.c.l.b16 %v2220
  %v3665 = vunpack.c.l.b16 %v2221
  %v3666 = vunpack.c.h.b16 %v2221
  %v3667 = vunpack.c.l.b16 %v2222
  %v3668 = vunpack.c.h.b16 %v2222
  %v3669 = vunpack.c.l.b16 %v2223
  %v3670 = vunpack.c.h.b16 %v2223
  %v3671 = vunpack.c.l.b16 %v2224
  %v3672 = vunpack.c.h.b16 %v2224
  %v3673 = vunpack.c.l.b16 %v2225
  %v3674 = vunpack.c.h.b16 %v2225
  %v3675 = vunpack.c.l.b16 %v2226
  %v3676 = vunpack.c.h.b16 %v2226
  %v3677 = vunpack.c.l.b16 %v2227
  %v3678 = vunpack.c.l.b16 %v2228
  %v3679 = vunpack.c.h.b16 %v2228
  %v3680 = vunpack.c.l.b16 %v2229
  %v3681 = vunpack.c.h.b16 %v2229
  %v3682 = vunpack.c.l.b16 %v2230
  %v3683 = vunpack.c.h.b16 %v2230
  %v3684 = vunpack.c.l.b16 %v2231
  %v3685 = vunpack.c.h.b16 %v2231
  %v3686 = vunpack.c.l.b16 %v2232
  %v3687 = vunpack.c.h.b16 %v2232
  %v3688 = vunpack.c.l.b16 %v2233
  %v3689 = vunpack.c.h.b16 %v2233
  %v3690 = vunpack.c.l.b16 %v2234
  %v3691 = vunpack.c.l.b16 %v2235
  %v3692 = vunpack.c.h.b16 %v2235
  %v3693 = vunpack.c.l.b16 %v2236
  %v3694 = vunpack.c.h.b16 %v2236
  %v3695 = vunpack.c.l.b16 %v2237
  %v3696 = vunpack.c.h.b16 %v2237
  %v3697 = vunpack.c.l.b16 %v2238
  %v3698 = vunpack.c.h.b16 %v2238
  %v3699 = vunpack.c.l.b16 %v2239
  %v3700 = vunpack.c.h.b16 %v2239
  %v3701 = vunpack.c.l.b16 %v2240
  %v3702 = vunpack.c.h.b16 %v2240
  %v3703 = vunpack.c.l.b16 %v2241
  %v3704 = vunpack.c.l.b16 %v2242
  %v3705 = vunpack.c.h.b16 %v2242
  %v3706 = vunpack.c.l.b16 %v2243
  %v3707 = vunpack.c.h.b16 %v2243
  %v3708 = vunpack.c.l.b16 %v2244
  %v3709 = vunpack.c.h.b16 %v2244
  %v3710 = vunpack.c.l.b16 %v2245
  %v3711 = vunpack.c.h.b16 %v2245
  %v3712 = vunpack.c.l.b16 %v2246
  %v3713 = vunpack.c.h.b16 %v2246
  %v3714 = vunpack.c.l.b16 %v2247
  %v3715 = vunpack.c.h.b16 %v2247
  %v3716 = vunpack.c.l.b16 %v2248
  %v3717 = vunpack.c.l.b16 %v2249
  %v3718 = vunpack.c.h.b16 %v2249
  %v3719 = vunpack.c.l.b16 %v2250
  %v3720 = vunpack.c.h.b16 %v2250
  %v3721 = vunpack.c.l.b16 %v2251
  %v3722 = vunpack.c.h.b16 %v2251
  %v3723 = vunpack.c.l.b16 %v2252
  %v3724 = vunpack.c.h.b16 %v2252
  %v3725 = vunpack.c.l.b16 %v2253
  %v3726 = vunpack.c.h.b16 %v2253
  %v3727 = vunpack.c.l.b16 %v2254
  %v3728 = vunpack.c.h.b16 %v2254
  %v3729 = vunpack.c.l.b16 %v2255
  %v3730 = vunpack.c.l.b16 %v2256
  %v3731 = vunpack.c.h.b16 %v2256
  %v3732 = vunpack.c.l.b16 %v2257
  %v3733 = vunpack.c.h.b16 %v2257
  %v3734 = vunpack.c.l.b16 %v2258
  %v3735 = vunpack.c.h.b16 %v2258
  %v3736 = vunpack.c.l.b16 %v2259
  %v3737 = vunpack.c.h.b16 %v2259
  %v3738 = vunpack.c.l.b16 %v2260
  %v3739 = vunpack.c.h.b16 %v2260
  %v3740 = vunpack.c.l.b16 %v2261
  %v3741 = vunpack.c.h.b16 %v2261
  %v3742 = vunpack.c.l.b16 %v2262
  %v3743 = vunpack.c.l.b16 %v2263
  %v3744 = vunpack.c.h.b16 %v2263
  %v3745 = vunpack.c.l.b16 %v2264
  %v3746 = vunpack.c.h.b16 %v2264
  %v3747 = vunpack.c.l.b16 %v2265
  %v3748 = vunpack.c.h.b16 %v2265
  %v3749 = vunpack.c.l.b16 %v2266
  %v3750 = vunpack.c.h.b16 %v2266
  %v3751 = vunpack.c.l.b16 %v2267
  %v3752 = vunpack.c.h.b16 %v2267
  %v3753 = vunpack.c.l.b16 %v2268
  %v3754 = vunpack.c.h.b16 %v2268
  %v3755 = vunpack.c.l.b16 %v2269
  %v3756 = vunpack.c.l.b16 %v2270
  %v3757 = vunpack.c.h.b16 %v2270
  %v3758 = vunpack.c.l.b16 %v2271
  %v3759 = vunpack.c.h.b16 %v2271
  %v3760 = vunpack.c.l.b16 %v2272
  %v3761 = vunpack.c.h.b16 %v2272
  %v3762 = vunpack.c.l.b16 %v2273
  %v3763 = vunpack.c.h.b16 %v2273
  %v3764 = vunpack.c.l.b16 %v2274
  %v3765 = vunpack.c.h.b16 %v2274
  %v3766 = vunpack.c.l.b16 %v2275
  %v3767 = vunpack.c.h.b16 %v2275
  %v3768 = vunpack.c.l.b16 %v2276
  %v3769 = vunpack.c.l.b16 %v2277
  %v3770 = vunpack.c.h.b16 %v2277
  %v3771 = vunpack.c.l.b16 %v2278
  %v3772 = vunpack.c.h.b16 %v2278
  %v3773 = vunpack.c.l.b16 %v2279
  %v3774 = vunpack.c.h.b16 %v2279
  %v3775 = vunpack.c.l.b16 %v2280
  %v3776 = vunpack.c.h.b16 %v2280
  %v3777 = vunpack.c.l.b16 %v2281
  %v3778 = vunpack.c.h.b16 %v2281
  %v3779 = vunpack.c.l.b16 %v2282
  %v3780 = vunpack.c.h.b16 %v2282
  %v3781 = vunpack.c.l.b16 %v2283
  %v3782 = vunpack.c.l.b16 %v2284
  %v3783 = vunpack.c.h.b16 %v2284
  %v3784 = vunpack.c.l.b16 %v2285
  %v3785 = vunpack.c.h.b16 %v2285
  %v3786 = vunpack.c.l.b16 %v2286
  %v3787 = vunpack.c.h.b16 %v2286
  %v3788 = vunpack.c.l.b16 %v2287
  %v3789 = vunpack.c.h.b16 %v2287
  %v3790 = vunpack.c.l.b16 %v2288
  %v3791 = vunpack.c.h.b16 %v2288
  %v3792 = vunpack.c.l.b16 %v2289
  %v3793 = vunpack.c.h.b16 %v2289
  %v3794 = vunpack.c.l.b16 %v2290
  %v3795 = vunpack.c.l.b16 %v2291
  %v3796 = vunpack.c.h.b16 %v2291
  %v3797 = vunpack.c.l.b16 %v2292
  %v3798 = vunpack.c.h.b16 %v2292
  %v3799 = vunpack.c.l.b16 %v2293
  %v3800 = vunpack.c.h.b16 %v2293
  %v3801 = vunpack.c.l.b16 %v2294
  %v3802 = vunpack.c.h.b16 %v2294
  %v3803 = vunpack.c.l.b16 %v2295
  %v3804 = vunpack.c.h.b16 %v2295
  %v3805 = vunpack.c.l.b16 %v2296
  %v3806 = vunpack.c.h.b16 %v2296
  %v3807 = vunpack.c.l.b16 %v2297
  %v3808 = vunpack.c.l.b16 %v2298
  %v3809 = vunpack.c.h.b16 %v2298
  %v3810 = vunpack.c.l.b16 %v2299
  %v3811 = vunpack.c.h.b16 %v2299
  %v3812 = vunpack.c.l.b16 %v2300
  %v3813 = vunpack.c.h.b16 %v2300
  %v3814 = vunpack.c.l.b16 %v2301
  %v3815 = vunpack.c.h.b16 %v2301
  %v3816 = vunpack.c.l.b16 %v2302
  %v3817 = vunpack.c.h.b16 %v2302
  %v3818 = vunpack.c.l.b16 %v2303
  %v3819 = vunpack.c.h.b16 %v2303
  %v3820 = vunpack.c.l.b16 %v2304
  %v3821 = vunpack.c.l.b16 %v2305
  %v3822 = vunpack.c.h.b16 %v2305
  %v3823 = vunpack.c.l.b16 %v2306
  %v3824 = vunpack.c.h.b16 %v2306
  %v3825 = vunpack.c.l.b16 %v2307
  %v3826 = vunpack.c.h.b16 %v2307
  %v3827 = vunpack.c.l.b16 %v2308
  %v3828 = vunpack.c.h.b16 %v2308
  %v3829 = vunpack.c.l.b16 %v2309
  %v3830 = vunpack.c.h.b16 %v2309
  %v3831 = vunpack.c.l.b16 %v2310
  %v3832 = vunpack.c.h.b16 %v2310
  %v3833 = vunpack.c.l.b16 %v2311
  %v3834 = vunpack.c.l.b16 %v2312
  %v3835 = vunpack.c.h.b16 %v2312
  %v3836 = vunpack.c.l.b16 %v2313
  %v3837 = vunpack.c.h.b16 %v2313
  %v3838 = vunpack.c.l.b16 %v2314
  %v3839 = vunpack.c.h.b16 %v2314
  %v3840 = vunpack.c.l.b16 %v2315
  %v3841 = vunpack.c.h.b16 %v2315
  %v3842 = vunpack.c.l.b16 %v2316
  %v3843 = vunpack.c.h.b16 %v2316
  %v3844 = vunpack.c.l.b16 %v2317
  %v3845 = vunpack.c.h.b16 %v2317
  %v3846 = vunpack.c.l.b16 %v2318
  %v3847 = vunpack.c.l.b16 %v2319
  %v3848 = vunpack.c.h.b16 %v2319
  %v3849 = vunpack.c.l.b16 %v2320
  %v3850 = vunpack.c.h.b16 %v2320
  %v3851 = vunpack.c.l.b16 %v2321
  %v3852 = vunpack.c.h.b16 %v2321
  %v3853 = vunpack.c.l.b16 %v2322
  %v3854 = vunpack.c.h.b16 %v2322
  %v3855 = vunpack.c.l.b16 %v2323
  %v3856 = vunpack.c.h.b16 %v2323
  %v3857 = vunpack.c.l.b16 %v2324
  %v3858 = vunpack.c.h.b16 %v2324
  %v3859 = vunpack.c.l.b16 %v2325
  %v3860 = vunpack.c.l.b16 %v2326
  %v3861 = vunpack.c.h.b16 %v2326
  %v3862 = vunpack.c.l.b16 %v2327
  %v3863 = vunpack.c.h.b16 %v2327
  %v3864 = vunpack.c.l.b16 %v2328
  %v3865 = vunpack.c.h.b16 %v2328
  %v3866 = vunpack.c.l.b16 %v2329
  %v3867 = vunpack.c.h.b16 %v2329
  %v3868 = vunpack.c.l.b16 %v2330
  %v3869 = vunpack.c.h.b16 %v2330
  %v3870 = vunpack.c.l.b16 %v2331
  %v3871 = vunpack.c.h.b16 %v2331
  %v3872 = vunpack.c.l.b16 %v2332
  %v3873 = vunpack.c.l.b16 %v2333
  %v3874 = vunpack.c.h.b16 %v2333
  %v3875 = vunpack.c.l.b16 %v2334
  %v3876 = vunpack.c.h.b16 %v2334
  %v3877 = vunpack.c.l.b16 %v2335
  %v3878 = vunpack.c.h.b16 %v2335
  %v3879 = vunpack.c.l.b16 %v2336
  %v3880 = vunpack.c.h.b16 %v2336
  %v3881 = vunpack.c.l.b16 %v2337
  %v3882 = vunpack.c.h.b16 %v2337
  %v3883 = vunpack.c.l.b16 %v2338
  %v3884 = vunpack.c.h.b16 %v2338
  %v3885 = vunpack.c.l.b16 %v2339
  %v3886 = vunpack.c.l.b16 %v2340
  %v3887 = vunpack.c.h.b16 %v2340
  %v3888 = vunpack.c.l.b16 %v2341
  %v3889 = vunpack.c.h.b16 %v2341
  %v3890 = vunpack.c.l.b16 %v2342
  %v3891 = vunpack.c.h.b16 %v2342
  %v3892 = vunpack.c.l.b16 %v2343
  %v3893 = vunpack.c.h.b16 %v2343
  %v3894 = vunpack.c.l.b16 %v2344
  %v3895 = vunpack.c.h.b16 %v2344
  %v3896 = vunpack.c.l.b16 %v2345
  %v3897 = vunpack.c.h.b16 %v2345
  %v3898 = vunpack.c.l.b16 %v2346
  %v3899 = vunpack.c.l.b16 %v2347
  %v3900 = vunpack.c.h.b16 %v2347
  %v3901 = vunpack.c.l.b16 %v2348
  %v3902 = vunpack.c.h.b16 %v2348
  %v3903 = vunpack.c.l.b16 %v2349
  %v3904 = vunpack.c.h.b16 %v2349
  %v3905 = vunpack.c.l.b16 %v2350
  %v3906 = vunpack.c.h.b16 %v2350
  %v3907 = vunpack.c.l.b16 %v2351
  %v3908 = vunpack.c.h.b16 %v2351
  %v3909 = vunpack.c.l.b16 %v2352
  %v3910 = vunpack.c.h.b16 %v2352
  %v3911 = vunpack.c.l.b16 %v2353
  %v3912 = vunpack.c.l.b16 %v2354
  %v3913 = vunpack.c.h.b16 %v2354
  %v3914 = vunpack.c.l.b16 %v2355
  %v3915 = vunpack.c.h.b16 %v2355
  %v3916 = vunpack.c.l.b16 %v2356
  %v3917 = vunpack.c.h.b16 %v2356
  %v3918 = vunpack.c.l.b16 %v2357
  %v3919 = vunpack.c.h.b16 %v2357
  %v3920 = vunpack.c.l.b16 %v2358
  %v3921 = vunpack.c.h.b16 %v2358
  %v3922 = vunpack.c.l.b16 %v2359
  %v3923 = vunpack.c.h.b16 %v2359
  %v3924 = vunpack.c.l.b16 %v2360
  %v3925 = vunpack.c.l.b16 %v2361
  %v3926 = vunpack.c.h.b16 %v2361
  %v3927 = vunpack.c.l.b16 %v2362
  %v3928 = vunpack.c.h.b16 %v2362
  %v3929 = vunpack.c.l.b16 %v2363
  %v3930 = vunpack.c.h.b16 %v2363
  %v3931 = vunpack.c.l.b16 %v2364
  %v3932 = vunpack.c.h.b16 %v2364
  %v3933 = vunpack.c.l.b16 %v2365
  %v3934 = vunpack.c.h.b16 %v2365
  %v3935 = vunpack.c.l.b16 %v2366
  %v3936 = vunpack.c.h.b16 %v2366
  %v3937 = vunpack.c.l.b16 %v2367
  %v3938 = vunpack.c.l.b16 %v2368
  %v3939 = vunpack.c.h.b16 %v2368
  %v3940 = vunpack.c.l.b16 %v2369
  %v3941 = vunpack.c.h.b16 %v2369
  %v3942 = vunpack.c.l.b16 %v2370
  %v3943 = vunpack.c.h.b16 %v2370
  %v3944 = vunpack.c.l.b16 %v2371
  %v3945 = vunpack.c.h.b16 %v2371
  %v3946 = vunpack.c.l.b16 %v2372
  %v3947 = vunpack.c.h.b16 %v2372
  %v3948 = vunpack.c.l.b16 %v2373
  %v3949 = vunpack.c.h.b16 %v2373
  %v3950 = vunpack.c.l.b16 %v2374
  %v3951 = vunpack.c.l.b16 %v2375
  %v3952 = vunpack.c.h.b16 %v2375
  %v3953 = vunpack.c.l.b16 %v2376
  %v3954 = vunpack.c.h.b16 %v2376
  %v3955 = vunpack.c.l.b16 %v2377
  %v3956 = vunpack.c.h.b16 %v2377
  %v3957 = vunpack.c.l.b16 %v2378
  %v3958 = vunpack.c.h.b16 %v2378
  %v3959 = vunpack.c.l.b16 %v2379
  %v3960 = vunpack.c.h.b16 %v2379
  %v3961 = vunpack.c.l.b16 %v2380
  %v3962 = vunpack.c.h.b16 %v2380
  %v3963 = vunpack.c.l.b16 %v2381
  %v3964 = vunpack.c.l.b16 %v2382
  %v3965 = vunpack.c.h.b16 %v2382
  %v3966 = vunpack.c.l.b16 %v2383
  %v3967 = vunpack.c.h.b16 %v2383
  %v3968 = vunpack.c.l.b16 %v2384
  %v3969 = vunpack.c.h.b16 %v2384
  %v3970 = vunpack.c.l.b16 %v2385
  %v3971 = vunpack.c.h.b16 %v2385
  %v3972 = vunpack.c.l.b16 %v2386
  %v3973 = vunpack.c.h.b16 %v2386
  %v3974 = vunpack.c.l.b16 %v2387
  %v3975 = vunpack.c.h.b16 %v2387
  %v3976 = vunpack.c.l.b16 %v2388
  %v3977 = vunpack.c.l.b16 %v2389
  %v3978 = vunpack.c.h.b16 %v2389
  %v3979 = vunpack.c.l.b16 %v2390
  %v3980 = vunpack.c.h.b16 %v2390
  %v3981 = vunpack.c.l.b16 %v2391
  %v3982 = vunpack.c.h.b16 %v2391
  %v3983 = vunpack.c.l.b16 %v2392
  %v3984 = vunpack.c.h.b16 %v2392
  %v3985 = vunpack.c.l.b16 %v2393
  %v3986 = vunpack.c.h.b16 %v2393
  %v3987 = vunpack.c.l.b16 %v2394
  %v3988 = vunpack.c.h.b16 %v2394
  %v3989 = vunpack.c.l.b16 %v2395
  %v3990 = vunpack.c.l.b16 %v2396
  %v3991 = vunpack.c.h.b16 %v2396
  %v3992 = vunpack.c.l.b16 %v2397
  %v3993 = vunpack.c.h.b16 %v2397
  %v3994 = vunpack.c.l.b16 %v2398
  %v3995 = vunpack.c.h.b16 %v2398
  %v3996 = vunpack.c.l.b16 %v2399
  %v3997 = vunpack.c.h.b16 %v2399
  %v3998 = vunpack.c.l.b16 %v2400
  %v3999 = vunpack.c.h.b16 %v2400
  %v4000 = vunpack.c.l.b16 %v2401
  %v4001 = vunpack.c.h.b16 %v2401
  %v4002 = vunpack.c.l.b16 %v2402
  %v4003 = vunpack.c.l.b16 %v2403
  %v4004 = vunpack.c.h.b16 %v2403
  %v4005 = vunpack.c.l.b16 %v2404
  %v4006 = vunpack.c.h.b16 %v2404
  %v4007 = vunpack.c.l.b16 %v2405
  %v4008 = vunpack.c.h.b16 %v2405
  %v4009 = vunpack.c.l.b16 %v2406
  %v4010 = vunpack.c.h.b16 %v2406
  %v4011 = vunpack.c.l.b16 %v2407
  %v4012 = vunpack.c.h.b16 %v2407
  %v4013 = vunpack.c.l.b16 %v2408
  %v4014 = vunpack.c.h.b16 %v2408
  %v4015 = vunpack.c.l.b16 %v2409
  %v4016 = vunpack.c.l.b16 %v2410
  %v4017 = vunpack.c.h.b16 %v2410
  %v4018 = vunpack.c.l.b16 %v2411
  %v4019 = vunpack.c.h.b16 %v2411
  %v4020 = vunpack.c.l.b16 %v2412
  %v4021 = vunpack.c.h.b16 %v2412
  %v4022 = vunpack.c.l.b16 %v2413
  %v4023 = vunpack.c.h.b16 %v2413
  %v4024 = vunpack.c.l.b16 %v2414
  %v4025 = vunpack.c.h.b16 %v2414
  %v4026 = vunpack.c.l.b16 %v2415
  %v4027 = vunpack.c.h.b16 %v2415
  %v4028 = vunpack.c.l.b16 %v2416
  %v4029 = vunpack.c.l.b16 %v2417
  %v4030 = vunpack.c.h.b16 %v2417
  %v4031 = vunpack.c.l.b16 %v2418
  %v4032 = vunpack.c.h.b16 %v2418
  %v4033 = vunpack.c.l.b16 %v2419
  %v4034 = vunpack.c.h.b16 %v2419
  %v4035 = vunpack.c.l.b16 %v2420
  %v4036 = vunpack.c.h.b16 %v2420
  %v4037 = vunpack.c.l.b16 %v2421
  %v4038 = vunpack.c.h.b16 %v2421
  %v4039 = vunpack.c.l.b16 %v2422
  %v4040 = vunpack.c.h.b16 %v2422
  %v4041 = vunpack.c.l.b16 %v2423
  %v4042 = vunpack.c.l.b16 %v2424
  %v4043 = vunpack.c.h.b16 %v2424
  %v4044 = vunpack.c.l.b16 %v2425
  %v4045 = vunpack.c.h.b16 %v2425
  %v4046 = vunpack.c.l.b16 %v2426
  %v4047 = vunpack.c.h.b16 %v2426
  %v4048 = vunpack.c.l.b16 %v2427
  %v4049 = vunpack.c.h.b16 %v2427
  %v4050 = vunpack.c.l.b16 %v2428
  %v4051 = vunpack.c.h.b16 %v2428
  %v4052 = vunpack.c.l.b16 %v2429
  %v4053 = vunpack.c.h.b16 %v2429
  %v4054 = vunpack.c.l.b16 %v2430
  %v4055 = vunpack.c.l.b16 %v2431
  %v4056 = vunpack.c.h.b16 %v2431
  %v4057 = vunpack.c.l.b16 %v2432
  %v4058 = vunpack.c.h.b16 %v2432
  %v4059 = vunpack.c.l.b16 %v2433
  %v4060 = vunpack.c.h.b16 %v2433
  %v4061 = vunpack.c.l.b16 %v2434
  %v4062 = vunpack.c.h.b16 %v2434
  %v4063 = vunpack.c.l.b16 %v2435
  %v4064 = vunpack.c.h.b16 %v2435
  %v4065 = vunpack.c.l.b16 %v2436
  %v4066 = vunpack.c.h.b16 %v2436
  %v4067 = vunpack.c.l.b16 %v2437
  %v4068 = vunpack.c.l.b16 %v2438
  %v4069 = vunpack.c.h.b16 %v2438
  %v4070 = vunpack.c.l.b16 %v2439
  %v4071 = vunpack.c.h.b16 %v2439
  %v4072 = vunpack.c.l.b16 %v2440
  %v4073 = vunpack.c.h.b16 %v2440
  %v4074 = vunpack.c.l.b16 %v2441
  %v4075 = vunpack.c.h.b16 %v2441
  %v4076 = vunpack.c.l.b16 %v2442
  %v4077 = vunpack.c.h.b16 %v2442
  %v4078 = vunpack.c.l.b16 %v2443
  %v4079 = vunpack.c.h.b16 %v2443
  %v4080 = vunpack.c.l.b16 %v2444
  %v4081 = vunpack.c.l.b16 %v2445
  %v4082 = vunpack.c.h.b16 %v2445
  %v4083 = vunpack.c.l.b16 %v2446
  %v4084 = vunpack.c.h.b16 %v2446
  %v4085 = vunpack.c.l.b16 %v2447
  %v4086 = vunpack.c.h.b16 %v2447
  %v4087 = vunpack.c.l.b16 %v2448
  %v4088 = vunpack.c.h.b16 %v2448
  %v4089 = vunpack.c.l.b16 %v2449
  %v4090 = vunpack.c.h.b16 %v2449
  %v4091 = vunpack.c.l.b16 %v2450
  %v4092 = vunpack.c.h.b16 %v2450
  %v4093 = vunpack.c.l.b16 %v2451
  %v4094 = vunpack.c.l.b16 %v2452
  %v4095 = vunpack.c.h.b16 %v2452
  %v4096 = vunpack.c.l.b16 %v2453
  %v4097 = vunpack.c.h.b16 %v2453
  %v4098 = vunpack.c.l.b16 %v2454
  %v4099 = vunpack.c.h.b16 %v2454
  %v4100 = vunpack.c.l.b16 %v2455
  %v4101 = vunpack.c.h.b16 %v2455
  %v4102 = vunpack.c.l.b16 %v2456
  %v4103 = vunpack.c.h.b16 %v2456
  %v4104 = vunpack.c.l.b16 %v2457
  %v4105 = vunpack.c.h.b16 %v2457
  %v4106 = vunpack.c.l.b16 %v2458
  %v4107 = vunpack.c.l.b16 %v2459
  %v4108 = vunpack.c.h.b16 %v2459
  %v4109 = vunpack.c.l.b16 %v2460
  %v4110 = vunpack.c.h.b16 %v2460
  %v4111 = vunpack.c.l.b16 %v2461
  %v4112 = vunpack.c.h.b16 %v2461
  %v4113 = vunpack.c.l.b16 %v2462
  %v4114 = vunpack.c.h.b16 %v2462
  %v4115 = vunpack.c.l.b16 %v2463
  %v4116 = vunpack.c.h.b16 %v2463
  %v4117 = vunpack.c.l.b16 %v2464
  %v4118 = vunpack.c.h.b16 %v2464
  %v4119 = vunpack.c.l.b16 %v2465
  %v4120 = vunpack.c.l.b16 %v2466
  %v4121 = vunpack.c.h.b16 %v2466
  %v4122 = vunpack.c.l.b16 %v2467
  %v4123 = vunpack.c.h.b16 %v2467
  %v4124 = vunpack.c.l.b16 %v2468
  %v4125 = vunpack.c.h.b16 %v2468
  %v4126 = vunpack.c.l.b16 %v2469
  %v4127 = vunpack.c.h.b16 %v2469
  %v4128 = vunpack.c.l.b16 %v2470
  %v4129 = vunpack.c.h.b16 %v2470
  %v4130 = vunpack.c.l.b16 %v2471
  %v4131 = vunpack.c.h.b16 %v2471
  %v4132 = vunpack.c.l.b16 %v2472
  %v4133 = vunpack.c.l.b16 %v2473
  %v4134 = vunpack.c.h.b16 %v2473
  %v4135 = vunpack.c.l.b16 %v2474
  %v4136 = vunpack.c.h.b16 %v2474
  %v4137 = vunpack.c.l.b16 %v2475
  %v4138 = vunpack.c.h.b16 %v2475
  %v4139 = vunpack.c.l.b16 %v2476
  %v4140 = vunpack.c.h.b16 %v2476
  %v4141 = vunpack.c.l.b16 %v2477
  %v4142 = vunpack.c.h.b16 %v2477
  %v4143 = vunpack.c.l.b16 %v2478
  %v4144 = vunpack.c.h.b16 %v2478
  %v4145 = vunpack.c.l.b16 %v2479
  %v4146 = vunpack.c.l.b16 %v2480
  %v4147 = vunpack.c.h.b16 %v2480
  %v4148 = vunpack.c.l.b16 %v2481
  %v4149 = vunpack.c.h.b16 %v2481
  %v4150 = vunpack.c.l.b16 %v2482
  %v4151 = vunpack.c.h.b16 %v2482
  %v4152 = vunpack.c.l.b16 %v2483
  %v4153 = vunpack.c.h.b16 %v2483
  %v4154 = vunpack.c.l.b16 %v2484
  %v4155 = vunpack.c.h.b16 %v2484
  %v4156 = vunpack.c.l.b16 %v2485
  %v4157 = vunpack.c.h.b16 %v2485
  %v4158 = vunpack.c.l.b16 %v2486
  %v4159 = vunpack.c.l.b16 %v2487
  %v4160 = vunpack.c.h.b16 %v2487
  %v4161 = vunpack.c.l.b16 %v2488
  %v4162 = vunpack.c.h.b16 %v2488
  %v4163 = vunpack.c.l.b16 %v2489
  %v4164 = vunpack.c.h.b16 %v2489
  %v4165 = vunpack.c.l.b16 %v2490
  %v4166 = vunpack.c.h.b16 %v2490
  %v4167 = vunpack.c.l.b16 %v2491
  %v4168 = vunpack.c.h.b16 %v2491
  %v4169 = vunpack.c.l.b16 %v2492
  %v4170 = vunpack.c.h.b16 %v2492
  %v4171 = vunpack.c.l.b16 %v2493
  %v4172 = vunpack.c.l.b16 %v2494
  %v4173 = vunpack.c.h.b16 %v2494
  %v4174 = vunpack.c.l.b16 %v2495
  %v4175 = vunpack.c.h.b16 %v2495
  %v4176 = vunpack.c.l.b16 %v2496
  %v4177 = vunpack.c.h.b16 %v2496
  %v4178 = vunpack.c.l.b16 %v2497
  %v4179 = vunpack.c.h.b16 %v2497
  %v4180 = vunpack.c.l.b16 %v2498
  %v4181 = vunpack.c.h.b16 %v2498
  %v4182 = vunpack.c.l.b16 %v2499
  %v4183 = vunpack.c.h.b16 %v2499
  %v4184 = vunpack.c.l.b16 %v2500
  %v4185 = vunpack.c.l.b16 %v2501
  %v4186 = vunpack.c.h.b16 %v2501
  %v4187 = vunpack.c.l.b16 %v2502
  %v4188 = vunpack.c.h.b16 %v2502
  %v4189 = vunpack.c.l.b16 %v2503
  %v4190 = vunpack.c.h.b16 %v2503
  %v4191 = vunpack.c.l.b16 %v2504
  %v4192 = vunpack.c.h.b16 %v2504
  %v4193 = vunpack.c.l.b16 %v2505
  %v4194 = vunpack.c.h.b16 %v2505
  %v4195 = vunpack.c.l.b16 %v2506
  %v4196 = vunpack.c.h.b16 %v2506
  %v4197 = vunpack.c.l.b16 %v2507
  %v4198 = vunpack.c.l.b16 %v2508
  %v4199 = vunpack.c.h.b16 %v2508
  %v4200 = vunpack.c.l.b16 %v2509
  %v4201 = vunpack.c.h.b16 %v2509
  %v4202 = vunpack.c.l.b16 %v2510
  %v4203 = vunpack.c.h.b16 %v2510
  %v4204 = vunpack.c.l.b16 %v2511
  %v4205 = vunpack.c.h.b16 %v2511
  %v4206 = vunpack.c.l.b16 %v2512
  %v4207 = vunpack.c.h.b16 %v2512
  %v4208 = vunpack.c.l.b16 %v2513
  %v4209 = vunpack.c.h.b16 %v2513
  %v4210 = vunpack.c.l.b16 %v2514
  %v4211 = vunpack.c.l.b16 %v2515
  %v4212 = vunpack.c.h.b16 %v2515
  %v4213 = vunpack.c.l.b16 %v2516
  %v4214 = vunpack.c.h.b16 %v2516
  %v4215 = vunpack.c.l.b16 %v2517
  %v4216 = vunpack.c.h.b16 %v2517
  %v4217 = vunpack.c.l.b16 %v2518
  %v4218 = vunpack.c.h.b16 %v2518
  %v4219 = vunpack.c.l.b16 %v2519
  %v4220 = vunpack.c.h.b16 %v2519
  %v4221 = vunpack.c.l.b16 %v2520
  %v4222 = vunpack.c.h.b16 %v2520
  %v4223 = vunpack.c.l.b16 %v2521
  %v4224 = vunpack.c.l.b16 %v2522
  %v4225 = vunpack.c.h.b16 %v2522
  %v4226 = vunpack.c.l.b16 %v2523
  %v4227 = vunpack.c.h.b16 %v2523
  %v4228 = vunpack.c.l.b16 %v2524
  %v4229 = vunpack.c.h.b16 %v2524
  %v4230 = vunpack.c.l.b16 %v2525
  %v4231 = vunpack.c.h.b16 %v2525
  %v4232 = vunpack.c.l.b16 %v2526
  %v4233 = vunpack.c.h.b16 %v2526
  %v4234 = vunpack.c.l.b16 %v2527
  %v4235 = vunpack.c.h.b16 %v2527
  %v4236 = vunpack.c.l.b16 %v2528
  %v4237 = vunpack.c.l.b16 %v2529
  %v4238 = vunpack.c.h.b16 %v2529
  %v4239 = vunpack.c.l.b16 %v2530
  %v4240 = vunpack.c.h.b16 %v2530
  %v4241 = vunpack.c.l.b16 %v2531
  %v4242 = vunpack.c.h.b16 %v2531
  %v4243 = vunpack.c.l.b16 %v2532
  %v4244 = vunpack.c.h.b16 %v2532
  %v4245 = vunpack.c.l.b16 %v2533
  %v4246 = vunpack.c.h.b16 %v2533
  %v4247 = vunpack.c.l.b16 %v2534
  %v4248 = vunpack.c.h.b16 %v2534
  %v4249 = vunpack.c.l.b16 %v2535
  %v4250 = vunpack.c.l.b16 %v2536
  %v4251 = vunpack.c.h.b16 %v2536
  %v4252 = vunpack.c.l.b16 %v2537
  %v4253 = vunpack.c.h.b16 %v2537
  %v4254 = vunpack.c.l.b16 %v2538
  %v4255 = vunpack.c.h.b16 %v2538
  %v4256 = vunpack.c.l.b16 %v2539
  %v4257 = vunpack.c.h.b16 %v2539
  %v4258 = vunpack.c.l.b16 %v2540
  %v4259 = vunpack.c.h.b16 %v2540
  %v4260 = vunpack.c.l.b16 %v2541
  %v4261 = vunpack.c.h.b16 %v2541
  %v4262 = vunpack.c.l.b16 %v2542
  %v4263 = vunpack.c.l.b16 %v2543
  %v4264 = vunpack.c.h.b16 %v2543
  %v4265 = vunpack.c.l.b16 %v2544
  %v4266 = vunpack.c.h.b16 %v2544
  %v4267 = vunpack.c.l.b16 %v2545
  %v4268 = vunpack.c.h.b16 %v2545
  %v4269 = vunpack.c.l.b16 %v2546
  %v4270 = vunpack.c.h.b16 %v2546
  %v4271 = vunpack.c.l.b16 %v2547
  %v4272 = vunpack.c.h.b16 %v2547
  %v4273 = vunpack.c.l.b16 %v2548
  %v4274 = vunpack.c.h.b16 %v2548
  %v4275 = vunpack.c.l.b16 %v2549
  %v4276 = vunpack.c.l.b16 %v2550
  %v4277 = vunpack.c.h.b16 %v2550
  %v4278 = vunpack.c.l.b16 %v2551
  %v4279 = vunpack.c.h.b16 %v2551
  %v4280 = vunpack.c.l.b16 %v2552
  %v4281 = vunpack.c.h.b16 %v2552
  %v4282 = vunpack.c.l.b16 %v2553
  %v4283 = vunpack.c.h.b16 %v2553
  %v4284 = vunpack.c.l.b16 %v2554
  %v4285 = vunpack.c.h.b16 %v2554
  %v4286 = vunpack.c.l.b16 %v2555
  %v4287 = vunpack.c.h.b16 %v2555
  %v4288 = vunpack.c.l.b16 %v2556
  %v4289 = vunpack.c.l.b16 %v2557
  %v4290 = vunpack.c.h.b16 %v2557
  %v4291 = vunpack.c.l.b16 %v2558
  %v4292 = vunpack.c.h.b16 %v2558
  %v4293 = vunpack.c.l.b16 %v2559
  %v4294 = vunpack.c.h.b16 %v2559
  %v4295 = vunpack.c.l.b16 %v2560
  %v4296 = vunpack.c.h.b16 %v2560
  %v4297 = vunpack.c.l.b16 %v2561
  %v4298 = vunpack.c.h.b16 %v2561
  %v4299 = vunpack.c.l.b16 %v2562
  %v4300 = vunpack.c.h.b16 %v2562
  %v4301 = vunpack.c.l.b16 %v2563
  %v4302 = vunpack.c.l.b16 %v2564
  %v4303 = vunpack.c.h.b16 %v2564
  %v4304 = vunpack.c.l.b16 %v2565
  %v4305 = vunpack.c.h.b16 %v2565
  %v4306 = vunpack.c.l.b16 %v2566
  %v4307 = vunpack.c.h.b16 %v2566
  %v4308 = vunpack.c.l.b16 %v2567
  %v4309 = vunpack.c.h.b16 %v2567
  %v4310 = vunpack.c.l.b16 %v2568
  %v4311 = vunpack.c.h.b16 %v2568
  %v4312 = vunpack.c.l.b16 %v2569
  %v4313 = vunpack.c.h.b16 %v2569
  %v4314 = vunpack.c.l.b16 %v2570
  %v4315 = vunpack.c.l.b16 %v2571
  %v4316 = vunpack.c.h.b16 %v2571
  %v4317 = vunpack.c.l.b16 %v2572
  %v4318 = vunpack.c.h.b16 %v2572
  %v4319 = vunpack.c.l.b16 %v2573
  %v4320 = vunpack.c.h.b16 %v2573
  %v4321 = vunpack.c.l.b16 %v2574
  %v4322 = vunpack.c.h.b16 %v2574
  %v4323 = vunpack.c.l.b16 %v2575
  %v4324 = vunpack.c.h.b16 %v2575
  %v4325 = vunpack.c.l.b16 %v2576
  %v4326 = vunpack.c.h.b16 %v2576
  %v4327 = vunpack.c.l.b16 %v2577
  %v4328 = vunpack.c.l.b16 %v2578
  %v4329 = vunpack.c.h.b16 %v2578
  %v4330 = vunpack.c.l.b16 %v2579
  %v4331 = vunpack.c.h.b16 %v2579
  %v4332 = vunpack.c.l.b16 %v2580
  %v4333 = vunpack.c.h.b16 %v2580
  %v4334 = vunpack.c.l.b16 %v2581
  %v4335 = vunpack.c.h.b16 %v2581
  %v4336 = vunpack.c.l.b16 %v2582
  %v4337 = vunpack.c.h.b16 %v2582
  %v4338 = vunpack.c.l.b16 %v2583
  %v4339 = vunpack.c.h.b16 %v2583
  %v4340 = vunpack.c.l.b16 %v2584
  %v4341 = vunpack.c.l.b16 %v2585
  %v4342 = vunpack.c.h.b16 %v2585
  %v4343 = vunpack.c.l.b16 %v2586
  %v4344 = vunpack.c.h.b16 %v2586
  %v4345 = vunpack.c.l.b16 %v2587
  %v4346 = vunpack.c.h.b16 %v2587
  %v4347 = vunpack.c.l.b16 %v2588
  %v4348 = vunpack.c.h.b16 %v2588
  %v4349 = vunpack.c.l.b16 %v2589
  %v4350 = vunpack.c.h.b16 %v2589
  %v4351 = vunpack.c.l.b16 %v2590
  %v4352 = vunpack.c.h.b16 %v2590
  %v4353 = vunpack.c.l.b16 %v2591
  %v4354 = vunpack.c.l.b16 %v2592
  %v4355 = vunpack.c.h.b16 %v2592
  %v4356 = vunpack.c.l.b16 %v2593
  %v4357 = vunpack.c.h.b16 %v2593
  %v4358 = vunpack.c.l.b16 %v2594
  %v4359 = vunpack.c.h.b16 %v2594
  %v4360 = vunpack.c.l.b16 %v2595
  %v4361 = vunpack.c.h.b16 %v2595
  %v4362 = vunpack.c.l.b16 %v2596
  %v4363 = vunpack.c.h.b16 %v2596
  %v4364 = vunpack.c.l.b16 %v2597
  %v4365 = vunpack.c.h.b16 %v2597
  %v4366 = vunpack.c.l.b16 %v2598
  %v4367 = vunpack.c.l.b16 %v2599
  %v4368 = vunpack.c.h.b16 %v2599
  %v4369 = vunpack.c.l.b16 %v2600
  %v4370 = vunpack.c.h.b16 %v2600
  %v4371 = vunpack.c.l.b16 %v2601
  %v4372 = vunpack.c.h.b16 %v2601
  %v4373 = vunpack.c.l.b16 %v2602
  %v4374 = vunpack.c.h.b16 %v2602
  %v4375 = vunpack.c.l.b16 %v2603
  %v4376 = vunpack.c.h.b16 %v2603
  %v4377 = vunpack.c.l.b16 %v2604
  %v4378 = vunpack.c.h.b16 %v2604
  %v4379 = vunpack.c.l.b16 %v2605
  %v4380 = vunpack.c.l.b16 %v2606
  %v4381 = vunpack.c.h.b16 %v2606
  %v4382 = vunpack.c.l.b16 %v2607
  %v4383 = vunpack.c.h.b16 %v2607
  %v4384 = vunpack.c.l.b16 %v2608
  %v4385 = vunpack.c.h.b16 %v2608
  %v4386 = vunpack.c.l.b16 %v2609
  %v4387 = vunpack.c.h.b16 %v2609
  %v4388 = vunpack.c.l.b16 %v2610
  %v4389 = vunpack.c.h.b16 %v2610
  %v4390 = vunpack.c.l.b16 %v2611
  %v4391 = vunpack.c.h.b16 %v2611
  %v4392 = vunpack.c.l.b16 %v2612
  %v4393 = vunpack.c.l.b16 %v2613
  %v4394 = vunpack.c.h.b16 %v2613
  %v4395 = vunpack.c.l.b16 %v2614
  %v4396 = vunpack.c.h.b16 %v2614
  %v4397 = vunpack.c.l.b16 %v2615
  %v4398 = vunpack.c.h.b16 %v2615
  %v4399 = vunpack.c.l.b16 %v2616
  %v4400 = vunpack.c.h.b16 %v2616
  %v4401 = vunpack.c.l.b16 %v2617
  %v4402 = vunpack.c.h.b16 %v2617
  %v4403 = vunpack.c.l.b16 %v2618
  %v4404 = vunpack.c.h.b16 %v2618
  %v4405 = vunpack.c.l.b16 %v2619
  %v4406 = vunpack.c.l.b16 %v2620
  %v4407 = vunpack.c.h.b16 %v2620
  %v4408 = vunpack.c.l.b16 %v2621
  %v4409 = vunpack.c.h.b16 %v2621
  %v4410 = vunpack.c.l.b16 %v2622
  %v4411 = vunpack.c.h.b16 %v2622
  %v4412 = vunpack.c.l.b16 %v2623
  %v4413 = vunpack.c.h.b16 %v2623
  %v4414 = vunpack.c.l.b16 %v2624
  %v4415 = vunpack.c.h.b16 %v2624
  %v4416 = vunpack.c.l.b16 %v2625
  %v4417 = vunpack.c.h.b16 %v2625
  %v4418 = vunpack.c.l.b16 %v2626
  %v4419 = vunpack.c.l.b16 %v2627
  %v4420 = vunpack.c.h.b16 %v2627
  %v4421 = vunpack.c.l.b16 %v2628
  %v4422 = vunpack.c.h.b16 %v2628
  %v4423 = vunpack.c.l.b16 %v2629
  %v4424 = vunpack.c.h.b16 %v2629
  %v4425 = vunpack.c.l.b16 %v2630
  %v4426 = vunpack.c.h.b16 %v2630
  %v4427 = vunpack.c.l.b16 %v2631
  %v4428 = vunpack.c.h.b16 %v2631
  %v4429 = vunpack.c.l.b16 %v2632
  %v4430 = vunpack.c.h.b16 %v2632
  %v4431 = vunpack.c.l.b16 %v2633
  %v4432 = vunpack.c.l.b16 %v2634
  %v4433 = vunpack.c.h.b16 %v2634
  %v4434 = vunpack.c.l.b16 %v2635
  %v4435 = vunpack.c.h.b16 %v2635
  %v4436 = vunpack.c.l.b16 %v2636
  %v4437 = vunpack.c.h.b16 %v2636
  %v4438 = vunpack.c.l.b16 %v2637
  %v4439 = vunpack.c.h.b16 %v2637
  %v4440 = vunpack.c.l.b16 %v2638
  %v4441 = vunpack.c.h.b16 %v2638
  %v4442 = vunpack.c.l.b16 %v2639
  %v4443 = vunpack.c.h.b16 %v2639
  %v4444 = vunpack.c.l.b16 %v2640
  %v4445 = vunpack.c.l.b16 %v2641
  %v4446 = vunpack.c.h.b16 %v2641
  %v4447 = vunpack.c.l.b16 %v2642
  %v4448 = vunpack.c.h.b16 %v2642
  %v4449 = vunpack.c.l.b16 %v2643
  %v4450 = vunpack.c.h.b16 %v2643
  %v4451 = vunpack.c.l.b16 %v2644
  %v4452 = vunpack.c.h.b16 %v2644
  %v4453 = vunpack.c.l.b16 %v2645
  %v4454 = vunpack.c.h.b16 %v2645
  %v4455 = vunpack.c.l.b16 %v2646
  %v4456 = vunpack.c.h.b16 %v2646
  %v4457 = vunpack.c.l.b16 %v2647
  %v4458 = vunpack.c.l.b16 %v2648
  %v4459 = vunpack.c.h.b16 %v2648
  %v4460 = vunpack.c.l.b16 %v2649
  %v4461 = vunpack.c.h.b16 %v2649
  %v4462 = vunpack.c.l.b16 %v2650
  %v4463 = vunpack.c.h.b16 %v2650
  %v4464 = vunpack.c.l.b16 %v2651
  %v4465 = vunpack.c.h.b16 %v2651
  %v4466 = vunpack.c.l.b16 %v2652
  %v4467 = vunpack.c.h.b16 %v2652
  %v4468 = vunpack.c.l.b16 %v2653
  %v4469 = vunpack.c.h.b16 %v2653
  %v4470 = vunpack.c.l.b16 %v2654
  %v4471 = vunpack.c.l.b16 %v2655
  %v4472 = vunpack.c.h.b16 %v2655
  %v4473 = vunpack.c.l.b16 %v2656
  %v4474 = vunpack.c.h.b16 %v2656
  %v4475 = vunpack.c.l.b16 %v2657
  %v4476 = vunpack.c.h.b16 %v2657
  %v4477 = vunpack.c.l.b16 %v2658
  %v4478 = vunpack.c.h.b16 %v2658
  %v4479 = vunpack.c.l.b16 %v2659
  %v4480 = vunpack.c.h.b16 %v2659
  %v4481 = vunpack.c.l.b16 %v2660
  %v4482 = vunpack.c.h.b16 %v2660
  %v4483 = vunpack.c.l.b16 %v2661
  %v4484 = vunpack.c.l.b16 %v2662
  %v4485 = vunpack.c.h.b16 %v2662
  %v4486 = vunpack.c.l.b16 %v2663
  %v4487 = vunpack.c.h.b16 %v2663
  %v4488 = vunpack.c.l.b16 %v2664
  %v4489 = vunpack.c.h.b16 %v2664
  %v4490 = vunpack.c.l.b16 %v2665
  %v4491 = vunpack.c.h.b16 %v2665
  %v4492 = vunpack.c.l.b16 %v2666
  %v4493 = vunpack.c.h.b16 %v2666
  %v4494 = vunpack.c.l.b16 %v2667
  %v4495 = vunpack.c.h.b16 %v2667
  %v4496 = vunpack.c.l.b16 %v2668
  %v4497 = vunpack.c.l.b16 %v2669
  %v4498 = vunpack.c.h.b16 %v2669
  %v4499 = vunpack.c.l.b16 %v2670
  %v4500 = vunpack.c.h.b16 %v2670
  %v4501 = vunpack.c.l.b16 %v2671
  %v4502 = vunpack.c.h.b16 %v2671
  %v4503 = vunpack.c.l.b16 %v2672
  %v4504 = vunpack.c.h.b16 %v2672
  %v4505 = vunpack.c.l.b16 %v2673
  %v4506 = vunpack.c.h.b16 %v2673
  %v4507 = vunpack.c.l.b16 %v2674
  %v4508 = vunpack.c.h.b16 %v2674
  %v4509 = vunpack.c.l.b16 %v2675
  %v4510 = vunpack.c.l.b16 %v2676
  %v4511 = vunpack.c.h.b16 %v2676
  %v4512 = vunpack.c.l.b16 %v2677
  %v4513 = vunpack.c.h.b16 %v2677
  %v4514 = vunpack.c.l.b16 %v2678
  %v4515 = vunpack.c.h.b16 %v2678
  %v4516 = vunpack.c.l.b16 %v2679
  %v4517 = vunpack.c.h.b16 %v2679
  %v4518 = vunpack.c.l.b16 %v2680
  %v4519 = vunpack.c.h.b16 %v2680
  %v4520 = vunpack.c.l.b16 %v2681
  %v4521 = vunpack.c.h.b16 %v2681
  %v4522 = vunpack.c.l.b16 %v2682
  %v4523 = vunpack.c.l.b16 %v2683
  %v4524 = vunpack.c.h.b16 %v2683
  %v4525 = vunpack.c.l.b16 %v2684
  %v4526 = vunpack.c.h.b16 %v2684
  %v4527 = vunpack.c.l.b16 %v2685
  %v4528 = vunpack.c.h.b16 %v2685
  %v4529 = vunpack.c.l.b16 %v2686
  %v4530 = vunpack.c.h.b16 %v2686
  %v4531 = vunpack.c.l.b16 %v2687
  %v4532 = vunpack.c.h.b16 %v2687
  %v4533 = vunpack.c.l.b16 %v2688
  %v4534 = vunpack.c.h.b16 %v2688
  %v4535 = vunpack.c.l.b16 %v2689
  %v4536 = vunpack.c.l.b16 %v2690
  %v4537 = vunpack.c.h.b16 %v2690
  %v4538 = vunpack.c.l.b16 %v2691
  %v4539 = vunpack.c.h.b16 %v2691
  %v4540 = vunpack.c.l.b16 %v2692
  %v4541 = vunpack.c.h.b16 %v2692
  %v4542 = vunpack.c.l.b16 %v2693
  %v4543 = vunpack.c.h.b16 %v2693
  %v4544 = vunpack.c.l.b16 %v2694
  %v4545 = vunpack.c.h.b16 %v2694
  %v4546 = vunpack.c.l.b16 %v2695
  %v4547 = vunpack.c.h.b16 %v2695
  %v4548 = vunpack.c.l.b16 %v2696
  %v4549 = vunpack.c.l.b16 %v2697
  %v4550 = vunpack.c.h.b16 %v2697
  %v4551 = vunpack.c.l.b16 %v2698
  %v4552 = vunpack.c.h.b16 %v2698
  %v4553 = vunpack.c.l.b16 %v2699
  %v4554 = vunpack.c.h.b16 %v2699
  %v4555 = vunpack.c.l.b16 %v2700
  %v4556 = vunpack.c.h.b16 %v2700
  %v4557 = vunpack.c.l.b16 %v2701
  %v4558 = vunpack.c.h.b16 %v2701
  %v4559 = vunpack.c.l.b16 %v2702
  %v4560 = vunpack.c.h.b16 %v2702
  %v4561 = vunpack.c.l.b16 %v2703
  %v4562 = vunpack.c.l.b16 %v2704
  %v4563 = vunpack.c.h.b16 %v2704
  %v4564 = vunpack.c.l.b16 %v2705
  %v4565 = vunpack.c.h.b16 %v2705
  %v4566 = vunpack.c.l.b16 %v2706
  %v4567 = vunpack.c.h.b16 %v2706
  %v4568 = vunpack.c.l.b16 %v2707
  %v4569 = vunpack.c.h.b16 %v2707
  %v4570 = vunpack.c.l.b16 %v2708
  %v4571 = vunpack.c.h.b16 %v2708
  %v4572 = vunpack.c.l.b16 %v2709
  %v4573 = vunpack.c.h.b16 %v2709
  %v4574 = vunpack.c.l.b16 %v2710
  %v4575 = vunpack.c.l.b16 %v2711
  %v4576 = vunpack.c.h.b16 %v2711
  %v4577 = vunpack.c.l.b16 %v2712
  %v4578 = vunpack.c.h.b16 %v2712
  %v4579 = vunpack.c.l.b16 %v2713
  %v4580 = vunpack.c.h.b16 %v2713
  %v4581 = vunpack.c.l.b16 %v2714
  %v4582 = vunpack.c.h.b16 %v2714
  %v4583 = vunpack.c.l.b16 %v2715
  %v4584 = vunpack.c.h.b16 %v2715
  %v4585 = vunpack.c.l.b16 %v2716
  %v4586 = vunpack.c.h.b16 %v2716
  %v4587 = vunpack.c.l.b16 %v2717
  %v4588 = vunpack.c.l.b16 %v2718
  %v4589 = vunpack.c.h.b16 %v2718
  %v4590 = vunpack.c.l.b16 %v2719
  %v4591 = vunpack.c.h.b16 %v2719
  %v4592 = vunpack.c.l.b16 %v2720
  %v4593 = vunpack.c.h.b16 %v2720
  %v4594 = vunpack.c.l.b16 %v2721
  %v4595 = vunpack.c.h.b16 %v2721
  %v4596 = vunpack.c.l.b16 %v2722
  %v4597 = vunpack.c.h.b16 %v2722
  %v4598 = vunpack.c.l.b16 %v2723
  %v4599 = vunpack.c.h.b16 %v2723
  %v4600 = vunpack.c.l.b16 %v2724
  %v4601 = vunpack.c.l.b16 %v2725
  %v4602 = vunpack.c.h.b16 %v2725
  %v4603 = vunpack.c.l.b16 %v2726
  %v4604 = vunpack.c.h.b16 %v2726
  %v4605 = vunpack.c.l.b16 %v2727
  %v4606 = vunpack.c.h.b16 %v2727
  %v4607 = vunpack.c.l.b16 %v2728
  %v4608 = vunpack.c.h.b16 %v2728
  %v4609 = vunpack.c.l.b16 %v2729
  %v4610 = vunpack.c.h.b16 %v2729
  %v4611 = vunpack.c.l.b16 %v2730
  %v4612 = vunpack.c.h.b16 %v2730
  %v4613 = vunpack.c.l.b16 %v2731
  %v4614 = vunpack.c.l.b16 %v2732
  %v4615 = vunpack.c.h.b16 %v2732
  %v4616 = vunpack.c.l.b16 %v2733
  %v4617 = vunpack.c.h.b16 %v2733
  %v4618 = vunpack.c.l.b16 %v2734
  %v4619 = vunpack.c.h.b16 %v2734
  %v4620 = vunpack.c.l.b16 %v2735
  %v4621 = vunpack.c.h.b16 %v2735
  %v4622 = vunpack.c.l.b16 %v2736
  %v4623 = vunpack.c.h.b16 %v2736
  %v4624 = vunpack.c.l.b16 %v2737
  %v4625 = vunpack.c.h.b16 %v2737
  %v4626 = vunpack.c.l.b16 %v2738
  %v4627 = vunpack.c.l.b16 %v2739
  %v4628 = vunpack.c.h.b16 %v2739
  %v4629 = vunpack.c.l.b16 %v2740
  %v4630 = vunpack.c.h.b16 %v2740
  %v4631 = vunpack.c.l.b16 %v2741
  %v4632 = vunpack.c.h.b16 %v2741
  %v4633 = vunpack.c.l.b16 %v2742
  %v4634 = vunpack.c.h.b16 %v2742
  %v4635 = vunpack.c.l.b16 %v2743
  %v4636 = vunpack.c.h.b16 %v2743
  %v4637 = vunpack.c.l.b16 %v2744
  %v4638 = vunpack.c.h.b16 %v2744
  %v4639 = vunpack.c.l.b16 %v2745
  %v4640 = vunpack.c.l.b16 %v2746
  %v4641 = vunpack.c.h.b16 %v2746
  %v4642 = vunpack.c.l.b16 %v2747
  %v4643 = vunpack.c.h.b16 %v2747
  %v4644 = vunpack.c.l.b16 %v2748
  %v4645 = vunpack.c.h.b16 %v2748
  %v4646 = vunpack.c.l.b16 %v2749
  %v4647 = vunpack.c.h.b16 %v2749
  %v4648 = vunpack.c.l.b16 %v2750
  %v4649 = vunpack.c.h.b16 %v2750
  %v4650 = vunpack.c.l.b16 %v2751
  %v4651 = vunpack.c.h.b16 %v2751
  %v4652 = vunpack.c.l.b16 %v2752
  %v4653 = vunpack.c.l.b16 %v2753
  %v4654 = vunpack.c.h.b16 %v2753
  %v4655 = vunpack.c.l.b16 %v2754
  %v4656 = vunpack.c.h.b16 %v2754
  %v4657 = vunpack.c.l.b16 %v2755
  %v4658 = vunpack.c.h.b16 %v2755
  %v4659 = vunpack.c.l.b16 %v2756
  %v4660 = vunpack.c.h.b16 %v2756
  %v4661 = vunpack.c.l.b16 %v2757
  %v4662 = vunpack.c.h.b16 %v2757
  %v4663 = vunpack.c.l.b16 %v2758
  %v4664 = vunpack.c.h.b16 %v2758
  %v4665 = vunpack.c.l.b16 %v2759
  %v4666 = vunpack.c.l.b16 %v2760
  %v4667 = vunpack.c.h.b16 %v2760
  %v4668 = vunpack.c.l.b16 %v2761
  %v4669 = vunpack.c.h.b16 %v2761
  %v4670 = vunpack.c.l.b16 %v2762
  %v4671 = vunpack.c.h.b16 %v2762
  %v4672 = vunpack.c.l.b16 %v2763
  %v4673 = vunpack.c.h.b16 %v2763
  %v4674 = vunpack.c.l.b16 %v2764
  %v4675 = vunpack.c.h.b16 %v2764
  %v4676 = vunpack.c.l.b16 %v2765
  %v4677 = vunpack.c.h.b16 %v2765
  %v4678 = vunpack.c.l.b16 %v2766
  %v4679 = vunpack.c.l.b16 %v2767
  %v4680 = vunpack.c.h.b16 %v2767
  %v4681 = vunpack.c.l.b16 %v2768
  %v4682 = vunpack.c.h.b16 %v2768
  %v4683 = vunpack.c.l.b16 %v2769
  %v4684 = vunpack.c.h.b16 %v2769
  %v4685 = vunpack.c.l.b16 %v2770
  %v4686 = vunpack.c.h.b16 %v2770
  %v4687 = vunpack.c.l.b16 %v2771
  %v4688 = vunpack.c.h.b16 %v2771
  %v4689 = vunpack.c.l.b16 %v2772
  %v4690 = vunpack.c.h.b16 %v2772
  %v4691 = vunpack.c.l.b16 %v2773
  %v4692 = vunpack.c.l.b16 %v2774
  %v4693 = vunpack.c.h.b16 %v2774
  %v4694 = vunpack.c.l.b16 %v2775
  %v4695 = vunpack.c.h.b16 %v2775
  %v4696 = vunpack.c.l.b16 %v2776
  %v4697 = vunpack.c.h.b16 %v2776
  %v4698 = vunpack.c.l.b16 %v2777
  %v4699 = vunpack.c.h.b16 %v2777
  %v4700 = vunpack.c.l.b16 %v2778
  %v4701 = vunpack.c.h.b16 %v2778
  %v4702 = vunpack.c.l.b16 %v2779
  %v4703 = vunpack.c.h.b16 %v2779
  %v4704 = vunpack.c.l.b16 %v2780
  %v4705 = vunpack.c.l.b16 %v2781
  %v4706 = vunpack.c.h.b16 %v2781
  %v4707 = vunpack.c.l.b16 %v2782
  %v4708 = vunpack.c.h.b16 %v2782
  %v4709 = vunpack.c.l.b16 %v2783
  %v4710 = vunpack.c.h.b16 %v2783
  %v4711 = vunpack.c.l.b16 %v2784
  %v4712 = vunpack.c.h.b16 %v2784
  %v4713 = vunpack.c.l.b16 %v2785
  %v4714 = vunpack.c.h.b16 %v2785
  %v4715 = vunpack.c.l.b16 %v2786
  %v4716 = vunpack.c.h.b16 %v2786
  %v4717 = vunpack.c.l.b16 %v2787
  %v4718 = vunpack.c.l.b16 %v2788
  %v4719 = vunpack.c.h.b16 %v2788
  %v4720 = vunpack.c.l.b16 %v2789
  %v4721 = vunpack.c.h.b16 %v2789
  %v4722 = vunpack.c.l.b16 %v2790
  %v4723 = vunpack.c.h.b16 %v2790
  %v4724 = vunpack.c.l.b16 %v2791
  %v4725 = vunpack.c.h.b16 %v2791
  %v4726 = vunpack.c.l.b16 %v2792
  %v4727 = vunpack.c.h.b16 %v2792
  %v4728 = vunpack.c.l.b16 %v2793
  %v4729 = vunpack.c.h.b16 %v2793
  %v4730 = vunpack.c.l.b16 %v2794
  %v4731 = vunpack.c.l.b16 %v2795
  %v4732 = vunpack.c.h.b16 %v2795
  %v4733 = vunpack.c.l.b16 %v2796
  %v4734 = vunpack.c.h.b16 %v2796
  %v4735 = vunpack.c.l.b16 %v2797
  %v4736 = vunpack.c.h.b16 %v2797
  %v4737 = vunpack.c.l.b16 %v2798
  %v4738 = vunpack.c.h.b16 %v2798
  %v4739 = vunpack.c.l.b16 %v2799
  %v4740 = vunpack.c.h.b16 %v2799
  %v4741 = vunpack.c.l.b16 %v2800
  %v4742 = vunpack.c.h.b16 %v2800
  %v4743 = vunpack.c.l.b16 %v2801
  %v4744 = vunpack.c.l.b16 %v2802
  %v4745 = vunpack.c.h.b16 %v2802
  %v4746 = vunpack.c.l.b16 %v2803
  %v4747 = vunpack.c.h.b16 %v2803
  %v4748 = vunpack.c.l.b16 %v2804
  %v4749 = vunpack.c.h.b16 %v2804
  %v4750 = vunpack.c.l.b16 %v2805
  %v4751 = vunpack.c.h.b16 %v2805
  %v4752 = vunpack.c.l.b16 %v2806
  %v4753 = vunpack.c.h.b16 %v2806
  %v4754 = vunpack.c.l.b16 %v2807
  %v4755 = vunpack.c.h.b16 %v2807
  %v4756 = vunpack.c.l.b16 %v2808
  %v4757 = vunpack.c.l.b16 %v2809
  %v4758 = vunpack.c.h.b16 %v2809
  %v4759 = vunpack.c.l.b16 %v2810
  %v4760 = vunpack.c.h.b16 %v2810
  %v4761 = vunpack.c.l.b16 %v2811
  %v4762 = vunpack.c.h.b16 %v2811
  %v4763 = vunpack.c.l.b16 %v2812
  %v4764 = vunpack.c.h.b16 %v2812
  %v4765 = vunpack.c.l.b16 %v2813
  %v4766 = vunpack.c.h.b16 %v2813
  %v4767 = vunpack.c.l.b16 %v2814
  %v4768 = vunpack.c.h.b16 %v2814
  %v4769 = vunpack.c.l.b16 %v2815
  %v4770 = vunpack.c.l.b16 %v2816
  %v4771 = vunpack.c.h.b16 %v2816
  %v4772 = vunpack.c.l.b16 %v2817
  %v4773 = vunpack.c.h.b16 %v2817
  %v4774 = vunpack.c.l.b16 %v2818
  %v4775 = vunpack.c.h.b16 %v2818
  %v4776 = vunpack.c.l.b16 %v2819
  %v4777 = vunpack.c.h.b16 %v2819
  %v4778 = vunpack.c.l.b16 %v2820
  %v4779 = vunpack.c.h.b16 %v2820
  %v4780 = vunpack.c.l.b16 %v2821
  %v4781 = vunpack.c.h.b16 %v2821
  %v4782 = vunpack.c.l.b16 %v2822
  %v4783 = vpack.c.b16 %v3522, %v3509
  %v4784 = vpack.c.b16 %v3523, %v3510
  %v4785 = vpack.c.b16 %v3524, %v3511
  %v4786 = vpack.c.b16 %v3525, %v3512
  %v4787 = vpack.c.b16 %v3526, %v3513
  %v4788 = vpack.c.b16 %v3527, %v3514
  %v4789 = vpack.c.b16 %v3528, %v3515
  %v4790 = vpack.c.b16 %v3529, %v3516
  %v4791 = vpack.c.b16 %v3530, %v3517
  %v4792 = vpack.c.b16 %v3531, %v3518
  %v4793 = vpack.c.b16 %v3532, %v3519
  %v4794 = vpack.c.b16 %v3533, %v3520
  %v4795 = vpack.c.b16 %v3534, %v3521
  %v4796 = vpack.c.b16 %v3548, %v3535
  %v4797 = vpack.c.b16 %v3549, %v3536
  %v4798 = vpack.c.b16 %v3550, %v3537
  %v4799 = vpack.c.b16 %v3551, %v3538
  %v4800 = vpack.c.b16 %v3552, %v3539
  %v4801 = vpack.c.b16 %v3553, %v3540
  %v4802 = vpack.c.b16 %v3554, %v3541
  %v4803 = vpack.c.b16 %v3555, %v3542
  %v4804 = vpack.c.b16 %v3556, %v3543
  %v4805 = vpack.c.b16 %v3557, %v3544
  %v4806 = vpack.c.b16 %v3558, %v3545
  %v4807 = vpack.c.b16 %v3559, %v3546
  %v4808 = vpack.c.b16 %v3560, %v3547
  %v4809 = vpack.c.b16 %v3574, %v3561
  %v4810 = vpack.c.b16 %v3575, %v3562
  %v4811 = vpack.c.b16 %v3576, %v3563
  %v4812 = vpack.c.b16 %v3577, %v3564
  %v4813 = vpack.c.b16 %v3578, %v3565
  %v4814 = vpack.c.b16 %v3579, %v3566
  %v4815 = vpack.c.b16 %v3580, %v3567
  %v4816 = vpack.c.b16 %v3581, %v3568
  %v4817 = vpack.c.b16 %v3582, %v3569
  %v4818 = vpack.c.b16 %v3583, %v3570
  %v4819 = vpack.c.b16 %v3584, %v3571
  %v4820 = vpack.c.b16 %v3585, %v3572
  %v4821 = vpack.c.b16 %v3586, %v3573
  %v4822 = vpack.c.b16 %v3600, %v3587
  %v4823 = vpack.c.b16 %v3601, %v3588
  %v4824 = vpack.c.b16 %v3602, %v3589
  %v4825 = vpack.c.b16 %v3603, %v3590
  %v4826 = vpack.c.b16 %v3604, %v3591
  %v4827 = vpack.c.b16 %v3605, %v3592
  %v4828 = vpack.c.b16 %v3606, %v3593
  %v4829 = vpack.c.b16 %v3607, %v3594
  %v4830 = vpack.c.b16 %v3608, %v3595
  %v4831 = vpack.c.b16 %v3609, %v3596
  %v4832 = vpack.c.b16 %v3610, %v3597
  %v4833 = vpack.c.b16 %v3611, %v3598
  %v4834 = vpack.c.b16 %v3612, %v3599
  %v4835 = vpack.c.b16 %v3626, %v3613
  %v4836 = vpack.c.b16 %v3627, %v3614
  %v4837 = vpack.c.b16 %v3628, %v3615
  %v4838 = vpack.c.b16 %v3629, %v3616
  %v4839 = vpack.c.b16 %v3630, %v3617
  %v4840 = vpack.c.b16 %v3631, %v3618
  %v4841 = vpack.c.b16 %v3632, %v3619
  %v4842 = vpack.c.b16 %v3633, %v3620
  %v4843 = vpack.c.b16 %v3634, %v3621
  %v4844 = vpack.c.b16 %v3635, %v3622
  %v4845 = vpack.c.b16 %v3636, %v3623
  %v4846 = vpack.c.b16 %v3637, %v3624
  %v4847 = vpack.c.b16 %v3638, %v3625
  %v4848 = vpack.c.b16 %v3652, %v3639
  %v4849 = vpack.c.b16 %v3653, %v3640
  %v4850 = vpack.c.b16 %v3654, %v3641
  %v4851 = vpack.c.b16 %v3655, %v3642
  %v4852 = vpack.c.b16 %v3656, %v3643
  %v4853 = vpack.c.b16 %v3657, %v3644
  %v4854 = vpack.c.b16 %v3658, %v3645
  %v4855 = vpack.c.b16 %v3659, %v3646
  %v4856 = vpack.c.b16 %v3660, %v3647
  %v4857 = vpack.c.b16 %v3661, %v3648
  %v4858 = vpack.c.b16 %v3662, %v3649
  %v4859 = vpack.c.b16 %v3663, %v3650
  %v4860 = vpack.c.b16 %v3664, %v3651
  %v4861 = vpack.c.b16 %v3678, %v3665
  %v4862 = vpack.c.b16 %v3679, %v3666
  %v4863 = vpack.c.b16 %v3680, %v3667
  %v4864 = vpack.c.b16 %v3681, %v3668
  %v4865 = vpack.c.b16 %v3682, %v3669
  %v4866 = vpack.c.b16 %v3683, %v3670
  %v4867 = vpack.c.b16 %v3684, %v3671
  %v4868 = vpack.c.b16 %v3685, %v3672
  %v4869 = vpack.c.b16 %v3686, %v3673
  %v4870 = vpack.c.b16 %v3687, %v3674
  %v4871 = vpack.c.b16 %v3688, %v3675
  %v4872 = vpack.c.b16 %v3689, %v3676
  %v4873 = vpack.c.b16 %v3690, %v3677
  %v4874 = vpack.c.b16 %v3704, %v3691
  %v4875 = vpack.c.b16 %v3705, %v3692
  %v4876 = vpack.c.b16 %v3706, %v3693
  %v4877 = vpack.c.b16 %v3707, %v3694
  %v4878 = vpack.c.b16 %v3708, %v3695
  %v4879 = vpack.c.b16 %v3709, %v3696
  %v4880 = vpack.c.b16 %v3710, %v3697
  %v4881 = vpack.c.b16 %v3711, %v3698
  %v4882 = vpack.c.b16 %v3712, %v3699
  %v4883 = vpack.c.b16 %v3713, %v3700
  %v4884 = vpack.c.b16 %v3714, %v3701
  %v4885 = vpack.c.b16 %v3715, %v3702
  %v4886 = vpack.c.b16 %v3716, %v3703
  %v4887 = vpack.c.b16 %v3730, %v3717
  %v4888 = vpack.c.b16 %v3731, %v3718
  %v4889 = vpack.c.b16 %v3732, %v3719
  %v4890 = vpack.c.b16 %v3733, %v3720
  %v4891 = vpack.c.b16 %v3734, %v3721
  %v4892 = vpack.c.b16 %v3735, %v3722
  %v4893 = vpack.c.b16 %v3736, %v3723
  %v4894 = vpack.c.b16 %v3737, %v3724
  %v4895 = vpack.c.b16 %v3738, %v3725
  %v4896 = vpack.c.b16 %v3739, %v3726
  %v4897 = vpack.c.b16 %v3740, %v3727
  %v4898 = vpack.c.b16 %v3741, %v3728
  %v4899 = vpack.c.b16 %v3742, %v3729
  %v4900 = vpack.c.b16 %v3756, %v3743
  %v4901 = vpack.c.b16 %v3757, %v3744
  %v4902 = vpack.c.b16 %v3758, %v3745
  %v4903 = vpack.c.b16 %v3759, %v3746
  %v4904 = vpack.c.b16 %v3760, %v3747
  %v4905 = vpack.c.b16 %v3761, %v3748
  %v4906 = vpack.c.b16 %v3762, %v3749
  %v4907 = vpack.c.b16 %v3763, %v3750
  %v4908 = vpack.c.b16 %v3764, %v3751
  %v4909 = vpack.c.b16 %v3765, %v3752
  %v4910 = vpack.c.b16 %v3766, %v3753
  %v4911 = vpack.c.b16 %v3767, %v3754
  %v4912 = vpack.c.b16 %v3768, %v3755
  %v4913 = vpack.c.b16 %v3782, %v3769
  %v4914 = vpack.c.b16 %v3783, %v3770
  %v4915 = vpack.c.b16 %v3784, %v3771
  %v4916 = vpack.c.b16 %v3785, %v3772
  %v4917 = vpack.c.b16 %v3786, %v3773
  %v4918 = vpack.c.b16 %v3787, %v3774
  %v4919 = vpack.c.b16 %v3788, %v3775
  %v4920 = vpack.c.b16 %v3789, %v3776
  %v4921 = vpack.c.b16 %v3790, %v3777
  %v4922 = vpack.c.b16 %v3791, %v3778
  %v4923 = vpack.c.b16 %v3792, %v3779
  %v4924 = vpack.c.b16 %v3793, %v3780
  %v4925 = vpack.c.b16 %v3794, %v3781
  %v4926 = vpack.c.b16 %v3808, %v3795
  %v4927 = vpack.c.b16 %v3809, %v3796
  %v4928 = vpack.c.b16 %v3810, %v3797
  %v4929 = vpack.c.b16 %v3811, %v3798
  %v4930 = vpack.c.b16 %v3812, %v3799
  %v4931 = vpack.c.b16 %v3813, %v3800
  %v4932 = vpack.c.b16 %v3814, %v3801
  %v4933 = vpack.c.b16 %v3815, %v3802
  %v4934 = vpack.c.b16 %v3816, %v3803
  %v4935 = vpack.c.b16 %v3817, %v3804
  %v4936 = vpack.c.b16 %v3818, %v3805
  %v4937 = vpack.c.b16 %v3819, %v3806
  %v4938 = vpack.c.b16 %v3820, %v3807
  %v4939 = vpack.c.b16 %v3834, %v3821
  %v4940 = vpack.c.b16 %v3835, %v3822
  %v4941 = vpack.c.b16 %v3836, %v3823
  %v4942 = vpack.c.b16 %v3837, %v3824
  %v4943 = vpack.c.b16 %v3838, %v3825
  %v4944 = vpack.c.b16 %v3839, %v3826
  %v4945 = vpack.c.b16 %v3840, %v3827
  %v4946 = vpack.c.b16 %v3841, %v3828
  %v4947 = vpack.c.b16 %v3842, %v3829
  %v4948 = vpack.c.b16 %v3843, %v3830
  %v4949 = vpack.c.b16 %v3844, %v3831
  %v4950 = vpack.c.b16 %v3845, %v3832
  %v4951 = vpack.c.b16 %v3846, %v3833
  %v4952 = vpack.c.b16 %v3860, %v3847
  %v4953 = vpack.c.b16 %v3861, %v3848
  %v4954 = vpack.c.b16 %v3862, %v3849
  %v4955 = vpack.c.b16 %v3863, %v3850
  %v4956 = vpack.c.b16 %v3864, %v3851
  %v4957 = vpack.c.b16 %v3865, %v3852
  %v4958 = vpack.c.b16 %v3866, %v3853
  %v4959 = vpack.c.b16 %v3867, %v3854
  %v4960 = vpack.c.b16 %v3868, %v3855
  %v4961 = vpack.c.b16 %v3869, %v3856
  %v4962 = vpack.c.b16 %v3870, %v3857
  %v4963 = vpack.c.b16 %v3871, %v3858
  %v4964 = vpack.c.b16 %v3872, %v3859
  %v4965 = vpack.c.b16 %v3886, %v3873
  %v4966 = vpack.c.b16 %v3887, %v3874
  %v4967 = vpack.c.b16 %v3888, %v3875
  %v4968 = vpack.c.b16 %v3889, %v3876
  %v4969 = vpack.c.b16 %v3890, %v3877
  %v4970 = vpack.c.b16 %v3891, %v3878
  %v4971 = vpack.c.b16 %v3892, %v3879
  %v4972 = vpack.c.b16 %v3893, %v3880
  %v4973 = vpack.c.b16 %v3894, %v3881
  %v4974 = vpack.c.b16 %v3895, %v3882
  %v4975 = vpack.c.b16 %v3896, %v3883
  %v4976 = vpack.c.b16 %v3897, %v3884
  %v4977 = vpack.c.b16 %v3898, %v3885
  %v4978 = vpack.c.b16 %v3912, %v3899
  %v4979 = vpack.c.b16 %v3913, %v3900
  %v4980 = vpack.c.b16 %v3914, %v3901
  %v4981 = vpack.c.b16 %v3915, %v3902
  %v4982 = vpack.c.b16 %v3916, %v3903
  %v4983 = vpack.c.b16 %v3917, %v3904
  %v4984 = vpack.c.b16 %v3918, %v3905
  %v4985 = vpack.c.b16 %v3919, %v3906
  %v4986 = vpack.c.b16 %v3920, %v3907
  %v4987 = vpack.c.b16 %v3921, %v3908
  %v4988 = vpack.c.b16 %v3922, %v3909
  %v4989 = vpack.c.b16 %v3923, %v3910
  %v4990 = vpack.c.b16 %v3924, %v3911
  %v4991 = vpack.c.b16 %v3938, %v3925
  %v4992 = vpack.c.b16 %v3939, %v3926
  %v4993 = vpack.c.b16 %v3940, %v3927
  %v4994 = vpack.c.b16 %v3941, %v3928
  %v4995 = vpack.c.b16 %v3942, %v3929
  %v4996 = vpack.c.b16 %v3943, %v3930
  %v4997 = vpack.c.b16 %v3944, %v3931
  %v4998 = vpack.c.b16 %v3945, %v3932
  %v4999 = vpack.c.b16 %v3946, %v3933
  %v5000 = vpack.c.b16 %v3947, %v3934
  %v5001 = vpack.c.b16 %v3948, %v3935
  %v5002 = vpack.c.b16 %v3949, %v3936
  %v5003 = vpack.c.b16 %v3950, %v3937
  %v5004 = vpack.c.b16 %v3964, %v3951
  %v5005 = vpack.c.b16 %v3965, %v3952
  %v5006 = vpack.c.b16 %v3966, %v3953
  %v5007 = vpack.c.b16 %v3967, %v3954
  %v5008 = vpack.c.b16 %v3968, %v3955
  %v5009 = vpack.c.b16 %v3969, %v3956
  %v5010 = vpack.c.b16 %v3970, %v3957
  %v5011 = vpack.c.b16 %v3971, %v3958
  %v5012 = vpack.c.b16 %v3972, %v3959
  %v5013 = vpack.c.b16 %v3973, %v3960
  %v5014 = vpack.c.b16 %v3974, %v3961
  %v5015 = vpack.c.b16 %v3975, %v3962
  %v5016 = vpack.c.b16 %v3976, %v3963
  %v5017 = vpack.c.b16 %v3990, %v3977
  %v5018 = vpack.c.b16 %v3991, %v3978
  %v5019 = vpack.c.b16 %v3992, %v3979
  %v5020 = vpack.c.b16 %v3993, %v3980
  %v5021 = vpack.c.b16 %v3994, %v3981
  %v5022 = vpack.c.b16 %v3995, %v3982
  %v5023 = vpack.c.b16 %v3996, %v3983
  %v5024 = vpack.c.b16 %v3997, %v3984
  %v5025 = vpack.c.b16 %v3998, %v3985
  %v5026 = vpack.c.b16 %v3999, %v3986
  %v5027 = vpack.c.b16 %v4000, %v3987
  %v5028 = vpack.c.b16 %v4001, %v3988
  %v5029 = vpack.c.b16 %v4002, %v3989
  %v5030 = vpack.c.b16 %v4016, %v4003
  %v5031 = vpack.c.b16 %v4017, %v4004
  %v5032 = vpack.c.b16 %v4018, %v4005
  %v5033 = vpack.c.b16 %v4019, %v4006
  %v5034 = vpack.c.b16 %v4020, %v4007
  %v5035 = vpack.c.b16 %v4021, %v4008
  %v5036 = vpack.c.b16 %v4022, %v4009
  %v5037 = vpack.c.b16 %v4023, %v4010
  %v5038 = vpack.c.b16 %v4024, %v4011
  %v5039 = vpack.c.b16 %v4025, %v4012
  %v5040 = vpack.c.b16 %v4026, %v4013
  %v5041 = vpack.c.b16 %v4027, %v4014
  %v5042 = vpack.c.b16 %v4028, %v4015
  %v5043 = vpack.c.b16 %v4042, %v4029
  %v5044 = vpack.c.b16 %v4043, %v4030
  %v5045 = vpack.c.b16 %v4044, %v4031
  %v5046 = vpack.c.b16 %v4045, %v4032
  %v5047 = vpack.c.b16 %v4046, %v4033
  %v5048 = vpack.c.b16 %v4047, %v4034
  %v5049 = vpack.c.b16 %v4048, %v4035
  %v5050 = vpack.c.b16 %v4049, %v4036
  %v5051 = vpack.c.b16 %v4050, %v4037
  %v5052 = vpack.c.b16 %v4051, %v4038
  %v5053 = vpack.c.b16 %v4052, %v4039
  %v5054 = vpack.c.b16 %v4053, %v4040
  %v5055 = vpack.c.b16 %v4054, %v4041
  %v5056 = vpack.c.b16 %v4068, %v4055
  %v5057 = vpack.c.b16 %v4069, %v4056
  %v5058 = vpack.c.b16 %v4070, %v4057
  %v5059 = vpack.c.b16 %v4071, %v4058
  %v5060 = vpack.c.b16 %v4072, %v4059
  %v5061 = vpack.c.b16 %v4073, %v4060
  %v5062 = vpack.c.b16 %v4074, %v4061
  %v5063 = vpack.c.b16 %v4075, %v4062
  %v5064 = vpack.c.b16 %v4076, %v4063
  %v5065 = vpack.c.b16 %v4077, %v4064
  %v5066 = vpack.c.b16 %v4078, %v4065
  %v5067 = vpack.c.b16 %v4079, %v4066
  %v5068 = vpack.c.b16 %v4080, %v4067
  %v5069 = vpack.c.b16 %v4094, %v4081
  %v5070 = vpack.c.b16 %v4095, %v4082
  %v5071 = vpack.c.b16 %v4096, %v4083
  %v5072 = vpack.c.b16 %v4097, %v4084
  %v5073 = vpack.c.b16 %v4098, %v4085
  %v5074 = vpack.c.b16 %v4099, %v4086
  %v5075 = vpack.c.b16 %v4100, %v4087
  %v5076 = vpack.c.b16 %v4101, %v4088
  %v5077 = vpack.c.b16 %v4102, %v4089
  %v5078 = vpack.c.b16 %v4103, %v4090
  %v5079 = vpack.c.b16 %v4104, %v4091
  %v5080 = vpack.c.b16 %v4105, %v4092
  %v5081 = vpack.c.b16 %v4106, %v4093
  %v5082 = vpack.c.b16 %v4120, %v4107
  %v5083 = vpack.c.b16 %v4121, %v4108
  %v5084 = vpack.c.b16 %v4122, %v4109
  %v5085 = vpack.c.b16 %v4123, %v4110
  %v5086 = vpack.c.b16 %v4124, %v4111
  %v5087 = vpack.c.b16 %v4125, %v4112
  %v5088 = vpack.c.b16 %v4126, %v4113
  %v5089 = vpack.c.b16 %v4127, %v4114
  %v5090 = vpack.c.b16 %v4128, %v4115
  %v5091 = vpack.c.b16 %v4129, %v4116
  %v5092 = vpack.c.b16 %v4130, %v4117
  %v5093 = vpack.c.b16 %v4131, %v4118
  %v5094 = vpack.c.b16 %v4132, %v4119
  %v5095 = vpack.c.b16 %v4146, %v4133
  %v5096 = vpack.c.b16 %v4147, %v4134
  %v5097 = vpack.c.b16 %v4148, %v4135
  %v5098 = vpack.c.b16 %v4149, %v4136
  %v5099 = vpack.c.b16 %v4150, %v4137
  %v5100 = vpack.c.b16 %v4151, %v4138
  %v5101 = vpack.c.b16 %v4152, %v4139
  %v5102 = vpack.c.b16 %v4153, %v4140
  %v5103 = vpack.c.b16 %v4154, %v4141
  %v5104 = vpack.c.b16 %v4155, %v4142
  %v5105 = vpack.c.b16 %v4156, %v4143
  %v5106 = vpack.c.b16 %v4157, %v4144
  %v5107 = vpack.c.b16 %v4158, %v4145
  %v5108 = vpack.c.b16 %v4172, %v4159
  %v5109 = vpack.c.b16 %v4173, %v4160
  %v5110 = vpack.c.b16 %v4174, %v4161
  %v5111 = vpack.c.b16 %v4175, %v4162
  %v5112 = vpack.c.b16 %v4176, %v4163
  %v5113 = vpack.c.b16 %v4177, %v4164
  %v5114 = vpack.c.b16 %v4178, %v4165
  %v5115 = vpack.c.b16 %v4179, %v4166
  %v5116 = vpack.c.b16 %v4180, %v4167
  %v5117 = vpack.c.b16 %v4181, %v4168
  %v5118 = vpack.c.b16 %v4182, %v4169
  %v5119 = vpack.c.b16 %v4183, %v4170
  %v5120 = vpack.c.b16 %v4184, %v4171
  %v5121 = vpack.c.b16 %v4198, %v4185
  %v5122 = vpack.c.b16 %v4199, %v4186
  %v5123 = vpack.c.b16 %v4200, %v4187
  %v5124 = vpack.c.b16 %v4201, %v4188
  %v5125 = vpack.c.b16 %v4202, %v4189
  %v5126 = vpack.c.b16 %v4203, %v4190
  %v5127 = vpack.c.b16 %v4204, %v4191
  %v5128 = vpack.c.b16 %v4205, %v4192
  %v5129 = vpack.c.b16 %v4206, %v4193
  %v5130 = vpack.c.b16 %v4207, %v4194
  %v5131 = vpack.c.b16 %v4208, %v4195
  %v5132 = vpack.c.b16 %v4209, %v4196
  %v5133 = vpack.c.b16 %v4210, %v4197
  %v5134 = vpack.c.b16 %v4224, %v4211
  %v5135 = vpack.c.b16 %v4225, %v4212
  %v5136 = vpack.c.b16 %v4226, %v4213
  %v5137 = vpack.c.b16 %v4227, %v4214
  %v5138 = vpack.c.b16 %v4228, %v4215
  %v5139 = vpack.c.b16 %v4229, %v4216
  %v5140 = vpack.c.b16 %v4230, %v4217
  %v5141 = vpack.c.b16 %v4231, %v4218
  %v5142 = vpack.c.b16 %v4232, %v4219
  %v5143 = vpack.c.b16 %v4233, %v4220
  %v5144 = vpack.c.b16 %v4234, %v4221
  %v5145 = vpack.c.b16 %v4235, %v4222
  %v5146 = vpack.c.b16 %v4236, %v4223
  %v5147 = vpack.c.b16 %v4250, %v4237
  %v5148 = vpack.c.b16 %v4251, %v4238
  %v5149 = vpack.c.b16 %v4252, %v4239
  %v5150 = vpack.c.b16 %v4253, %v4240
  %v5151 = vpack.c.b16 %v4254, %v4241
  %v5152 = vpack.c.b16 %v4255, %v4242
  %v5153 = vpack.c.b16 %v4256, %v4243
  %v5154 = vpack.c.b16 %v4257, %v4244
  %v5155 = vpack.c.b16 %v4258, %v4245
  %v5156 = vpack.c.b16 %v4259, %v4246
  %v5157 = vpack.c.b16 %v4260, %v4247
  %v5158 = vpack.c.b16 %v4261, %v4248
  %v5159 = vpack.c.b16 %v4262, %v4249
  %v5160 = vpack.c.b16 %v4276, %v4263
  %v5161 = vpack.c.b16 %v4277, %v4264
  %v5162 = vpack.c.b16 %v4278, %v4265
  %v5163 = vpack.c.b16 %v4279, %v4266
  %v5164 = vpack.c.b16 %v4280, %v4267
  %v5165 = vpack.c.b16 %v4281, %v4268
  %v5166 = vpack.c.b16 %v4282, %v4269
  %v5167 = vpack.c.b16 %v4283, %v4270
  %v5168 = vpack.c.b16 %v4284, %v4271
  %v5169 = vpack.c.b16 %v4285, %v4272
  %v5170 = vpack.c.b16 %v4286, %v4273
  %v5171 = vpack.c.b16 %v4287, %v4274
  %v5172 = vpack.c.b16 %v4288, %v4275
  %v5173 = vpack.c.b16 %v4302, %v4289
  %v5174 = vpack.c.b16 %v4303, %v4290
  %v5175 = vpack.c.b16 %v4304, %v4291
  %v5176 = vpack.c.b16 %v4305, %v4292
  %v5177 = vpack.c.b16 %v4306, %v4293
  %v5178 = vpack.c.b16 %v4307, %v4294
  %v5179 = vpack.c.b16 %v4308, %v4295
  %v5180 = vpack.c.b16 %v4309, %v4296
  %v5181 = vpack.c.b16 %v4310, %v4297
  %v5182 = vpack.c.b16 %v4311, %v4298
  %v5183 = vpack.c.b16 %v4312, %v4299
  %v5184 = vpack.c.b16 %v4313, %v4300
  %v5185 = vpack.c.b16 %v4314, %v4301
  %v5186 = vpack.c.b16 %v4328, %v4315
  %v5187 = vpack.c.b16 %v4329, %v4316
  %v5188 = vpack.c.b16 %v4330, %v4317
  %v5189 = vpack.c.b16 %v4331, %v4318
  %v5190 = vpack.c.b16 %v4332, %v4319
  %v5191 = vpack.c.b16 %v4333, %v4320
  %v5192 = vpack.c.b16 %v4334, %v4321
  %v5193 = vpack.c.b16 %v4335, %v4322
  %v5194 = vpack.c.b16 %v4336, %v4323
  %v5195 = vpack.c.b16 %v4337, %v4324
  %v5196 = vpack.c.b16 %v4338, %v4325
  %v5197 = vpack.c.b16 %v4339, %v4326
  %v5198 = vpack.c.b16 %v4340, %v4327
  %v5199 = vpack.c.b16 %v4354, %v4341
  %v5200 = vpack.c.b16 %v4355, %v4342
  %v5201 = vpack.c.b16 %v4356, %v4343
  %v5202 = vpack.c.b16 %v4357, %v4344
  %v5203 = vpack.c.b16 %v4358, %v4345
  %v5204 = vpack.c.b16 %v4359, %v4346
  %v5205 = vpack.c.b16 %v4360, %v4347
  %v5206 = vpack.c.b16 %v4361, %v4348
  %v5207 = vpack.c.b16 %v4362, %v4349
  %v5208 = vpack.c.b16 %v4363, %v4350
  %v5209 = vpack.c.b16 %v4364, %v4351
  %v5210 = vpack.c.b16 %v4365, %v4352
  %v5211 = vpack.c.b16 %v4366, %v4353
  %v5212 = vpack.c.b16 %v4380, %v4367
  %v5213 = vpack.c.b16 %v4381, %v4368
  %v5214 = vpack.c.b16 %v4382, %v4369
  %v5215 = vpack.c.b16 %v4383, %v4370
  %v5216 = vpack.c.b16 %v4384, %v4371
  %v5217 = vpack.c.b16 %v4385, %v4372
  %v5218 = vpack.c.b16 %v4386, %v4373
  %v5219 = vpack.c.b16 %v4387, %v4374
  %v5220 = vpack.c.b16 %v4388, %v4375
  %v5221 = vpack.c.b16 %v4389, %v4376
  %v5222 = vpack.c.b16 %v4390, %v4377
  %v5223 = vpack.c.b16 %v4391, %v4378
  %v5224 = vpack.c.b16 %v4392, %v4379
  %v5225 = vpack.c.b16 %v4406, %v4393
  %v5226 = vpack.c.b16 %v4407, %v4394
  %v5227 = vpack.c.b16 %v4408, %v4395
  %v5228 = vpack.c.b16 %v4409, %v4396
  %v5229 = vpack.c.b16 %v4410, %v4397
  %v5230 = vpack.c.b16 %v4411, %v4398
  %v5231 = vpack.c.b16 %v4412, %v4399
  %v5232 = vpack.c.b16 %v4413, %v4400
  %v5233 = vpack.c.b16 %v4414, %v4401
  %v5234 = vpack.c.b16 %v4415, %v4402
  %v5235 = vpack.c.b16 %v4416, %v4403
  %v5236 = vpack.c.b16 %v4417, %v4404
  %v5237 = vpack.c.b16 %v4418, %v4405
  %v5238 = vpack.c.b16 %v4432, %v4419
  %v5239 = vpack.c.b16 %v4433, %v4420
  %v5240 = vpack.c.b16 %v4434, %v4421
  %v5241 = vpack.c.b16 %v4435, %v4422
  %v5242 = vpack.c.b16 %v4436, %v4423
  %v5243 = vpack.c.b16 %v4437, %v4424
  %v5244 = vpack.c.b16 %v4438, %v4425
  %v5245 = vpack.c.b16 %v4439, %v4426
  %v5246 = vpack.c.b16 %v4440, %v4427
  %v5247 = vpack.c.b16 %v4441, %v4428
  %v5248 = vpack.c.b16 %v4442, %v4429
  %v5249 = vpack.c.b16 %v4443, %v4430
  %v5250 = vpack.c.b16 %v4444, %v4431
  %v5251 = vpack.c.b16 %v4458, %v4445
  %v5252 = vpack.c.b16 %v4459, %v4446
  %v5253 = vpack.c.b16 %v4460, %v4447
  %v5254 = vpack.c.b16 %v4461, %v4448
  %v5255 = vpack.c.b16 %v4462, %v4449
  %v5256 = vpack.c.b16 %v4463, %v4450
  %v5257 = vpack.c.b16 %v4464, %v4451
  %v5258 = vpack.c.b16 %v4465, %v4452
  %v5259 = vpack.c.b16 %v4466, %v4453
  %v5260 = vpack.c.b16 %v4467, %v4454
  %v5261 = vpack.c.b16 %v4468, %v4455
  %v5262 = vpack.c.b16 %v4469, %v4456
  %v5263 = vpack.c.b16 %v4470, %v4457
  %v5264 = vpack.c.b16 %v4484, %v4471
  %v5265 = vpack.c.b16 %v4485, %v4472
  %v5266 = vpack.c.b16 %v4486, %v4473
  %v5267 = vpack.c.b16 %v4487, %v4474
  %v5268 = vpack.c.b16 %v4488, %v4475
  %v5269 = vpack.c.b16 %v4489, %v4476
  %v5270 = vpack.c.b16 %v4490, %v4477
  %v5271 = vpack.c.b16 %v4491, %v4478
  %v5272 = vpack.c.b16 %v4492, %v4479
  %v5273 = vpack.c.b16 %v4493, %v4480
  %v5274 = vpack.c.b16 %v4494, %v4481
  %v5275 = vpack.c.b16 %v4495, %v4482
  %v5276 = vpack.c.b16 %v4496, %v4483
  %v5277 = vpack.c.b16 %v4510, %v4497
  %v5278 = vpack.c.b16 %v4511, %v4498
  %v5279 = vpack.c.b16 %v4512, %v4499
  %v5280 = vpack.c.b16 %v4513, %v4500
  %v5281 = vpack.c.b16 %v4514, %v4501
  %v5282 = vpack.c.b16 %v4515, %v4502
  %v5283 = vpack.c.b16 %v4516, %v4503
  %v5284 = vpack.c.b16 %v4517, %v4504
  %v5285 = vpack.c.b16 %v4518, %v4505
  %v5286 = vpack.c.b16 %v4519, %v4506
  %v5287 = vpack.c.b16 %v4520, %v4507
  %v5288 = vpack.c.b16 %v4521, %v4508
  %v5289 = vpack.c.b16 %v4522, %v4509
  %v5290 = vpack.c.b16 %v4536, %v4523
  %v5291 = vpack.c.b16 %v4537, %v4524
  %v5292 = vpack.c.b16 %v4538, %v4525
  %v5293 = vpack.c.b16 %v4539, %v4526
  %v5294 = vpack.c.b16 %v4540, %v4527
  %v5295 = vpack.c.b16 %v4541, %v4528
  %v5296 = vpack.c.b16 %v4542, %v4529
  %v5297 = vpack.c.b16 %v4543, %v4530
  %v5298 = vpack.c.b16 %v4544, %v4531
  %v5299 = vpack.c.b16 %v4545, %v4532
  %v5300 = vpack.c.b16 %v4546, %v4533
  %v5301 = vpack.c.b16 %v4547, %v4534
  %v5302 = vpack.c.b16 %v4548, %v4535
  %v5303 = vpack.c.b16 %v4562, %v4549
  %v5304 = vpack.c.b16 %v4563, %v4550
  %v5305 = vpack.c.b16 %v4564, %v4551
  %v5306 = vpack.c.b16 %v4565, %v4552
  %v5307 = vpack.c.b16 %v4566, %v4553
  %v5308 = vpack.c.b16 %v4567, %v4554
  %v5309 = vpack.c.b16 %v4568, %v4555
  %v5310 = vpack.c.b16 %v4569, %v4556
  %v5311 = vpack.c.b16 %v4570, %v4557
  %v5312 = vpack.c.b16 %v4571, %v4558
  %v5313 = vpack.c.b16 %v4572, %v4559
  %v5314 = vpack.c.b16 %v4573, %v4560
  %v5315 = vpack.c.b16 %v4574, %v4561
  %v5316 = vpack.c.b16 %v4588, %v4575
  %v5317 = vpack.c.b16 %v4589, %v4576
  %v5318 = vpack.c.b16 %v4590, %v4577
  %v5319 = vpack.c.b16 %v4591, %v4578
  %v5320 = vpack.c.b16 %v4592, %v4579
  %v5321 = vpack.c.b16 %v4593, %v4580
  %v5322 = vpack.c.b16 %v4594, %v4581
  %v5323 = vpack.c.b16 %v4595, %v4582
  %v5324 = vpack.c.b16 %v4596, %v4583
  %v5325 = vpack.c.b16 %v4597, %v4584
  %v5326 = vpack.c.b16 %v4598, %v4585
  %v5327 = vpack.c.b16 %v4599, %v4586
  %v5328 = vpack.c.b16 %v4600, %v4587
  %v5329 = vpack.c.b16 %v4614, %v4601
  %v5330 = vpack.c.b16 %v4615, %v4602
  %v5331 = vpack.c.b16 %v4616, %v4603
  %v5332 = vpack.c.b16 %v4617, %v4604
  %v5333 = vpack.c.b16 %v4618, %v4605
  %v5334 = vpack.c.b16 %v4619, %v4606
  %v5335 = vpack.c.b16 %v4620, %v4607
  %v5336 = vpack.c.b16 %v4621, %v4608
  %v5337 = vpack.c.b16 %v4622, %v4609
  %v5338 = vpack.c.b16 %v4623, %v4610
  %v5339 = vpack.c.b16 %v4624, %v4611
  %v5340 = vpack.c.b16 %v4625, %v4612
  %v5341 = vpack.c.b16 %v4626, %v4613
  %v5342 = vpack.c.b16 %v4640, %v4627
  %v5343 = vpack.c.b16 %v4641, %v4628
  %v5344 = vpack.c.b16 %v4642, %v4629
  %v5345 = vpack.c.b16 %v4643, %v4630
  %v5346 = vpack.c.b16 %v4644, %v4631
  %v5347 = vpack.c.b16 %v4645, %v4632
  %v5348 = vpack.c.b16 %v4646, %v4633
  %v5349 = vpack.c.b16 %v4647, %v4634
  %v5350 = vpack.c.b16 %v4648, %v4635
  %v5351 = vpack.c.b16 %v4649, %v4636
  %v5352 = vpack.c.b16 %v4650, %v4637
  %v5353 = vpack.c.b16 %v4651, %v4638
  %v5354 = vpack.c.b16 %v4652, %v4639
  %v5355 = vpack.c.b16 %v4666, %v4653
  %v5356 = vpack.c.b16 %v4667, %v4654
  %v5357 = vpack.c.b16 %v4668, %v4655
  %v5358 = vpack.c.b16 %v4669, %v4656
  %v5359 = vpack.c.b16 %v4670, %v4657
  %v5360 = vpack.c.b16 %v4671, %v4658
  %v5361 = vpack.c.b16 %v4672, %v4659
  %v5362 = vpack.c.b16 %v4673, %v4660
  %v5363 = vpack.c.b16 %v4674, %v4661
  %v5364 = vpack.c.b16 %v4675, %v4662
  %v5365 = vpack.c.b16 %v4676, %v4663
  %v5366 = vpack.c.b16 %v4677, %v4664
  %v5367 = vpack.c.b16 %v4678, %v4665
  %v5368 = vpack.c.b16 %v4692, %v4679
  %v5369 = vpack.c.b16 %v4693, %v4680
  %v5370 = vpack.c.b16 %v4694, %v4681
  %v5371 = vpack.c.b16 %v4695, %v4682
  %v5372 = vpack.c.b16 %v4696, %v4683
  %v5373 = vpack.c.b16 %v4697, %v4684
  %v5374 = vpack.c.b16 %v4698, %v4685
  %v5375 = vpack.c.b16 %v4699, %v4686
  %v5376 = vpack.c.b16 %v4700, %v4687
  %v5377 = vpack.c.b16 %v4701, %v4688
  %v5378 = vpack.c.b16 %v4702, %v4689
  %v5379 = vpack.c.b16 %v4703, %v4690
  %v5380 = vpack.c.b16 %v4704, %v4691
  %v5381 = vpack.c.b16 %v4718, %v4705
  %v5382 = vpack.c.b16 %v4719, %v4706
  %v5383 = vpack.c.b16 %v4720, %v4707
  %v5384 = vpack.c.b16 %v4721, %v4708
  %v5385 = vpack.c.b16 %v4722, %v4709
  %v5386 = vpack.c.b16 %v4723, %v4710
  %v5387 = vpack.c.b16 %v4724, %v4711
  %v5388 = vpack.c.b16 %v4725, %v4712
  %v5389 = vpack.c.b16 %v4726, %v4713
  %v5390 = vpack.c.b16 %v4727, %v4714
  %v5391 = vpack.c.b16 %v4728, %v4715
  %v5392 = vpack.c.b16 %v4729, %v4716
  %v5393 = vpack.c.b16 %v4730, %v4717
  %v5394 = vpack.c.b16 %v4744, %v4731
  %v5395 = vpack.c.b16 %v4745, %v4732
  %v5396 = vpack.c.b16 %v4746, %v4733
  %v5397 = vpack.c.b16 %v4747, %v4734
  %v5398 = vpack.c.b16 %v4748, %v4735
  %v5399 = vpack.c.b16 %v4749, %v4736
  %v5400 = vpack.c.b16 %v4750, %v4737
  %v5401 = vpack.c.b16 %v4751, %v4738
  %v5402 = vpack.c.b16 %v4752, %v4739
  %v5403 = vpack.c.b16 %v4753, %v4740
  %v5404 = vpack.c.b16 %v4754, %v4741
  %v5405 = vpack.c.b16 %v4755, %v4742
  %v5406 = vpack.c.b16 %v4756, %v4743
  %v5407 = vpack.c.b16 %v4770, %v4757
  %v5408 = vpack.c.b16 %v4771, %v4758
  %v5409 = vpack.c.b16 %v4772, %v4759
  %v5410 = vpack.c.b16 %v4773, %v4760
  %v5411 = vpack.c.b16 %v4774, %v4761
  %v5412 = vpack.c.b16 %v4775, %v4762
  %v5413 = vpack.c.b16 %v4776, %v4763
  %v5414 = vpack.c.b16 %v4777, %v4764
  %v5415 = vpack.c.b16 %v4778, %v4765
  %v5416 = vpack.c.b16 %v4779, %v4766
  %v5417 = vpack.c.b16 %v4780, %v4767
  %v5418 = vpack.c.b16 %v4781, %v4768
  %v5419 = vpack.c.b16 %v4782, %v4769
  %v6058 = vsel %vm1488, %v2136, 0
  %6060 = vmatpush.bf16.msra.mxu0 %v4874
  %6061 = vmatpush.bf16.msra.mxu0 %v4861
  %6062 = vmatpush.bf16.msra.mxu0 %v4848
  %6063 = vmatpush.bf16.msra.mxu0 %v4835
  %6064 = vmatpush.bf16.msra.mxu0 %v4822
  %6065 = vmatpush.bf16.msra.mxu0 %v4809
  %6066 = vmatpush.bf16.msra.mxu0 %v4796
  %6067 = vmatpush.bf16.msra.mxu0 %v4783
  %6068 = vmatmul.bf16.gmra.mxu0 %v2130
  %v6069 = vpop.f32.mrf.mxu0
  %v6070 = vadd.f32 0.0, %v6069
  %v6071 = vpop.f32.mrf.mxu0
  %6072 = vdwg.mxu0
  %6073 = vmatpush.bf16.msra.mxu0 %v4978
  %6074 = vmatpush.bf16.msra.mxu0 %v4965
  %6075 = vmatpush.bf16.msra.mxu0 %v4952
  %6076 = vmatpush.bf16.msra.mxu0 %v4939
  %6077 = vmatpush.bf16.msra.mxu0 %v4926
  %6078 = vmatpush.bf16.msra.mxu0 %v4913
  %6079 = vmatpush.bf16.msra.mxu0 %v4900
  %6080 = vmatpush.bf16.msra.mxu0 %v4887
  %6081 = vmatmul.bf16.gmra.mxu0 %v2131
  %v6082 = vpop.f32.mrf.mxu0
  %v6083 = vadd.f32 %v6070, %v6082
  %v6084 = vpop.f32.mrf.mxu0
  %6085 = vdwg.mxu0
  %6086 = vmatpush.bf16.msra.mxu0 %v5082
  %6087 = vmatpush.bf16.msra.mxu0 %v5069
  %6088 = vmatpush.bf16.msra.mxu0 %v5056
  %6089 = vmatpush.bf16.msra.mxu0 %v5043
  %6090 = vmatpush.bf16.msra.mxu0 %v5030
  %6091 = vmatpush.bf16.msra.mxu0 %v5017
  %6092 = vmatpush.bf16.msra.mxu0 %v5004
  %6093 = vmatpush.bf16.msra.mxu0 %v4991
  %6094 = vmatmul.bf16.gmra.mxu0 %v2132
  %v6095 = vpop.f32.mrf.mxu0
  %v6096 = vadd.f32 %v6083, %v6095
  %v6097 = vpop.f32.mrf.mxu0
  %6098 = vdwg.mxu0
  %6099 = vmatpush.bf16.msra.mxu0 %v5186
  %6100 = vmatpush.bf16.msra.mxu0 %v5173
  %6101 = vmatpush.bf16.msra.mxu0 %v5160
  %6102 = vmatpush.bf16.msra.mxu0 %v5147
  %6103 = vmatpush.bf16.msra.mxu0 %v5134
  %6104 = vmatpush.bf16.msra.mxu0 %v5121
  %6105 = vmatpush.bf16.msra.mxu0 %v5108
  %6106 = vmatpush.bf16.msra.mxu0 %v5095
  %6107 = vmatmul.bf16.gmra.mxu0 %v2133
  %v6108 = vpop.f32.mrf.mxu0
  %v6109 = vadd.f32 %v6096, %v6108
  %v6110 = vpop.f32.mrf.mxu0
  %6111 = vdwg.mxu0
  %6112 = vmatpush.bf16.msra.mxu0 %v5290
  %6113 = vmatpush.bf16.msra.mxu0 %v5277
  %6114 = vmatpush.bf16.msra.mxu0 %v5264
  %6115 = vmatpush.bf16.msra.mxu0 %v5251
  %6116 = vmatpush.bf16.msra.mxu0 %v5238
  %6117 = vmatpush.bf16.msra.mxu0 %v5225
  %6118 = vmatpush.bf16.msra.mxu0 %v5212
  %6119 = vmatpush.bf16.msra.mxu0 %v5199
  %6120 = vmatmul.bf16.gmra.mxu0 %v2134
  %v6121 = vpop.f32.mrf.mxu0
  %v6122 = vadd.f32 %v6109, %v6121
  %v6123 = vpop.f32.mrf.mxu0
  %6124 = vdwg.mxu0
  %6125 = vmatpush.bf16.msra.mxu0 %v5394
  %6126 = vmatpush.bf16.msra.mxu0 %v5381
  %6127 = vmatpush.bf16.msra.mxu0 %v5368
  %6128 = vmatpush.bf16.msra.mxu0 %v5355
  %6129 = vmatpush.bf16.msra.mxu0 %v5342
  %6130 = vmatpush.bf16.msra.mxu0 %v5329
  %6131 = vmatpush.bf16.msra.mxu0 %v5316
  %6132 = vmatpush.bf16.msra.mxu0 %v5303
  %6133 = vmatmul.bf16.gmra.mxu0 %v2135
  %v6134 = vpop.f32.mrf.mxu0
  %v6135 = vadd.f32 %v6122, %v6134
  %v6136 = vpop.f32.mrf.mxu0
  %6137 = vdwg.mxu0
  %6138 = vmatpush.bf16.msra.mxu0 0
  %6139 = vmatpush.bf16.msra.mxu0 0
  %6140 = vmatpush.bf16.msra.mxu0 0
  %6141 = vmatpush.bf16.msra.mxu0 0
  %6142 = vmatpush.bf16.msra.mxu0 0
  %6143 = vmatpush.bf16.msra.mxu0 0
  %6144 = vmatpush.bf16.msra.mxu0 0
  %6145 = vmatpush.bf16.msra.mxu0 %v5407
  %6146 = vmatmul.bf16.gmra.mxu0 %v6058
  %v6147 = vpop.f32.mrf.mxu0
  %v6148 = vadd.f32 %v6135, %v6147
  %v6149 = vpop.f32.mrf.mxu0
  %6150 = vdwg.mxu0
  %6151 = vmatpush.bf16.msra.mxu0 %v4875
  %6152 = vmatpush.bf16.msra.mxu0 %v4862
  %6153 = vmatpush.bf16.msra.mxu0 %v4849
  %6154 = vmatpush.bf16.msra.mxu0 %v4836
  %6155 = vmatpush.bf16.msra.mxu0 %v4823
  %6156 = vmatpush.bf16.msra.mxu0 %v4810
  %6157 = vmatpush.bf16.msra.mxu0 %v4797
  %6158 = vmatpush.bf16.msra.mxu0 %v4784
  %6159 = vmatmul.bf16.gmra.mxu0 %v2130
  %v6160 = vpop.f32.mrf.mxu0
  %v6161 = vadd.f32 0.0, %v6160
  %v6162 = vpop.f32.mrf.mxu0
  %6163 = vdwg.mxu0
  %6164 = vmatpush.bf16.msra.mxu0 %v4979
  %6165 = vmatpush.bf16.msra.mxu0 %v4966
  %6166 = vmatpush.bf16.msra.mxu0 %v4953
  %6167 = vmatpush.bf16.msra.mxu0 %v4940
  %6168 = vmatpush.bf16.msra.mxu0 %v4927
  %6169 = vmatpush.bf16.msra.mxu0 %v4914
  %6170 = vmatpush.bf16.msra.mxu0 %v4901
  %6171 = vmatpush.bf16.msra.mxu0 %v4888
  %6172 = vmatmul.bf16.gmra.mxu0 %v2131
  %v6173 = vpop.f32.mrf.mxu0
  %v6174 = vadd.f32 %v6161, %v6173
  %v6175 = vpop.f32.mrf.mxu0
  %6176 = vdwg.mxu0
  %6177 = vmatpush.bf16.msra.mxu0 %v5083
  %6178 = vmatpush.bf16.msra.mxu0 %v5070
  %6179 = vmatpush.bf16.msra.mxu0 %v5057
  %6180 = vmatpush.bf16.msra.mxu0 %v5044
  %6181 = vmatpush.bf16.msra.mxu0 %v5031
  %6182 = vmatpush.bf16.msra.mxu0 %v5018
  %6183 = vmatpush.bf16.msra.mxu0 %v5005
  %6184 = vmatpush.bf16.msra.mxu0 %v4992
  %6185 = vmatmul.bf16.gmra.mxu0 %v2132
  %v6186 = vpop.f32.mrf.mxu0
  %v6187 = vadd.f32 %v6174, %v6186
  %v6188 = vpop.f32.mrf.mxu0
  %6189 = vdwg.mxu0
  %6190 = vmatpush.bf16.msra.mxu0 %v5187
  %6191 = vmatpush.bf16.msra.mxu0 %v5174
  %6192 = vmatpush.bf16.msra.mxu0 %v5161
  %6193 = vmatpush.bf16.msra.mxu0 %v5148
  %6194 = vmatpush.bf16.msra.mxu0 %v5135
  %6195 = vmatpush.bf16.msra.mxu0 %v5122
  %6196 = vmatpush.bf16.msra.mxu0 %v5109
  %6197 = vmatpush.bf16.msra.mxu0 %v5096
  %6198 = vmatmul.bf16.gmra.mxu0 %v2133
  %v6199 = vpop.f32.mrf.mxu0
  %v6200 = vadd.f32 %v6187, %v6199
  %v6201 = vpop.f32.mrf.mxu0
  %6202 = vdwg.mxu0
  %6203 = vmatpush.bf16.msra.mxu0 %v5291
  %6204 = vmatpush.bf16.msra.mxu0 %v5278
  %6205 = vmatpush.bf16.msra.mxu0 %v5265
  %6206 = vmatpush.bf16.msra.mxu0 %v5252
  %6207 = vmatpush.bf16.msra.mxu0 %v5239
  %6208 = vmatpush.bf16.msra.mxu0 %v5226
  %6209 = vmatpush.bf16.msra.mxu0 %v5213
  %6210 = vmatpush.bf16.msra.mxu0 %v5200
  %6211 = vmatmul.bf16.gmra.mxu0 %v2134
  %v6212 = vpop.f32.mrf.mxu0
  %v6213 = vadd.f32 %v6200, %v6212
  %v6214 = vpop.f32.mrf.mxu0
  %6215 = vdwg.mxu0
  %6216 = vmatpush.bf16.msra.mxu0 %v5395
  %6217 = vmatpush.bf16.msra.mxu0 %v5382
  %6218 = vmatpush.bf16.msra.mxu0 %v5369
  %6219 = vmatpush.bf16.msra.mxu0 %v5356
  %6220 = vmatpush.bf16.msra.mxu0 %v5343
  %6221 = vmatpush.bf16.msra.mxu0 %v5330
  %6222 = vmatpush.bf16.msra.mxu0 %v5317
  %6223 = vmatpush.bf16.msra.mxu0 %v5304
  %6224 = vmatmul.bf16.gmra.mxu0 %v2135
  %v6225 = vpop.f32.mrf.mxu0
  %v6226 = vadd.f32 %v6213, %v6225
  %v6227 = vpop.f32.mrf.mxu0
  %6228 = vdwg.mxu0
  %6229 = vmatpush.bf16.msra.mxu0 0
  %6230 = vmatpush.bf16.msra.mxu0 0
  %6231 = vmatpush.bf16.msra.mxu0 0
  %6232 = vmatpush.bf16.msra.mxu0 0
  %6233 = vmatpush.bf16.msra.mxu0 0
  %6234 = vmatpush.bf16.msra.mxu0 0
  %6235 = vmatpush.bf16.msra.mxu0 0
  %6236 = vmatpush.bf16.msra.mxu0 %v5408
  %6237 = vmatmul.bf16.gmra.mxu0 %v6058
  %v6238 = vpop.f32.mrf.mxu0
  %v6239 = vadd.f32 %v6226, %v6238
  %v6240 = vpop.f32.mrf.mxu0
  %6241 = vdwg.mxu0
  %6242 = vmatpush.bf16.msra.mxu0 %v4876
  %6243 = vmatpush.bf16.msra.mxu0 %v4863
  %6244 = vmatpush.bf16.msra.mxu0 %v4850
  %6245 = vmatpush.bf16.msra.mxu0 %v4837
  %6246 = vmatpush.bf16.msra.mxu0 %v4824
  %6247 = vmatpush.bf16.msra.mxu0 %v4811
  %6248 = vmatpush.bf16.msra.mxu0 %v4798
  %6249 = vmatpush.bf16.msra.mxu0 %v4785
  %6250 = vmatmul.bf16.gmra.mxu0 %v2130
  %v6251 = vpop.f32.mrf.mxu0
  %v6252 = vadd.f32 0.0, %v6251
  %v6253 = vpop.f32.mrf.mxu0
  %6254 = vdwg.mxu0
  %6255 = vmatpush.bf16.msra.mxu0 %v4980
  %6256 = vmatpush.bf16.msra.mxu0 %v4967
  %6257 = vmatpush.bf16.msra.mxu0 %v4954
  %6258 = vmatpush.bf16.msra.mxu0 %v4941
  %6259 = vmatpush.bf16.msra.mxu0 %v4928
  %6260 = vmatpush.bf16.msra.mxu0 %v4915
  %6261 = vmatpush.bf16.msra.mxu0 %v4902
  %6262 = vmatpush.bf16.msra.mxu0 %v4889
  %6263 = vmatmul.bf16.gmra.mxu0 %v2131
  %v6264 = vpop.f32.mrf.mxu0
  %v6265 = vadd.f32 %v6252, %v6264
  %v6266 = vpop.f32.mrf.mxu0
  %6267 = vdwg.mxu0
  %6268 = vmatpush.bf16.msra.mxu0 %v5084
  %6269 = vmatpush.bf16.msra.mxu0 %v5071
  %6270 = vmatpush.bf16.msra.mxu0 %v5058
  %6271 = vmatpush.bf16.msra.mxu0 %v5045
  %6272 = vmatpush.bf16.msra.mxu0 %v5032
  %6273 = vmatpush.bf16.msra.mxu0 %v5019
  %6274 = vmatpush.bf16.msra.mxu0 %v5006
  %6275 = vmatpush.bf16.msra.mxu0 %v4993
  %6276 = vmatmul.bf16.gmra.mxu0 %v2132
  %v6277 = vpop.f32.mrf.mxu0
  %v6278 = vadd.f32 %v6265, %v6277
  %v6279 = vpop.f32.mrf.mxu0
  %6280 = vdwg.mxu0
  %6281 = vmatpush.bf16.msra.mxu0 %v5188
  %6282 = vmatpush.bf16.msra.mxu0 %v5175
  %6283 = vmatpush.bf16.msra.mxu0 %v5162
  %6284 = vmatpush.bf16.msra.mxu0 %v5149
  %6285 = vmatpush.bf16.msra.mxu0 %v5136
  %6286 = vmatpush.bf16.msra.mxu0 %v5123
  %6287 = vmatpush.bf16.msra.mxu0 %v5110
  %6288 = vmatpush.bf16.msra.mxu0 %v5097
  %6289 = vmatmul.bf16.gmra.mxu0 %v2133
  %v6290 = vpop.f32.mrf.mxu0
  %v6291 = vadd.f32 %v6278, %v6290
  %v6292 = vpop.f32.mrf.mxu0
  %6293 = vdwg.mxu0
  %6294 = vmatpush.bf16.msra.mxu0 %v5292
  %6295 = vmatpush.bf16.msra.mxu0 %v5279
  %6296 = vmatpush.bf16.msra.mxu0 %v5266
  %6297 = vmatpush.bf16.msra.mxu0 %v5253
  %6298 = vmatpush.bf16.msra.mxu0 %v5240
  %6299 = vmatpush.bf16.msra.mxu0 %v5227
  %6300 = vmatpush.bf16.msra.mxu0 %v5214
  %6301 = vmatpush.bf16.msra.mxu0 %v5201
  %6302 = vmatmul.bf16.gmra.mxu0 %v2134
  %v6303 = vpop.f32.mrf.mxu0
  %v6304 = vadd.f32 %v6291, %v6303
  %v6305 = vpop.f32.mrf.mxu0
  %6306 = vdwg.mxu0
  %6307 = vmatpush.bf16.msra.mxu0 %v5396
  %6308 = vmatpush.bf16.msra.mxu0 %v5383
  %6309 = vmatpush.bf16.msra.mxu0 %v5370
  %6310 = vmatpush.bf16.msra.mxu0 %v5357
  %6311 = vmatpush.bf16.msra.mxu0 %v5344
  %6312 = vmatpush.bf16.msra.mxu0 %v5331
  %6313 = vmatpush.bf16.msra.mxu0 %v5318
  %6314 = vmatpush.bf16.msra.mxu0 %v5305
  %6315 = vmatmul.bf16.gmra.mxu0 %v2135
  %v6316 = vpop.f32.mrf.mxu0
  %v6317 = vadd.f32 %v6304, %v6316
  %v6318 = vpop.f32.mrf.mxu0
  %6319 = vdwg.mxu0
  %6320 = vmatpush.bf16.msra.mxu0 0
  %6321 = vmatpush.bf16.msra.mxu0 0
  %6322 = vmatpush.bf16.msra.mxu0 0
  %6323 = vmatpush.bf16.msra.mxu0 0
  %6324 = vmatpush.bf16.msra.mxu0 0
  %6325 = vmatpush.bf16.msra.mxu0 0
  %6326 = vmatpush.bf16.msra.mxu0 0
  %6327 = vmatpush.bf16.msra.mxu0 %v5409
  %6328 = vmatmul.bf16.gmra.mxu0 %v6058
  %v6329 = vpop.f32.mrf.mxu0
  %v6330 = vadd.f32 %v6317, %v6329
  %v6331 = vpop.f32.mrf.mxu0
  %6332 = vdwg.mxu0
  %6333 = vmatpush.bf16.msra.mxu0 %v4877
  %6334 = vmatpush.bf16.msra.mxu0 %v4864
  %6335 = vmatpush.bf16.msra.mxu0 %v4851
  %6336 = vmatpush.bf16.msra.mxu0 %v4838
  %6337 = vmatpush.bf16.msra.mxu0 %v4825
  %6338 = vmatpush.bf16.msra.mxu0 %v4812
  %6339 = vmatpush.bf16.msra.mxu0 %v4799
  %6340 = vmatpush.bf16.msra.mxu0 %v4786
  %6341 = vmatmul.bf16.gmra.mxu0 %v2130
  %v6342 = vpop.f32.mrf.mxu0
  %v6343 = vadd.f32 0.0, %v6342
  %v6344 = vpop.f32.mrf.mxu0
  %6345 = vdwg.mxu0
  %6346 = vmatpush.bf16.msra.mxu0 %v4981
  %6347 = vmatpush.bf16.msra.mxu0 %v4968
  %6348 = vmatpush.bf16.msra.mxu0 %v4955
  %6349 = vmatpush.bf16.msra.mxu0 %v4942
  %6350 = vmatpush.bf16.msra.mxu0 %v4929
  %6351 = vmatpush.bf16.msra.mxu0 %v4916
  %6352 = vmatpush.bf16.msra.mxu0 %v4903
  %6353 = vmatpush.bf16.msra.mxu0 %v4890
  %6354 = vmatmul.bf16.gmra.mxu0 %v2131
  %v6355 = vpop.f32.mrf.mxu0
  %v6356 = vadd.f32 %v6343, %v6355
  %v6357 = vpop.f32.mrf.mxu0
  %6358 = vdwg.mxu0
  %6359 = vmatpush.bf16.msra.mxu0 %v5085
  %6360 = vmatpush.bf16.msra.mxu0 %v5072
  %6361 = vmatpush.bf16.msra.mxu0 %v5059
  %6362 = vmatpush.bf16.msra.mxu0 %v5046
  %6363 = vmatpush.bf16.msra.mxu0 %v5033
  %6364 = vmatpush.bf16.msra.mxu0 %v5020
  %6365 = vmatpush.bf16.msra.mxu0 %v5007
  %6366 = vmatpush.bf16.msra.mxu0 %v4994
  %6367 = vmatmul.bf16.gmra.mxu0 %v2132
  %v6368 = vpop.f32.mrf.mxu0
  %v6369 = vadd.f32 %v6356, %v6368
  %v6370 = vpop.f32.mrf.mxu0
  %6371 = vdwg.mxu0
  %6372 = vmatpush.bf16.msra.mxu0 %v5189
  %6373 = vmatpush.bf16.msra.mxu0 %v5176
  %6374 = vmatpush.bf16.msra.mxu0 %v5163
  %6375 = vmatpush.bf16.msra.mxu0 %v5150
  %6376 = vmatpush.bf16.msra.mxu0 %v5137
  %6377 = vmatpush.bf16.msra.mxu0 %v5124
  %6378 = vmatpush.bf16.msra.mxu0 %v5111
  %6379 = vmatpush.bf16.msra.mxu0 %v5098
  %6380 = vmatmul.bf16.gmra.mxu0 %v2133
  %v6381 = vpop.f32.mrf.mxu0
  %v6382 = vadd.f32 %v6369, %v6381
  %v6383 = vpop.f32.mrf.mxu0
  %6384 = vdwg.mxu0
  %6385 = vmatpush.bf16.msra.mxu0 %v5293
  %6386 = vmatpush.bf16.msra.mxu0 %v5280
  %6387 = vmatpush.bf16.msra.mxu0 %v5267
  %6388 = vmatpush.bf16.msra.mxu0 %v5254
  %6389 = vmatpush.bf16.msra.mxu0 %v5241
  %6390 = vmatpush.bf16.msra.mxu0 %v5228
  %6391 = vmatpush.bf16.msra.mxu0 %v5215
  %6392 = vmatpush.bf16.msra.mxu0 %v5202
  %6393 = vmatmul.bf16.gmra.mxu0 %v2134
  %v6394 = vpop.f32.mrf.mxu0
  %v6395 = vadd.f32 %v6382, %v6394
  %v6396 = vpop.f32.mrf.mxu0
  %6397 = vdwg.mxu0
  %6398 = vmatpush.bf16.msra.mxu0 %v5397
  %6399 = vmatpush.bf16.msra.mxu0 %v5384
  %6400 = vmatpush.bf16.msra.mxu0 %v5371
  %6401 = vmatpush.bf16.msra.mxu0 %v5358
  %6402 = vmatpush.bf16.msra.mxu0 %v5345
  %6403 = vmatpush.bf16.msra.mxu0 %v5332
  %6404 = vmatpush.bf16.msra.mxu0 %v5319
  %6405 = vmatpush.bf16.msra.mxu0 %v5306
  %6406 = vmatmul.bf16.gmra.mxu0 %v2135
  %v6407 = vpop.f32.mrf.mxu0
  %v6408 = vadd.f32 %v6395, %v6407
  %v6409 = vpop.f32.mrf.mxu0
  %6410 = vdwg.mxu0
  %6411 = vmatpush.bf16.msra.mxu0 0
  %6412 = vmatpush.bf16.msra.mxu0 0
  %6413 = vmatpush.bf16.msra.mxu0 0
  %6414 = vmatpush.bf16.msra.mxu0 0
  %6415 = vmatpush.bf16.msra.mxu0 0
  %6416 = vmatpush.bf16.msra.mxu0 0
  %6417 = vmatpush.bf16.msra.mxu0 0
  %6418 = vmatpush.bf16.msra.mxu0 %v5410
  %6419 = vmatmul.bf16.gmra.mxu0 %v6058
  %v6420 = vpop.f32.mrf.mxu0
  %v6421 = vadd.f32 %v6408, %v6420
  %v6422 = vpop.f32.mrf.mxu0
  %6423 = vdwg.mxu0
  %6424 = vmatpush.bf16.msra.mxu0 %v4878
  %6425 = vmatpush.bf16.msra.mxu0 %v4865
  %6426 = vmatpush.bf16.msra.mxu0 %v4852
  %6427 = vmatpush.bf16.msra.mxu0 %v4839
  %6428 = vmatpush.bf16.msra.mxu0 %v4826
  %6429 = vmatpush.bf16.msra.mxu0 %v4813
  %6430 = vmatpush.bf16.msra.mxu0 %v4800
  %6431 = vmatpush.bf16.msra.mxu0 %v4787
  %6432 = vmatmul.bf16.gmra.mxu0 %v2130
  %v6433 = vpop.f32.mrf.mxu0
  %v6434 = vadd.f32 0.0, %v6433
  %v6435 = vpop.f32.mrf.mxu0
  %6436 = vdwg.mxu0
  %6437 = vmatpush.bf16.msra.mxu0 %v4982
  %6438 = vmatpush.bf16.msra.mxu0 %v4969
  %6439 = vmatpush.bf16.msra.mxu0 %v4956
  %6440 = vmatpush.bf16.msra.mxu0 %v4943
  %6441 = vmatpush.bf16.msra.mxu0 %v4930
  %6442 = vmatpush.bf16.msra.mxu0 %v4917
  %6443 = vmatpush.bf16.msra.mxu0 %v4904
  %6444 = vmatpush.bf16.msra.mxu0 %v4891
  %6445 = vmatmul.bf16.gmra.mxu0 %v2131
  %v6446 = vpop.f32.mrf.mxu0
  %v6447 = vadd.f32 %v6434, %v6446
  %v6448 = vpop.f32.mrf.mxu0
  %6449 = vdwg.mxu0
  %6450 = vmatpush.bf16.msra.mxu0 %v5086
  %6451 = vmatpush.bf16.msra.mxu0 %v5073
  %6452 = vmatpush.bf16.msra.mxu0 %v5060
  %6453 = vmatpush.bf16.msra.mxu0 %v5047
  %6454 = vmatpush.bf16.msra.mxu0 %v5034
  %6455 = vmatpush.bf16.msra.mxu0 %v5021
  %6456 = vmatpush.bf16.msra.mxu0 %v5008
  %6457 = vmatpush.bf16.msra.mxu0 %v4995
  %6458 = vmatmul.bf16.gmra.mxu0 %v2132
  %v6459 = vpop.f32.mrf.mxu0
  %v6460 = vadd.f32 %v6447, %v6459
  %v6461 = vpop.f32.mrf.mxu0
  %6462 = vdwg.mxu0
  %6463 = vmatpush.bf16.msra.mxu0 %v5190
  %6464 = vmatpush.bf16.msra.mxu0 %v5177
  %6465 = vmatpush.bf16.msra.mxu0 %v5164
  %6466 = vmatpush.bf16.msra.mxu0 %v5151
  %6467 = vmatpush.bf16.msra.mxu0 %v5138
  %6468 = vmatpush.bf16.msra.mxu0 %v5125
  %6469 = vmatpush.bf16.msra.mxu0 %v5112
  %6470 = vmatpush.bf16.msra.mxu0 %v5099
  %6471 = vmatmul.bf16.gmra.mxu0 %v2133
  %v6472 = vpop.f32.mrf.mxu0
  %v6473 = vadd.f32 %v6460, %v6472
  %v6474 = vpop.f32.mrf.mxu0
  %6475 = vdwg.mxu0
  %6476 = vmatpush.bf16.msra.mxu0 %v5294
  %6477 = vmatpush.bf16.msra.mxu0 %v5281
  %6478 = vmatpush.bf16.msra.mxu0 %v5268
  %6479 = vmatpush.bf16.msra.mxu0 %v5255
  %6480 = vmatpush.bf16.msra.mxu0 %v5242
  %6481 = vmatpush.bf16.msra.mxu0 %v5229
  %6482 = vmatpush.bf16.msra.mxu0 %v5216
  %6483 = vmatpush.bf16.msra.mxu0 %v5203
  %6484 = vmatmul.bf16.gmra.mxu0 %v2134
  %v6485 = vpop.f32.mrf.mxu0
  %v6486 = vadd.f32 %v6473, %v6485
  %v6487 = vpop.f32.mrf.mxu0
  %6488 = vdwg.mxu0
  %6489 = vmatpush.bf16.msra.mxu0 %v5398
  %6490 = vmatpush.bf16.msra.mxu0 %v5385
  %6491 = vmatpush.bf16.msra.mxu0 %v5372
  %6492 = vmatpush.bf16.msra.mxu0 %v5359
  %6493 = vmatpush.bf16.msra.mxu0 %v5346
  %6494 = vmatpush.bf16.msra.mxu0 %v5333
  %6495 = vmatpush.bf16.msra.mxu0 %v5320
  %6496 = vmatpush.bf16.msra.mxu0 %v5307
  %6497 = vmatmul.bf16.gmra.mxu0 %v2135
  %v6498 = vpop.f32.mrf.mxu0
  %v6499 = vadd.f32 %v6486, %v6498
  %v6500 = vpop.f32.mrf.mxu0
  %6501 = vdwg.mxu0
  %6502 = vmatpush.bf16.msra.mxu0 0
  %6503 = vmatpush.bf16.msra.mxu0 0
  %6504 = vmatpush.bf16.msra.mxu0 0
  %6505 = vmatpush.bf16.msra.mxu0 0
  %6506 = vmatpush.bf16.msra.mxu0 0
  %6507 = vmatpush.bf16.msra.mxu0 0
  %6508 = vmatpush.bf16.msra.mxu0 0
  %6509 = vmatpush.bf16.msra.mxu0 %v5411
  %6510 = vmatmul.bf16.gmra.mxu0 %v6058
  %v6511 = vpop.f32.mrf.mxu0
  %v6512 = vadd.f32 %v6499, %v6511
  %v6513 = vpop.f32.mrf.mxu0
  %6514 = vdwg.mxu0
  %6515 = vmatpush.bf16.msra.mxu0 %v4879
  %6516 = vmatpush.bf16.msra.mxu0 %v4866
  %6517 = vmatpush.bf16.msra.mxu0 %v4853
  %6518 = vmatpush.bf16.msra.mxu0 %v4840
  %6519 = vmatpush.bf16.msra.mxu0 %v4827
  %6520 = vmatpush.bf16.msra.mxu0 %v4814
  %6521 = vmatpush.bf16.msra.mxu0 %v4801
  %6522 = vmatpush.bf16.msra.mxu0 %v4788
  %6523 = vmatmul.bf16.gmra.mxu0 %v2130
  %v6524 = vpop.f32.mrf.mxu0
  %v6525 = vadd.f32 0.0, %v6524
  %v6526 = vpop.f32.mrf.mxu0
  %6527 = vdwg.mxu0
  %6528 = vmatpush.bf16.msra.mxu0 %v4983
  %6529 = vmatpush.bf16.msra.mxu0 %v4970
  %6530 = vmatpush.bf16.msra.mxu0 %v4957
  %6531 = vmatpush.bf16.msra.mxu0 %v4944
  %6532 = vmatpush.bf16.msra.mxu0 %v4931
  %6533 = vmatpush.bf16.msra.mxu0 %v4918
  %6534 = vmatpush.bf16.msra.mxu0 %v4905
  %6535 = vmatpush.bf16.msra.mxu0 %v4892
  %6536 = vmatmul.bf16.gmra.mxu0 %v2131
  %v6537 = vpop.f32.mrf.mxu0
  %v6538 = vadd.f32 %v6525, %v6537
  %v6539 = vpop.f32.mrf.mxu0
  %6540 = vdwg.mxu0
  %6541 = vmatpush.bf16.msra.mxu0 %v5087
  %6542 = vmatpush.bf16.msra.mxu0 %v5074
  %6543 = vmatpush.bf16.msra.mxu0 %v5061
  %6544 = vmatpush.bf16.msra.mxu0 %v5048
  %6545 = vmatpush.bf16.msra.mxu0 %v5035
  %6546 = vmatpush.bf16.msra.mxu0 %v5022
  %6547 = vmatpush.bf16.msra.mxu0 %v5009
  %6548 = vmatpush.bf16.msra.mxu0 %v4996
  %6549 = vmatmul.bf16.gmra.mxu0 %v2132
  %v6550 = vpop.f32.mrf.mxu0
  %v6551 = vadd.f32 %v6538, %v6550
  %v6552 = vpop.f32.mrf.mxu0
  %6553 = vdwg.mxu0
  %6554 = vmatpush.bf16.msra.mxu0 %v5191
  %6555 = vmatpush.bf16.msra.mxu0 %v5178
  %6556 = vmatpush.bf16.msra.mxu0 %v5165
  %6557 = vmatpush.bf16.msra.mxu0 %v5152
  %6558 = vmatpush.bf16.msra.mxu0 %v5139
  %6559 = vmatpush.bf16.msra.mxu0 %v5126
  %6560 = vmatpush.bf16.msra.mxu0 %v5113
  %6561 = vmatpush.bf16.msra.mxu0 %v5100
  %6562 = vmatmul.bf16.gmra.mxu0 %v2133
  %v6563 = vpop.f32.mrf.mxu0
  %v6564 = vadd.f32 %v6551, %v6563
  %v6565 = vpop.f32.mrf.mxu0
  %6566 = vdwg.mxu0
  %6567 = vmatpush.bf16.msra.mxu0 %v5295
  %6568 = vmatpush.bf16.msra.mxu0 %v5282
  %6569 = vmatpush.bf16.msra.mxu0 %v5269
  %6570 = vmatpush.bf16.msra.mxu0 %v5256
  %6571 = vmatpush.bf16.msra.mxu0 %v5243
  %6572 = vmatpush.bf16.msra.mxu0 %v5230
  %6573 = vmatpush.bf16.msra.mxu0 %v5217
  %6574 = vmatpush.bf16.msra.mxu0 %v5204
  %6575 = vmatmul.bf16.gmra.mxu0 %v2134
  %v6576 = vpop.f32.mrf.mxu0
  %v6577 = vadd.f32 %v6564, %v6576
  %v6578 = vpop.f32.mrf.mxu0
  %6579 = vdwg.mxu0
  %6580 = vmatpush.bf16.msra.mxu0 %v5399
  %6581 = vmatpush.bf16.msra.mxu0 %v5386
  %6582 = vmatpush.bf16.msra.mxu0 %v5373
  %6583 = vmatpush.bf16.msra.mxu0 %v5360
  %6584 = vmatpush.bf16.msra.mxu0 %v5347
  %6585 = vmatpush.bf16.msra.mxu0 %v5334
  %6586 = vmatpush.bf16.msra.mxu0 %v5321
  %6587 = vmatpush.bf16.msra.mxu0 %v5308
  %6588 = vmatmul.bf16.gmra.mxu0 %v2135
  %v6589 = vpop.f32.mrf.mxu0
  %v6590 = vadd.f32 %v6577, %v6589
  %v6591 = vpop.f32.mrf.mxu0
  %6592 = vdwg.mxu0
  %6593 = vmatpush.bf16.msra.mxu0 0
  %6594 = vmatpush.bf16.msra.mxu0 0
  %6595 = vmatpush.bf16.msra.mxu0 0
  %6596 = vmatpush.bf16.msra.mxu0 0
  %6597 = vmatpush.bf16.msra.mxu0 0
  %6598 = vmatpush.bf16.msra.mxu0 0
  %6599 = vmatpush.bf16.msra.mxu0 0
  %6600 = vmatpush.bf16.msra.mxu0 %v5412
  %6601 = vmatmul.bf16.gmra.mxu0 %v6058
  %v6602 = vpop.f32.mrf.mxu0
  %v6603 = vadd.f32 %v6590, %v6602
  %v6604 = vpop.f32.mrf.mxu0
  %6605 = vdwg.mxu0
  %6606 = vmatpush.bf16.msra.mxu0 %v4880
  %6607 = vmatpush.bf16.msra.mxu0 %v4867
  %6608 = vmatpush.bf16.msra.mxu0 %v4854
  %6609 = vmatpush.bf16.msra.mxu0 %v4841
  %6610 = vmatpush.bf16.msra.mxu0 %v4828
  %6611 = vmatpush.bf16.msra.mxu0 %v4815
  %6612 = vmatpush.bf16.msra.mxu0 %v4802
  %6613 = vmatpush.bf16.msra.mxu0 %v4789
  %6614 = vmatmul.bf16.gmra.mxu0 %v2130
  %v6615 = vpop.f32.mrf.mxu0
  %v6616 = vadd.f32 0.0, %v6615
  %v6617 = vpop.f32.mrf.mxu0
  %6618 = vdwg.mxu0
  %6619 = vmatpush.bf16.msra.mxu0 %v4984
  %6620 = vmatpush.bf16.msra.mxu0 %v4971
  %6621 = vmatpush.bf16.msra.mxu0 %v4958
  %6622 = vmatpush.bf16.msra.mxu0 %v4945
  %6623 = vmatpush.bf16.msra.mxu0 %v4932
  %6624 = vmatpush.bf16.msra.mxu0 %v4919
  %6625 = vmatpush.bf16.msra.mxu0 %v4906
  %6626 = vmatpush.bf16.msra.mxu0 %v4893
  %6627 = vmatmul.bf16.gmra.mxu0 %v2131
  %v6628 = vpop.f32.mrf.mxu0
  %v6629 = vadd.f32 %v6616, %v6628
  %v6630 = vpop.f32.mrf.mxu0
  %6631 = vdwg.mxu0
  %6632 = vmatpush.bf16.msra.mxu0 %v5088
  %6633 = vmatpush.bf16.msra.mxu0 %v5075
  %6634 = vmatpush.bf16.msra.mxu0 %v5062
  %6635 = vmatpush.bf16.msra.mxu0 %v5049
  %6636 = vmatpush.bf16.msra.mxu0 %v5036
  %6637 = vmatpush.bf16.msra.mxu0 %v5023
  %6638 = vmatpush.bf16.msra.mxu0 %v5010
  %6639 = vmatpush.bf16.msra.mxu0 %v4997
  %6640 = vmatmul.bf16.gmra.mxu0 %v2132
  %v6641 = vpop.f32.mrf.mxu0
  %v6642 = vadd.f32 %v6629, %v6641
  %v6643 = vpop.f32.mrf.mxu0
  %6644 = vdwg.mxu0
  %6645 = vmatpush.bf16.msra.mxu0 %v5192
  %6646 = vmatpush.bf16.msra.mxu0 %v5179
  %6647 = vmatpush.bf16.msra.mxu0 %v5166
  %6648 = vmatpush.bf16.msra.mxu0 %v5153
  %6649 = vmatpush.bf16.msra.mxu0 %v5140
  %6650 = vmatpush.bf16.msra.mxu0 %v5127
  %6651 = vmatpush.bf16.msra.mxu0 %v5114
  %6652 = vmatpush.bf16.msra.mxu0 %v5101
  %6653 = vmatmul.bf16.gmra.mxu0 %v2133
  %v6654 = vpop.f32.mrf.mxu0
  %v6655 = vadd.f32 %v6642, %v6654
  %v6656 = vpop.f32.mrf.mxu0
  %6657 = vdwg.mxu0
  %6658 = vmatpush.bf16.msra.mxu0 %v5296
  %6659 = vmatpush.bf16.msra.mxu0 %v5283
  %6660 = vmatpush.bf16.msra.mxu0 %v5270
  %6661 = vmatpush.bf16.msra.mxu0 %v5257
  %6662 = vmatpush.bf16.msra.mxu0 %v5244
  %6663 = vmatpush.bf16.msra.mxu0 %v5231
  %6664 = vmatpush.bf16.msra.mxu0 %v5218
  %6665 = vmatpush.bf16.msra.mxu0 %v5205
  %6666 = vmatmul.bf16.gmra.mxu0 %v2134
  %v6667 = vpop.f32.mrf.mxu0
  %v6668 = vadd.f32 %v6655, %v6667
  %v6669 = vpop.f32.mrf.mxu0
  %6670 = vdwg.mxu0
  %6671 = vmatpush.bf16.msra.mxu0 %v5400
  %6672 = vmatpush.bf16.msra.mxu0 %v5387
  %6673 = vmatpush.bf16.msra.mxu0 %v5374
  %6674 = vmatpush.bf16.msra.mxu0 %v5361
  %6675 = vmatpush.bf16.msra.mxu0 %v5348
  %6676 = vmatpush.bf16.msra.mxu0 %v5335
  %6677 = vmatpush.bf16.msra.mxu0 %v5322
  %6678 = vmatpush.bf16.msra.mxu0 %v5309
  %6679 = vmatmul.bf16.gmra.mxu0 %v2135
  %v6680 = vpop.f32.mrf.mxu0
  %v6681 = vadd.f32 %v6668, %v6680
  %v6682 = vpop.f32.mrf.mxu0
  %6683 = vdwg.mxu0
  %6684 = vmatpush.bf16.msra.mxu0 0
  %6685 = vmatpush.bf16.msra.mxu0 0
  %6686 = vmatpush.bf16.msra.mxu0 0
  %6687 = vmatpush.bf16.msra.mxu0 0
  %6688 = vmatpush.bf16.msra.mxu0 0
  %6689 = vmatpush.bf16.msra.mxu0 0
  %6690 = vmatpush.bf16.msra.mxu0 0
  %6691 = vmatpush.bf16.msra.mxu0 %v5413
  %6692 = vmatmul.bf16.gmra.mxu0 %v6058
  %v6693 = vpop.f32.mrf.mxu0
  %v6694 = vadd.f32 %v6681, %v6693
  %v6695 = vpop.f32.mrf.mxu0
  %6696 = vdwg.mxu0
  %6697 = vmatpush.bf16.msra.mxu0 %v4881
  %6698 = vmatpush.bf16.msra.mxu0 %v4868
  %6699 = vmatpush.bf16.msra.mxu0 %v4855
  %6700 = vmatpush.bf16.msra.mxu0 %v4842
  %6701 = vmatpush.bf16.msra.mxu0 %v4829
  %6702 = vmatpush.bf16.msra.mxu0 %v4816
  %6703 = vmatpush.bf16.msra.mxu0 %v4803
  %6704 = vmatpush.bf16.msra.mxu0 %v4790
  %6705 = vmatmul.bf16.gmra.mxu0 %v2130
  %v6706 = vpop.f32.mrf.mxu0
  %v6707 = vadd.f32 0.0, %v6706
  %v6708 = vpop.f32.mrf.mxu0
  %6709 = vdwg.mxu0
  %6710 = vmatpush.bf16.msra.mxu0 %v4985
  %6711 = vmatpush.bf16.msra.mxu0 %v4972
  %6712 = vmatpush.bf16.msra.mxu0 %v4959
  %6713 = vmatpush.bf16.msra.mxu0 %v4946
  %6714 = vmatpush.bf16.msra.mxu0 %v4933
  %6715 = vmatpush.bf16.msra.mxu0 %v4920
  %6716 = vmatpush.bf16.msra.mxu0 %v4907
  %6717 = vmatpush.bf16.msra.mxu0 %v4894
  %6718 = vmatmul.bf16.gmra.mxu0 %v2131
  %v6719 = vpop.f32.mrf.mxu0
  %v6720 = vadd.f32 %v6707, %v6719
  %v6721 = vpop.f32.mrf.mxu0
  %6722 = vdwg.mxu0
  %6723 = vmatpush.bf16.msra.mxu0 %v5089
  %6724 = vmatpush.bf16.msra.mxu0 %v5076
  %6725 = vmatpush.bf16.msra.mxu0 %v5063
  %6726 = vmatpush.bf16.msra.mxu0 %v5050
  %6727 = vmatpush.bf16.msra.mxu0 %v5037
  %6728 = vmatpush.bf16.msra.mxu0 %v5024
  %6729 = vmatpush.bf16.msra.mxu0 %v5011
  %6730 = vmatpush.bf16.msra.mxu0 %v4998
  %6731 = vmatmul.bf16.gmra.mxu0 %v2132
  %v6732 = vpop.f32.mrf.mxu0
  %v6733 = vadd.f32 %v6720, %v6732
  %v6734 = vpop.f32.mrf.mxu0
  %6735 = vdwg.mxu0
  %6736 = vmatpush.bf16.msra.mxu0 %v5193
  %6737 = vmatpush.bf16.msra.mxu0 %v5180
  %6738 = vmatpush.bf16.msra.mxu0 %v5167
  %6739 = vmatpush.bf16.msra.mxu0 %v5154
  %6740 = vmatpush.bf16.msra.mxu0 %v5141
  %6741 = vmatpush.bf16.msra.mxu0 %v5128
  %6742 = vmatpush.bf16.msra.mxu0 %v5115
  %6743 = vmatpush.bf16.msra.mxu0 %v5102
  %6744 = vmatmul.bf16.gmra.mxu0 %v2133
  %v6745 = vpop.f32.mrf.mxu0
  %v6746 = vadd.f32 %v6733, %v6745
  %v6747 = vpop.f32.mrf.mxu0
  %6748 = vdwg.mxu0
  %6749 = vmatpush.bf16.msra.mxu0 %v5297
  %6750 = vmatpush.bf16.msra.mxu0 %v5284
  %6751 = vmatpush.bf16.msra.mxu0 %v5271
  %6752 = vmatpush.bf16.msra.mxu0 %v5258
  %6753 = vmatpush.bf16.msra.mxu0 %v5245
  %6754 = vmatpush.bf16.msra.mxu0 %v5232
  %6755 = vmatpush.bf16.msra.mxu0 %v5219
  %6756 = vmatpush.bf16.msra.mxu0 %v5206
  %6757 = vmatmul.bf16.gmra.mxu0 %v2134
  %v6758 = vpop.f32.mrf.mxu0
  %v6759 = vadd.f32 %v6746, %v6758
  %v6760 = vpop.f32.mrf.mxu0
  %6761 = vdwg.mxu0
  %6762 = vmatpush.bf16.msra.mxu0 %v5401
  %6763 = vmatpush.bf16.msra.mxu0 %v5388
  %6764 = vmatpush.bf16.msra.mxu0 %v5375
  %6765 = vmatpush.bf16.msra.mxu0 %v5362
  %6766 = vmatpush.bf16.msra.mxu0 %v5349
  %6767 = vmatpush.bf16.msra.mxu0 %v5336
  %6768 = vmatpush.bf16.msra.mxu0 %v5323
  %6769 = vmatpush.bf16.msra.mxu0 %v5310
  %6770 = vmatmul.bf16.gmra.mxu0 %v2135
  %v6771 = vpop.f32.mrf.mxu0
  %v6772 = vadd.f32 %v6759, %v6771
  %v6773 = vpop.f32.mrf.mxu0
  %6774 = vdwg.mxu0
  %6775 = vmatpush.bf16.msra.mxu0 0
  %6776 = vmatpush.bf16.msra.mxu0 0
  %6777 = vmatpush.bf16.msra.mxu0 0
  %6778 = vmatpush.bf16.msra.mxu0 0
  %6779 = vmatpush.bf16.msra.mxu0 0
  %6780 = vmatpush.bf16.msra.mxu0 0
  %6781 = vmatpush.bf16.msra.mxu0 0
  %6782 = vmatpush.bf16.msra.mxu0 %v5414
  %6783 = vmatmul.bf16.gmra.mxu0 %v6058
  %v6784 = vpop.f32.mrf.mxu0
  %v6785 = vadd.f32 %v6772, %v6784
  %v6786 = vpop.f32.mrf.mxu0
  %6787 = vdwg.mxu0
  %6788 = vmatpush.bf16.msra.mxu0 %v4882
  %6789 = vmatpush.bf16.msra.mxu0 %v4869
  %6790 = vmatpush.bf16.msra.mxu0 %v4856
  %6791 = vmatpush.bf16.msra.mxu0 %v4843
  %6792 = vmatpush.bf16.msra.mxu0 %v4830
  %6793 = vmatpush.bf16.msra.mxu0 %v4817
  %6794 = vmatpush.bf16.msra.mxu0 %v4804
  %6795 = vmatpush.bf16.msra.mxu0 %v4791
  %6796 = vmatmul.bf16.gmra.mxu0 %v2130
  %v6797 = vpop.f32.mrf.mxu0
  %v6798 = vadd.f32 0.0, %v6797
  %v6799 = vpop.f32.mrf.mxu0
  %6800 = vdwg.mxu0
  %6801 = vmatpush.bf16.msra.mxu0 %v4986
  %6802 = vmatpush.bf16.msra.mxu0 %v4973
  %6803 = vmatpush.bf16.msra.mxu0 %v4960
  %6804 = vmatpush.bf16.msra.mxu0 %v4947
  %6805 = vmatpush.bf16.msra.mxu0 %v4934
  %6806 = vmatpush.bf16.msra.mxu0 %v4921
  %6807 = vmatpush.bf16.msra.mxu0 %v4908
  %6808 = vmatpush.bf16.msra.mxu0 %v4895
  %6809 = vmatmul.bf16.gmra.mxu0 %v2131
  %v6810 = vpop.f32.mrf.mxu0
  %v6811 = vadd.f32 %v6798, %v6810
  %v6812 = vpop.f32.mrf.mxu0
  %6813 = vdwg.mxu0
  %6814 = vmatpush.bf16.msra.mxu0 %v5090
  %6815 = vmatpush.bf16.msra.mxu0 %v5077
  %6816 = vmatpush.bf16.msra.mxu0 %v5064
  %6817 = vmatpush.bf16.msra.mxu0 %v5051
  %6818 = vmatpush.bf16.msra.mxu0 %v5038
  %6819 = vmatpush.bf16.msra.mxu0 %v5025
  %6820 = vmatpush.bf16.msra.mxu0 %v5012
  %6821 = vmatpush.bf16.msra.mxu0 %v4999
  %6822 = vmatmul.bf16.gmra.mxu0 %v2132
  %v6823 = vpop.f32.mrf.mxu0
  %v6824 = vadd.f32 %v6811, %v6823
  %v6825 = vpop.f32.mrf.mxu0
  %6826 = vdwg.mxu0
  %6827 = vmatpush.bf16.msra.mxu0 %v5194
  %6828 = vmatpush.bf16.msra.mxu0 %v5181
  %6829 = vmatpush.bf16.msra.mxu0 %v5168
  %6830 = vmatpush.bf16.msra.mxu0 %v5155
  %6831 = vmatpush.bf16.msra.mxu0 %v5142
  %6832 = vmatpush.bf16.msra.mxu0 %v5129
  %6833 = vmatpush.bf16.msra.mxu0 %v5116
  %6834 = vmatpush.bf16.msra.mxu0 %v5103
  %6835 = vmatmul.bf16.gmra.mxu0 %v2133
  %v6836 = vpop.f32.mrf.mxu0
  %v6837 = vadd.f32 %v6824, %v6836
  %v6838 = vpop.f32.mrf.mxu0
  %6839 = vdwg.mxu0
  %6840 = vmatpush.bf16.msra.mxu0 %v5298
  %6841 = vmatpush.bf16.msra.mxu0 %v5285
  %6842 = vmatpush.bf16.msra.mxu0 %v5272
  %6843 = vmatpush.bf16.msra.mxu0 %v5259
  %6844 = vmatpush.bf16.msra.mxu0 %v5246
  %6845 = vmatpush.bf16.msra.mxu0 %v5233
  %6846 = vmatpush.bf16.msra.mxu0 %v5220
  %6847 = vmatpush.bf16.msra.mxu0 %v5207
  %6848 = vmatmul.bf16.gmra.mxu0 %v2134
  %v6849 = vpop.f32.mrf.mxu0
  %v6850 = vadd.f32 %v6837, %v6849
  %v6851 = vpop.f32.mrf.mxu0
  %6852 = vdwg.mxu0
  %6853 = vmatpush.bf16.msra.mxu0 %v5402
  %6854 = vmatpush.bf16.msra.mxu0 %v5389
  %6855 = vmatpush.bf16.msra.mxu0 %v5376
  %6856 = vmatpush.bf16.msra.mxu0 %v5363
  %6857 = vmatpush.bf16.msra.mxu0 %v5350
  %6858 = vmatpush.bf16.msra.mxu0 %v5337
  %6859 = vmatpush.bf16.msra.mxu0 %v5324
  %6860 = vmatpush.bf16.msra.mxu0 %v5311
  %6861 = vmatmul.bf16.gmra.mxu0 %v2135
  %v6862 = vpop.f32.mrf.mxu0
  %v6863 = vadd.f32 %v6850, %v6862
  %v6864 = vpop.f32.mrf.mxu0
  %6865 = vdwg.mxu0
  %6866 = vmatpush.bf16.msra.mxu0 0
  %6867 = vmatpush.bf16.msra.mxu0 0
  %6868 = vmatpush.bf16.msra.mxu0 0
  %6869 = vmatpush.bf16.msra.mxu0 0
  %6870 = vmatpush.bf16.msra.mxu0 0
  %6871 = vmatpush.bf16.msra.mxu0 0
  %6872 = vmatpush.bf16.msra.mxu0 0
  %6873 = vmatpush.bf16.msra.mxu0 %v5415
  %6874 = vmatmul.bf16.gmra.mxu0 %v6058
  %v6875 = vpop.f32.mrf.mxu0
  %v6876 = vadd.f32 %v6863, %v6875
  %v6877 = vpop.f32.mrf.mxu0
  %6878 = vdwg.mxu0
  %6879 = vmatpush.bf16.msra.mxu0 %v4883
  %6880 = vmatpush.bf16.msra.mxu0 %v4870
  %6881 = vmatpush.bf16.msra.mxu0 %v4857
  %6882 = vmatpush.bf16.msra.mxu0 %v4844
  %6883 = vmatpush.bf16.msra.mxu0 %v4831
  %6884 = vmatpush.bf16.msra.mxu0 %v4818
  %6885 = vmatpush.bf16.msra.mxu0 %v4805
  %6886 = vmatpush.bf16.msra.mxu0 %v4792
  %6887 = vmatmul.bf16.gmra.mxu0 %v2130
  %v6888 = vpop.f32.mrf.mxu0
  %v6889 = vadd.f32 0.0, %v6888
  %v6890 = vpop.f32.mrf.mxu0
  %6891 = vdwg.mxu0
  %6892 = vmatpush.bf16.msra.mxu0 %v4987
  %6893 = vmatpush.bf16.msra.mxu0 %v4974
  %6894 = vmatpush.bf16.msra.mxu0 %v4961
  %6895 = vmatpush.bf16.msra.mxu0 %v4948
  %6896 = vmatpush.bf16.msra.mxu0 %v4935
  %6897 = vmatpush.bf16.msra.mxu0 %v4922
  %6898 = vmatpush.bf16.msra.mxu0 %v4909
  %6899 = vmatpush.bf16.msra.mxu0 %v4896
  %6900 = vmatmul.bf16.gmra.mxu0 %v2131
  %v6901 = vpop.f32.mrf.mxu0
  %v6902 = vadd.f32 %v6889, %v6901
  %v6903 = vpop.f32.mrf.mxu0
  %6904 = vdwg.mxu0
  %6905 = vmatpush.bf16.msra.mxu0 %v5091
  %6906 = vmatpush.bf16.msra.mxu0 %v5078
  %6907 = vmatpush.bf16.msra.mxu0 %v5065
  %6908 = vmatpush.bf16.msra.mxu0 %v5052
  %6909 = vmatpush.bf16.msra.mxu0 %v5039
  %6910 = vmatpush.bf16.msra.mxu0 %v5026
  %6911 = vmatpush.bf16.msra.mxu0 %v5013
  %6912 = vmatpush.bf16.msra.mxu0 %v5000
  %6913 = vmatmul.bf16.gmra.mxu0 %v2132
  %v6914 = vpop.f32.mrf.mxu0
  %v6915 = vadd.f32 %v6902, %v6914
  %v6916 = vpop.f32.mrf.mxu0
  %6917 = vdwg.mxu0
  %6918 = vmatpush.bf16.msra.mxu0 %v5195
  %6919 = vmatpush.bf16.msra.mxu0 %v5182
  %6920 = vmatpush.bf16.msra.mxu0 %v5169
  %6921 = vmatpush.bf16.msra.mxu0 %v5156
  %6922 = vmatpush.bf16.msra.mxu0 %v5143
  %6923 = vmatpush.bf16.msra.mxu0 %v5130
  %6924 = vmatpush.bf16.msra.mxu0 %v5117
  %6925 = vmatpush.bf16.msra.mxu0 %v5104
  %6926 = vmatmul.bf16.gmra.mxu0 %v2133
  %v6927 = vpop.f32.mrf.mxu0
  %v6928 = vadd.f32 %v6915, %v6927
  %v6929 = vpop.f32.mrf.mxu0
  %6930 = vdwg.mxu0
  %6931 = vmatpush.bf16.msra.mxu0 %v5299
  %6932 = vmatpush.bf16.msra.mxu0 %v5286
  %6933 = vmatpush.bf16.msra.mxu0 %v5273
  %6934 = vmatpush.bf16.msra.mxu0 %v5260
  %6935 = vmatpush.bf16.msra.mxu0 %v5247
  %6936 = vmatpush.bf16.msra.mxu0 %v5234
  %6937 = vmatpush.bf16.msra.mxu0 %v5221
  %6938 = vmatpush.bf16.msra.mxu0 %v5208
  %6939 = vmatmul.bf16.gmra.mxu0 %v2134
  %v6940 = vpop.f32.mrf.mxu0
  %v6941 = vadd.f32 %v6928, %v6940
  %v6942 = vpop.f32.mrf.mxu0
  %6943 = vdwg.mxu0
  %6944 = vmatpush.bf16.msra.mxu0 %v5403
  %6945 = vmatpush.bf16.msra.mxu0 %v5390
  %6946 = vmatpush.bf16.msra.mxu0 %v5377
  %6947 = vmatpush.bf16.msra.mxu0 %v5364
  %6948 = vmatpush.bf16.msra.mxu0 %v5351
  %6949 = vmatpush.bf16.msra.mxu0 %v5338
  %6950 = vmatpush.bf16.msra.mxu0 %v5325
  %6951 = vmatpush.bf16.msra.mxu0 %v5312
  %6952 = vmatmul.bf16.gmra.mxu0 %v2135
  %v6953 = vpop.f32.mrf.mxu0
  %v6954 = vadd.f32 %v6941, %v6953
  %v6955 = vpop.f32.mrf.mxu0
  %6956 = vdwg.mxu0
  %6957 = vmatpush.bf16.msra.mxu0 0
  %6958 = vmatpush.bf16.msra.mxu0 0
  %6959 = vmatpush.bf16.msra.mxu0 0
  %6960 = vmatpush.bf16.msra.mxu0 0
  %6961 = vmatpush.bf16.msra.mxu0 0
  %6962 = vmatpush.bf16.msra.mxu0 0
  %6963 = vmatpush.bf16.msra.mxu0 0
  %6964 = vmatpush.bf16.msra.mxu0 %v5416
  %6965 = vmatmul.bf16.gmra.mxu0 %v6058
  %v6966 = vpop.f32.mrf.mxu0
  %v6967 = vadd.f32 %v6954, %v6966
  %v6968 = vpop.f32.mrf.mxu0
  %6969 = vdwg.mxu0
  %6970 = vmatpush.bf16.msra.mxu0 %v4884
  %6971 = vmatpush.bf16.msra.mxu0 %v4871
  %6972 = vmatpush.bf16.msra.mxu0 %v4858
  %6973 = vmatpush.bf16.msra.mxu0 %v4845
  %6974 = vmatpush.bf16.msra.mxu0 %v4832
  %6975 = vmatpush.bf16.msra.mxu0 %v4819
  %6976 = vmatpush.bf16.msra.mxu0 %v4806
  %6977 = vmatpush.bf16.msra.mxu0 %v4793
  %6978 = vmatmul.bf16.gmra.mxu0 %v2130
  %v6979 = vpop.f32.mrf.mxu0
  %v6980 = vadd.f32 0.0, %v6979
  %v6981 = vpop.f32.mrf.mxu0
  %6982 = vdwg.mxu0
  %6983 = vmatpush.bf16.msra.mxu0 %v4988
  %6984 = vmatpush.bf16.msra.mxu0 %v4975
  %6985 = vmatpush.bf16.msra.mxu0 %v4962
  %6986 = vmatpush.bf16.msra.mxu0 %v4949
  %6987 = vmatpush.bf16.msra.mxu0 %v4936
  %6988 = vmatpush.bf16.msra.mxu0 %v4923
  %6989 = vmatpush.bf16.msra.mxu0 %v4910
  %6990 = vmatpush.bf16.msra.mxu0 %v4897
  %6991 = vmatmul.bf16.gmra.mxu0 %v2131
  %v6992 = vpop.f32.mrf.mxu0
  %v6993 = vadd.f32 %v6980, %v6992
  %v6994 = vpop.f32.mrf.mxu0
  %6995 = vdwg.mxu0
  %6996 = vmatpush.bf16.msra.mxu0 %v5092
  %6997 = vmatpush.bf16.msra.mxu0 %v5079
  %6998 = vmatpush.bf16.msra.mxu0 %v5066
  %6999 = vmatpush.bf16.msra.mxu0 %v5053
  %7000 = vmatpush.bf16.msra.mxu0 %v5040
  %7001 = vmatpush.bf16.msra.mxu0 %v5027
  %7002 = vmatpush.bf16.msra.mxu0 %v5014
  %7003 = vmatpush.bf16.msra.mxu0 %v5001
  %7004 = vmatmul.bf16.gmra.mxu0 %v2132
  %v7005 = vpop.f32.mrf.mxu0
  %v7006 = vadd.f32 %v6993, %v7005
  %v7007 = vpop.f32.mrf.mxu0
  %7008 = vdwg.mxu0
  %7009 = vmatpush.bf16.msra.mxu0 %v5196
  %7010 = vmatpush.bf16.msra.mxu0 %v5183
  %7011 = vmatpush.bf16.msra.mxu0 %v5170
  %7012 = vmatpush.bf16.msra.mxu0 %v5157
  %7013 = vmatpush.bf16.msra.mxu0 %v5144
  %7014 = vmatpush.bf16.msra.mxu0 %v5131
  %7015 = vmatpush.bf16.msra.mxu0 %v5118
  %7016 = vmatpush.bf16.msra.mxu0 %v5105
  %7017 = vmatmul.bf16.gmra.mxu0 %v2133
  %v7018 = vpop.f32.mrf.mxu0
  %v7019 = vadd.f32 %v7006, %v7018
  %v7020 = vpop.f32.mrf.mxu0
  %7021 = vdwg.mxu0
  %7022 = vmatpush.bf16.msra.mxu0 %v5300
  %7023 = vmatpush.bf16.msra.mxu0 %v5287
  %7024 = vmatpush.bf16.msra.mxu0 %v5274
  %7025 = vmatpush.bf16.msra.mxu0 %v5261
  %7026 = vmatpush.bf16.msra.mxu0 %v5248
  %7027 = vmatpush.bf16.msra.mxu0 %v5235
  %7028 = vmatpush.bf16.msra.mxu0 %v5222
  %7029 = vmatpush.bf16.msra.mxu0 %v5209
  %7030 = vmatmul.bf16.gmra.mxu0 %v2134
  %v7031 = vpop.f32.mrf.mxu0
  %v7032 = vadd.f32 %v7019, %v7031
  %v7033 = vpop.f32.mrf.mxu0
  %7034 = vdwg.mxu0
  %7035 = vmatpush.bf16.msra.mxu0 %v5404
  %7036 = vmatpush.bf16.msra.mxu0 %v5391
  %7037 = vmatpush.bf16.msra.mxu0 %v5378
  %7038 = vmatpush.bf16.msra.mxu0 %v5365
  %7039 = vmatpush.bf16.msra.mxu0 %v5352
  %7040 = vmatpush.bf16.msra.mxu0 %v5339
  %7041 = vmatpush.bf16.msra.mxu0 %v5326
  %7042 = vmatpush.bf16.msra.mxu0 %v5313
  %7043 = vmatmul.bf16.gmra.mxu0 %v2135
  %v7044 = vpop.f32.mrf.mxu0
  %v7045 = vadd.f32 %v7032, %v7044
  %v7046 = vpop.f32.mrf.mxu0
  %7047 = vdwg.mxu0
  %7048 = vmatpush.bf16.msra.mxu0 0
  %7049 = vmatpush.bf16.msra.mxu0 0
  %7050 = vmatpush.bf16.msra.mxu0 0
  %7051 = vmatpush.bf16.msra.mxu0 0
  %7052 = vmatpush.bf16.msra.mxu0 0
  %7053 = vmatpush.bf16.msra.mxu0 0
  %7054 = vmatpush.bf16.msra.mxu0 0
  %7055 = vmatpush.bf16.msra.mxu0 %v5417
  %7056 = vmatmul.bf16.gmra.mxu0 %v6058
  %v7057 = vpop.f32.mrf.mxu0
  %v7058 = vadd.f32 %v7045, %v7057
  %v7059 = vpop.f32.mrf.mxu0
  %7060 = vdwg.mxu0
  %7061 = vmatpush.bf16.msra.mxu0 %v4885
  %7062 = vmatpush.bf16.msra.mxu0 %v4872
  %7063 = vmatpush.bf16.msra.mxu0 %v4859
  %7064 = vmatpush.bf16.msra.mxu0 %v4846
  %7065 = vmatpush.bf16.msra.mxu0 %v4833
  %7066 = vmatpush.bf16.msra.mxu0 %v4820
  %7067 = vmatpush.bf16.msra.mxu0 %v4807
  %7068 = vmatpush.bf16.msra.mxu0 %v4794
  %7069 = vmatmul.bf16.gmra.mxu0 %v2130
  %v7070 = vpop.f32.mrf.mxu0
  %v7071 = vadd.f32 0.0, %v7070
  %v7072 = vpop.f32.mrf.mxu0
  %7073 = vdwg.mxu0
  %7074 = vmatpush.bf16.msra.mxu0 %v4989
  %7075 = vmatpush.bf16.msra.mxu0 %v4976
  %7076 = vmatpush.bf16.msra.mxu0 %v4963
  %7077 = vmatpush.bf16.msra.mxu0 %v4950
  %7078 = vmatpush.bf16.msra.mxu0 %v4937
  %7079 = vmatpush.bf16.msra.mxu0 %v4924
  %7080 = vmatpush.bf16.msra.mxu0 %v4911
  %7081 = vmatpush.bf16.msra.mxu0 %v4898
  %7082 = vmatmul.bf16.gmra.mxu0 %v2131
  %v7083 = vpop.f32.mrf.mxu0
  %v7084 = vadd.f32 %v7071, %v7083
  %v7085 = vpop.f32.mrf.mxu0
  %7086 = vdwg.mxu0
  %7087 = vmatpush.bf16.msra.mxu0 %v5093
  %7088 = vmatpush.bf16.msra.mxu0 %v5080
  %7089 = vmatpush.bf16.msra.mxu0 %v5067
  %7090 = vmatpush.bf16.msra.mxu0 %v5054
  %7091 = vmatpush.bf16.msra.mxu0 %v5041
  %7092 = vmatpush.bf16.msra.mxu0 %v5028
  %7093 = vmatpush.bf16.msra.mxu0 %v5015
  %7094 = vmatpush.bf16.msra.mxu0 %v5002
  %7095 = vmatmul.bf16.gmra.mxu0 %v2132
  %v7096 = vpop.f32.mrf.mxu0
  %v7097 = vadd.f32 %v7084, %v7096
  %v7098 = vpop.f32.mrf.mxu0
  %7099 = vdwg.mxu0
  %7100 = vmatpush.bf16.msra.mxu0 %v5197
  %7101 = vmatpush.bf16.msra.mxu0 %v5184
  %7102 = vmatpush.bf16.msra.mxu0 %v5171
  %7103 = vmatpush.bf16.msra.mxu0 %v5158
  %7104 = vmatpush.bf16.msra.mxu0 %v5145
  %7105 = vmatpush.bf16.msra.mxu0 %v5132
  %7106 = vmatpush.bf16.msra.mxu0 %v5119
  %7107 = vmatpush.bf16.msra.mxu0 %v5106
  %7108 = vmatmul.bf16.gmra.mxu0 %v2133
  %v7109 = vpop.f32.mrf.mxu0
  %v7110 = vadd.f32 %v7097, %v7109
  %v7111 = vpop.f32.mrf.mxu0
  %7112 = vdwg.mxu0
  %7113 = vmatpush.bf16.msra.mxu0 %v5301
  %7114 = vmatpush.bf16.msra.mxu0 %v5288
  %7115 = vmatpush.bf16.msra.mxu0 %v5275
  %7116 = vmatpush.bf16.msra.mxu0 %v5262
  %7117 = vmatpush.bf16.msra.mxu0 %v5249
  %7118 = vmatpush.bf16.msra.mxu0 %v5236
  %7119 = vmatpush.bf16.msra.mxu0 %v5223
  %7120 = vmatpush.bf16.msra.mxu0 %v5210
  %7121 = vmatmul.bf16.gmra.mxu0 %v2134
  %v7122 = vpop.f32.mrf.mxu0
  %v7123 = vadd.f32 %v7110, %v7122
  %v7124 = vpop.f32.mrf.mxu0
  %7125 = vdwg.mxu0
  %7126 = vmatpush.bf16.msra.mxu0 %v5405
  %7127 = vmatpush.bf16.msra.mxu0 %v5392
  %7128 = vmatpush.bf16.msra.mxu0 %v5379
  %7129 = vmatpush.bf16.msra.mxu0 %v5366
  %7130 = vmatpush.bf16.msra.mxu0 %v5353
  %7131 = vmatpush.bf16.msra.mxu0 %v5340
  %7132 = vmatpush.bf16.msra.mxu0 %v5327
  %7133 = vmatpush.bf16.msra.mxu0 %v5314
  %7134 = vmatmul.bf16.gmra.mxu0 %v2135
  %v7135 = vpop.f32.mrf.mxu0
  %v7136 = vadd.f32 %v7123, %v7135
  %v7137 = vpop.f32.mrf.mxu0
  %7138 = vdwg.mxu0
  %7139 = vmatpush.bf16.msra.mxu0 0
  %7140 = vmatpush.bf16.msra.mxu0 0
  %7141 = vmatpush.bf16.msra.mxu0 0
  %7142 = vmatpush.bf16.msra.mxu0 0
  %7143 = vmatpush.bf16.msra.mxu0 0
  %7144 = vmatpush.bf16.msra.mxu0 0
  %7145 = vmatpush.bf16.msra.mxu0 0
  %7146 = vmatpush.bf16.msra.mxu0 %v5418
  %7147 = vmatmul.bf16.gmra.mxu0 %v6058
  %v7148 = vpop.f32.mrf.mxu0
  %v7149 = vadd.f32 %v7136, %v7148
  %v7150 = vpop.f32.mrf.mxu0
  %7151 = vdwg.mxu0
  %7152 = vmatpush.bf16.msra.mxu0 %v4886
  %7153 = vmatpush.bf16.msra.mxu0 %v4873
  %7154 = vmatpush.bf16.msra.mxu0 %v4860
  %7155 = vmatpush.bf16.msra.mxu0 %v4847
  %7156 = vmatpush.bf16.msra.mxu0 %v4834
  %7157 = vmatpush.bf16.msra.mxu0 %v4821
  %7158 = vmatpush.bf16.msra.mxu0 %v4808
  %7159 = vmatpush.bf16.msra.mxu0 %v4795
  %7160 = vmatmul.bf16.gmra.mxu0 %v2130
  %v7161 = vpop.f32.mrf.mxu0
  %v7162 = vadd.f32 0.0, %v7161
  %v7163 = vpop.f32.mrf.mxu0
  %7164 = vdwg.mxu0
  %7165 = vmatpush.bf16.msra.mxu0 %v4990
  %7166 = vmatpush.bf16.msra.mxu0 %v4977
  %7167 = vmatpush.bf16.msra.mxu0 %v4964
  %7168 = vmatpush.bf16.msra.mxu0 %v4951
  %7169 = vmatpush.bf16.msra.mxu0 %v4938
  %7170 = vmatpush.bf16.msra.mxu0 %v4925
  %7171 = vmatpush.bf16.msra.mxu0 %v4912
  %7172 = vmatpush.bf16.msra.mxu0 %v4899
  %7173 = vmatmul.bf16.gmra.mxu0 %v2131
  %v7174 = vpop.f32.mrf.mxu0
  %v7175 = vadd.f32 %v7162, %v7174
  %v7176 = vpop.f32.mrf.mxu0
  %7177 = vdwg.mxu0
  %7178 = vmatpush.bf16.msra.mxu0 %v5094
  %7179 = vmatpush.bf16.msra.mxu0 %v5081
  %7180 = vmatpush.bf16.msra.mxu0 %v5068
  %7181 = vmatpush.bf16.msra.mxu0 %v5055
  %7182 = vmatpush.bf16.msra.mxu0 %v5042
  %7183 = vmatpush.bf16.msra.mxu0 %v5029
  %7184 = vmatpush.bf16.msra.mxu0 %v5016
  %7185 = vmatpush.bf16.msra.mxu0 %v5003
  %7186 = vmatmul.bf16.gmra.mxu0 %v2132
  %v7187 = vpop.f32.mrf.mxu0
  %v7188 = vadd.f32 %v7175, %v7187
  %v7189 = vpop.f32.mrf.mxu0
  %7190 = vdwg.mxu0
  %7191 = vmatpush.bf16.msra.mxu0 %v5198
  %7192 = vmatpush.bf16.msra.mxu0 %v5185
  %7193 = vmatpush.bf16.msra.mxu0 %v5172
  %7194 = vmatpush.bf16.msra.mxu0 %v5159
  %7195 = vmatpush.bf16.msra.mxu0 %v5146
  %7196 = vmatpush.bf16.msra.mxu0 %v5133
  %7197 = vmatpush.bf16.msra.mxu0 %v5120
  %7198 = vmatpush.bf16.msra.mxu0 %v5107
  %7199 = vmatmul.bf16.gmra.mxu0 %v2133
  %v7200 = vpop.f32.mrf.mxu0
  %v7201 = vadd.f32 %v7188, %v7200
  %v7202 = vpop.f32.mrf.mxu0
  %7203 = vdwg.mxu0
  %7204 = vmatpush.bf16.msra.mxu0 %v5302
  %7205 = vmatpush.bf16.msra.mxu0 %v5289
  %7206 = vmatpush.bf16.msra.mxu0 %v5276
  %7207 = vmatpush.bf16.msra.mxu0 %v5263
  %7208 = vmatpush.bf16.msra.mxu0 %v5250
  %7209 = vmatpush.bf16.msra.mxu0 %v5237
  %7210 = vmatpush.bf16.msra.mxu0 %v5224
  %7211 = vmatpush.bf16.msra.mxu0 %v5211
  %7212 = vmatmul.bf16.gmra.mxu0 %v2134
  %v7213 = vpop.f32.mrf.mxu0
  %v7214 = vadd.f32 %v7201, %v7213
  %v7215 = vpop.f32.mrf.mxu0
  %7216 = vdwg.mxu0
  %7217 = vmatpush.bf16.msra.mxu0 %v5406
  %7218 = vmatpush.bf16.msra.mxu0 %v5393
  %7219 = vmatpush.bf16.msra.mxu0 %v5380
  %7220 = vmatpush.bf16.msra.mxu0 %v5367
  %7221 = vmatpush.bf16.msra.mxu0 %v5354
  %7222 = vmatpush.bf16.msra.mxu0 %v5341
  %7223 = vmatpush.bf16.msra.mxu0 %v5328
  %7224 = vmatpush.bf16.msra.mxu0 %v5315
  %7225 = vmatmul.bf16.gmra.mxu0 %v2135
  %v7226 = vpop.f32.mrf.mxu0
  %v7227 = vadd.f32 %v7214, %v7226
  %v7228 = vpop.f32.mrf.mxu0
  %7229 = vdwg.mxu0
  %7230 = vmatpush.bf16.msra.mxu0 0
  %7231 = vmatpush.bf16.msra.mxu0 0
  %7232 = vmatpush.bf16.msra.mxu0 0
  %7233 = vmatpush.bf16.msra.mxu0 0
  %7234 = vmatpush.bf16.msra.mxu0 0
  %7235 = vmatpush.bf16.msra.mxu0 0
  %7236 = vmatpush.bf16.msra.mxu0 0
  %7237 = vmatpush.bf16.msra.mxu0 %v5419
  %7238 = vmatmul.bf16.gmra.mxu0 %v6058
  %v7239 = vpop.f32.mrf.mxu0
  %v7240 = vadd.f32 %v7227, %v7239
  %v7241 = vpop.f32.mrf.mxu0
  %7242 = vdwg.mxu0
  %v7243 = vsel %vm1283, %v6148, 0.0
  %v7244 = vrot.slane %v7243, 4
  %v7245 = vadd.f32 %v7243, %v7244
  %v7246 = vrot.slane %v7245, 2
  %v7247 = vadd.f32 %v7245, %v7246
  %v7248 = vrot.slane %v7247, 1
  %v7249 = vadd.f32 %v7247, %v7248
  %v7250 = vsel %vm1283, %v6239, 0.0
  %v7251 = vrot.slane %v7250, 4
  %v7252 = vadd.f32 %v7250, %v7251
  %v7253 = vrot.slane %v7252, 2
  %v7254 = vadd.f32 %v7252, %v7253
  %v7255 = vrot.slane %v7254, 1
  %v7256 = vadd.f32 %v7254, %v7255
  %v7257 = vsel %vm1283, %v6330, 0.0
  %v7258 = vrot.slane %v7257, 4
  %v7259 = vadd.f32 %v7257, %v7258
  %v7260 = vrot.slane %v7259, 2
  %v7261 = vadd.f32 %v7259, %v7260
  %v7262 = vrot.slane %v7261, 1
  %v7263 = vadd.f32 %v7261, %v7262
  %v7264 = vsel %vm1283, %v6421, 0.0
  %v7265 = vrot.slane %v7264, 4
  %v7266 = vadd.f32 %v7264, %v7265
  %v7267 = vrot.slane %v7266, 2
  %v7268 = vadd.f32 %v7266, %v7267
  %v7269 = vrot.slane %v7268, 1
  %v7270 = vadd.f32 %v7268, %v7269
  %v7271 = vsel %vm1283, %v6512, 0.0
  %v7272 = vrot.slane %v7271, 4
  %v7273 = vadd.f32 %v7271, %v7272
  %v7274 = vrot.slane %v7273, 2
  %v7275 = vadd.f32 %v7273, %v7274
  %v7276 = vrot.slane %v7275, 1
  %v7277 = vadd.f32 %v7275, %v7276
  %v7278 = vsel %vm1283, %v6603, 0.0
  %v7279 = vrot.slane %v7278, 4
  %v7280 = vadd.f32 %v7278, %v7279
  %v7281 = vrot.slane %v7280, 2
  %v7282 = vadd.f32 %v7280, %v7281
  %v7283 = vrot.slane %v7282, 1
  %v7284 = vadd.f32 %v7282, %v7283
  %v7285 = vsel %vm1283, %v6694, 0.0
  %v7286 = vrot.slane %v7285, 4
  %v7287 = vadd.f32 %v7285, %v7286
  %v7288 = vrot.slane %v7287, 2
  %v7289 = vadd.f32 %v7287, %v7288
  %v7290 = vrot.slane %v7289, 1
  %v7291 = vadd.f32 %v7289, %v7290
  %v7292 = vsel %vm1283, %v6785, 0.0
  %v7293 = vrot.slane %v7292, 4
  %v7294 = vadd.f32 %v7292, %v7293
  %v7295 = vrot.slane %v7294, 2
  %v7296 = vadd.f32 %v7294, %v7295
  %v7297 = vrot.slane %v7296, 1
  %v7298 = vadd.f32 %v7296, %v7297
  %v7299 = vsel %vm1283, %v6876, 0.0
  %v7300 = vrot.slane %v7299, 4
  %v7301 = vadd.f32 %v7299, %v7300
  %v7302 = vrot.slane %v7301, 2
  %v7303 = vadd.f32 %v7301, %v7302
  %v7304 = vrot.slane %v7303, 1
  %v7305 = vadd.f32 %v7303, %v7304
  %v7306 = vsel %vm1283, %v6967, 0.0
  %v7307 = vrot.slane %v7306, 4
  %v7308 = vadd.f32 %v7306, %v7307
  %v7309 = vrot.slane %v7308, 2
  %v7310 = vadd.f32 %v7308, %v7309
  %v7311 = vrot.slane %v7310, 1
  %v7312 = vadd.f32 %v7310, %v7311
  %v7313 = vsel %vm1283, %v7058, 0.0
  %v7314 = vrot.slane %v7313, 4
  %v7315 = vadd.f32 %v7313, %v7314
  %v7316 = vrot.slane %v7315, 2
  %v7317 = vadd.f32 %v7315, %v7316
  %v7318 = vrot.slane %v7317, 1
  %v7319 = vadd.f32 %v7317, %v7318
  %v7320 = vsel %vm1283, %v7149, 0.0
  %v7321 = vrot.slane %v7320, 4
  %v7322 = vadd.f32 %v7320, %v7321
  %v7323 = vrot.slane %v7322, 2
  %v7324 = vadd.f32 %v7322, %v7323
  %v7325 = vrot.slane %v7324, 1
  %v7326 = vadd.f32 %v7324, %v7325
  %vm7327 = vcmask 254976
  %v7328 = vsel %vm7327, %v7240, 0.0
  %v7329 = vrot.slane %v7328, 4
  %v7330 = vadd.f32 %v7328, %v7329
  %v7331 = vrot.slane %v7330, 2
  %v7332 = vadd.f32 %v7330, %v7331
  %v7333 = vrot.slane %v7332, 1
  %v7334 = vadd.f32 %v7332, %v7333
  %v7335 = vmul.f32 %v6148, %v6148
  %v7336 = vmul.f32 %v6239, %v6239
  %v7337 = vmul.f32 %v6330, %v6330
  %v7338 = vmul.f32 %v6421, %v6421
  %v7339 = vmul.f32 %v6512, %v6512
  %v7340 = vmul.f32 %v6603, %v6603
  %v7341 = vmul.f32 %v6694, %v6694
  %v7342 = vmul.f32 %v6785, %v6785
  %v7343 = vmul.f32 %v6876, %v6876
  %v7344 = vmul.f32 %v6967, %v6967
  %v7345 = vmul.f32 %v7058, %v7058
  %v7346 = vmul.f32 %v7149, %v7149
  %v7347 = vmul.f32 %v7240, %v7240
  %v7348 = vsel %vm1283, %v7335, 0.0
  %v7349 = vrot.slane %v7348, 4
  %v7350 = vadd.f32 %v7348, %v7349
  %v7351 = vrot.slane %v7350, 2
  %v7352 = vadd.f32 %v7350, %v7351
  %v7353 = vrot.slane %v7352, 1
  %v7354 = vadd.f32 %v7352, %v7353
  %v7355 = vsel %vm1283, %v7336, 0.0
  %v7356 = vrot.slane %v7355, 4
  %v7357 = vadd.f32 %v7355, %v7356
  %v7358 = vrot.slane %v7357, 2
  %v7359 = vadd.f32 %v7357, %v7358
  %v7360 = vrot.slane %v7359, 1
  %v7361 = vadd.f32 %v7359, %v7360
  %v7362 = vsel %vm1283, %v7337, 0.0
  %v7363 = vrot.slane %v7362, 4
  %v7364 = vadd.f32 %v7362, %v7363
  %v7365 = vrot.slane %v7364, 2
  %v7366 = vadd.f32 %v7364, %v7365
  %v7367 = vrot.slane %v7366, 1
  %v7368 = vadd.f32 %v7366, %v7367
  %v7369 = vsel %vm1283, %v7338, 0.0
  %v7370 = vrot.slane %v7369, 4
  %v7371 = vadd.f32 %v7369, %v7370
  %v7372 = vrot.slane %v7371, 2
  %v7373 = vadd.f32 %v7371, %v7372
  %v7374 = vrot.slane %v7373, 1
  %v7375 = vadd.f32 %v7373, %v7374
  %v7376 = vsel %vm1283, %v7339, 0.0
  %v7377 = vrot.slane %v7376, 4
  %v7378 = vadd.f32 %v7376, %v7377
  %v7379 = vrot.slane %v7378, 2
  %v7380 = vadd.f32 %v7378, %v7379
  %v7381 = vrot.slane %v7380, 1
  %v7382 = vadd.f32 %v7380, %v7381
  %v7383 = vsel %vm1283, %v7340, 0.0
  %v7384 = vrot.slane %v7383, 4
  %v7385 = vadd.f32 %v7383, %v7384
  %v7386 = vrot.slane %v7385, 2
  %v7387 = vadd.f32 %v7385, %v7386
  %v7388 = vrot.slane %v7387, 1
  %v7389 = vadd.f32 %v7387, %v7388
  %v7390 = vsel %vm1283, %v7341, 0.0
  %v7391 = vrot.slane %v7390, 4
  %v7392 = vadd.f32 %v7390, %v7391
  %v7393 = vrot.slane %v7392, 2
  %v7394 = vadd.f32 %v7392, %v7393
  %v7395 = vrot.slane %v7394, 1
  %v7396 = vadd.f32 %v7394, %v7395
  %v7397 = vsel %vm1283, %v7342, 0.0
  %v7398 = vrot.slane %v7397, 4
  %v7399 = vadd.f32 %v7397, %v7398
  %v7400 = vrot.slane %v7399, 2
  %v7401 = vadd.f32 %v7399, %v7400
  %v7402 = vrot.slane %v7401, 1
  %v7403 = vadd.f32 %v7401, %v7402
  %v7404 = vsel %vm1283, %v7343, 0.0
  %v7405 = vrot.slane %v7404, 4
  %v7406 = vadd.f32 %v7404, %v7405
  %v7407 = vrot.slane %v7406, 2
  %v7408 = vadd.f32 %v7406, %v7407
  %v7409 = vrot.slane %v7408, 1
  %v7410 = vadd.f32 %v7408, %v7409
  %v7411 = vsel %vm1283, %v7344, 0.0
  %v7412 = vrot.slane %v7411, 4
  %v7413 = vadd.f32 %v7411, %v7412
  %v7414 = vrot.slane %v7413, 2
  %v7415 = vadd.f32 %v7413, %v7414
  %v7416 = vrot.slane %v7415, 1
  %v7417 = vadd.f32 %v7415, %v7416
  %v7418 = vsel %vm1283, %v7345, 0.0
  %v7419 = vrot.slane %v7418, 4
  %v7420 = vadd.f32 %v7418, %v7419
  %v7421 = vrot.slane %v7420, 2
  %v7422 = vadd.f32 %v7420, %v7421
  %v7423 = vrot.slane %v7422, 1
  %v7424 = vadd.f32 %v7422, %v7423
  %v7425 = vsel %vm1283, %v7346, 0.0
  %v7426 = vrot.slane %v7425, 4
  %v7427 = vadd.f32 %v7425, %v7426
  %v7428 = vrot.slane %v7427, 2
  %v7429 = vadd.f32 %v7427, %v7428
  %v7430 = vrot.slane %v7429, 1
  %v7431 = vadd.f32 %v7429, %v7430
  %v7432 = vsel %vm7327, %v7347, 0.0
  %v7433 = vrot.slane %v7432, 4
  %v7434 = vadd.f32 %v7432, %v7433
  %v7435 = vrot.slane %v7434, 2
  %v7436 = vadd.f32 %v7434, %v7435
  %v7437 = vrot.slane %v7436, 1
  %v7438 = vadd.f32 %v7436, %v7437
  %v7439 = vld [vmem:[%s11] sm:$0xff]
  %v7440 = vld [vmem:[%s11 + $0x8] sm:$0xff]
  %v7441 = vld [vmem:[%s11 + $0x10] sm:$0xff]
  %v7442 = vld [vmem:[%s11 + $0x18] sm:$0xff]
  %v7443 = vld [vmem:[%s11 + $0x20] sm:$0xff]
  %v7444 = vld [vmem:[%s11 + $0x28] sm:$0xff]
  %v7445 = vld [vmem:[%s11 + $0x30] sm:$0xff]
  %v7446 = vld [vmem:[%s11 + $0x38] sm:$0xff]
  %v7447 = vld [vmem:[%s11 + $0x40] sm:$0xff]
  %v7448 = vld [vmem:[%s11 + $0x48] sm:$0xff]
  %v7449 = vld [vmem:[%s11 + $0x50] sm:$0xff]
  %v7450 = vld [vmem:[%s11 + $0x58] sm:$0xff]
  %v7451 = vld [vmem:[%s11 + $0x60] sm:$0xff]
  %v7452 = vld [vmem:[%s11 + $0x68] sm:$0xff]
  %v7453 = vld [vmem:[%s11 + $0x70] sm:$0xff]
  %v7454 = vld [vmem:[%s11 + $0x78] sm:$0xff]
  %v7455 = vld [vmem:[%s11 + $0x80] sm:$0xff]
  %v7456 = vld [vmem:[%s11 + $0x88] sm:$0xff]
  %v7457 = vld [vmem:[%s11 + $0x90] sm:$0xff]
  %v7458 = vld [vmem:[%s11 + $0x98] sm:$0xff]
  %v7459 = vld [vmem:[%s11 + $0xa0] sm:$0xff]
  %v7460 = vld [vmem:[%s11 + $0xa8] sm:$0xff]
  %v7461 = vld [vmem:[%s11 + $0xb0] sm:$0xff]
  %v7462 = vld [vmem:[%s11 + $0xb8] sm:$0xff]
  %v7463 = vld [vmem:[%s11 + $0xc0] sm:$0xff]
  %v7464 = vld [vmem:[%s11 + $0xc8] sm:$0xff]
  %v7465 = vld [vmem:[%s11 + $0xd0] sm:$0xff]
  %v7466 = vld [vmem:[%s11 + $0xd8] sm:$0xff]
  %v7467 = vld [vmem:[%s11 + $0xe0] sm:$0xff]
  %v7468 = vld [vmem:[%s11 + $0xe8] sm:$0xff]
  %v7469 = vld [vmem:[%s11 + $0xf0] sm:$0xff]
  %v7470 = vld [vmem:[%s11 + $0xf8] sm:$0xff]
  %v7471 = vld [vmem:[%s11 + $0x100] sm:$0xff]
  %v7472 = vld [vmem:[%s11 + $0x108] sm:$0xff]
  %v7473 = vld [vmem:[%s11 + $0x110] sm:$0xff]
  %v7474 = vld [vmem:[%s11 + $0x118] sm:$0xff]
  %v7475 = vld [vmem:[%s11 + $0x120] sm:$0xff]
  %v7476 = vld [vmem:[%s11 + $0x128] sm:$0xff]
  %v7477 = vld [vmem:[%s11 + $0x130] sm:$0xff]
  %v7478 = vld [vmem:[%s11 + $0x138] sm:$0xff]
  %v7479 = vld [vmem:[%s11 + $0x140] sm:$0xff]
  %v7480 = vld [vmem:[%s11 + $0x148] sm:$0xff]
  %v7481 = vld [vmem:[%s11 + $0x150] sm:$0xff]
  %v7482 = vld [vmem:[%s11 + $0x158] sm:$0xff]
  %v7483 = vld [vmem:[%s11 + $0x160] sm:$0xff]
  %v7484 = vld [vmem:[%s11 + $0x168] sm:$0xff]
  %v7485 = vld [vmem:[%s11 + $0x170] sm:$0xff]
  %v7486 = vld [vmem:[%s11 + $0x178] sm:$0xff]
  %v7487 = vld [vmem:[%s11 + $0x180] sm:$0xff]
  %v7488 = vld [vmem:[%s11 + $0x188] sm:$0xff]
  %v7489 = vld [vmem:[%s11 + $0x190] sm:$0xff]
  %v7490 = vld [vmem:[%s11 + $0x198] sm:$0xff]
  %v7491 = vld [vmem:[%s11 + $0x1a0] sm:$0xff]
  %v7492 = vld [vmem:[%s11 + $0x1a8] sm:$0xff]
  %v7493 = vld [vmem:[%s11 + $0x1b0] sm:$0xff]
  %v7494 = vld [vmem:[%s11 + $0x1b8] sm:$0xff]
  %v7495 = vld [vmem:[%s11 + $0x1c0] sm:$0xff]
  %v7496 = vld [vmem:[%s11 + $0x1c8] sm:$0xff]
  %v7497 = vld [vmem:[%s11 + $0x1d0] sm:$0xff]
  %v7498 = vld [vmem:[%s11 + $0x1d8] sm:$0xff]
  %v7499 = vld [vmem:[%s11 + $0x1e0] sm:$0xff]
  %v7500 = vld [vmem:[%s11 + $0x1e8] sm:$0xff]
  %v7501 = vld [vmem:[%s11 + $0x1f0] sm:$0xff]
  %v7502 = vld [vmem:[%s11 + $0x1f8] sm:$0xff]
  %v7503 = vld [vmem:[%s11 + $0x200] sm:$0xff]
  %v7504 = vld [vmem:[%s11 + $0x208] sm:$0xff]
  %v7505 = vld [vmem:[%s11 + $0x210] sm:$0xff]
  %v7506 = vld [vmem:[%s11 + $0x218] sm:$0xff]
  %v7507 = vld [vmem:[%s11 + $0x220] sm:$0xff]
  %v7508 = vld [vmem:[%s11 + $0x228] sm:$0xff]
  %v7509 = vld [vmem:[%s11 + $0x230] sm:$0xff]
  %v7510 = vld [vmem:[%s11 + $0x238] sm:$0xff]
  %v7511 = vld [vmem:[%s11 + $0x240] sm:$0xff]
  %v7512 = vld [vmem:[%s11 + $0x248] sm:$0xff]
  %v7513 = vld [vmem:[%s11 + $0x250] sm:$0xff]
  %v7514 = vld [vmem:[%s11 + $0x258] sm:$0xff]
  %v7515 = vld [vmem:[%s11 + $0x260] sm:$0xff]
  %v7516 = vld [vmem:[%s11 + $0x268] sm:$0xff]
  %v7517 = vld [vmem:[%s11 + $0x270] sm:$0xff]
  %v7518 = vld [vmem:[%s11 + $0x278] sm:$0xff]
  %v7519 = vld [vmem:[%s11 + $0x280] sm:$0xff]
  %v7520 = vld [vmem:[%s11 + $0x288] sm:$0xff]
  %v7521 = vld [vmem:[%s11 + $0x290] sm:$0xff]
  %v7522 = vld [vmem:[%s11 + $0x298] sm:$0xff]
  %v7523 = vld [vmem:[%s11 + $0x2a0] sm:$0xff]
  %v7524 = vld [vmem:[%s11 + $0x2a8] sm:$0xff]
  %v7525 = vld [vmem:[%s11 + $0x2b0] sm:$0xff]
  %v7526 = vld [vmem:[%s11 + $0x2b8] sm:$0xff]
  %v7527 = vld [vmem:[%s11 + $0x2c0] sm:$0xff]
  %v7528 = vld [vmem:[%s11 + $0x2c8] sm:$0xff]
  %v7529 = vld [vmem:[%s11 + $0x2d0] sm:$0xff]
  %v7530 = vld [vmem:[%s11 + $0x2d8] sm:$0xff]
  %v7531 = vld [vmem:[%s11 + $0x2e0] sm:$0xff]
  %v7532 = vld [vmem:[%s11 + $0x2e8] sm:$0xff]
  %v7533 = vld [vmem:[%s11 + $0x2f0] sm:$0xff]
  %v7534 = vld [vmem:[%s11 + $0x2f8] sm:$0xff]
  %v7535 = vld [vmem:[%s11 + $0x300] sm:$0xff]
  %v7536 = vld [vmem:[%s11 + $0x308] sm:$0xff]
  %v7537 = vld [vmem:[%s11 + $0x310] sm:$0xff]
  %v7538 = vld [vmem:[%s11 + $0x318] sm:$0xff]
  %v7539 = vld [vmem:[%s11 + $0x320] sm:$0xff]
  %v7540 = vld [vmem:[%s11 + $0x328] sm:$0xff]
  %v7541 = vld [vmem:[%s11 + $0x330] sm:$0xff]
  %v7542 = vld [vmem:[%s11 + $0x338] sm:$0xff]
  %v7543 = vld [vmem:[%s11 + $0x340] sm:$0xff]
  %v7544 = vld [vmem:[%s11 + $0x348] sm:$0xff]
  %v7545 = vld [vmem:[%s11 + $0x350] sm:$0xff]
  %v7546 = vld [vmem:[%s11 + $0x358] sm:$0xff]
  %v7547 = vld [vmem:[%s11 + $0x360] sm:$0xff]
  %v7548 = vld [vmem:[%s11 + $0x368] sm:$0xff]
  %v7549 = vld [vmem:[%s11 + $0x370] sm:$0xff]
  %v7550 = vld [vmem:[%s11 + $0x378] sm:$0xff]
  %v7551 = vld [vmem:[%s11 + $0x380] sm:$0xff]
  %v7552 = vld [vmem:[%s11 + $0x388] sm:$0xff]
  %v7553 = vld [vmem:[%s11 + $0x390] sm:$0xff]
  %v7554 = vld [vmem:[%s11 + $0x398] sm:$0xff]
  %v7555 = vld [vmem:[%s11 + $0x3a0] sm:$0xff]
  %v7556 = vld [vmem:[%s11 + $0x3a8] sm:$0xff]
  %v7557 = vld [vmem:[%s11 + $0x3b0] sm:$0xff]
  %v7558 = vld [vmem:[%s11 + $0x3b8] sm:$0xff]
  %v7559 = vld [vmem:[%s11 + $0x3c0] sm:$0xff]
  %v7560 = vld [vmem:[%s11 + $0x3c8] sm:$0xff]
  %v7561 = vld [vmem:[%s11 + $0x3d0] sm:$0xff]
  %v7562 = vld [vmem:[%s11 + $0x3d8] sm:$0xff]
  %v7563 = vld [vmem:[%s11 + $0x3e0] sm:$0xff]
  %v7564 = vld [vmem:[%s11 + $0x3e8] sm:$0xff]
  %v7565 = vld [vmem:[%s11 + $0x3f0] sm:$0xff]
  %v7566 = vld [vmem:[%s11 + $0x3f8] sm:$0xff]
  %v7567 = vld [vmem:[%s11 + $0x400] sm:$0xff]
  %v7568 = vld [vmem:[%s11 + $0x408] sm:$0xff]
  %v7569 = vld [vmem:[%s11 + $0x410] sm:$0xff]
  %v7570 = vld [vmem:[%s11 + $0x418] sm:$0xff]
  %v7571 = vld [vmem:[%s11 + $0x420] sm:$0xff]
  %v7572 = vld [vmem:[%s11 + $0x428] sm:$0xff]
  %v7573 = vld [vmem:[%s11 + $0x430] sm:$0xff]
  %v7574 = vld [vmem:[%s11 + $0x438] sm:$0xff]
  %v7575 = vld [vmem:[%s11 + $0x440] sm:$0xff]
  %v7576 = vld [vmem:[%s11 + $0x448] sm:$0xff]
  %v7577 = vld [vmem:[%s11 + $0x450] sm:$0xff]
  %v7578 = vld [vmem:[%s11 + $0x458] sm:$0xff]
  %v7579 = vld [vmem:[%s11 + $0x460] sm:$0xff]
  %v7580 = vld [vmem:[%s11 + $0x468] sm:$0xff]
  %v7581 = vld [vmem:[%s11 + $0x470] sm:$0xff]
  %v7582 = vld [vmem:[%s11 + $0x478] sm:$0xff]
  %v7583 = vld [vmem:[%s11 + $0x480] sm:$0xff]
  %v7584 = vld [vmem:[%s11 + $0x488] sm:$0xff]
  %v7585 = vld [vmem:[%s11 + $0x490] sm:$0xff]
  %v7586 = vld [vmem:[%s11 + $0x498] sm:$0xff]
  %v7587 = vld [vmem:[%s11 + $0x4a0] sm:$0xff]
  %v7588 = vld [vmem:[%s11 + $0x4a8] sm:$0xff]
  %v7589 = vld [vmem:[%s11 + $0x4b0] sm:$0xff]
  %v7590 = vld [vmem:[%s11 + $0x4b8] sm:$0xff]
  %v7591 = vld [vmem:[%s11 + $0x4c0] sm:$0xff]
  %v7592 = vld [vmem:[%s11 + $0x4c8] sm:$0xff]
  %v7593 = vld [vmem:[%s11 + $0x4d0] sm:$0xff]
  %v7594 = vld [vmem:[%s11 + $0x4d8] sm:$0xff]
  %v7595 = vld [vmem:[%s11 + $0x4e0] sm:$0xff]
  %v7596 = vld [vmem:[%s11 + $0x4e8] sm:$0xff]
  %v7597 = vld [vmem:[%s11 + $0x4f0] sm:$0xff]
  %v7598 = vld [vmem:[%s11 + $0x4f8] sm:$0xff]
  %v7599 = vld [vmem:[%s11 + $0x500] sm:$0xff]
  %v7600 = vld [vmem:[%s11 + $0x508] sm:$0xff]
  %v7601 = vld [vmem:[%s11 + $0x510] sm:$0xff]
  %v7602 = vld [vmem:[%s11 + $0x518] sm:$0xff]
  %v7603 = vld [vmem:[%s11 + $0x520] sm:$0xff]
  %v7604 = vld [vmem:[%s11 + $0x528] sm:$0xff]
  %v7605 = vld [vmem:[%s11 + $0x530] sm:$0xff]
  %v7606 = vld [vmem:[%s11 + $0x538] sm:$0xff]
  %v7607 = vld [vmem:[%s11 + $0x540] sm:$0xff]
  %v7608 = vld [vmem:[%s11 + $0x548] sm:$0xff]
  %v7609 = vld [vmem:[%s11 + $0x550] sm:$0xff]
  %v7610 = vld [vmem:[%s11 + $0x558] sm:$0xff]
  %v7611 = vld [vmem:[%s11 + $0x560] sm:$0xff]
  %v7612 = vld [vmem:[%s11 + $0x568] sm:$0xff]
  %v7613 = vld [vmem:[%s11 + $0x570] sm:$0xff]
  %v7614 = vld [vmem:[%s11 + $0x578] sm:$0xff]
  %v7615 = vld [vmem:[%s11 + $0x580] sm:$0xff]
  %v7616 = vld [vmem:[%s11 + $0x588] sm:$0xff]
  %v7617 = vld [vmem:[%s11 + $0x590] sm:$0xff]
  %v7618 = vld [vmem:[%s11 + $0x598] sm:$0xff]
  %v7619 = vld [vmem:[%s11 + $0x5a0] sm:$0xff]
  %v7620 = vld [vmem:[%s11 + $0x5a8] sm:$0xff]
  %v7621 = vld [vmem:[%s11 + $0x5b0] sm:$0xff]
  %v7622 = vld [vmem:[%s11 + $0x5b8] sm:$0xff]
  %v7623 = vld [vmem:[%s11 + $0x5c0] sm:$0xff]
  %v7624 = vld [vmem:[%s11 + $0x5c8] sm:$0xff]
  %v7625 = vld [vmem:[%s11 + $0x5d0] sm:$0xff]
  %v7626 = vld [vmem:[%s11 + $0x5d8] sm:$0xff]
  %v7627 = vld [vmem:[%s11 + $0x5e0] sm:$0xff]
  %v7628 = vld [vmem:[%s11 + $0x5e8] sm:$0xff]
  %v7629 = vld [vmem:[%s11 + $0x5f0] sm:$0xff]
  %v7630 = vld [vmem:[%s11 + $0x5f8] sm:$0xff]
  %v7631 = vld [vmem:[%s11 + $0x600] sm:$0xff]
  %v7632 = vld [vmem:[%s11 + $0x608] sm:$0xff]
  %v7633 = vld [vmem:[%s11 + $0x610] sm:$0xff]
  %v7634 = vld [vmem:[%s11 + $0x618] sm:$0xff]
  %v7636 = vsel %vm1006, %v7334, 0
  %7638 = vmatpush.msra.mxu0 %v7454
  %7639 = vmatpush.msra.mxu0 %v7453
  %7640 = vmatpush.msra.mxu0 %v7452
  %7641 = vmatpush.msra.mxu0 %v7451
  %7642 = vmatpush.msra.mxu0 %v7450
  %7643 = vmatpush.msra.mxu0 %v7449
  %7644 = vmatpush.msra.mxu0 %v7448
  %7645 = vmatpush.msra.mxu0 %v7447
  %7646 = vmatpush.msra.mxu0 %v7446
  %7647 = vmatpush.msra.mxu0 %v7445
  %7648 = vmatpush.msra.mxu0 %v7444
  %7649 = vmatpush.msra.mxu0 %v7443
  %7650 = vmatpush.msra.mxu0 %v7442
  %7651 = vmatpush.msra.mxu0 %v7441
  %7652 = vmatpush.msra.mxu0 %v7440
  %7653 = vmatpush.msra.mxu0 %v7439
  %7654 = vmatmul.f32.gmra.mxu0 %v7249
  %v7655 = vpop.f32.mrf.mxu0
  %v7656 = vadd.f32 0.0, %v7655
  %7657 = vdwg.mxu0
  %7658 = vmatpush.msra.mxu0 %v7470
  %7659 = vmatpush.msra.mxu0 %v7469
  %7660 = vmatpush.msra.mxu0 %v7468
  %7661 = vmatpush.msra.mxu0 %v7467
  %7662 = vmatpush.msra.mxu0 %v7466
  %7663 = vmatpush.msra.mxu0 %v7465
  %7664 = vmatpush.msra.mxu0 %v7464
  %7665 = vmatpush.msra.mxu0 %v7463
  %7666 = vmatpush.msra.mxu0 %v7462
  %7667 = vmatpush.msra.mxu0 %v7461
  %7668 = vmatpush.msra.mxu0 %v7460
  %7669 = vmatpush.msra.mxu0 %v7459
  %7670 = vmatpush.msra.mxu0 %v7458
  %7671 = vmatpush.msra.mxu0 %v7457
  %7672 = vmatpush.msra.mxu0 %v7456
  %7673 = vmatpush.msra.mxu0 %v7455
  %7674 = vmatmul.f32.gmra.mxu0 %v7256
  %v7675 = vpop.f32.mrf.mxu0
  %v7676 = vadd.f32 %v7656, %v7675
  %7677 = vdwg.mxu0
  %7678 = vmatpush.msra.mxu0 %v7486
  %7679 = vmatpush.msra.mxu0 %v7485
  %7680 = vmatpush.msra.mxu0 %v7484
  %7681 = vmatpush.msra.mxu0 %v7483
  %7682 = vmatpush.msra.mxu0 %v7482
  %7683 = vmatpush.msra.mxu0 %v7481
  %7684 = vmatpush.msra.mxu0 %v7480
  %7685 = vmatpush.msra.mxu0 %v7479
  %7686 = vmatpush.msra.mxu0 %v7478
  %7687 = vmatpush.msra.mxu0 %v7477
  %7688 = vmatpush.msra.mxu0 %v7476
  %7689 = vmatpush.msra.mxu0 %v7475
  %7690 = vmatpush.msra.mxu0 %v7474
  %7691 = vmatpush.msra.mxu0 %v7473
  %7692 = vmatpush.msra.mxu0 %v7472
  %7693 = vmatpush.msra.mxu0 %v7471
  %7694 = vmatmul.f32.gmra.mxu0 %v7263
  %v7695 = vpop.f32.mrf.mxu0
  %v7696 = vadd.f32 %v7676, %v7695
  %7697 = vdwg.mxu0
  %7698 = vmatpush.msra.mxu0 %v7502
  %7699 = vmatpush.msra.mxu0 %v7501
  %7700 = vmatpush.msra.mxu0 %v7500
  %7701 = vmatpush.msra.mxu0 %v7499
  %7702 = vmatpush.msra.mxu0 %v7498
  %7703 = vmatpush.msra.mxu0 %v7497
  %7704 = vmatpush.msra.mxu0 %v7496
  %7705 = vmatpush.msra.mxu0 %v7495
  %7706 = vmatpush.msra.mxu0 %v7494
  %7707 = vmatpush.msra.mxu0 %v7493
  %7708 = vmatpush.msra.mxu0 %v7492
  %7709 = vmatpush.msra.mxu0 %v7491
  %7710 = vmatpush.msra.mxu0 %v7490
  %7711 = vmatpush.msra.mxu0 %v7489
  %7712 = vmatpush.msra.mxu0 %v7488
  %7713 = vmatpush.msra.mxu0 %v7487
  %7714 = vmatmul.f32.gmra.mxu0 %v7270
  %v7715 = vpop.f32.mrf.mxu0
  %v7716 = vadd.f32 %v7696, %v7715
  %7717 = vdwg.mxu0
  %7718 = vmatpush.msra.mxu0 %v7518
  %7719 = vmatpush.msra.mxu0 %v7517
  %7720 = vmatpush.msra.mxu0 %v7516
  %7721 = vmatpush.msra.mxu0 %v7515
  %7722 = vmatpush.msra.mxu0 %v7514
  %7723 = vmatpush.msra.mxu0 %v7513
  %7724 = vmatpush.msra.mxu0 %v7512
  %7725 = vmatpush.msra.mxu0 %v7511
  %7726 = vmatpush.msra.mxu0 %v7510
  %7727 = vmatpush.msra.mxu0 %v7509
  %7728 = vmatpush.msra.mxu0 %v7508
  %7729 = vmatpush.msra.mxu0 %v7507
  %7730 = vmatpush.msra.mxu0 %v7506
  %7731 = vmatpush.msra.mxu0 %v7505
  %7732 = vmatpush.msra.mxu0 %v7504
  %7733 = vmatpush.msra.mxu0 %v7503
  %7734 = vmatmul.f32.gmra.mxu0 %v7277
  %v7735 = vpop.f32.mrf.mxu0
  %v7736 = vadd.f32 %v7716, %v7735
  %7737 = vdwg.mxu0
  %7738 = vmatpush.msra.mxu0 %v7534
  %7739 = vmatpush.msra.mxu0 %v7533
  %7740 = vmatpush.msra.mxu0 %v7532
  %7741 = vmatpush.msra.mxu0 %v7531
  %7742 = vmatpush.msra.mxu0 %v7530
  %7743 = vmatpush.msra.mxu0 %v7529
  %7744 = vmatpush.msra.mxu0 %v7528
  %7745 = vmatpush.msra.mxu0 %v7527
  %7746 = vmatpush.msra.mxu0 %v7526
  %7747 = vmatpush.msra.mxu0 %v7525
  %7748 = vmatpush.msra.mxu0 %v7524
  %7749 = vmatpush.msra.mxu0 %v7523
  %7750 = vmatpush.msra.mxu0 %v7522
  %7751 = vmatpush.msra.mxu0 %v7521
  %7752 = vmatpush.msra.mxu0 %v7520
  %7753 = vmatpush.msra.mxu0 %v7519
  %7754 = vmatmul.f32.gmra.mxu0 %v7284
  %v7755 = vpop.f32.mrf.mxu0
  %v7756 = vadd.f32 %v7736, %v7755
  %7757 = vdwg.mxu0
  %7758 = vmatpush.msra.mxu0 %v7550
  %7759 = vmatpush.msra.mxu0 %v7549
  %7760 = vmatpush.msra.mxu0 %v7548
  %7761 = vmatpush.msra.mxu0 %v7547
  %7762 = vmatpush.msra.mxu0 %v7546
  %7763 = vmatpush.msra.mxu0 %v7545
  %7764 = vmatpush.msra.mxu0 %v7544
  %7765 = vmatpush.msra.mxu0 %v7543
  %7766 = vmatpush.msra.mxu0 %v7542
  %7767 = vmatpush.msra.mxu0 %v7541
  %7768 = vmatpush.msra.mxu0 %v7540
  %7769 = vmatpush.msra.mxu0 %v7539
  %7770 = vmatpush.msra.mxu0 %v7538
  %7771 = vmatpush.msra.mxu0 %v7537
  %7772 = vmatpush.msra.mxu0 %v7536
  %7773 = vmatpush.msra.mxu0 %v7535
  %7774 = vmatmul.f32.gmra.mxu0 %v7291
  %v7775 = vpop.f32.mrf.mxu0
  %v7776 = vadd.f32 %v7756, %v7775
  %7777 = vdwg.mxu0
  %7778 = vmatpush.msra.mxu0 %v7566
  %7779 = vmatpush.msra.mxu0 %v7565
  %7780 = vmatpush.msra.mxu0 %v7564
  %7781 = vmatpush.msra.mxu0 %v7563
  %7782 = vmatpush.msra.mxu0 %v7562
  %7783 = vmatpush.msra.mxu0 %v7561
  %7784 = vmatpush.msra.mxu0 %v7560
  %7785 = vmatpush.msra.mxu0 %v7559
  %7786 = vmatpush.msra.mxu0 %v7558
  %7787 = vmatpush.msra.mxu0 %v7557
  %7788 = vmatpush.msra.mxu0 %v7556
  %7789 = vmatpush.msra.mxu0 %v7555
  %7790 = vmatpush.msra.mxu0 %v7554
  %7791 = vmatpush.msra.mxu0 %v7553
  %7792 = vmatpush.msra.mxu0 %v7552
  %7793 = vmatpush.msra.mxu0 %v7551
  %7794 = vmatmul.f32.gmra.mxu0 %v7298
  %v7795 = vpop.f32.mrf.mxu0
  %v7796 = vadd.f32 %v7776, %v7795
  %7797 = vdwg.mxu0
  %7798 = vmatpush.msra.mxu0 %v7582
  %7799 = vmatpush.msra.mxu0 %v7581
  %7800 = vmatpush.msra.mxu0 %v7580
  %7801 = vmatpush.msra.mxu0 %v7579
  %7802 = vmatpush.msra.mxu0 %v7578
  %7803 = vmatpush.msra.mxu0 %v7577
  %7804 = vmatpush.msra.mxu0 %v7576
  %7805 = vmatpush.msra.mxu0 %v7575
  %7806 = vmatpush.msra.mxu0 %v7574
  %7807 = vmatpush.msra.mxu0 %v7573
  %7808 = vmatpush.msra.mxu0 %v7572
  %7809 = vmatpush.msra.mxu0 %v7571
  %7810 = vmatpush.msra.mxu0 %v7570
  %7811 = vmatpush.msra.mxu0 %v7569
  %7812 = vmatpush.msra.mxu0 %v7568
  %7813 = vmatpush.msra.mxu0 %v7567
  %7814 = vmatmul.f32.gmra.mxu0 %v7305
  %v7815 = vpop.f32.mrf.mxu0
  %v7816 = vadd.f32 %v7796, %v7815
  %7817 = vdwg.mxu0
  %7818 = vmatpush.msra.mxu0 %v7598
  %7819 = vmatpush.msra.mxu0 %v7597
  %7820 = vmatpush.msra.mxu0 %v7596
  %7821 = vmatpush.msra.mxu0 %v7595
  %7822 = vmatpush.msra.mxu0 %v7594
  %7823 = vmatpush.msra.mxu0 %v7593
  %7824 = vmatpush.msra.mxu0 %v7592
  %7825 = vmatpush.msra.mxu0 %v7591
  %7826 = vmatpush.msra.mxu0 %v7590
  %7827 = vmatpush.msra.mxu0 %v7589
  %7828 = vmatpush.msra.mxu0 %v7588
  %7829 = vmatpush.msra.mxu0 %v7587
  %7830 = vmatpush.msra.mxu0 %v7586
  %7831 = vmatpush.msra.mxu0 %v7585
  %7832 = vmatpush.msra.mxu0 %v7584
  %7833 = vmatpush.msra.mxu0 %v7583
  %7834 = vmatmul.f32.gmra.mxu0 %v7312
  %v7835 = vpop.f32.mrf.mxu0
  %v7836 = vadd.f32 %v7816, %v7835
  %7837 = vdwg.mxu0
  %7838 = vmatpush.msra.mxu0 %v7614
  %7839 = vmatpush.msra.mxu0 %v7613
  %7840 = vmatpush.msra.mxu0 %v7612
  %7841 = vmatpush.msra.mxu0 %v7611
  %7842 = vmatpush.msra.mxu0 %v7610
  %7843 = vmatpush.msra.mxu0 %v7609
  %7844 = vmatpush.msra.mxu0 %v7608
  %7845 = vmatpush.msra.mxu0 %v7607
  %7846 = vmatpush.msra.mxu0 %v7606
  %7847 = vmatpush.msra.mxu0 %v7605
  %7848 = vmatpush.msra.mxu0 %v7604
  %7849 = vmatpush.msra.mxu0 %v7603
  %7850 = vmatpush.msra.mxu0 %v7602
  %7851 = vmatpush.msra.mxu0 %v7601
  %7852 = vmatpush.msra.mxu0 %v7600
  %7853 = vmatpush.msra.mxu0 %v7599
  %7854 = vmatmul.f32.gmra.mxu0 %v7319
  %v7855 = vpop.f32.mrf.mxu0
  %v7856 = vadd.f32 %v7836, %v7855
  %7857 = vdwg.mxu0
  %7858 = vmatpush.msra.mxu0 %v7630
  %7859 = vmatpush.msra.mxu0 %v7629
  %7860 = vmatpush.msra.mxu0 %v7628
  %7861 = vmatpush.msra.mxu0 %v7627
  %7862 = vmatpush.msra.mxu0 %v7626
  %7863 = vmatpush.msra.mxu0 %v7625
  %7864 = vmatpush.msra.mxu0 %v7624
  %7865 = vmatpush.msra.mxu0 %v7623
  %7866 = vmatpush.msra.mxu0 %v7622
  %7867 = vmatpush.msra.mxu0 %v7621
  %7868 = vmatpush.msra.mxu0 %v7620
  %7869 = vmatpush.msra.mxu0 %v7619
  %7870 = vmatpush.msra.mxu0 %v7618
  %7871 = vmatpush.msra.mxu0 %v7617
  %7872 = vmatpush.msra.mxu0 %v7616
  %7873 = vmatpush.msra.mxu0 %v7615
  %7874 = vmatmul.f32.gmra.mxu0 %v7326
  %v7875 = vpop.f32.mrf.mxu0
  %v7876 = vadd.f32 %v7856, %v7875
  %7877 = vdwg.mxu0
  %7878 = vmatpush.msra.mxu0 0.0
  %7879 = vmatpush.msra.mxu0 0.0
  %7880 = vmatpush.msra.mxu0 0.0
  %7881 = vmatpush.msra.mxu0 0.0
  %7882 = vmatpush.msra.mxu0 0.0
  %7883 = vmatpush.msra.mxu0 0.0
  %7884 = vmatpush.msra.mxu0 0.0
  %7885 = vmatpush.msra.mxu0 0.0
  %7886 = vmatpush.msra.mxu0 0.0
  %7887 = vmatpush.msra.mxu0 0.0
  %7888 = vmatpush.msra.mxu0 0.0
  %7889 = vmatpush.msra.mxu0 0.0
  %7890 = vmatpush.msra.mxu0 %v7634
  %7891 = vmatpush.msra.mxu0 %v7633
  %7892 = vmatpush.msra.mxu0 %v7632
  %7893 = vmatpush.msra.mxu0 %v7631
  %7894 = vmatmul.f32.gmra.mxu0 %v7636
  %v7895 = vpop.f32.mrf.mxu0
  %v7896 = vadd.f32 %v7876, %v7895
  %7897 = vdwg.mxu0
  %v7899 = vsel %vm1006, %v7438, 0
  %7901 = vmatpush.msra.mxu0 %v7454
  %7902 = vmatpush.msra.mxu0 %v7453
  %7903 = vmatpush.msra.mxu0 %v7452
  %7904 = vmatpush.msra.mxu0 %v7451
  %7905 = vmatpush.msra.mxu0 %v7450
  %7906 = vmatpush.msra.mxu0 %v7449
  %7907 = vmatpush.msra.mxu0 %v7448
  %7908 = vmatpush.msra.mxu0 %v7447
  %7909 = vmatpush.msra.mxu0 %v7446
  %7910 = vmatpush.msra.mxu0 %v7445
  %7911 = vmatpush.msra.mxu0 %v7444
  %7912 = vmatpush.msra.mxu0 %v7443
  %7913 = vmatpush.msra.mxu0 %v7442
  %7914 = vmatpush.msra.mxu0 %v7441
  %7915 = vmatpush.msra.mxu0 %v7440
  %7916 = vmatpush.msra.mxu0 %v7439
  %7917 = vmatmul.f32.gmra.mxu0 %v7354
  %v7918 = vpop.f32.mrf.mxu0
  %v7919 = vadd.f32 0.0, %v7918
  %7920 = vdwg.mxu0
  %7921 = vmatpush.msra.mxu0 %v7470
  %7922 = vmatpush.msra.mxu0 %v7469
  %7923 = vmatpush.msra.mxu0 %v7468
  %7924 = vmatpush.msra.mxu0 %v7467
  %7925 = vmatpush.msra.mxu0 %v7466
  %7926 = vmatpush.msra.mxu0 %v7465
  %7927 = vmatpush.msra.mxu0 %v7464
  %7928 = vmatpush.msra.mxu0 %v7463
  %7929 = vmatpush.msra.mxu0 %v7462
  %7930 = vmatpush.msra.mxu0 %v7461
  %7931 = vmatpush.msra.mxu0 %v7460
  %7932 = vmatpush.msra.mxu0 %v7459
  %7933 = vmatpush.msra.mxu0 %v7458
  %7934 = vmatpush.msra.mxu0 %v7457
  %7935 = vmatpush.msra.mxu0 %v7456
  %7936 = vmatpush.msra.mxu0 %v7455
  %7937 = vmatmul.f32.gmra.mxu0 %v7361
  %v7938 = vpop.f32.mrf.mxu0
  %v7939 = vadd.f32 %v7919, %v7938
  %7940 = vdwg.mxu0
  %7941 = vmatpush.msra.mxu0 %v7486
  %7942 = vmatpush.msra.mxu0 %v7485
  %7943 = vmatpush.msra.mxu0 %v7484
  %7944 = vmatpush.msra.mxu0 %v7483
  %7945 = vmatpush.msra.mxu0 %v7482
  %7946 = vmatpush.msra.mxu0 %v7481
  %7947 = vmatpush.msra.mxu0 %v7480
  %7948 = vmatpush.msra.mxu0 %v7479
  %7949 = vmatpush.msra.mxu0 %v7478
  %7950 = vmatpush.msra.mxu0 %v7477
  %7951 = vmatpush.msra.mxu0 %v7476
  %7952 = vmatpush.msra.mxu0 %v7475
  %7953 = vmatpush.msra.mxu0 %v7474
  %7954 = vmatpush.msra.mxu0 %v7473
  %7955 = vmatpush.msra.mxu0 %v7472
  %7956 = vmatpush.msra.mxu0 %v7471
  %7957 = vmatmul.f32.gmra.mxu0 %v7368
  %v7958 = vpop.f32.mrf.mxu0
  %v7959 = vadd.f32 %v7939, %v7958
  %7960 = vdwg.mxu0
  %7961 = vmatpush.msra.mxu0 %v7502
  %7962 = vmatpush.msra.mxu0 %v7501
  %7963 = vmatpush.msra.mxu0 %v7500
  %7964 = vmatpush.msra.mxu0 %v7499
  %7965 = vmatpush.msra.mxu0 %v7498
  %7966 = vmatpush.msra.mxu0 %v7497
  %7967 = vmatpush.msra.mxu0 %v7496
  %7968 = vmatpush.msra.mxu0 %v7495
  %7969 = vmatpush.msra.mxu0 %v7494
  %7970 = vmatpush.msra.mxu0 %v7493
  %7971 = vmatpush.msra.mxu0 %v7492
  %7972 = vmatpush.msra.mxu0 %v7491
  %7973 = vmatpush.msra.mxu0 %v7490
  %7974 = vmatpush.msra.mxu0 %v7489
  %7975 = vmatpush.msra.mxu0 %v7488
  %7976 = vmatpush.msra.mxu0 %v7487
  %7977 = vmatmul.f32.gmra.mxu0 %v7375
  %v7978 = vpop.f32.mrf.mxu0
  %v7979 = vadd.f32 %v7959, %v7978
  %7980 = vdwg.mxu0
  %7981 = vmatpush.msra.mxu0 %v7518
  %7982 = vmatpush.msra.mxu0 %v7517
  %7983 = vmatpush.msra.mxu0 %v7516
  %7984 = vmatpush.msra.mxu0 %v7515
  %7985 = vmatpush.msra.mxu0 %v7514
  %7986 = vmatpush.msra.mxu0 %v7513
  %7987 = vmatpush.msra.mxu0 %v7512
  %7988 = vmatpush.msra.mxu0 %v7511
  %7989 = vmatpush.msra.mxu0 %v7510
  %7990 = vmatpush.msra.mxu0 %v7509
  %7991 = vmatpush.msra.mxu0 %v7508
  %7992 = vmatpush.msra.mxu0 %v7507
  %7993 = vmatpush.msra.mxu0 %v7506
  %7994 = vmatpush.msra.mxu0 %v7505
  %7995 = vmatpush.msra.mxu0 %v7504
  %7996 = vmatpush.msra.mxu0 %v7503
  %7997 = vmatmul.f32.gmra.mxu0 %v7382
  %v7998 = vpop.f32.mrf.mxu0
  %v7999 = vadd.f32 %v7979, %v7998
  %8000 = vdwg.mxu0
  %8001 = vmatpush.msra.mxu0 %v7534
  %8002 = vmatpush.msra.mxu0 %v7533
  %8003 = vmatpush.msra.mxu0 %v7532
  %8004 = vmatpush.msra.mxu0 %v7531
  %8005 = vmatpush.msra.mxu0 %v7530
  %8006 = vmatpush.msra.mxu0 %v7529
  %8007 = vmatpush.msra.mxu0 %v7528
  %8008 = vmatpush.msra.mxu0 %v7527
  %8009 = vmatpush.msra.mxu0 %v7526
  %8010 = vmatpush.msra.mxu0 %v7525
  %8011 = vmatpush.msra.mxu0 %v7524
  %8012 = vmatpush.msra.mxu0 %v7523
  %8013 = vmatpush.msra.mxu0 %v7522
  %8014 = vmatpush.msra.mxu0 %v7521
  %8015 = vmatpush.msra.mxu0 %v7520
  %8016 = vmatpush.msra.mxu0 %v7519
  %8017 = vmatmul.f32.gmra.mxu0 %v7389
  %v8018 = vpop.f32.mrf.mxu0
  %v8019 = vadd.f32 %v7999, %v8018
  %8020 = vdwg.mxu0
  %8021 = vmatpush.msra.mxu0 %v7550
  %8022 = vmatpush.msra.mxu0 %v7549
  %8023 = vmatpush.msra.mxu0 %v7548
  %8024 = vmatpush.msra.mxu0 %v7547
  %8025 = vmatpush.msra.mxu0 %v7546
  %8026 = vmatpush.msra.mxu0 %v7545
  %8027 = vmatpush.msra.mxu0 %v7544
  %8028 = vmatpush.msra.mxu0 %v7543
  %8029 = vmatpush.msra.mxu0 %v7542
  %8030 = vmatpush.msra.mxu0 %v7541
  %8031 = vmatpush.msra.mxu0 %v7540
  %8032 = vmatpush.msra.mxu0 %v7539
  %8033 = vmatpush.msra.mxu0 %v7538
  %8034 = vmatpush.msra.mxu0 %v7537
  %8035 = vmatpush.msra.mxu0 %v7536
  %8036 = vmatpush.msra.mxu0 %v7535
  %8037 = vmatmul.f32.gmra.mxu0 %v7396
  %v8038 = vpop.f32.mrf.mxu0
  %v8039 = vadd.f32 %v8019, %v8038
  %8040 = vdwg.mxu0
  %8041 = vmatpush.msra.mxu0 %v7566
  %8042 = vmatpush.msra.mxu0 %v7565
  %8043 = vmatpush.msra.mxu0 %v7564
  %8044 = vmatpush.msra.mxu0 %v7563
  %8045 = vmatpush.msra.mxu0 %v7562
  %8046 = vmatpush.msra.mxu0 %v7561
  %8047 = vmatpush.msra.mxu0 %v7560
  %8048 = vmatpush.msra.mxu0 %v7559
  %8049 = vmatpush.msra.mxu0 %v7558
  %8050 = vmatpush.msra.mxu0 %v7557
  %8051 = vmatpush.msra.mxu0 %v7556
  %8052 = vmatpush.msra.mxu0 %v7555
  %8053 = vmatpush.msra.mxu0 %v7554
  %8054 = vmatpush.msra.mxu0 %v7553
  %8055 = vmatpush.msra.mxu0 %v7552
  %8056 = vmatpush.msra.mxu0 %v7551
  %8057 = vmatmul.f32.gmra.mxu0 %v7403
  %v8058 = vpop.f32.mrf.mxu0
  %v8059 = vadd.f32 %v8039, %v8058
  %8060 = vdwg.mxu0
  %8061 = vmatpush.msra.mxu0 %v7582
  %8062 = vmatpush.msra.mxu0 %v7581
  %8063 = vmatpush.msra.mxu0 %v7580
  %8064 = vmatpush.msra.mxu0 %v7579
  %8065 = vmatpush.msra.mxu0 %v7578
  %8066 = vmatpush.msra.mxu0 %v7577
  %8067 = vmatpush.msra.mxu0 %v7576
  %8068 = vmatpush.msra.mxu0 %v7575
  %8069 = vmatpush.msra.mxu0 %v7574
  %8070 = vmatpush.msra.mxu0 %v7573
  %8071 = vmatpush.msra.mxu0 %v7572
  %8072 = vmatpush.msra.mxu0 %v7571
  %8073 = vmatpush.msra.mxu0 %v7570
  %8074 = vmatpush.msra.mxu0 %v7569
  %8075 = vmatpush.msra.mxu0 %v7568
  %8076 = vmatpush.msra.mxu0 %v7567
  %8077 = vmatmul.f32.gmra.mxu0 %v7410
  %v8078 = vpop.f32.mrf.mxu0
  %v8079 = vadd.f32 %v8059, %v8078
  %8080 = vdwg.mxu0
  %8081 = vmatpush.msra.mxu0 %v7598
  %8082 = vmatpush.msra.mxu0 %v7597
  %8083 = vmatpush.msra.mxu0 %v7596
  %8084 = vmatpush.msra.mxu0 %v7595
  %8085 = vmatpush.msra.mxu0 %v7594
  %8086 = vmatpush.msra.mxu0 %v7593
  %8087 = vmatpush.msra.mxu0 %v7592
  %8088 = vmatpush.msra.mxu0 %v7591
  %8089 = vmatpush.msra.mxu0 %v7590
  %8090 = vmatpush.msra.mxu0 %v7589
  %8091 = vmatpush.msra.mxu0 %v7588
  %8092 = vmatpush.msra.mxu0 %v7587
  %8093 = vmatpush.msra.mxu0 %v7586
  %8094 = vmatpush.msra.mxu0 %v7585
  %8095 = vmatpush.msra.mxu0 %v7584
  %8096 = vmatpush.msra.mxu0 %v7583
  %8097 = vmatmul.f32.gmra.mxu0 %v7417
  %v8098 = vpop.f32.mrf.mxu0
  %v8099 = vadd.f32 %v8079, %v8098
  %8100 = vdwg.mxu0
  %8101 = vmatpush.msra.mxu0 %v7614
  %8102 = vmatpush.msra.mxu0 %v7613
  %8103 = vmatpush.msra.mxu0 %v7612
  %8104 = vmatpush.msra.mxu0 %v7611
  %8105 = vmatpush.msra.mxu0 %v7610
  %8106 = vmatpush.msra.mxu0 %v7609
  %8107 = vmatpush.msra.mxu0 %v7608
  %8108 = vmatpush.msra.mxu0 %v7607
  %8109 = vmatpush.msra.mxu0 %v7606
  %8110 = vmatpush.msra.mxu0 %v7605
  %8111 = vmatpush.msra.mxu0 %v7604
  %8112 = vmatpush.msra.mxu0 %v7603
  %8113 = vmatpush.msra.mxu0 %v7602
  %8114 = vmatpush.msra.mxu0 %v7601
  %8115 = vmatpush.msra.mxu0 %v7600
  %8116 = vmatpush.msra.mxu0 %v7599
  %8117 = vmatmul.f32.gmra.mxu0 %v7424
  %v8118 = vpop.f32.mrf.mxu0
  %v8119 = vadd.f32 %v8099, %v8118
  %8120 = vdwg.mxu0
  %8121 = vmatpush.msra.mxu0 %v7630
  %8122 = vmatpush.msra.mxu0 %v7629
  %8123 = vmatpush.msra.mxu0 %v7628
  %8124 = vmatpush.msra.mxu0 %v7627
  %8125 = vmatpush.msra.mxu0 %v7626
  %8126 = vmatpush.msra.mxu0 %v7625
  %8127 = vmatpush.msra.mxu0 %v7624
  %8128 = vmatpush.msra.mxu0 %v7623
  %8129 = vmatpush.msra.mxu0 %v7622
  %8130 = vmatpush.msra.mxu0 %v7621
  %8131 = vmatpush.msra.mxu0 %v7620
  %8132 = vmatpush.msra.mxu0 %v7619
  %8133 = vmatpush.msra.mxu0 %v7618
  %8134 = vmatpush.msra.mxu0 %v7617
  %8135 = vmatpush.msra.mxu0 %v7616
  %8136 = vmatpush.msra.mxu0 %v7615
  %8137 = vmatmul.f32.gmra.mxu0 %v7431
  %v8138 = vpop.f32.mrf.mxu0
  %v8139 = vadd.f32 %v8119, %v8138
  %8140 = vdwg.mxu0
  %8141 = vmatpush.msra.mxu0 0.0
  %8142 = vmatpush.msra.mxu0 0.0
  %8143 = vmatpush.msra.mxu0 0.0
  %8144 = vmatpush.msra.mxu0 0.0
  %8145 = vmatpush.msra.mxu0 0.0
  %8146 = vmatpush.msra.mxu0 0.0
  %8147 = vmatpush.msra.mxu0 0.0
  %8148 = vmatpush.msra.mxu0 0.0
  %8149 = vmatpush.msra.mxu0 0.0
  %8150 = vmatpush.msra.mxu0 0.0
  %8151 = vmatpush.msra.mxu0 0.0
  %8152 = vmatpush.msra.mxu0 0.0
  %8153 = vmatpush.msra.mxu0 %v7634
  %8154 = vmatpush.msra.mxu0 %v7633
  %8155 = vmatpush.msra.mxu0 %v7632
  %8156 = vmatpush.msra.mxu0 %v7631
  %8157 = vmatmul.f32.gmra.mxu0 %v7899
  %v8158 = vpop.f32.mrf.mxu0
  %v8159 = vadd.f32 %v8139, %v8158
  %8160 = vdwg.mxu0
  %v8161 = vmul.f32 %v7896, 0.0025510204
  %v8162 = vmul.f32 %v8159, 0.0025510204
  %v8163 = vmul.f32 %v8161, %v8161
  %v8164 = vsub.f32 %v8162, %v8163
  %v8165 = vld [vmem:[%s13] sm:$0x1]
  %v8166 = vadd.f32 %v8164, 1e-05
  %v8167 = vrsqrt.pop %v8166
  %v8168 = vmul.f32 %v8167, %v8166
  %v8169 = vmul.f32 %v8168, %v8167
  %v8170 = vmul.f32 0.5, %v8169
  %v8171 = vsub.f32 1.5, %v8170
  %v8172 = vmul.f32 %v8167, %v8171
  %vm8173 = vweird.f32 %v8166
  %vm8174 = vweird.f32 %v8167
  %vm8175 = vmor %vm8173, %vm8174
  %v8176 = vsel %vm8175, %v8167, %v8172
  %v8177 = vmul.f32 %v8165, %v8176
  %v8178 = vld [vmem:[%s14] sm:$0x1]
  %v8179 = vmul.f32 %v8161, %v8177
  %v8180 = vsub.f32 %v8178, %v8179
  %v8181 = vld [vmem:[%s12] sm:$0xff]
  %v8182 = vld [vmem:[%s12 + $0x8] sm:$0xff]
  %v8183 = vld [vmem:[%s12 + $0x10] sm:$0xff]
  %v8184 = vld [vmem:[%s12 + $0x18] sm:$0xff]
  %v8185 = vld [vmem:[%s12 + $0x20] sm:$0xff]
  %v8186 = vld [vmem:[%s12 + $0x28] sm:$0xff]
  %v8187 = vld [vmem:[%s12 + $0x30] sm:$0xff]
  %v8188 = vld [vmem:[%s12 + $0x38] sm:$0xff]
  %v8189 = vld [vmem:[%s12 + $0x40] sm:$0xff]
  %v8190 = vld [vmem:[%s12 + $0x48] sm:$0xff]
  %v8191 = vld [vmem:[%s12 + $0x50] sm:$0xff]
  %v8192 = vld [vmem:[%s12 + $0x58] sm:$0xff]
  %v8193 = vld [vmem:[%s12 + $0x60] sm:$0xff]
  %vm8194 = vcmask 64512
  %v8196 = vsel %vm8194, %v8177, 0
  %8198 = vmatpush.msra.mxu0 0.0
  %8199 = vmatpush.msra.mxu0 0.0
  %8200 = vmatpush.msra.mxu0 0.0
  %8201 = vmatpush.msra.mxu0 0.0
  %8202 = vmatpush.msra.mxu0 0.0
  %8203 = vmatpush.msra.mxu0 0.0
  %8204 = vmatpush.msra.mxu0 0.0
  %8205 = vmatpush.msra.mxu0 0.0
  %8206 = vmatpush.msra.mxu0 0.0
  %8207 = vmatpush.msra.mxu0 0.0
  %8208 = vmatpush.msra.mxu0 0.0
  %8209 = vmatpush.msra.mxu0 0.0
  %8210 = vmatpush.msra.mxu0 0.0
  %8211 = vmatpush.msra.mxu0 0.0
  %8212 = vmatpush.msra.mxu0 0.0
  %8213 = vmatpush.msra.mxu0 %v8181
  %8214 = vmatmul.f32.gmra.mxu0 %v8196
  %v8215 = vpop.f32.mrf.mxu0
  %v8216 = vadd.f32 0.0, %v8215
  %8217 = vdwg.mxu0
  %8218 = vmatpush.msra.mxu0 0.0
  %8219 = vmatpush.msra.mxu0 0.0
  %8220 = vmatpush.msra.mxu0 0.0
  %8221 = vmatpush.msra.mxu0 0.0
  %8222 = vmatpush.msra.mxu0 0.0
  %8223 = vmatpush.msra.mxu0 0.0
  %8224 = vmatpush.msra.mxu0 0.0
  %8225 = vmatpush.msra.mxu0 0.0
  %8226 = vmatpush.msra.mxu0 0.0
  %8227 = vmatpush.msra.mxu0 0.0
  %8228 = vmatpush.msra.mxu0 0.0
  %8229 = vmatpush.msra.mxu0 0.0
  %8230 = vmatpush.msra.mxu0 0.0
  %8231 = vmatpush.msra.mxu0 0.0
  %8232 = vmatpush.msra.mxu0 0.0
  %8233 = vmatpush.msra.mxu0 %v8182
  %8234 = vmatmul.f32.gmra.mxu0 %v8196
  %v8235 = vpop.f32.mrf.mxu0
  %v8236 = vadd.f32 0.0, %v8235
  %8237 = vdwg.mxu0
  %8238 = vmatpush.msra.mxu0 0.0
  %8239 = vmatpush.msra.mxu0 0.0
  %8240 = vmatpush.msra.mxu0 0.0
  %8241 = vmatpush.msra.mxu0 0.0
  %8242 = vmatpush.msra.mxu0 0.0
  %8243 = vmatpush.msra.mxu0 0.0
  %8244 = vmatpush.msra.mxu0 0.0
  %8245 = vmatpush.msra.mxu0 0.0
  %8246 = vmatpush.msra.mxu0 0.0
  %8247 = vmatpush.msra.mxu0 0.0
  %8248 = vmatpush.msra.mxu0 0.0
  %8249 = vmatpush.msra.mxu0 0.0
  %8250 = vmatpush.msra.mxu0 0.0
  %8251 = vmatpush.msra.mxu0 0.0
  %8252 = vmatpush.msra.mxu0 0.0
  %8253 = vmatpush.msra.mxu0 %v8183
  %8254 = vmatmul.f32.gmra.mxu0 %v8196
  %v8255 = vpop.f32.mrf.mxu0
  %v8256 = vadd.f32 0.0, %v8255
  %8257 = vdwg.mxu0
  %8258 = vmatpush.msra.mxu0 0.0
  %8259 = vmatpush.msra.mxu0 0.0
  %8260 = vmatpush.msra.mxu0 0.0
  %8261 = vmatpush.msra.mxu0 0.0
  %8262 = vmatpush.msra.mxu0 0.0
  %8263 = vmatpush.msra.mxu0 0.0
  %8264 = vmatpush.msra.mxu0 0.0
  %8265 = vmatpush.msra.mxu0 0.0
  %8266 = vmatpush.msra.mxu0 0.0
  %8267 = vmatpush.msra.mxu0 0.0
  %8268 = vmatpush.msra.mxu0 0.0
  %8269 = vmatpush.msra.mxu0 0.0
  %8270 = vmatpush.msra.mxu0 0.0
  %8271 = vmatpush.msra.mxu0 0.0
  %8272 = vmatpush.msra.mxu0 0.0
  %8273 = vmatpush.msra.mxu0 %v8184
  %8274 = vmatmul.f32.gmra.mxu0 %v8196
  %v8275 = vpop.f32.mrf.mxu0
  %v8276 = vadd.f32 0.0, %v8275
  %8277 = vdwg.mxu0
  %8278 = vmatpush.msra.mxu0 0.0
  %8279 = vmatpush.msra.mxu0 0.0
  %8280 = vmatpush.msra.mxu0 0.0
  %8281 = vmatpush.msra.mxu0 0.0
  %8282 = vmatpush.msra.mxu0 0.0
  %8283 = vmatpush.msra.mxu0 0.0
  %8284 = vmatpush.msra.mxu0 0.0
  %8285 = vmatpush.msra.mxu0 0.0
  %8286 = vmatpush.msra.mxu0 0.0
  %8287 = vmatpush.msra.mxu0 0.0
  %8288 = vmatpush.msra.mxu0 0.0
  %8289 = vmatpush.msra.mxu0 0.0
  %8290 = vmatpush.msra.mxu0 0.0
  %8291 = vmatpush.msra.mxu0 0.0
  %8292 = vmatpush.msra.mxu0 0.0
  %8293 = vmatpush.msra.mxu0 %v8185
  %8294 = vmatmul.f32.gmra.mxu0 %v8196
  %v8295 = vpop.f32.mrf.mxu0
  %v8296 = vadd.f32 0.0, %v8295
  %8297 = vdwg.mxu0
  %8298 = vmatpush.msra.mxu0 0.0
  %8299 = vmatpush.msra.mxu0 0.0
  %8300 = vmatpush.msra.mxu0 0.0
  %8301 = vmatpush.msra.mxu0 0.0
  %8302 = vmatpush.msra.mxu0 0.0
  %8303 = vmatpush.msra.mxu0 0.0
  %8304 = vmatpush.msra.mxu0 0.0
  %8305 = vmatpush.msra.mxu0 0.0
  %8306 = vmatpush.msra.mxu0 0.0
  %8307 = vmatpush.msra.mxu0 0.0
  %8308 = vmatpush.msra.mxu0 0.0
  %8309 = vmatpush.msra.mxu0 0.0
  %8310 = vmatpush.msra.mxu0 0.0
  %8311 = vmatpush.msra.mxu0 0.0
  %8312 = vmatpush.msra.mxu0 0.0
  %8313 = vmatpush.msra.mxu0 %v8186
  %8314 = vmatmul.f32.gmra.mxu0 %v8196
  %v8315 = vpop.f32.mrf.mxu0
  %v8316 = vadd.f32 0.0, %v8315
  %8317 = vdwg.mxu0
  %8318 = vmatpush.msra.mxu0 0.0
  %8319 = vmatpush.msra.mxu0 0.0
  %8320 = vmatpush.msra.mxu0 0.0
  %8321 = vmatpush.msra.mxu0 0.0
  %8322 = vmatpush.msra.mxu0 0.0
  %8323 = vmatpush.msra.mxu0 0.0
  %8324 = vmatpush.msra.mxu0 0.0
  %8325 = vmatpush.msra.mxu0 0.0
  %8326 = vmatpush.msra.mxu0 0.0
  %8327 = vmatpush.msra.mxu0 0.0
  %8328 = vmatpush.msra.mxu0 0.0
  %8329 = vmatpush.msra.mxu0 0.0
  %8330 = vmatpush.msra.mxu0 0.0
  %8331 = vmatpush.msra.mxu0 0.0
  %8332 = vmatpush.msra.mxu0 0.0
  %8333 = vmatpush.msra.mxu0 %v8187
  %8334 = vmatmul.f32.gmra.mxu0 %v8196
  %v8335 = vpop.f32.mrf.mxu0
  %v8336 = vadd.f32 0.0, %v8335
  %8337 = vdwg.mxu0
  %8338 = vmatpush.msra.mxu0 0.0
  %8339 = vmatpush.msra.mxu0 0.0
  %8340 = vmatpush.msra.mxu0 0.0
  %8341 = vmatpush.msra.mxu0 0.0
  %8342 = vmatpush.msra.mxu0 0.0
  %8343 = vmatpush.msra.mxu0 0.0
  %8344 = vmatpush.msra.mxu0 0.0
  %8345 = vmatpush.msra.mxu0 0.0
  %8346 = vmatpush.msra.mxu0 0.0
  %8347 = vmatpush.msra.mxu0 0.0
  %8348 = vmatpush.msra.mxu0 0.0
  %8349 = vmatpush.msra.mxu0 0.0
  %8350 = vmatpush.msra.mxu0 0.0
  %8351 = vmatpush.msra.mxu0 0.0
  %8352 = vmatpush.msra.mxu0 0.0
  %8353 = vmatpush.msra.mxu0 %v8188
  %8354 = vmatmul.f32.gmra.mxu0 %v8196
  %v8355 = vpop.f32.mrf.mxu0
  %v8356 = vadd.f32 0.0, %v8355
  %8357 = vdwg.mxu0
  %8358 = vmatpush.msra.mxu0 0.0
  %8359 = vmatpush.msra.mxu0 0.0
  %8360 = vmatpush.msra.mxu0 0.0
  %8361 = vmatpush.msra.mxu0 0.0
  %8362 = vmatpush.msra.mxu0 0.0
  %8363 = vmatpush.msra.mxu0 0.0
  %8364 = vmatpush.msra.mxu0 0.0
  %8365 = vmatpush.msra.mxu0 0.0
  %8366 = vmatpush.msra.mxu0 0.0
  %8367 = vmatpush.msra.mxu0 0.0
  %8368 = vmatpush.msra.mxu0 0.0
  %8369 = vmatpush.msra.mxu0 0.0
  %8370 = vmatpush.msra.mxu0 0.0
  %8371 = vmatpush.msra.mxu0 0.0
  %8372 = vmatpush.msra.mxu0 0.0
  %8373 = vmatpush.msra.mxu0 %v8189
  %8374 = vmatmul.f32.gmra.mxu0 %v8196
  %v8375 = vpop.f32.mrf.mxu0
  %v8376 = vadd.f32 0.0, %v8375
  %8377 = vdwg.mxu0
  %8378 = vmatpush.msra.mxu0 0.0
  %8379 = vmatpush.msra.mxu0 0.0
  %8380 = vmatpush.msra.mxu0 0.0
  %8381 = vmatpush.msra.mxu0 0.0
  %8382 = vmatpush.msra.mxu0 0.0
  %8383 = vmatpush.msra.mxu0 0.0
  %8384 = vmatpush.msra.mxu0 0.0
  %8385 = vmatpush.msra.mxu0 0.0
  %8386 = vmatpush.msra.mxu0 0.0
  %8387 = vmatpush.msra.mxu0 0.0
  %8388 = vmatpush.msra.mxu0 0.0
  %8389 = vmatpush.msra.mxu0 0.0
  %8390 = vmatpush.msra.mxu0 0.0
  %8391 = vmatpush.msra.mxu0 0.0
  %8392 = vmatpush.msra.mxu0 0.0
  %8393 = vmatpush.msra.mxu0 %v8190
  %8394 = vmatmul.f32.gmra.mxu0 %v8196
  %v8395 = vpop.f32.mrf.mxu0
  %v8396 = vadd.f32 0.0, %v8395
  %8397 = vdwg.mxu0
  %8398 = vmatpush.msra.mxu0 0.0
  %8399 = vmatpush.msra.mxu0 0.0
  %8400 = vmatpush.msra.mxu0 0.0
  %8401 = vmatpush.msra.mxu0 0.0
  %8402 = vmatpush.msra.mxu0 0.0
  %8403 = vmatpush.msra.mxu0 0.0
  %8404 = vmatpush.msra.mxu0 0.0
  %8405 = vmatpush.msra.mxu0 0.0
  %8406 = vmatpush.msra.mxu0 0.0
  %8407 = vmatpush.msra.mxu0 0.0
  %8408 = vmatpush.msra.mxu0 0.0
  %8409 = vmatpush.msra.mxu0 0.0
  %8410 = vmatpush.msra.mxu0 0.0
  %8411 = vmatpush.msra.mxu0 0.0
  %8412 = vmatpush.msra.mxu0 0.0
  %8413 = vmatpush.msra.mxu0 %v8191
  %8414 = vmatmul.f32.gmra.mxu0 %v8196
  %v8415 = vpop.f32.mrf.mxu0
  %v8416 = vadd.f32 0.0, %v8415
  %8417 = vdwg.mxu0
  %8418 = vmatpush.msra.mxu0 0.0
  %8419 = vmatpush.msra.mxu0 0.0
  %8420 = vmatpush.msra.mxu0 0.0
  %8421 = vmatpush.msra.mxu0 0.0
  %8422 = vmatpush.msra.mxu0 0.0
  %8423 = vmatpush.msra.mxu0 0.0
  %8424 = vmatpush.msra.mxu0 0.0
  %8425 = vmatpush.msra.mxu0 0.0
  %8426 = vmatpush.msra.mxu0 0.0
  %8427 = vmatpush.msra.mxu0 0.0
  %8428 = vmatpush.msra.mxu0 0.0
  %8429 = vmatpush.msra.mxu0 0.0
  %8430 = vmatpush.msra.mxu0 0.0
  %8431 = vmatpush.msra.mxu0 0.0
  %8432 = vmatpush.msra.mxu0 0.0
  %8433 = vmatpush.msra.mxu0 %v8192
  %8434 = vmatmul.f32.gmra.mxu0 %v8196
  %v8435 = vpop.f32.mrf.mxu0
  %v8436 = vadd.f32 0.0, %v8435
  %8437 = vdwg.mxu0
  %8438 = vmatpush.msra.mxu0 0.0
  %8439 = vmatpush.msra.mxu0 0.0
  %8440 = vmatpush.msra.mxu0 0.0
  %8441 = vmatpush.msra.mxu0 0.0
  %8442 = vmatpush.msra.mxu0 0.0
  %8443 = vmatpush.msra.mxu0 0.0
  %8444 = vmatpush.msra.mxu0 0.0
  %8445 = vmatpush.msra.mxu0 0.0
  %8446 = vmatpush.msra.mxu0 0.0
  %8447 = vmatpush.msra.mxu0 0.0
  %8448 = vmatpush.msra.mxu0 0.0
  %8449 = vmatpush.msra.mxu0 0.0
  %8450 = vmatpush.msra.mxu0 0.0
  %8451 = vmatpush.msra.mxu0 0.0
  %8452 = vmatpush.msra.mxu0 0.0
  %8453 = vmatpush.msra.mxu0 %v8193
  %8454 = vmatmul.f32.gmra.mxu0 %v8196
  %v8455 = vpop.f32.mrf.mxu0
  %v8456 = vadd.f32 0.0, %v8455
  %8457 = vdwg.mxu0
  %v8459 = vsel %vm8194, %v8180, 0
  %8461 = vmatpush.msra.mxu0 0.0
  %8462 = vmatpush.msra.mxu0 0.0
  %8463 = vmatpush.msra.mxu0 0.0
  %8464 = vmatpush.msra.mxu0 0.0
  %8465 = vmatpush.msra.mxu0 0.0
  %8466 = vmatpush.msra.mxu0 0.0
  %8467 = vmatpush.msra.mxu0 0.0
  %8468 = vmatpush.msra.mxu0 0.0
  %8469 = vmatpush.msra.mxu0 0.0
  %8470 = vmatpush.msra.mxu0 0.0
  %8471 = vmatpush.msra.mxu0 0.0
  %8472 = vmatpush.msra.mxu0 0.0
  %8473 = vmatpush.msra.mxu0 0.0
  %8474 = vmatpush.msra.mxu0 0.0
  %8475 = vmatpush.msra.mxu0 0.0
  %8476 = vmatpush.msra.mxu0 %v8181
  %8477 = vmatmul.f32.gmra.mxu0 %v8459
  %v8478 = vpop.f32.mrf.mxu0
  %v8479 = vadd.f32 0.0, %v8478
  %8480 = vdwg.mxu0
  %8481 = vmatpush.msra.mxu0 0.0
  %8482 = vmatpush.msra.mxu0 0.0
  %8483 = vmatpush.msra.mxu0 0.0
  %8484 = vmatpush.msra.mxu0 0.0
  %8485 = vmatpush.msra.mxu0 0.0
  %8486 = vmatpush.msra.mxu0 0.0
  %8487 = vmatpush.msra.mxu0 0.0
  %8488 = vmatpush.msra.mxu0 0.0
  %8489 = vmatpush.msra.mxu0 0.0
  %8490 = vmatpush.msra.mxu0 0.0
  %8491 = vmatpush.msra.mxu0 0.0
  %8492 = vmatpush.msra.mxu0 0.0
  %8493 = vmatpush.msra.mxu0 0.0
  %8494 = vmatpush.msra.mxu0 0.0
  %8495 = vmatpush.msra.mxu0 0.0
  %8496 = vmatpush.msra.mxu0 %v8182
  %8497 = vmatmul.f32.gmra.mxu0 %v8459
  %v8498 = vpop.f32.mrf.mxu0
  %v8499 = vadd.f32 0.0, %v8498
  %8500 = vdwg.mxu0
  %8501 = vmatpush.msra.mxu0 0.0
  %8502 = vmatpush.msra.mxu0 0.0
  %8503 = vmatpush.msra.mxu0 0.0
  %8504 = vmatpush.msra.mxu0 0.0
  %8505 = vmatpush.msra.mxu0 0.0
  %8506 = vmatpush.msra.mxu0 0.0
  %8507 = vmatpush.msra.mxu0 0.0
  %8508 = vmatpush.msra.mxu0 0.0
  %8509 = vmatpush.msra.mxu0 0.0
  %8510 = vmatpush.msra.mxu0 0.0
  %8511 = vmatpush.msra.mxu0 0.0
  %8512 = vmatpush.msra.mxu0 0.0
  %8513 = vmatpush.msra.mxu0 0.0
  %8514 = vmatpush.msra.mxu0 0.0
  %8515 = vmatpush.msra.mxu0 0.0
  %8516 = vmatpush.msra.mxu0 %v8183
  %8517 = vmatmul.f32.gmra.mxu0 %v8459
  %v8518 = vpop.f32.mrf.mxu0
  %v8519 = vadd.f32 0.0, %v8518
  %8520 = vdwg.mxu0
  %8521 = vmatpush.msra.mxu0 0.0
  %8522 = vmatpush.msra.mxu0 0.0
  %8523 = vmatpush.msra.mxu0 0.0
  %8524 = vmatpush.msra.mxu0 0.0
  %8525 = vmatpush.msra.mxu0 0.0
  %8526 = vmatpush.msra.mxu0 0.0
  %8527 = vmatpush.msra.mxu0 0.0
  %8528 = vmatpush.msra.mxu0 0.0
  %8529 = vmatpush.msra.mxu0 0.0
  %8530 = vmatpush.msra.mxu0 0.0
  %8531 = vmatpush.msra.mxu0 0.0
  %8532 = vmatpush.msra.mxu0 0.0
  %8533 = vmatpush.msra.mxu0 0.0
  %8534 = vmatpush.msra.mxu0 0.0
  %8535 = vmatpush.msra.mxu0 0.0
  %8536 = vmatpush.msra.mxu0 %v8184
  %8537 = vmatmul.f32.gmra.mxu0 %v8459
  %v8538 = vpop.f32.mrf.mxu0
  %v8539 = vadd.f32 0.0, %v8538
  %8540 = vdwg.mxu0
  %8541 = vmatpush.msra.mxu0 0.0
  %8542 = vmatpush.msra.mxu0 0.0
  %8543 = vmatpush.msra.mxu0 0.0
  %8544 = vmatpush.msra.mxu0 0.0
  %8545 = vmatpush.msra.mxu0 0.0
  %8546 = vmatpush.msra.mxu0 0.0
  %8547 = vmatpush.msra.mxu0 0.0
  %8548 = vmatpush.msra.mxu0 0.0
  %8549 = vmatpush.msra.mxu0 0.0
  %8550 = vmatpush.msra.mxu0 0.0
  %8551 = vmatpush.msra.mxu0 0.0
  %8552 = vmatpush.msra.mxu0 0.0
  %8553 = vmatpush.msra.mxu0 0.0
  %8554 = vmatpush.msra.mxu0 0.0
  %8555 = vmatpush.msra.mxu0 0.0
  %8556 = vmatpush.msra.mxu0 %v8185
  %8557 = vmatmul.f32.gmra.mxu0 %v8459
  %v8558 = vpop.f32.mrf.mxu0
  %v8559 = vadd.f32 0.0, %v8558
  %8560 = vdwg.mxu0
  %8561 = vmatpush.msra.mxu0 0.0
  %8562 = vmatpush.msra.mxu0 0.0
  %8563 = vmatpush.msra.mxu0 0.0
  %8564 = vmatpush.msra.mxu0 0.0
  %8565 = vmatpush.msra.mxu0 0.0
  %8566 = vmatpush.msra.mxu0 0.0
  %8567 = vmatpush.msra.mxu0 0.0
  %8568 = vmatpush.msra.mxu0 0.0
  %8569 = vmatpush.msra.mxu0 0.0
  %8570 = vmatpush.msra.mxu0 0.0
  %8571 = vmatpush.msra.mxu0 0.0
  %8572 = vmatpush.msra.mxu0 0.0
  %8573 = vmatpush.msra.mxu0 0.0
  %8574 = vmatpush.msra.mxu0 0.0
  %8575 = vmatpush.msra.mxu0 0.0
  %8576 = vmatpush.msra.mxu0 %v8186
  %8577 = vmatmul.f32.gmra.mxu0 %v8459
  %v8578 = vpop.f32.mrf.mxu0
  %v8579 = vadd.f32 0.0, %v8578
  %8580 = vdwg.mxu0
  %8581 = vmatpush.msra.mxu0 0.0
  %8582 = vmatpush.msra.mxu0 0.0
  %8583 = vmatpush.msra.mxu0 0.0
  %8584 = vmatpush.msra.mxu0 0.0
  %8585 = vmatpush.msra.mxu0 0.0
  %8586 = vmatpush.msra.mxu0 0.0
  %8587 = vmatpush.msra.mxu0 0.0
  %8588 = vmatpush.msra.mxu0 0.0
  %8589 = vmatpush.msra.mxu0 0.0
  %8590 = vmatpush.msra.mxu0 0.0
  %8591 = vmatpush.msra.mxu0 0.0
  %8592 = vmatpush.msra.mxu0 0.0
  %8593 = vmatpush.msra.mxu0 0.0
  %8594 = vmatpush.msra.mxu0 0.0
  %8595 = vmatpush.msra.mxu0 0.0
  %8596 = vmatpush.msra.mxu0 %v8187
  %8597 = vmatmul.f32.gmra.mxu0 %v8459
  %v8598 = vpop.f32.mrf.mxu0
  %v8599 = vadd.f32 0.0, %v8598
  %8600 = vdwg.mxu0
  %8601 = vmatpush.msra.mxu0 0.0
  %8602 = vmatpush.msra.mxu0 0.0
  %8603 = vmatpush.msra.mxu0 0.0
  %8604 = vmatpush.msra.mxu0 0.0
  %8605 = vmatpush.msra.mxu0 0.0
  %8606 = vmatpush.msra.mxu0 0.0
  %8607 = vmatpush.msra.mxu0 0.0
  %8608 = vmatpush.msra.mxu0 0.0
  %8609 = vmatpush.msra.mxu0 0.0
  %8610 = vmatpush.msra.mxu0 0.0
  %8611 = vmatpush.msra.mxu0 0.0
  %8612 = vmatpush.msra.mxu0 0.0
  %8613 = vmatpush.msra.mxu0 0.0
  %8614 = vmatpush.msra.mxu0 0.0
  %8615 = vmatpush.msra.mxu0 0.0
  %8616 = vmatpush.msra.mxu0 %v8188
  %8617 = vmatmul.f32.gmra.mxu0 %v8459
  %v8618 = vpop.f32.mrf.mxu0
  %v8619 = vadd.f32 0.0, %v8618
  %8620 = vdwg.mxu0
  %8621 = vmatpush.msra.mxu0 0.0
  %8622 = vmatpush.msra.mxu0 0.0
  %8623 = vmatpush.msra.mxu0 0.0
  %8624 = vmatpush.msra.mxu0 0.0
  %8625 = vmatpush.msra.mxu0 0.0
  %8626 = vmatpush.msra.mxu0 0.0
  %8627 = vmatpush.msra.mxu0 0.0
  %8628 = vmatpush.msra.mxu0 0.0
  %8629 = vmatpush.msra.mxu0 0.0
  %8630 = vmatpush.msra.mxu0 0.0
  %8631 = vmatpush.msra.mxu0 0.0
  %8632 = vmatpush.msra.mxu0 0.0
  %8633 = vmatpush.msra.mxu0 0.0
  %8634 = vmatpush.msra.mxu0 0.0
  %8635 = vmatpush.msra.mxu0 0.0
  %8636 = vmatpush.msra.mxu0 %v8189
  %8637 = vmatmul.f32.gmra.mxu0 %v8459
  %v8638 = vpop.f32.mrf.mxu0
  %v8639 = vadd.f32 0.0, %v8638
  %8640 = vdwg.mxu0
  %8641 = vmatpush.msra.mxu0 0.0
  %8642 = vmatpush.msra.mxu0 0.0
  %8643 = vmatpush.msra.mxu0 0.0
  %8644 = vmatpush.msra.mxu0 0.0
  %8645 = vmatpush.msra.mxu0 0.0
  %8646 = vmatpush.msra.mxu0 0.0
  %8647 = vmatpush.msra.mxu0 0.0
  %8648 = vmatpush.msra.mxu0 0.0
  %8649 = vmatpush.msra.mxu0 0.0
  %8650 = vmatpush.msra.mxu0 0.0
  %8651 = vmatpush.msra.mxu0 0.0
  %8652 = vmatpush.msra.mxu0 0.0
  %8653 = vmatpush.msra.mxu0 0.0
  %8654 = vmatpush.msra.mxu0 0.0
  %8655 = vmatpush.msra.mxu0 0.0
  %8656 = vmatpush.msra.mxu0 %v8190
  %8657 = vmatmul.f32.gmra.mxu0 %v8459
  %v8658 = vpop.f32.mrf.mxu0
  %v8659 = vadd.f32 0.0, %v8658
  %8660 = vdwg.mxu0
  %8661 = vmatpush.msra.mxu0 0.0
  %8662 = vmatpush.msra.mxu0 0.0
  %8663 = vmatpush.msra.mxu0 0.0
  %8664 = vmatpush.msra.mxu0 0.0
  %8665 = vmatpush.msra.mxu0 0.0
  %8666 = vmatpush.msra.mxu0 0.0
  %8667 = vmatpush.msra.mxu0 0.0
  %8668 = vmatpush.msra.mxu0 0.0
  %8669 = vmatpush.msra.mxu0 0.0
  %8670 = vmatpush.msra.mxu0 0.0
  %8671 = vmatpush.msra.mxu0 0.0
  %8672 = vmatpush.msra.mxu0 0.0
  %8673 = vmatpush.msra.mxu0 0.0
  %8674 = vmatpush.msra.mxu0 0.0
  %8675 = vmatpush.msra.mxu0 0.0
  %8676 = vmatpush.msra.mxu0 %v8191
  %8677 = vmatmul.f32.gmra.mxu0 %v8459
  %v8678 = vpop.f32.mrf.mxu0
  %v8679 = vadd.f32 0.0, %v8678
  %8680 = vdwg.mxu0
  %8681 = vmatpush.msra.mxu0 0.0
  %8682 = vmatpush.msra.mxu0 0.0
  %8683 = vmatpush.msra.mxu0 0.0
  %8684 = vmatpush.msra.mxu0 0.0
  %8685 = vmatpush.msra.mxu0 0.0
  %8686 = vmatpush.msra.mxu0 0.0
  %8687 = vmatpush.msra.mxu0 0.0
  %8688 = vmatpush.msra.mxu0 0.0
  %8689 = vmatpush.msra.mxu0 0.0
  %8690 = vmatpush.msra.mxu0 0.0
  %8691 = vmatpush.msra.mxu0 0.0
  %8692 = vmatpush.msra.mxu0 0.0
  %8693 = vmatpush.msra.mxu0 0.0
  %8694 = vmatpush.msra.mxu0 0.0
  %8695 = vmatpush.msra.mxu0 0.0
  %8696 = vmatpush.msra.mxu0 %v8192
  %8697 = vmatmul.f32.gmra.mxu0 %v8459
  %v8698 = vpop.f32.mrf.mxu0
  %v8699 = vadd.f32 0.0, %v8698
  %8700 = vdwg.mxu0
  %8701 = vmatpush.msra.mxu0 0.0
  %8702 = vmatpush.msra.mxu0 0.0
  %8703 = vmatpush.msra.mxu0 0.0
  %8704 = vmatpush.msra.mxu0 0.0
  %8705 = vmatpush.msra.mxu0 0.0
  %8706 = vmatpush.msra.mxu0 0.0
  %8707 = vmatpush.msra.mxu0 0.0
  %8708 = vmatpush.msra.mxu0 0.0
  %8709 = vmatpush.msra.mxu0 0.0
  %8710 = vmatpush.msra.mxu0 0.0
  %8711 = vmatpush.msra.mxu0 0.0
  %8712 = vmatpush.msra.mxu0 0.0
  %8713 = vmatpush.msra.mxu0 0.0
  %8714 = vmatpush.msra.mxu0 0.0
  %8715 = vmatpush.msra.mxu0 0.0
  %8716 = vmatpush.msra.mxu0 %v8193
  %8717 = vmatmul.f32.gmra.mxu0 %v8459
  %v8718 = vpop.f32.mrf.mxu0
  %v8719 = vadd.f32 0.0, %v8718
  %8720 = vdwg.mxu0
  %v8721 = vperm.slane %v8216, 0
  %v8722 = vperm.slane %v8236, 0
  %v8723 = vperm.slane %v8256, 0
  %v8724 = vperm.slane %v8276, 0
  %v8725 = vperm.slane %v8296, 0
  %v8726 = vperm.slane %v8316, 0
  %v8727 = vperm.slane %v8336, 0
  %v8728 = vperm.slane %v8356, 0
  %v8729 = vperm.slane %v8376, 0
  %v8730 = vperm.slane %v8396, 0
  %v8731 = vperm.slane %v8416, 0
  %v8732 = vperm.slane %v8436, 0
  %v8733 = vperm.slane %v8456, 0
  %v8734 = vmul.f32 %v6148, %v8721
  %v8735 = vmul.f32 %v6239, %v8722
  %v8736 = vmul.f32 %v6330, %v8723
  %v8737 = vmul.f32 %v6421, %v8724
  %v8738 = vmul.f32 %v6512, %v8725
  %v8739 = vmul.f32 %v6603, %v8726
  %v8740 = vmul.f32 %v6694, %v8727
  %v8741 = vmul.f32 %v6785, %v8728
  %v8742 = vmul.f32 %v6876, %v8729
  %v8743 = vmul.f32 %v6967, %v8730
  %v8744 = vmul.f32 %v7058, %v8731
  %v8745 = vmul.f32 %v7149, %v8732
  %v8746 = vmul.f32 %v7240, %v8733
  %v8747 = vperm.slane %v8479, 0
  %v8748 = vperm.slane %v8499, 0
  %v8749 = vperm.slane %v8519, 0
  %v8750 = vperm.slane %v8539, 0
  %v8751 = vperm.slane %v8559, 0
  %v8752 = vperm.slane %v8579, 0
  %v8753 = vperm.slane %v8599, 0
  %v8754 = vperm.slane %v8619, 0
  %v8755 = vperm.slane %v8639, 0
  %v8756 = vperm.slane %v8659, 0
  %v8757 = vperm.slane %v8679, 0
  %v8758 = vperm.slane %v8699, 0
  %v8759 = vperm.slane %v8719, 0
  %v8760 = vadd.f32 %v8734, %v8747
  %v8761 = vadd.f32 %v8735, %v8748
  %v8762 = vadd.f32 %v8736, %v8749
  %v8763 = vadd.f32 %v8737, %v8750
  %v8764 = vadd.f32 %v8738, %v8751
  %v8765 = vadd.f32 %v8739, %v8752
  %v8766 = vadd.f32 %v8740, %v8753
  %v8767 = vadd.f32 %v8741, %v8754
  %v8768 = vadd.f32 %v8742, %v8755
  %v8769 = vadd.f32 %v8743, %v8756
  %v8770 = vadd.f32 %v8744, %v8757
  %v8771 = vadd.f32 %v8745, %v8758
  %v8772 = vadd.f32 %v8746, %v8759
  %v8773 = vmax.f32 %v8760, 0.0
  %v8774 = vmax.f32 %v8761, 0.0
  %v8775 = vmax.f32 %v8762, 0.0
  %v8776 = vmax.f32 %v8763, 0.0
  %v8777 = vmax.f32 %v8764, 0.0
  %v8778 = vmax.f32 %v8765, 0.0
  %v8779 = vmax.f32 %v8766, 0.0
  %v8780 = vmax.f32 %v8767, 0.0
  %v8781 = vmax.f32 %v8768, 0.0
  %v8782 = vmax.f32 %v8769, 0.0
  %v8783 = vmax.f32 %v8770, 0.0
  %v8784 = vmax.f32 %v8771, 0.0
  %v8785 = vmax.f32 %v8772, 0.0
  %v8786 = vpack.c.bf16 %v8773, %v8773
  %v8787 = vpack.c.bf16 %v8774, %v8774
  %v8788 = vpack.c.bf16 %v8775, %v8775
  %v8789 = vpack.c.bf16 %v8776, %v8776
  %v8790 = vpack.c.bf16 %v8777, %v8777
  %v8791 = vpack.c.bf16 %v8778, %v8778
  %v8792 = vpack.c.bf16 %v8779, %v8779
  %v8793 = vpack.c.bf16 %v8780, %v8780
  %v8794 = vpack.c.bf16 %v8781, %v8781
  %v8795 = vpack.c.bf16 %v8782, %v8782
  %v8796 = vpack.c.bf16 %v8783, %v8783
  %v8797 = vpack.c.bf16 %v8784, %v8784
  %v8798 = vpack.c.bf16 %v8785, %v8785
  %v8799 = vld [vmem:[%s15] sm:$0xff]
  %v8800 = vld [vmem:[%s15 + $0x8] sm:$0xff]
  %v8801 = vld [vmem:[%s15 + $0x10] sm:$0xff]
  %v8802 = vld [vmem:[%s15 + $0x18] sm:$0xf]
  %v8803 = vld [vmem:[%s15 + $0x1c] sm:$0xff]
  %v8804 = vld [vmem:[%s15 + $0x24] sm:$0xff]
  %v8805 = vld [vmem:[%s15 + $0x2c] sm:$0xff]
  %v8806 = vld [vmem:[%s15 + $0x34] sm:$0xf]
  %v8807 = vld [vmem:[%s15 + $0x38] sm:$0xff]
  %v8808 = vld [vmem:[%s15 + $0x40] sm:$0xff]
  %v8809 = vld [vmem:[%s15 + $0x48] sm:$0xff]
  %v8810 = vld [vmem:[%s15 + $0x50] sm:$0xf]
  %v8811 = vld [vmem:[%s15 + $0x54] sm:$0xff]
  %v8812 = vld [vmem:[%s15 + $0x5c] sm:$0xff]
  %v8813 = vld [vmem:[%s15 + $0x64] sm:$0xff]
  %v8814 = vld [vmem:[%s15 + $0x6c] sm:$0xf]
  %v8815 = vld [vmem:[%s15 + $0x70] sm:$0xff]
  %v8816 = vld [vmem:[%s15 + $0x78] sm:$0xff]
  %v8817 = vld [vmem:[%s15 + $0x80] sm:$0xff]
  %v8818 = vld [vmem:[%s15 + $0x88] sm:$0xf]
  %v8819 = vld [vmem:[%s15 + $0x8c] sm:$0xff]
  %v8820 = vld [vmem:[%s15 + $0x94] sm:$0xff]
  %v8821 = vld [vmem:[%s15 + $0x9c] sm:$0xff]
  %v8822 = vld [vmem:[%s15 + $0xa4] sm:$0xf]
  %v8823 = vld [vmem:[%s15 + $0xa8] sm:$0xff]
  %v8824 = vld [vmem:[%s15 + $0xb0] sm:$0xff]
  %v8825 = vld [vmem:[%s15 + $0xb8] sm:$0xff]
  %v8826 = vld [vmem:[%s15 + $0xc0] sm:$0xf]
  %v8827 = vld [vmem:[%s15 + $0xc4] sm:$0xff]
  %v8828 = vld [vmem:[%s15 + $0xcc] sm:$0xff]
  %v8829 = vld [vmem:[%s15 + $0xd4] sm:$0xff]
  %v8830 = vld [vmem:[%s15 + $0xdc] sm:$0xf]
  %v8831 = vld [vmem:[%s15 + $0xe0] sm:$0xff]
  %v8832 = vld [vmem:[%s15 + $0xe8] sm:$0xff]
  %v8833 = vld [vmem:[%s15 + $0xf0] sm:$0xff]
  %v8834 = vld [vmem:[%s15 + $0xf8] sm:$0xf]
  %v8835 = vld [vmem:[%s15 + $0xfc] sm:$0xff]
  %v8836 = vld [vmem:[%s15 + $0x104] sm:$0xff]
  %v8837 = vld [vmem:[%s15 + $0x10c] sm:$0xff]
  %v8838 = vld [vmem:[%s15 + $0x114] sm:$0xf]
  %v8839 = vld [vmem:[%s15 + $0x118] sm:$0xff]
  %v8840 = vld [vmem:[%s15 + $0x120] sm:$0xff]
  %v8841 = vld [vmem:[%s15 + $0x128] sm:$0xff]
  %v8842 = vld [vmem:[%s15 + $0x130] sm:$0xf]
  %v8843 = vld [vmem:[%s15 + $0x134] sm:$0xff]
  %v8844 = vld [vmem:[%s15 + $0x13c] sm:$0xff]
  %v8845 = vld [vmem:[%s15 + $0x144] sm:$0xff]
  %v8846 = vld [vmem:[%s15 + $0x14c] sm:$0xf]
  %v8847 = vld [vmem:[%s15 + $0x150] sm:$0xff]
  %v8848 = vld [vmem:[%s15 + $0x158] sm:$0xff]
  %v8849 = vld [vmem:[%s15 + $0x160] sm:$0xff]
  %v8850 = vld [vmem:[%s15 + $0x168] sm:$0xf]
  %v8851 = vld [vmem:[%s15 + $0x16c] sm:$0xff]
  %v8852 = vld [vmem:[%s15 + $0x174] sm:$0xff]
  %v8853 = vld [vmem:[%s15 + $0x17c] sm:$0xff]
  %v8854 = vld [vmem:[%s15 + $0x184] sm:$0xf]
  %v8855 = vld [vmem:[%s15 + $0x188] sm:$0xff]
  %v8856 = vld [vmem:[%s15 + $0x190] sm:$0xff]
  %v8857 = vld [vmem:[%s15 + $0x198] sm:$0xff]
  %v8858 = vld [vmem:[%s15 + $0x1a0] sm:$0xf]
  %v8859 = vld [vmem:[%s15 + $0x1a4] sm:$0xff]
  %v8860 = vld [vmem:[%s15 + $0x1ac] sm:$0xff]
  %v8861 = vld [vmem:[%s15 + $0x1b4] sm:$0xff]
  %v8862 = vld [vmem:[%s15 + $0x1bc] sm:$0xf]
  %v8863 = vld [vmem:[%s15 + $0x1c0] sm:$0xff]
  %v8864 = vld [vmem:[%s15 + $0x1c8] sm:$0xff]
  %v8865 = vld [vmem:[%s15 + $0x1d0] sm:$0xff]
  %v8866 = vld [vmem:[%s15 + $0x1d8] sm:$0xf]
  %v8867 = vld [vmem:[%s15 + $0x1dc] sm:$0xff]
  %v8868 = vld [vmem:[%s15 + $0x1e4] sm:$0xff]
  %v8869 = vld [vmem:[%s15 + $0x1ec] sm:$0xff]
  %v8870 = vld [vmem:[%s15 + $0x1f4] sm:$0xf]
  %v8871 = vld [vmem:[%s15 + $0x1f8] sm:$0xff]
  %v8872 = vld [vmem:[%s15 + $0x200] sm:$0xff]
  %v8873 = vld [vmem:[%s15 + $0x208] sm:$0xff]
  %v8874 = vld [vmem:[%s15 + $0x210] sm:$0xf]
  %v8875 = vld [vmem:[%s15 + $0x214] sm:$0xff]
  %v8876 = vld [vmem:[%s15 + $0x21c] sm:$0xff]
  %v8877 = vld [vmem:[%s15 + $0x224] sm:$0xff]
  %v8878 = vld [vmem:[%s15 + $0x22c] sm:$0xf]
  %v8879 = vld [vmem:[%s15 + $0x230] sm:$0xff]
  %v8880 = vld [vmem:[%s15 + $0x238] sm:$0xff]
  %v8881 = vld [vmem:[%s15 + $0x240] sm:$0xff]
  %v8882 = vld [vmem:[%s15 + $0x248] sm:$0xf]
  %v8883 = vld [vmem:[%s15 + $0x24c] sm:$0xff]
  %v8884 = vld [vmem:[%s15 + $0x254] sm:$0xff]
  %v8885 = vld [vmem:[%s15 + $0x25c] sm:$0xff]
  %v8886 = vld [vmem:[%s15 + $0x264] sm:$0xf]
  %v8887 = vld [vmem:[%s15 + $0x268] sm:$0xff]
  %v8888 = vld [vmem:[%s15 + $0x270] sm:$0xff]
  %v8889 = vld [vmem:[%s15 + $0x278] sm:$0xff]
  %v8890 = vld [vmem:[%s15 + $0x280] sm:$0xf]
  %v8891 = vld [vmem:[%s15 + $0x284] sm:$0xff]
  %v8892 = vld [vmem:[%s15 + $0x28c] sm:$0xff]
  %v8893 = vld [vmem:[%s15 + $0x294] sm:$0xff]
  %v8894 = vld [vmem:[%s15 + $0x29c] sm:$0xf]
  %v8895 = vld [vmem:[%s15 + $0x2a0] sm:$0xff]
  %v8896 = vld [vmem:[%s15 + $0x2a8] sm:$0xff]
  %v8897 = vld [vmem:[%s15 + $0x2b0] sm:$0xff]
  %v8898 = vld [vmem:[%s15 + $0x2b8] sm:$0xf]
  %v8899 = vld [vmem:[%s15 + $0x2bc] sm:$0xff]
  %v8900 = vld [vmem:[%s15 + $0x2c4] sm:$0xff]
  %v8901 = vld [vmem:[%s15 + $0x2cc] sm:$0xff]
  %v8902 = vld [vmem:[%s15 + $0x2d4] sm:$0xf]
  %v8903 = vld [vmem:[%s15 + $0x2d8] sm:$0xff]
  %v8904 = vld [vmem:[%s15 + $0x2e0] sm:$0xff]
  %v8905 = vld [vmem:[%s15 + $0x2e8] sm:$0xff]
  %v8906 = vld [vmem:[%s15 + $0x2f0] sm:$0xf]
  %v8907 = vld [vmem:[%s15 + $0x2f4] sm:$0xff]
  %v8908 = vld [vmem:[%s15 + $0x2fc] sm:$0xff]
  %v8909 = vld [vmem:[%s15 + $0x304] sm:$0xff]
  %v8910 = vld [vmem:[%s15 + $0x30c] sm:$0xf]
  %v8911 = vld [vmem:[%s15 + $0x310] sm:$0xff]
  %v8912 = vld [vmem:[%s15 + $0x318] sm:$0xff]
  %v8913 = vld [vmem:[%s15 + $0x320] sm:$0xff]
  %v8914 = vld [vmem:[%s15 + $0x328] sm:$0xf]
  %v8915 = vld [vmem:[%s15 + $0x32c] sm:$0xff]
  %v8916 = vld [vmem:[%s15 + $0x334] sm:$0xff]
  %v8917 = vld [vmem:[%s15 + $0x33c] sm:$0xff]
  %v8918 = vld [vmem:[%s15 + $0x344] sm:$0xf]
  %v8919 = vld [vmem:[%s15 + $0x348] sm:$0xff]
  %v8920 = vld [vmem:[%s15 + $0x350] sm:$0xff]
  %v8921 = vld [vmem:[%s15 + $0x358] sm:$0xff]
  %v8922 = vld [vmem:[%s15 + $0x360] sm:$0xf]
  %v8923 = vld [vmem:[%s15 + $0x364] sm:$0xff]
  %v8924 = vld [vmem:[%s15 + $0x36c] sm:$0xff]
  %v8925 = vld [vmem:[%s15 + $0x374] sm:$0xff]
  %v8926 = vld [vmem:[%s15 + $0x37c] sm:$0xf]
  %v8927 = vld [vmem:[%s15 + $0x380] sm:$0xff]
  %v8928 = vld [vmem:[%s15 + $0x388] sm:$0xff]
  %v8929 = vld [vmem:[%s15 + $0x390] sm:$0xff]
  %v8930 = vld [vmem:[%s15 + $0x398] sm:$0xf]
  %v8931 = vld [vmem:[%s15 + $0x39c] sm:$0xff]
  %v8932 = vld [vmem:[%s15 + $0x3a4] sm:$0xff]
  %v8933 = vld [vmem:[%s15 + $0x3ac] sm:$0xff]
  %v8934 = vld [vmem:[%s15 + $0x3b4] sm:$0xf]
  %v8935 = vld [vmem:[%s15 + $0x3b8] sm:$0xff]
  %v8936 = vld [vmem:[%s15 + $0x3c0] sm:$0xff]
  %v8937 = vld [vmem:[%s15 + $0x3c8] sm:$0xff]
  %v8938 = vld [vmem:[%s15 + $0x3d0] sm:$0xf]
  %v8939 = vld [vmem:[%s15 + $0x3d4] sm:$0xff]
  %v8940 = vld [vmem:[%s15 + $0x3dc] sm:$0xff]
  %v8941 = vld [vmem:[%s15 + $0x3e4] sm:$0xff]
  %v8942 = vld [vmem:[%s15 + $0x3ec] sm:$0xf]
  %v8943 = vld [vmem:[%s15 + $0x3f0] sm:$0xff]
  %v8944 = vld [vmem:[%s15 + $0x3f8] sm:$0xff]
  %v8945 = vld [vmem:[%s15 + $0x400] sm:$0xff]
  %v8946 = vld [vmem:[%s15 + $0x408] sm:$0xf]
  %v8947 = vld [vmem:[%s15 + $0x40c] sm:$0xff]
  %v8948 = vld [vmem:[%s15 + $0x414] sm:$0xff]
  %v8949 = vld [vmem:[%s15 + $0x41c] sm:$0xff]
  %v8950 = vld [vmem:[%s15 + $0x424] sm:$0xf]
  %v8951 = vld [vmem:[%s15 + $0x428] sm:$0xff]
  %v8952 = vld [vmem:[%s15 + $0x430] sm:$0xff]
  %v8953 = vld [vmem:[%s15 + $0x438] sm:$0xff]
  %v8954 = vld [vmem:[%s15 + $0x440] sm:$0xf]
  %v8955 = vld [vmem:[%s15 + $0x444] sm:$0xff]
  %v8956 = vld [vmem:[%s15 + $0x44c] sm:$0xff]
  %v8957 = vld [vmem:[%s15 + $0x454] sm:$0xff]
  %v8958 = vld [vmem:[%s15 + $0x45c] sm:$0xf]
  %v8959 = vld [vmem:[%s15 + $0x460] sm:$0xff]
  %v8960 = vld [vmem:[%s15 + $0x468] sm:$0xff]
  %v8961 = vld [vmem:[%s15 + $0x470] sm:$0xff]
  %v8962 = vld [vmem:[%s15 + $0x478] sm:$0xf]
  %v8963 = vld [vmem:[%s15 + $0x47c] sm:$0xff]
  %v8964 = vld [vmem:[%s15 + $0x484] sm:$0xff]
  %v8965 = vld [vmem:[%s15 + $0x48c] sm:$0xff]
  %v8966 = vld [vmem:[%s15 + $0x494] sm:$0xf]
  %v8967 = vld [vmem:[%s15 + $0x498] sm:$0xff]
  %v8968 = vld [vmem:[%s15 + $0x4a0] sm:$0xff]
  %v8969 = vld [vmem:[%s15 + $0x4a8] sm:$0xff]
  %v8970 = vld [vmem:[%s15 + $0x4b0] sm:$0xf]
  %v8971 = vld [vmem:[%s15 + $0x4b4] sm:$0xff]
  %v8972 = vld [vmem:[%s15 + $0x4bc] sm:$0xff]
  %v8973 = vld [vmem:[%s15 + $0x4c4] sm:$0xff]
  %v8974 = vld [vmem:[%s15 + $0x4cc] sm:$0xf]
  %v8975 = vld [vmem:[%s15 + $0x4d0] sm:$0xff]
  %v8976 = vld [vmem:[%s15 + $0x4d8] sm:$0xff]
  %v8977 = vld [vmem:[%s15 + $0x4e0] sm:$0xff]
  %v8978 = vld [vmem:[%s15 + $0x4e8] sm:$0xf]
  %v8979 = vld [vmem:[%s15 + $0x4ec] sm:$0xff]
  %v8980 = vld [vmem:[%s15 + $0x4f4] sm:$0xff]
  %v8981 = vld [vmem:[%s15 + $0x4fc] sm:$0xff]
  %v8982 = vld [vmem:[%s15 + $0x504] sm:$0xf]
  %v8983 = vld [vmem:[%s15 + $0x508] sm:$0xff]
  %v8984 = vld [vmem:[%s15 + $0x510] sm:$0xff]
  %v8985 = vld [vmem:[%s15 + $0x518] sm:$0xff]
  %v8986 = vld [vmem:[%s15 + $0x520] sm:$0xf]
  %v8987 = vld [vmem:[%s15 + $0x524] sm:$0xff]
  %v8988 = vld [vmem:[%s15 + $0x52c] sm:$0xff]
  %v8989 = vld [vmem:[%s15 + $0x534] sm:$0xff]
  %v8990 = vld [vmem:[%s15 + $0x53c] sm:$0xf]
  %v8991 = vld [vmem:[%s15 + $0x540] sm:$0xff]
  %v8992 = vld [vmem:[%s15 + $0x548] sm:$0xff]
  %v8993 = vld [vmem:[%s15 + $0x550] sm:$0xff]
  %v8994 = vld [vmem:[%s15 + $0x558] sm:$0xf]
  %v8995 = vld [vmem:[%s15 + $0x55c] sm:$0xff]
  %v8996 = vld [vmem:[%s15 + $0x564] sm:$0xff]
  %v8997 = vld [vmem:[%s15 + $0x56c] sm:$0xff]
  %v8998 = vld [vmem:[%s15 + $0x574] sm:$0xf]
  %v8999 = vld [vmem:[%s15 + $0x578] sm:$0xff]
  %v9000 = vld [vmem:[%s15 + $0x580] sm:$0xff]
  %v9001 = vld [vmem:[%s15 + $0x588] sm:$0xff]
  %v9002 = vld [vmem:[%s15 + $0x590] sm:$0xf]
  %v9003 = vld [vmem:[%s15 + $0x594] sm:$0xff]
  %v9004 = vld [vmem:[%s15 + $0x59c] sm:$0xff]
  %v9005 = vld [vmem:[%s15 + $0x5a4] sm:$0xff]
  %v9006 = vld [vmem:[%s15 + $0x5ac] sm:$0xf]
  %v9007 = vld [vmem:[%s15 + $0x5b0] sm:$0xff]
  %v9008 = vld [vmem:[%s15 + $0x5b8] sm:$0xff]
  %v9009 = vld [vmem:[%s15 + $0x5c0] sm:$0xff]
  %v9010 = vld [vmem:[%s15 + $0x5c8] sm:$0xf]
  %v9011 = vld [vmem:[%s15 + $0x5cc] sm:$0xff]
  %v9012 = vld [vmem:[%s15 + $0x5d4] sm:$0xff]
  %v9013 = vld [vmem:[%s15 + $0x5dc] sm:$0xff]
  %v9014 = vld [vmem:[%s15 + $0x5e4] sm:$0xf]
  %v9015 = vld [vmem:[%s15 + $0x5e8] sm:$0xff]
  %v9016 = vld [vmem:[%s15 + $0x5f0] sm:$0xff]
  %v9017 = vld [vmem:[%s15 + $0x5f8] sm:$0xff]
  %v9018 = vld [vmem:[%s15 + $0x600] sm:$0xf]
  %v9019 = vld [vmem:[%s15 + $0x604] sm:$0xff]
  %v9020 = vld [vmem:[%s15 + $0x60c] sm:$0xff]
  %v9021 = vld [vmem:[%s15 + $0x614] sm:$0xff]
  %v9022 = vld [vmem:[%s15 + $0x61c] sm:$0xf]
  %v9023 = vld [vmem:[%s15 + $0x620] sm:$0xff]
  %v9024 = vld [vmem:[%s15 + $0x628] sm:$0xff]
  %v9025 = vld [vmem:[%s15 + $0x630] sm:$0xff]
  %v9026 = vld [vmem:[%s15 + $0x638] sm:$0xf]
  %v9027 = vld [vmem:[%s15 + $0x63c] sm:$0xff]
  %v9028 = vld [vmem:[%s15 + $0x644] sm:$0xff]
  %v9029 = vld [vmem:[%s15 + $0x64c] sm:$0xff]
  %v9030 = vld [vmem:[%s15 + $0x654] sm:$0xf]
  %v9031 = vld [vmem:[%s15 + $0x658] sm:$0xff]
  %v9032 = vld [vmem:[%s15 + $0x660] sm:$0xff]
  %v9033 = vld [vmem:[%s15 + $0x668] sm:$0xff]
  %v9034 = vld [vmem:[%s15 + $0x670] sm:$0xf]
  %v9035 = vld [vmem:[%s15 + $0x674] sm:$0xff]
  %v9036 = vld [vmem:[%s15 + $0x67c] sm:$0xff]
  %v9037 = vld [vmem:[%s15 + $0x684] sm:$0xff]
  %v9038 = vld [vmem:[%s15 + $0x68c] sm:$0xf]
  %v9039 = vld [vmem:[%s15 + $0x690] sm:$0xff]
  %v9040 = vld [vmem:[%s15 + $0x698] sm:$0xff]
  %v9041 = vld [vmem:[%s15 + $0x6a0] sm:$0xff]
  %v9042 = vld [vmem:[%s15 + $0x6a8] sm:$0xf]
  %v9043 = vld [vmem:[%s15 + $0x6ac] sm:$0xff]
  %v9044 = vld [vmem:[%s15 + $0x6b4] sm:$0xff]
  %v9045 = vld [vmem:[%s15 + $0x6bc] sm:$0xff]
  %v9046 = vld [vmem:[%s15 + $0x6c4] sm:$0xf]
  %v9047 = vld [vmem:[%s15 + $0x6c8] sm:$0xff]
  %v9048 = vld [vmem:[%s15 + $0x6d0] sm:$0xff]
  %v9049 = vld [vmem:[%s15 + $0x6d8] sm:$0xff]
  %v9050 = vld [vmem:[%s15 + $0x6e0] sm:$0xf]
  %v9051 = vld [vmem:[%s15 + $0x6e4] sm:$0xff]
  %v9052 = vld [vmem:[%s15 + $0x6ec] sm:$0xff]
  %v9053 = vld [vmem:[%s15 + $0x6f4] sm:$0xff]
  %v9054 = vld [vmem:[%s15 + $0x6fc] sm:$0xf]
  %v9055 = vld [vmem:[%s15 + $0x700] sm:$0xff]
  %v9056 = vld [vmem:[%s15 + $0x708] sm:$0xff]
  %v9057 = vld [vmem:[%s15 + $0x710] sm:$0xff]
  %v9058 = vld [vmem:[%s15 + $0x718] sm:$0xf]
  %v9059 = vld [vmem:[%s15 + $0x71c] sm:$0xff]
  %v9060 = vld [vmem:[%s15 + $0x724] sm:$0xff]
  %v9061 = vld [vmem:[%s15 + $0x72c] sm:$0xff]
  %v9062 = vld [vmem:[%s15 + $0x734] sm:$0xf]
  %v9063 = vld [vmem:[%s15 + $0x738] sm:$0xff]
  %v9064 = vld [vmem:[%s15 + $0x740] sm:$0xff]
  %v9065 = vld [vmem:[%s15 + $0x748] sm:$0xff]
  %v9066 = vld [vmem:[%s15 + $0x750] sm:$0xf]
  %v9067 = vld [vmem:[%s15 + $0x754] sm:$0xff]
  %v9068 = vld [vmem:[%s15 + $0x75c] sm:$0xff]
  %v9069 = vld [vmem:[%s15 + $0x764] sm:$0xff]
  %v9070 = vld [vmem:[%s15 + $0x76c] sm:$0xf]
  %v9071 = vld [vmem:[%s15 + $0x770] sm:$0xff]
  %v9072 = vld [vmem:[%s15 + $0x778] sm:$0xff]
  %v9073 = vld [vmem:[%s15 + $0x780] sm:$0xff]
  %v9074 = vld [vmem:[%s15 + $0x788] sm:$0xf]
  %v9075 = vld [vmem:[%s15 + $0x78c] sm:$0xff]
  %v9076 = vld [vmem:[%s15 + $0x794] sm:$0xff]
  %v9077 = vld [vmem:[%s15 + $0x79c] sm:$0xff]
  %v9078 = vld [vmem:[%s15 + $0x7a4] sm:$0xf]
  %v9079 = vld [vmem:[%s15 + $0x7a8] sm:$0xff]
  %v9080 = vld [vmem:[%s15 + $0x7b0] sm:$0xff]
  %v9081 = vld [vmem:[%s15 + $0x7b8] sm:$0xff]
  %v9082 = vld [vmem:[%s15 + $0x7c0] sm:$0xf]
  %v9083 = vld [vmem:[%s15 + $0x7c4] sm:$0xff]
  %v9084 = vld [vmem:[%s15 + $0x7cc] sm:$0xff]
  %v9085 = vld [vmem:[%s15 + $0x7d4] sm:$0xff]
  %v9086 = vld [vmem:[%s15 + $0x7dc] sm:$0xf]
  %v9087 = vld [vmem:[%s15 + $0x7e0] sm:$0xff]
  %v9088 = vld [vmem:[%s15 + $0x7e8] sm:$0xff]
  %v9089 = vld [vmem:[%s15 + $0x7f0] sm:$0xff]
  %v9090 = vld [vmem:[%s15 + $0x7f8] sm:$0xf]
  %v9091 = vld [vmem:[%s15 + $0x7fc] sm:$0xff]
  %v9092 = vld [vmem:[%s15 + $0x804] sm:$0xff]
  %v9093 = vld [vmem:[%s15 + $0x80c] sm:$0xff]
  %v9094 = vld [vmem:[%s15 + $0x814] sm:$0xf]
  %v9095 = vld [vmem:[%s15 + $0x818] sm:$0xff]
  %v9096 = vld [vmem:[%s15 + $0x820] sm:$0xff]
  %v9097 = vld [vmem:[%s15 + $0x828] sm:$0xff]
  %v9098 = vld [vmem:[%s15 + $0x830] sm:$0xf]
  %v9099 = vld [vmem:[%s15 + $0x834] sm:$0xff]
  %v9100 = vld [vmem:[%s15 + $0x83c] sm:$0xff]
  %v9101 = vld [vmem:[%s15 + $0x844] sm:$0xff]
  %v9102 = vld [vmem:[%s15 + $0x84c] sm:$0xf]
  %v9103 = vld [vmem:[%s15 + $0x850] sm:$0xff]
  %v9104 = vld [vmem:[%s15 + $0x858] sm:$0xff]
  %v9105 = vld [vmem:[%s15 + $0x860] sm:$0xff]
  %v9106 = vld [vmem:[%s15 + $0x868] sm:$0xf]
  %v9107 = vld [vmem:[%s15 + $0x86c] sm:$0xff]
  %v9108 = vld [vmem:[%s15 + $0x874] sm:$0xff]
  %v9109 = vld [vmem:[%s15 + $0x87c] sm:$0xff]
  %v9110 = vld [vmem:[%s15 + $0x884] sm:$0xf]
  %v9111 = vld [vmem:[%s15 + $0x888] sm:$0xff]
  %v9112 = vld [vmem:[%s15 + $0x890] sm:$0xff]
  %v9113 = vld [vmem:[%s15 + $0x898] sm:$0xff]
  %v9114 = vld [vmem:[%s15 + $0x8a0] sm:$0xf]
  %v9115 = vld [vmem:[%s15 + $0x8a4] sm:$0xff]
  %v9116 = vld [vmem:[%s15 + $0x8ac] sm:$0xff]
  %v9117 = vld [vmem:[%s15 + $0x8b4] sm:$0xff]
  %v9118 = vld [vmem:[%s15 + $0x8bc] sm:$0xf]
  %v9119 = vld [vmem:[%s15 + $0x8c0] sm:$0xff]
  %v9120 = vld [vmem:[%s15 + $0x8c8] sm:$0xff]
  %v9121 = vld [vmem:[%s15 + $0x8d0] sm:$0xff]
  %v9122 = vld [vmem:[%s15 + $0x8d8] sm:$0xf]
  %v9123 = vld [vmem:[%s15 + $0x8dc] sm:$0xff]
  %v9124 = vld [vmem:[%s15 + $0x8e4] sm:$0xff]
  %v9125 = vld [vmem:[%s15 + $0x8ec] sm:$0xff]
  %v9126 = vld [vmem:[%s15 + $0x8f4] sm:$0xf]
  %v9127 = vld [vmem:[%s15 + $0x8f8] sm:$0xff]
  %v9128 = vld [vmem:[%s15 + $0x900] sm:$0xff]
  %v9129 = vld [vmem:[%s15 + $0x908] sm:$0xff]
  %v9130 = vld [vmem:[%s15 + $0x910] sm:$0xf]
  %v9131 = vld [vmem:[%s15 + $0x914] sm:$0xff]
  %v9132 = vld [vmem:[%s15 + $0x91c] sm:$0xff]
  %v9133 = vld [vmem:[%s15 + $0x924] sm:$0xff]
  %v9134 = vld [vmem:[%s15 + $0x92c] sm:$0xf]
  %v9135 = vld [vmem:[%s15 + $0x930] sm:$0xff]
  %v9136 = vld [vmem:[%s15 + $0x938] sm:$0xff]
  %v9137 = vld [vmem:[%s15 + $0x940] sm:$0xff]
  %v9138 = vld [vmem:[%s15 + $0x948] sm:$0xf]
  %v9139 = vld [vmem:[%s15 + $0x94c] sm:$0xff]
  %v9140 = vld [vmem:[%s15 + $0x954] sm:$0xff]
  %v9141 = vld [vmem:[%s15 + $0x95c] sm:$0xff]
  %v9142 = vld [vmem:[%s15 + $0x964] sm:$0xf]
  %v9143 = vld [vmem:[%s15 + $0x968] sm:$0xff]
  %v9144 = vld [vmem:[%s15 + $0x970] sm:$0xff]
  %v9145 = vld [vmem:[%s15 + $0x978] sm:$0xff]
  %v9146 = vld [vmem:[%s15 + $0x980] sm:$0xf]
  %v9147 = vld [vmem:[%s15 + $0x984] sm:$0xff]
  %v9148 = vld [vmem:[%s15 + $0x98c] sm:$0xff]
  %v9149 = vld [vmem:[%s15 + $0x994] sm:$0xff]
  %v9150 = vld [vmem:[%s15 + $0x99c] sm:$0xf]
  %v9151 = vld [vmem:[%s15 + $0x9a0] sm:$0xff]
  %v9152 = vld [vmem:[%s15 + $0x9a8] sm:$0xff]
  %v9153 = vld [vmem:[%s15 + $0x9b0] sm:$0xff]
  %v9154 = vld [vmem:[%s15 + $0x9b8] sm:$0xf]
  %v9155 = vld [vmem:[%s15 + $0x9bc] sm:$0xff]
  %v9156 = vld [vmem:[%s15 + $0x9c4] sm:$0xff]
  %v9157 = vld [vmem:[%s15 + $0x9cc] sm:$0xff]
  %v9158 = vld [vmem:[%s15 + $0x9d4] sm:$0xf]
  %v9159 = vld [vmem:[%s15 + $0x9d8] sm:$0xff]
  %v9160 = vld [vmem:[%s15 + $0x9e0] sm:$0xff]
  %v9161 = vld [vmem:[%s15 + $0x9e8] sm:$0xff]
  %v9162 = vld [vmem:[%s15 + $0x9f0] sm:$0xf]
  %v9163 = vld [vmem:[%s15 + $0x9f4] sm:$0xff]
  %v9164 = vld [vmem:[%s15 + $0x9fc] sm:$0xff]
  %v9165 = vld [vmem:[%s15 + $0xa04] sm:$0xff]
  %v9166 = vld [vmem:[%s15 + $0xa0c] sm:$0xf]
  %v9167 = vld [vmem:[%s15 + $0xa10] sm:$0xff]
  %v9168 = vld [vmem:[%s15 + $0xa18] sm:$0xff]
  %v9169 = vld [vmem:[%s15 + $0xa20] sm:$0xff]
  %v9170 = vld [vmem:[%s15 + $0xa28] sm:$0xf]
  %v9171 = vld [vmem:[%s15 + $0xa2c] sm:$0xff]
  %v9172 = vld [vmem:[%s15 + $0xa34] sm:$0xff]
  %v9173 = vld [vmem:[%s15 + $0xa3c] sm:$0xff]
  %v9174 = vld [vmem:[%s15 + $0xa44] sm:$0xf]
  %v9175 = vld [vmem:[%s15 + $0xa48] sm:$0xff]
  %v9176 = vld [vmem:[%s15 + $0xa50] sm:$0xff]
  %v9177 = vld [vmem:[%s15 + $0xa58] sm:$0xff]
  %v9178 = vld [vmem:[%s15 + $0xa60] sm:$0xf]
  %v9179 = vld [vmem:[%s15 + $0xa64] sm:$0xff]
  %v9180 = vld [vmem:[%s15 + $0xa6c] sm:$0xff]
  %v9181 = vld [vmem:[%s15 + $0xa74] sm:$0xff]
  %v9182 = vld [vmem:[%s15 + $0xa7c] sm:$0xf]
  %v9183 = vld [vmem:[%s15 + $0xa80] sm:$0xff]
  %v9184 = vld [vmem:[%s15 + $0xa88] sm:$0xff]
  %v9185 = vld [vmem:[%s15 + $0xa90] sm:$0xff]
  %v9186 = vld [vmem:[%s15 + $0xa98] sm:$0xf]
  %v9187 = vld [vmem:[%s15 + $0xa9c] sm:$0xff]
  %v9188 = vld [vmem:[%s15 + $0xaa4] sm:$0xff]
  %v9189 = vld [vmem:[%s15 + $0xaac] sm:$0xff]
  %v9190 = vld [vmem:[%s15 + $0xab4] sm:$0xf]
  %v9191 = vld [vmem:[%s15 + $0xab8] sm:$0xff]
  %v9192 = vld [vmem:[%s15 + $0xac0] sm:$0xff]
  %v9193 = vld [vmem:[%s15 + $0xac8] sm:$0xff]
  %v9194 = vld [vmem:[%s15 + $0xad0] sm:$0xf]
  %v9195 = vld [vmem:[%s15 + $0xad4] sm:$0xff]
  %v9196 = vld [vmem:[%s15 + $0xadc] sm:$0xff]
  %v9197 = vld [vmem:[%s15 + $0xae4] sm:$0xff]
  %v9198 = vld [vmem:[%s15 + $0xaec] sm:$0xf]
  %v9199 = vld [vmem:[%s15 + $0xaf0] sm:$0xff]
  %v9200 = vld [vmem:[%s15 + $0xaf8] sm:$0xff]
  %v9201 = vld [vmem:[%s15 + $0xb00] sm:$0xff]
  %v9202 = vld [vmem:[%s15 + $0xb08] sm:$0xf]
  %v9203 = vld [vmem:[%s15 + $0xb0c] sm:$0xff]
  %v9204 = vld [vmem:[%s15 + $0xb14] sm:$0xff]
  %v9205 = vld [vmem:[%s15 + $0xb1c] sm:$0xff]
  %v9206 = vld [vmem:[%s15 + $0xb24] sm:$0xf]
  %v9207 = vld [vmem:[%s15 + $0xb28] sm:$0xff]
  %v9208 = vld [vmem:[%s15 + $0xb30] sm:$0xff]
  %v9209 = vld [vmem:[%s15 + $0xb38] sm:$0xff]
  %v9210 = vld [vmem:[%s15 + $0xb40] sm:$0xf]
  %v9211 = vld [vmem:[%s15 + $0xb44] sm:$0xff]
  %v9212 = vld [vmem:[%s15 + $0xb4c] sm:$0xff]
  %v9213 = vld [vmem:[%s15 + $0xb54] sm:$0xff]
  %v9214 = vld [vmem:[%s15 + $0xb5c] sm:$0xf]
  %v9215 = vld [vmem:[%s15 + $0xb60] sm:$0xff]
  %v9216 = vld [vmem:[%s15 + $0xb68] sm:$0xff]
  %v9217 = vld [vmem:[%s15 + $0xb70] sm:$0xff]
  %v9218 = vld [vmem:[%s15 + $0xb78] sm:$0xf]
  %v9219 = vld [vmem:[%s15 + $0xb7c] sm:$0xff]
  %v9220 = vld [vmem:[%s15 + $0xb84] sm:$0xff]
  %v9221 = vld [vmem:[%s15 + $0xb8c] sm:$0xff]
  %v9222 = vld [vmem:[%s15 + $0xb94] sm:$0xf]
  %v9223 = vld [vmem:[%s15 + $0xb98] sm:$0xff]
  %v9224 = vld [vmem:[%s15 + $0xba0] sm:$0xff]
  %v9225 = vld [vmem:[%s15 + $0xba8] sm:$0xff]
  %v9226 = vld [vmem:[%s15 + $0xbb0] sm:$0xf]
  %v9227 = vld [vmem:[%s15 + $0xbb4] sm:$0xff]
  %v9228 = vld [vmem:[%s15 + $0xbbc] sm:$0xff]
  %v9229 = vld [vmem:[%s15 + $0xbc4] sm:$0xff]
  %v9230 = vld [vmem:[%s15 + $0xbcc] sm:$0xf]
  %v9231 = vld [vmem:[%s15 + $0xbd0] sm:$0xff]
  %v9232 = vld [vmem:[%s15 + $0xbd8] sm:$0xff]
  %v9233 = vld [vmem:[%s15 + $0xbe0] sm:$0xff]
  %v9234 = vld [vmem:[%s15 + $0xbe8] sm:$0xf]
  %v9235 = vld [vmem:[%s15 + $0xbec] sm:$0xff]
  %v9236 = vld [vmem:[%s15 + $0xbf4] sm:$0xff]
  %v9237 = vld [vmem:[%s15 + $0xbfc] sm:$0xff]
  %v9238 = vld [vmem:[%s15 + $0xc04] sm:$0xf]
  %v9239 = vld [vmem:[%s15 + $0xc08] sm:$0xff]
  %v9240 = vld [vmem:[%s15 + $0xc10] sm:$0xff]
  %v9241 = vld [vmem:[%s15 + $0xc18] sm:$0xff]
  %v9242 = vld [vmem:[%s15 + $0xc20] sm:$0xf]
  %v9243 = vld [vmem:[%s15 + $0xc24] sm:$0xff]
  %v9244 = vld [vmem:[%s15 + $0xc2c] sm:$0xff]
  %v9245 = vld [vmem:[%s15 + $0xc34] sm:$0xff]
  %v9246 = vld [vmem:[%s15 + $0xc3c] sm:$0xf]
  %v9247 = vld [vmem:[%s15 + $0xc40] sm:$0xff]
  %v9248 = vld [vmem:[%s15 + $0xc48] sm:$0xff]
  %v9249 = vld [vmem:[%s15 + $0xc50] sm:$0xff]
  %v9250 = vld [vmem:[%s15 + $0xc58] sm:$0xf]
  %v9251 = vld [vmem:[%s15 + $0xc5c] sm:$0xff]
  %v9252 = vld [vmem:[%s15 + $0xc64] sm:$0xff]
  %v9253 = vld [vmem:[%s15 + $0xc6c] sm:$0xff]
  %v9254 = vld [vmem:[%s15 + $0xc74] sm:$0xf]
  %v9255 = vld [vmem:[%s15 + $0xc78] sm:$0xff]
  %v9256 = vld [vmem:[%s15 + $0xc80] sm:$0xff]
  %v9257 = vld [vmem:[%s15 + $0xc88] sm:$0xff]
  %v9258 = vld [vmem:[%s15 + $0xc90] sm:$0xf]
  %v9259 = vld [vmem:[%s15 + $0xc94] sm:$0xff]
  %v9260 = vld [vmem:[%s15 + $0xc9c] sm:$0xff]
  %v9261 = vld [vmem:[%s15 + $0xca4] sm:$0xff]
  %v9262 = vld [vmem:[%s15 + $0xcac] sm:$0xf]
  %v9263 = vld [vmem:[%s15 + $0xcb0] sm:$0xff]
  %v9264 = vld [vmem:[%s15 + $0xcb8] sm:$0xff]
  %v9265 = vld [vmem:[%s15 + $0xcc0] sm:$0xff]
  %v9266 = vld [vmem:[%s15 + $0xcc8] sm:$0xf]
  %v9267 = vld [vmem:[%s15 + $0xccc] sm:$0xff]
  %v9268 = vld [vmem:[%s15 + $0xcd4] sm:$0xff]
  %v9269 = vld [vmem:[%s15 + $0xcdc] sm:$0xff]
  %v9270 = vld [vmem:[%s15 + $0xce4] sm:$0xf]
  %v9271 = vld [vmem:[%s15 + $0xce8] sm:$0xff]
  %v9272 = vld [vmem:[%s15 + $0xcf0] sm:$0xff]
  %v9273 = vld [vmem:[%s15 + $0xcf8] sm:$0xff]
  %v9274 = vld [vmem:[%s15 + $0xd00] sm:$0xf]
  %v9275 = vld [vmem:[%s15 + $0xd04] sm:$0xff]
  %v9276 = vld [vmem:[%s15 + $0xd0c] sm:$0xff]
  %v9277 = vld [vmem:[%s15 + $0xd14] sm:$0xff]
  %v9278 = vld [vmem:[%s15 + $0xd1c] sm:$0xf]
  %v9279 = vld [vmem:[%s15 + $0xd20] sm:$0xff]
  %v9280 = vld [vmem:[%s15 + $0xd28] sm:$0xff]
  %v9281 = vld [vmem:[%s15 + $0xd30] sm:$0xff]
  %v9282 = vld [vmem:[%s15 + $0xd38] sm:$0xf]
  %v9283 = vld [vmem:[%s15 + $0xd3c] sm:$0xff]
  %v9284 = vld [vmem:[%s15 + $0xd44] sm:$0xff]
  %v9285 = vld [vmem:[%s15 + $0xd4c] sm:$0xff]
  %v9286 = vld [vmem:[%s15 + $0xd54] sm:$0xf]
  %v9287 = vld [vmem:[%s15 + $0xd58] sm:$0xff]
  %v9288 = vld [vmem:[%s15 + $0xd60] sm:$0xff]
  %v9289 = vld [vmem:[%s15 + $0xd68] sm:$0xff]
  %v9290 = vld [vmem:[%s15 + $0xd70] sm:$0xf]
  %v9291 = vld [vmem:[%s15 + $0xd74] sm:$0xff]
  %v9292 = vld [vmem:[%s15 + $0xd7c] sm:$0xff]
  %v9293 = vld [vmem:[%s15 + $0xd84] sm:$0xff]
  %v9294 = vld [vmem:[%s15 + $0xd8c] sm:$0xf]
  %v9295 = vld [vmem:[%s15 + $0xd90] sm:$0xff]
  %v9296 = vld [vmem:[%s15 + $0xd98] sm:$0xff]
  %v9297 = vld [vmem:[%s15 + $0xda0] sm:$0xff]
  %v9298 = vld [vmem:[%s15 + $0xda8] sm:$0xf]
  %v9299 = vld [vmem:[%s15 + $0xdac] sm:$0xff]
  %v9300 = vld [vmem:[%s15 + $0xdb4] sm:$0xff]
  %v9301 = vld [vmem:[%s15 + $0xdbc] sm:$0xff]
  %v9302 = vld [vmem:[%s15 + $0xdc4] sm:$0xf]
  %v9303 = vld [vmem:[%s15 + $0xdc8] sm:$0xff]
  %v9304 = vld [vmem:[%s15 + $0xdd0] sm:$0xff]
  %v9305 = vld [vmem:[%s15 + $0xdd8] sm:$0xff]
  %v9306 = vld [vmem:[%s15 + $0xde0] sm:$0xf]
  %v9307 = vld [vmem:[%s15 + $0xde4] sm:$0xff]
  %v9308 = vld [vmem:[%s15 + $0xdec] sm:$0xff]
  %v9309 = vld [vmem:[%s15 + $0xdf4] sm:$0xff]
  %v9310 = vld [vmem:[%s15 + $0xdfc] sm:$0xf]
  %v9311 = vld [vmem:[%s15 + $0xe00] sm:$0xff]
  %v9312 = vld [vmem:[%s15 + $0xe08] sm:$0xff]
  %v9313 = vld [vmem:[%s15 + $0xe10] sm:$0xff]
  %v9314 = vld [vmem:[%s15 + $0xe18] sm:$0xf]
  %v9315 = vld [vmem:[%s15 + $0xe1c] sm:$0xff]
  %v9316 = vld [vmem:[%s15 + $0xe24] sm:$0xff]
  %v9317 = vld [vmem:[%s15 + $0xe2c] sm:$0xff]
  %v9318 = vld [vmem:[%s15 + $0xe34] sm:$0xf]
  %v9319 = vld [vmem:[%s15 + $0xe38] sm:$0xff]
  %v9320 = vld [vmem:[%s15 + $0xe40] sm:$0xff]
  %v9321 = vld [vmem:[%s15 + $0xe48] sm:$0xff]
  %v9322 = vld [vmem:[%s15 + $0xe50] sm:$0xf]
  %v9323 = vld [vmem:[%s15 + $0xe54] sm:$0xff]
  %v9324 = vld [vmem:[%s15 + $0xe5c] sm:$0xff]
  %v9325 = vld [vmem:[%s15 + $0xe64] sm:$0xff]
  %v9326 = vld [vmem:[%s15 + $0xe6c] sm:$0xf]
  %v9327 = vld [vmem:[%s15 + $0xe70] sm:$0xff]
  %v9328 = vld [vmem:[%s15 + $0xe78] sm:$0xff]
  %v9329 = vld [vmem:[%s15 + $0xe80] sm:$0xff]
  %v9330 = vld [vmem:[%s15 + $0xe88] sm:$0xf]
  %v9331 = vld [vmem:[%s15 + $0xe8c] sm:$0xff]
  %v9332 = vld [vmem:[%s15 + $0xe94] sm:$0xff]
  %v9333 = vld [vmem:[%s15 + $0xe9c] sm:$0xff]
  %v9334 = vld [vmem:[%s15 + $0xea4] sm:$0xf]
  %v9335 = vld [vmem:[%s15 + $0xea8] sm:$0xff]
  %v9336 = vld [vmem:[%s15 + $0xeb0] sm:$0xff]
  %v9337 = vld [vmem:[%s15 + $0xeb8] sm:$0xff]
  %v9338 = vld [vmem:[%s15 + $0xec0] sm:$0xf]
  %v9339 = vld [vmem:[%s15 + $0xec4] sm:$0xff]
  %v9340 = vld [vmem:[%s15 + $0xecc] sm:$0xff]
  %v9341 = vld [vmem:[%s15 + $0xed4] sm:$0xff]
  %v9342 = vld [vmem:[%s15 + $0xedc] sm:$0xf]
  %v9343 = vld [vmem:[%s15 + $0xee0] sm:$0xff]
  %v9344 = vld [vmem:[%s15 + $0xee8] sm:$0xff]
  %v9345 = vld [vmem:[%s15 + $0xef0] sm:$0xff]
  %v9346 = vld [vmem:[%s15 + $0xef8] sm:$0xf]
  %v9347 = vld [vmem:[%s15 + $0xefc] sm:$0xff]
  %v9348 = vld [vmem:[%s15 + $0xf04] sm:$0xff]
  %v9349 = vld [vmem:[%s15 + $0xf0c] sm:$0xff]
  %v9350 = vld [vmem:[%s15 + $0xf14] sm:$0xf]
  %v9351 = vld [vmem:[%s15 + $0xf18] sm:$0xff]
  %v9352 = vld [vmem:[%s15 + $0xf20] sm:$0xff]
  %v9353 = vld [vmem:[%s15 + $0xf28] sm:$0xff]
  %v9354 = vld [vmem:[%s15 + $0xf30] sm:$0xf]
  %v9355 = vld [vmem:[%s15 + $0xf34] sm:$0xff]
  %v9356 = vld [vmem:[%s15 + $0xf3c] sm:$0xff]
  %v9357 = vld [vmem:[%s15 + $0xf44] sm:$0xff]
  %v9358 = vld [vmem:[%s15 + $0xf4c] sm:$0xf]
  %v9359 = vld [vmem:[%s15 + $0xf50] sm:$0xff]
  %v9360 = vld [vmem:[%s15 + $0xf58] sm:$0xff]
  %v9361 = vld [vmem:[%s15 + $0xf60] sm:$0xff]
  %v9362 = vld [vmem:[%s15 + $0xf68] sm:$0xf]
  %v9363 = vld [vmem:[%s15 + $0xf6c] sm:$0xff]
  %v9364 = vld [vmem:[%s15 + $0xf74] sm:$0xff]
  %v9365 = vld [vmem:[%s15 + $0xf7c] sm:$0xff]
  %v9366 = vld [vmem:[%s15 + $0xf84] sm:$0xf]
  %v9367 = vld [vmem:[%s15 + $0xf88] sm:$0xff]
  %v9368 = vld [vmem:[%s15 + $0xf90] sm:$0xff]
  %v9369 = vld [vmem:[%s15 + $0xf98] sm:$0xff]
  %v9370 = vld [vmem:[%s15 + $0xfa0] sm:$0xf]
  %v9371 = vld [vmem:[%s15 + $0xfa4] sm:$0xff]
  %v9372 = vld [vmem:[%s15 + $0xfac] sm:$0xff]
  %v9373 = vld [vmem:[%s15 + $0xfb4] sm:$0xff]
  %v9374 = vld [vmem:[%s15 + $0xfbc] sm:$0xf]
  %v9375 = vld [vmem:[%s15 + $0xfc0] sm:$0xff]
  %v9376 = vld [vmem:[%s15 + $0xfc8] sm:$0xff]
  %v9377 = vld [vmem:[%s15 + $0xfd0] sm:$0xff]
  %v9378 = vld [vmem:[%s15 + $0xfd8] sm:$0xf]
  %v9379 = vld [vmem:[%s15 + $0xfdc] sm:$0xff]
  %v9380 = vld [vmem:[%s15 + $0xfe4] sm:$0xff]
  %v9381 = vld [vmem:[%s15 + $0xfec] sm:$0xff]
  %v9382 = vld [vmem:[%s15 + $0xff4] sm:$0xf]
  %v9383 = vld [vmem:[%s15 + $0xff8] sm:$0xff]
  %v9384 = vld [vmem:[%s15 + $0x1000] sm:$0xff]
  %v9385 = vld [vmem:[%s15 + $0x1008] sm:$0xff]
  %v9386 = vld [vmem:[%s15 + $0x1010] sm:$0xf]
  %v9387 = vld [vmem:[%s15 + $0x1014] sm:$0xff]
  %v9388 = vld [vmem:[%s15 + $0x101c] sm:$0xff]
  %v9389 = vld [vmem:[%s15 + $0x1024] sm:$0xff]
  %v9390 = vld [vmem:[%s15 + $0x102c] sm:$0xf]
  %v9391 = vld [vmem:[%s15 + $0x1030] sm:$0xff]
  %v9392 = vld [vmem:[%s15 + $0x1038] sm:$0xff]
  %v9393 = vld [vmem:[%s15 + $0x1040] sm:$0xff]
  %v9394 = vld [vmem:[%s15 + $0x1048] sm:$0xf]
  %v9395 = vld [vmem:[%s15 + $0x104c] sm:$0xff]
  %v9396 = vld [vmem:[%s15 + $0x1054] sm:$0xff]
  %v9397 = vld [vmem:[%s15 + $0x105c] sm:$0xff]
  %v9398 = vld [vmem:[%s15 + $0x1064] sm:$0xf]
  %v9399 = vld [vmem:[%s15 + $0x1068] sm:$0xff]
  %v9400 = vld [vmem:[%s15 + $0x1070] sm:$0xff]
  %v9401 = vld [vmem:[%s15 + $0x1078] sm:$0xff]
  %v9402 = vld [vmem:[%s15 + $0x1080] sm:$0xf]
  %v9403 = vld [vmem:[%s15 + $0x1084] sm:$0xff]
  %v9404 = vld [vmem:[%s15 + $0x108c] sm:$0xff]
  %v9405 = vld [vmem:[%s15 + $0x1094] sm:$0xff]
  %v9406 = vld [vmem:[%s15 + $0x109c] sm:$0xf]
  %v9407 = vld [vmem:[%s15 + $0x10a0] sm:$0xff]
  %v9408 = vld [vmem:[%s15 + $0x10a8] sm:$0xff]
  %v9409 = vld [vmem:[%s15 + $0x10b0] sm:$0xff]
  %v9410 = vld [vmem:[%s15 + $0x10b8] sm:$0xf]
  %v9411 = vld [vmem:[%s15 + $0x10bc] sm:$0xff]
  %v9412 = vld [vmem:[%s15 + $0x10c4] sm:$0xff]
  %v9413 = vld [vmem:[%s15 + $0x10cc] sm:$0xff]
  %v9414 = vld [vmem:[%s15 + $0x10d4] sm:$0xf]
  %v9415 = vld [vmem:[%s15 + $0x10d8] sm:$0xff]
  %v9416 = vld [vmem:[%s15 + $0x10e0] sm:$0xff]
  %v9417 = vld [vmem:[%s15 + $0x10e8] sm:$0xff]
  %v9418 = vld [vmem:[%s15 + $0x10f0] sm:$0xf]
  %v9419 = vld [vmem:[%s15 + $0x10f4] sm:$0xff]
  %v9420 = vld [vmem:[%s15 + $0x10fc] sm:$0xff]
  %v9421 = vld [vmem:[%s15 + $0x1104] sm:$0xff]
  %v9422 = vld [vmem:[%s15 + $0x110c] sm:$0xf]
  %v9423 = vld [vmem:[%s15 + $0x1110] sm:$0xff]
  %v9424 = vld [vmem:[%s15 + $0x1118] sm:$0xff]
  %v9425 = vld [vmem:[%s15 + $0x1120] sm:$0xff]
  %v9426 = vld [vmem:[%s15 + $0x1128] sm:$0xf]
  %v9427 = vld [vmem:[%s15 + $0x112c] sm:$0xff]
  %v9428 = vld [vmem:[%s15 + $0x1134] sm:$0xff]
  %v9429 = vld [vmem:[%s15 + $0x113c] sm:$0xff]
  %v9430 = vld [vmem:[%s15 + $0x1144] sm:$0xf]
  %v9431 = vld [vmem:[%s15 + $0x1148] sm:$0xff]
  %v9432 = vld [vmem:[%s15 + $0x1150] sm:$0xff]
  %v9433 = vld [vmem:[%s15 + $0x1158] sm:$0xff]
  %v9434 = vld [vmem:[%s15 + $0x1160] sm:$0xf]
  %v9435 = vld [vmem:[%s15 + $0x1164] sm:$0xff]
  %v9436 = vld [vmem:[%s15 + $0x116c] sm:$0xff]
  %v9437 = vld [vmem:[%s15 + $0x1174] sm:$0xff]
  %v9438 = vld [vmem:[%s15 + $0x117c] sm:$0xf]
  %v9439 = vld [vmem:[%s15 + $0x1180] sm:$0xff]
  %v9440 = vld [vmem:[%s15 + $0x1188] sm:$0xff]
  %v9441 = vld [vmem:[%s15 + $0x1190] sm:$0xff]
  %v9442 = vld [vmem:[%s15 + $0x1198] sm:$0xf]
  %v9443 = vld [vmem:[%s15 + $0x119c] sm:$0xff]
  %v9444 = vld [vmem:[%s15 + $0x11a4] sm:$0xff]
  %v9445 = vld [vmem:[%s15 + $0x11ac] sm:$0xff]
  %v9446 = vld [vmem:[%s15 + $0x11b4] sm:$0xf]
  %v9447 = vld [vmem:[%s15 + $0x11b8] sm:$0xff]
  %v9448 = vld [vmem:[%s15 + $0x11c0] sm:$0xff]
  %v9449 = vld [vmem:[%s15 + $0x11c8] sm:$0xff]
  %v9450 = vld [vmem:[%s15 + $0x11d0] sm:$0xf]
  %v9451 = vld [vmem:[%s15 + $0x11d4] sm:$0xff]
  %v9452 = vld [vmem:[%s15 + $0x11dc] sm:$0xff]
  %v9453 = vld [vmem:[%s15 + $0x11e4] sm:$0xff]
  %v9454 = vld [vmem:[%s15 + $0x11ec] sm:$0xf]
  %v9455 = vld [vmem:[%s15 + $0x11f0] sm:$0xff]
  %v9456 = vld [vmem:[%s15 + $0x11f8] sm:$0xff]
  %v9457 = vld [vmem:[%s15 + $0x1200] sm:$0xff]
  %v9458 = vld [vmem:[%s15 + $0x1208] sm:$0xf]
  %v9459 = vld [vmem:[%s15 + $0x120c] sm:$0xff]
  %v9460 = vld [vmem:[%s15 + $0x1214] sm:$0xff]
  %v9461 = vld [vmem:[%s15 + $0x121c] sm:$0xff]
  %v9462 = vld [vmem:[%s15 + $0x1224] sm:$0xf]
  %v9463 = vld [vmem:[%s15 + $0x1228] sm:$0xff]
  %v9464 = vld [vmem:[%s15 + $0x1230] sm:$0xff]
  %v9465 = vld [vmem:[%s15 + $0x1238] sm:$0xff]
  %v9466 = vld [vmem:[%s15 + $0x1240] sm:$0xf]
  %v9467 = vld [vmem:[%s15 + $0x1244] sm:$0xff]
  %v9468 = vld [vmem:[%s15 + $0x124c] sm:$0xff]
  %v9469 = vld [vmem:[%s15 + $0x1254] sm:$0xff]
  %v9470 = vld [vmem:[%s15 + $0x125c] sm:$0xf]
  %v9471 = vld [vmem:[%s15 + $0x1260] sm:$0xff]
  %v9472 = vld [vmem:[%s15 + $0x1268] sm:$0xff]
  %v9473 = vld [vmem:[%s15 + $0x1270] sm:$0xff]
  %v9474 = vld [vmem:[%s15 + $0x1278] sm:$0xf]
  %v9475 = vld [vmem:[%s15 + $0x127c] sm:$0xff]
  %v9476 = vld [vmem:[%s15 + $0x1284] sm:$0xff]
  %v9477 = vld [vmem:[%s15 + $0x128c] sm:$0xff]
  %v9478 = vld [vmem:[%s15 + $0x1294] sm:$0xf]
  %v9479 = vld [vmem:[%s15 + $0x1298] sm:$0xff]
  %v9480 = vld [vmem:[%s15 + $0x12a0] sm:$0xff]
  %v9481 = vld [vmem:[%s15 + $0x12a8] sm:$0xff]
  %v9482 = vld [vmem:[%s15 + $0x12b0] sm:$0xf]
  %v9483 = vld [vmem:[%s15 + $0x12b4] sm:$0xff]
  %v9484 = vld [vmem:[%s15 + $0x12bc] sm:$0xff]
  %v9485 = vld [vmem:[%s15 + $0x12c4] sm:$0xff]
  %v9486 = vld [vmem:[%s15 + $0x12cc] sm:$0xf]
  %v9487 = vld [vmem:[%s15 + $0x12d0] sm:$0xff]
  %v9488 = vld [vmem:[%s15 + $0x12d8] sm:$0xff]
  %v9489 = vld [vmem:[%s15 + $0x12e0] sm:$0xff]
  %v9490 = vld [vmem:[%s15 + $0x12e8] sm:$0xf]
  %v9491 = vld [vmem:[%s15 + $0x12ec] sm:$0xff]
  %v9492 = vld [vmem:[%s15 + $0x12f4] sm:$0xff]
  %v9493 = vld [vmem:[%s15 + $0x12fc] sm:$0xff]
  %v9494 = vld [vmem:[%s15 + $0x1304] sm:$0xf]
  %v9495 = vld [vmem:[%s15 + $0x1308] sm:$0xff]
  %v9496 = vld [vmem:[%s15 + $0x1310] sm:$0xff]
  %v9497 = vld [vmem:[%s15 + $0x1318] sm:$0xff]
  %v9498 = vld [vmem:[%s15 + $0x1320] sm:$0xf]
  %v9499 = vld [vmem:[%s15 + $0x1324] sm:$0xff]
  %v9500 = vld [vmem:[%s15 + $0x132c] sm:$0xff]
  %v9501 = vld [vmem:[%s15 + $0x1334] sm:$0xff]
  %v9502 = vld [vmem:[%s15 + $0x133c] sm:$0xf]
  %v9503 = vld [vmem:[%s15 + $0x1340] sm:$0xff]
  %v9504 = vld [vmem:[%s15 + $0x1348] sm:$0xff]
  %v9505 = vld [vmem:[%s15 + $0x1350] sm:$0xff]
  %v9506 = vld [vmem:[%s15 + $0x1358] sm:$0xf]
  %v9507 = vld [vmem:[%s15 + $0x135c] sm:$0xff]
  %v9508 = vld [vmem:[%s15 + $0x1364] sm:$0xff]
  %v9509 = vld [vmem:[%s15 + $0x136c] sm:$0xff]
  %v9510 = vld [vmem:[%s15 + $0x1374] sm:$0xf]
  %v9511 = vld [vmem:[%s15 + $0x1378] sm:$0xff]
  %v9512 = vld [vmem:[%s15 + $0x1380] sm:$0xff]
  %v9513 = vld [vmem:[%s15 + $0x1388] sm:$0xff]
  %v9514 = vld [vmem:[%s15 + $0x1390] sm:$0xf]
  %v9515 = vld [vmem:[%s15 + $0x1394] sm:$0xff]
  %v9516 = vld [vmem:[%s15 + $0x139c] sm:$0xff]
  %v9517 = vld [vmem:[%s15 + $0x13a4] sm:$0xff]
  %v9518 = vld [vmem:[%s15 + $0x13ac] sm:$0xf]
  %v9519 = vld [vmem:[%s15 + $0x13b0] sm:$0xff]
  %v9520 = vld [vmem:[%s15 + $0x13b8] sm:$0xff]
  %v9521 = vld [vmem:[%s15 + $0x13c0] sm:$0xff]
  %v9522 = vld [vmem:[%s15 + $0x13c8] sm:$0xf]
  %v9523 = vld [vmem:[%s15 + $0x13cc] sm:$0xff]
  %v9524 = vld [vmem:[%s15 + $0x13d4] sm:$0xff]
  %v9525 = vld [vmem:[%s15 + $0x13dc] sm:$0xff]
  %v9526 = vld [vmem:[%s15 + $0x13e4] sm:$0xf]
  %v9527 = vld [vmem:[%s15 + $0x13e8] sm:$0xff]
  %v9528 = vld [vmem:[%s15 + $0x13f0] sm:$0xff]
  %v9529 = vld [vmem:[%s15 + $0x13f8] sm:$0xff]
  %v9530 = vld [vmem:[%s15 + $0x1400] sm:$0xf]
  %v9531 = vld [vmem:[%s15 + $0x1404] sm:$0xff]
  %v9532 = vld [vmem:[%s15 + $0x140c] sm:$0xff]
  %v9533 = vld [vmem:[%s15 + $0x1414] sm:$0xff]
  %v9534 = vld [vmem:[%s15 + $0x141c] sm:$0xf]
  %v9535 = vld [vmem:[%s15 + $0x1420] sm:$0xff]
  %v9536 = vld [vmem:[%s15 + $0x1428] sm:$0xff]
  %v9537 = vld [vmem:[%s15 + $0x1430] sm:$0xff]
  %v9538 = vld [vmem:[%s15 + $0x1438] sm:$0xf]
  %v9539 = vld [vmem:[%s15 + $0x143c] sm:$0xff]
  %v9540 = vld [vmem:[%s15 + $0x1444] sm:$0xff]
  %v9541 = vld [vmem:[%s15 + $0x144c] sm:$0xff]
  %v9542 = vld [vmem:[%s15 + $0x1454] sm:$0xf]
  %v9543 = vld [vmem:[%s15 + $0x1458] sm:$0xff]
  %v9544 = vld [vmem:[%s15 + $0x1460] sm:$0xff]
  %v9545 = vld [vmem:[%s15 + $0x1468] sm:$0xff]
  %v9546 = vld [vmem:[%s15 + $0x1470] sm:$0xf]
  %v9547 = vld [vmem:[%s15 + $0x1474] sm:$0xff]
  %v9548 = vld [vmem:[%s15 + $0x147c] sm:$0xff]
  %v9549 = vld [vmem:[%s15 + $0x1484] sm:$0xff]
  %v9550 = vld [vmem:[%s15 + $0x148c] sm:$0xf]
  %v9551 = vld [vmem:[%s15 + $0x1490] sm:$0xff]
  %v9552 = vld [vmem:[%s15 + $0x1498] sm:$0xff]
  %v9553 = vld [vmem:[%s15 + $0x14a0] sm:$0xff]
  %v9554 = vld [vmem:[%s15 + $0x14a8] sm:$0xf]
  %v9555 = vld [vmem:[%s15 + $0x14ac] sm:$0xff]
  %v9556 = vld [vmem:[%s15 + $0x14b4] sm:$0xff]
  %v9557 = vld [vmem:[%s15 + $0x14bc] sm:$0xff]
  %v9558 = vld [vmem:[%s15 + $0x14c4] sm:$0xf]
  %v9559 = vld [vmem:[%s15 + $0x14c8] sm:$0xff]
  %v9560 = vld [vmem:[%s15 + $0x14d0] sm:$0xff]
  %v9561 = vld [vmem:[%s15 + $0x14d8] sm:$0xff]
  %v9562 = vld [vmem:[%s15 + $0x14e0] sm:$0xf]
  %v9563 = vld [vmem:[%s15 + $0x14e4] sm:$0xff]
  %v9564 = vld [vmem:[%s15 + $0x14ec] sm:$0xff]
  %v9565 = vld [vmem:[%s15 + $0x14f4] sm:$0xff]
  %v9566 = vld [vmem:[%s15 + $0x14fc] sm:$0xf]
  %v9567 = vld [vmem:[%s15 + $0x1500] sm:$0xff]
  %v9568 = vld [vmem:[%s15 + $0x1508] sm:$0xff]
  %v9569 = vld [vmem:[%s15 + $0x1510] sm:$0xff]
  %v9570 = vld [vmem:[%s15 + $0x1518] sm:$0xf]
  %v9571 = vld [vmem:[%s15 + $0x151c] sm:$0xff]
  %v9572 = vld [vmem:[%s15 + $0x1524] sm:$0xff]
  %v9573 = vld [vmem:[%s15 + $0x152c] sm:$0xff]
  %v9574 = vld [vmem:[%s15 + $0x1534] sm:$0xf]
  %v9575 = vld [vmem:[%s15 + $0x1538] sm:$0xff]
  %v9576 = vld [vmem:[%s15 + $0x1540] sm:$0xff]
  %v9577 = vld [vmem:[%s15 + $0x1548] sm:$0xff]
  %v9578 = vld [vmem:[%s15 + $0x1550] sm:$0xf]
  %v9579 = vld [vmem:[%s15 + $0x1554] sm:$0xff]
  %v9580 = vld [vmem:[%s15 + $0x155c] sm:$0xff]
  %v9581 = vld [vmem:[%s15 + $0x1564] sm:$0xff]
  %v9582 = vld [vmem:[%s15 + $0x156c] sm:$0xf]
  %v9583 = vld [vmem:[%s16] sm:$0x7f]
  %v9585 = vperm.slane %v9583, 0
  %v9586 = vperm.slane %v9583, 1
  %v9587 = vperm.slane %v9583, 2
  %v9588 = vperm.slane %v9583, 3
  %v9589 = vperm.slane %v9583, 4
  %v9590 = vperm.slane %v9583, 5
  %v9591 = vperm.slane %v9583, 6
  %v10383 = vunpack.c.l.b16 %v8799
  %v10384 = vunpack.c.h.b16 %v8799
  %v10385 = vunpack.c.l.b16 %v8800
  %v10386 = vunpack.c.h.b16 %v8800
  %v10387 = vunpack.c.l.b16 %v8801
  %v10388 = vunpack.c.h.b16 %v8801
  %v10389 = vunpack.c.l.b16 %v8802
  %v10390 = vunpack.c.l.b16 %v8803
  %v10391 = vunpack.c.h.b16 %v8803
  %v10392 = vunpack.c.l.b16 %v8804
  %v10393 = vunpack.c.h.b16 %v8804
  %v10394 = vunpack.c.l.b16 %v8805
  %v10395 = vunpack.c.h.b16 %v8805
  %v10396 = vunpack.c.l.b16 %v8806
  %v10397 = vunpack.c.l.b16 %v8807
  %v10398 = vunpack.c.h.b16 %v8807
  %v10399 = vunpack.c.l.b16 %v8808
  %v10400 = vunpack.c.h.b16 %v8808
  %v10401 = vunpack.c.l.b16 %v8809
  %v10402 = vunpack.c.h.b16 %v8809
  %v10403 = vunpack.c.l.b16 %v8810
  %v10404 = vunpack.c.l.b16 %v8811
  %v10405 = vunpack.c.h.b16 %v8811
  %v10406 = vunpack.c.l.b16 %v8812
  %v10407 = vunpack.c.h.b16 %v8812
  %v10408 = vunpack.c.l.b16 %v8813
  %v10409 = vunpack.c.h.b16 %v8813
  %v10410 = vunpack.c.l.b16 %v8814
  %v10411 = vunpack.c.l.b16 %v8815
  %v10412 = vunpack.c.h.b16 %v8815
  %v10413 = vunpack.c.l.b16 %v8816
  %v10414 = vunpack.c.h.b16 %v8816
  %v10415 = vunpack.c.l.b16 %v8817
  %v10416 = vunpack.c.h.b16 %v8817
  %v10417 = vunpack.c.l.b16 %v8818
  %v10418 = vunpack.c.l.b16 %v8819
  %v10419 = vunpack.c.h.b16 %v8819
  %v10420 = vunpack.c.l.b16 %v8820
  %v10421 = vunpack.c.h.b16 %v8820
  %v10422 = vunpack.c.l.b16 %v8821
  %v10423 = vunpack.c.h.b16 %v8821
  %v10424 = vunpack.c.l.b16 %v8822
  %v10425 = vunpack.c.l.b16 %v8823
  %v10426 = vunpack.c.h.b16 %v8823
  %v10427 = vunpack.c.l.b16 %v8824
  %v10428 = vunpack.c.h.b16 %v8824
  %v10429 = vunpack.c.l.b16 %v8825
  %v10430 = vunpack.c.h.b16 %v8825
  %v10431 = vunpack.c.l.b16 %v8826
  %v10432 = vunpack.c.l.b16 %v8827
  %v10433 = vunpack.c.h.b16 %v8827
  %v10434 = vunpack.c.l.b16 %v8828
  %v10435 = vunpack.c.h.b16 %v8828
  %v10436 = vunpack.c.l.b16 %v8829
  %v10437 = vunpack.c.h.b16 %v8829
  %v10438 = vunpack.c.l.b16 %v8830
  %v10439 = vunpack.c.l.b16 %v8831
  %v10440 = vunpack.c.h.b16 %v8831
  %v10441 = vunpack.c.l.b16 %v8832
  %v10442 = vunpack.c.h.b16 %v8832
  %v10443 = vunpack.c.l.b16 %v8833
  %v10444 = vunpack.c.h.b16 %v8833
  %v10445 = vunpack.c.l.b16 %v8834
  %v10446 = vunpack.c.l.b16 %v8835
  %v10447 = vunpack.c.h.b16 %v8835
  %v10448 = vunpack.c.l.b16 %v8836
  %v10449 = vunpack.c.h.b16 %v8836
  %v10450 = vunpack.c.l.b16 %v8837
  %v10451 = vunpack.c.h.b16 %v8837
  %v10452 = vunpack.c.l.b16 %v8838
  %v10453 = vunpack.c.l.b16 %v8839
  %v10454 = vunpack.c.h.b16 %v8839
  %v10455 = vunpack.c.l.b16 %v8840
  %v10456 = vunpack.c.h.b16 %v8840
  %v10457 = vunpack.c.l.b16 %v8841
  %v10458 = vunpack.c.h.b16 %v8841
  %v10459 = vunpack.c.l.b16 %v8842
  %v10460 = vunpack.c.l.b16 %v8843
  %v10461 = vunpack.c.h.b16 %v8843
  %v10462 = vunpack.c.l.b16 %v8844
  %v10463 = vunpack.c.h.b16 %v8844
  %v10464 = vunpack.c.l.b16 %v8845
  %v10465 = vunpack.c.h.b16 %v8845
  %v10466 = vunpack.c.l.b16 %v8846
  %v10467 = vunpack.c.l.b16 %v8847
  %v10468 = vunpack.c.h.b16 %v8847
  %v10469 = vunpack.c.l.b16 %v8848
  %v10470 = vunpack.c.h.b16 %v8848
  %v10471 = vunpack.c.l.b16 %v8849
  %v10472 = vunpack.c.h.b16 %v8849
  %v10473 = vunpack.c.l.b16 %v8850
  %v10474 = vunpack.c.l.b16 %v8851
  %v10475 = vunpack.c.h.b16 %v8851
  %v10476 = vunpack.c.l.b16 %v8852
  %v10477 = vunpack.c.h.b16 %v8852
  %v10478 = vunpack.c.l.b16 %v8853
  %v10479 = vunpack.c.h.b16 %v8853
  %v10480 = vunpack.c.l.b16 %v8854
  %v10481 = vunpack.c.l.b16 %v8855
  %v10482 = vunpack.c.h.b16 %v8855
  %v10483 = vunpack.c.l.b16 %v8856
  %v10484 = vunpack.c.h.b16 %v8856
  %v10485 = vunpack.c.l.b16 %v8857
  %v10486 = vunpack.c.h.b16 %v8857
  %v10487 = vunpack.c.l.b16 %v8858
  %v10488 = vunpack.c.l.b16 %v8859
  %v10489 = vunpack.c.h.b16 %v8859
  %v10490 = vunpack.c.l.b16 %v8860
  %v10491 = vunpack.c.h.b16 %v8860
  %v10492 = vunpack.c.l.b16 %v8861
  %v10493 = vunpack.c.h.b16 %v8861
  %v10494 = vunpack.c.l.b16 %v8862
  %v10495 = vunpack.c.l.b16 %v8863
  %v10496 = vunpack.c.h.b16 %v8863
  %v10497 = vunpack.c.l.b16 %v8864
  %v10498 = vunpack.c.h.b16 %v8864
  %v10499 = vunpack.c.l.b16 %v8865
  %v10500 = vunpack.c.h.b16 %v8865
  %v10501 = vunpack.c.l.b16 %v8866
  %v10502 = vunpack.c.l.b16 %v8867
  %v10503 = vunpack.c.h.b16 %v8867
  %v10504 = vunpack.c.l.b16 %v8868
  %v10505 = vunpack.c.h.b16 %v8868
  %v10506 = vunpack.c.l.b16 %v8869
  %v10507 = vunpack.c.h.b16 %v8869
  %v10508 = vunpack.c.l.b16 %v8870
  %v10509 = vunpack.c.l.b16 %v8871
  %v10510 = vunpack.c.h.b16 %v8871
  %v10511 = vunpack.c.l.b16 %v8872
  %v10512 = vunpack.c.h.b16 %v8872
  %v10513 = vunpack.c.l.b16 %v8873
  %v10514 = vunpack.c.h.b16 %v8873
  %v10515 = vunpack.c.l.b16 %v8874
  %v10516 = vunpack.c.l.b16 %v8875
  %v10517 = vunpack.c.h.b16 %v8875
  %v10518 = vunpack.c.l.b16 %v8876
  %v10519 = vunpack.c.h.b16 %v8876
  %v10520 = vunpack.c.l.b16 %v8877
  %v10521 = vunpack.c.h.b16 %v8877
  %v10522 = vunpack.c.l.b16 %v8878
  %v10523 = vunpack.c.l.b16 %v8879
  %v10524 = vunpack.c.h.b16 %v8879
  %v10525 = vunpack.c.l.b16 %v8880
  %v10526 = vunpack.c.h.b16 %v8880
  %v10527 = vunpack.c.l.b16 %v8881
  %v10528 = vunpack.c.h.b16 %v8881
  %v10529 = vunpack.c.l.b16 %v8882
  %v10530 = vunpack.c.l.b16 %v8883
  %v10531 = vunpack.c.h.b16 %v8883
  %v10532 = vunpack.c.l.b16 %v8884
  %v10533 = vunpack.c.h.b16 %v8884
  %v10534 = vunpack.c.l.b16 %v8885
  %v10535 = vunpack.c.h.b16 %v8885
  %v10536 = vunpack.c.l.b16 %v8886
  %v10537 = vunpack.c.l.b16 %v8887
  %v10538 = vunpack.c.h.b16 %v8887
  %v10539 = vunpack.c.l.b16 %v8888
  %v10540 = vunpack.c.h.b16 %v8888
  %v10541 = vunpack.c.l.b16 %v8889
  %v10542 = vunpack.c.h.b16 %v8889
  %v10543 = vunpack.c.l.b16 %v8890
  %v10544 = vunpack.c.l.b16 %v8891
  %v10545 = vunpack.c.h.b16 %v8891
  %v10546 = vunpack.c.l.b16 %v8892
  %v10547 = vunpack.c.h.b16 %v8892
  %v10548 = vunpack.c.l.b16 %v8893
  %v10549 = vunpack.c.h.b16 %v8893
  %v10550 = vunpack.c.l.b16 %v8894
  %v10551 = vunpack.c.l.b16 %v8895
  %v10552 = vunpack.c.h.b16 %v8895
  %v10553 = vunpack.c.l.b16 %v8896
  %v10554 = vunpack.c.h.b16 %v8896
  %v10555 = vunpack.c.l.b16 %v8897
  %v10556 = vunpack.c.h.b16 %v8897
  %v10557 = vunpack.c.l.b16 %v8898
  %v10558 = vunpack.c.l.b16 %v8899
  %v10559 = vunpack.c.h.b16 %v8899
  %v10560 = vunpack.c.l.b16 %v8900
  %v10561 = vunpack.c.h.b16 %v8900
  %v10562 = vunpack.c.l.b16 %v8901
  %v10563 = vunpack.c.h.b16 %v8901
  %v10564 = vunpack.c.l.b16 %v8902
  %v10565 = vunpack.c.l.b16 %v8903
  %v10566 = vunpack.c.h.b16 %v8903
  %v10567 = vunpack.c.l.b16 %v8904
  %v10568 = vunpack.c.h.b16 %v8904
  %v10569 = vunpack.c.l.b16 %v8905
  %v10570 = vunpack.c.h.b16 %v8905
  %v10571 = vunpack.c.l.b16 %v8906
  %v10572 = vunpack.c.l.b16 %v8907
  %v10573 = vunpack.c.h.b16 %v8907
  %v10574 = vunpack.c.l.b16 %v8908
  %v10575 = vunpack.c.h.b16 %v8908
  %v10576 = vunpack.c.l.b16 %v8909
  %v10577 = vunpack.c.h.b16 %v8909
  %v10578 = vunpack.c.l.b16 %v8910
  %v10579 = vunpack.c.l.b16 %v8911
  %v10580 = vunpack.c.h.b16 %v8911
  %v10581 = vunpack.c.l.b16 %v8912
  %v10582 = vunpack.c.h.b16 %v8912
  %v10583 = vunpack.c.l.b16 %v8913
  %v10584 = vunpack.c.h.b16 %v8913
  %v10585 = vunpack.c.l.b16 %v8914
  %v10586 = vunpack.c.l.b16 %v8915
  %v10587 = vunpack.c.h.b16 %v8915
  %v10588 = vunpack.c.l.b16 %v8916
  %v10589 = vunpack.c.h.b16 %v8916
  %v10590 = vunpack.c.l.b16 %v8917
  %v10591 = vunpack.c.h.b16 %v8917
  %v10592 = vunpack.c.l.b16 %v8918
  %v10593 = vunpack.c.l.b16 %v8919
  %v10594 = vunpack.c.h.b16 %v8919
  %v10595 = vunpack.c.l.b16 %v8920
  %v10596 = vunpack.c.h.b16 %v8920
  %v10597 = vunpack.c.l.b16 %v8921
  %v10598 = vunpack.c.h.b16 %v8921
  %v10599 = vunpack.c.l.b16 %v8922
  %v10600 = vunpack.c.l.b16 %v8923
  %v10601 = vunpack.c.h.b16 %v8923
  %v10602 = vunpack.c.l.b16 %v8924
  %v10603 = vunpack.c.h.b16 %v8924
  %v10604 = vunpack.c.l.b16 %v8925
  %v10605 = vunpack.c.h.b16 %v8925
  %v10606 = vunpack.c.l.b16 %v8926
  %v10607 = vunpack.c.l.b16 %v8927
  %v10608 = vunpack.c.h.b16 %v8927
  %v10609 = vunpack.c.l.b16 %v8928
  %v10610 = vunpack.c.h.b16 %v8928
  %v10611 = vunpack.c.l.b16 %v8929
  %v10612 = vunpack.c.h.b16 %v8929
  %v10613 = vunpack.c.l.b16 %v8930
  %v10614 = vunpack.c.l.b16 %v8931
  %v10615 = vunpack.c.h.b16 %v8931
  %v10616 = vunpack.c.l.b16 %v8932
  %v10617 = vunpack.c.h.b16 %v8932
  %v10618 = vunpack.c.l.b16 %v8933
  %v10619 = vunpack.c.h.b16 %v8933
  %v10620 = vunpack.c.l.b16 %v8934
  %v10621 = vunpack.c.l.b16 %v8935
  %v10622 = vunpack.c.h.b16 %v8935
  %v10623 = vunpack.c.l.b16 %v8936
  %v10624 = vunpack.c.h.b16 %v8936
  %v10625 = vunpack.c.l.b16 %v8937
  %v10626 = vunpack.c.h.b16 %v8937
  %v10627 = vunpack.c.l.b16 %v8938
  %v10628 = vunpack.c.l.b16 %v8939
  %v10629 = vunpack.c.h.b16 %v8939
  %v10630 = vunpack.c.l.b16 %v8940
  %v10631 = vunpack.c.h.b16 %v8940
  %v10632 = vunpack.c.l.b16 %v8941
  %v10633 = vunpack.c.h.b16 %v8941
  %v10634 = vunpack.c.l.b16 %v8942
  %v10635 = vunpack.c.l.b16 %v8943
  %v10636 = vunpack.c.h.b16 %v8943
  %v10637 = vunpack.c.l.b16 %v8944
  %v10638 = vunpack.c.h.b16 %v8944
  %v10639 = vunpack.c.l.b16 %v8945
  %v10640 = vunpack.c.h.b16 %v8945
  %v10641 = vunpack.c.l.b16 %v8946
  %v10642 = vunpack.c.l.b16 %v8947
  %v10643 = vunpack.c.h.b16 %v8947
  %v10644 = vunpack.c.l.b16 %v8948
  %v10645 = vunpack.c.h.b16 %v8948
  %v10646 = vunpack.c.l.b16 %v8949
  %v10647 = vunpack.c.h.b16 %v8949
  %v10648 = vunpack.c.l.b16 %v8950
  %v10649 = vunpack.c.l.b16 %v8951
  %v10650 = vunpack.c.h.b16 %v8951
  %v10651 = vunpack.c.l.b16 %v8952
  %v10652 = vunpack.c.h.b16 %v8952
  %v10653 = vunpack.c.l.b16 %v8953
  %v10654 = vunpack.c.h.b16 %v8953
  %v10655 = vunpack.c.l.b16 %v8954
  %v10656 = vunpack.c.l.b16 %v8955
  %v10657 = vunpack.c.h.b16 %v8955
  %v10658 = vunpack.c.l.b16 %v8956
  %v10659 = vunpack.c.h.b16 %v8956
  %v10660 = vunpack.c.l.b16 %v8957
  %v10661 = vunpack.c.h.b16 %v8957
  %v10662 = vunpack.c.l.b16 %v8958
  %v10663 = vunpack.c.l.b16 %v8959
  %v10664 = vunpack.c.h.b16 %v8959
  %v10665 = vunpack.c.l.b16 %v8960
  %v10666 = vunpack.c.h.b16 %v8960
  %v10667 = vunpack.c.l.b16 %v8961
  %v10668 = vunpack.c.h.b16 %v8961
  %v10669 = vunpack.c.l.b16 %v8962
  %v10670 = vunpack.c.l.b16 %v8963
  %v10671 = vunpack.c.h.b16 %v8963
  %v10672 = vunpack.c.l.b16 %v8964
  %v10673 = vunpack.c.h.b16 %v8964
  %v10674 = vunpack.c.l.b16 %v8965
  %v10675 = vunpack.c.h.b16 %v8965
  %v10676 = vunpack.c.l.b16 %v8966
  %v10677 = vunpack.c.l.b16 %v8967
  %v10678 = vunpack.c.h.b16 %v8967
  %v10679 = vunpack.c.l.b16 %v8968
  %v10680 = vunpack.c.h.b16 %v8968
  %v10681 = vunpack.c.l.b16 %v8969
  %v10682 = vunpack.c.h.b16 %v8969
  %v10683 = vunpack.c.l.b16 %v8970
  %v10684 = vunpack.c.l.b16 %v8971
  %v10685 = vunpack.c.h.b16 %v8971
  %v10686 = vunpack.c.l.b16 %v8972
  %v10687 = vunpack.c.h.b16 %v8972
  %v10688 = vunpack.c.l.b16 %v8973
  %v10689 = vunpack.c.h.b16 %v8973
  %v10690 = vunpack.c.l.b16 %v8974
  %v10691 = vunpack.c.l.b16 %v8975
  %v10692 = vunpack.c.h.b16 %v8975
  %v10693 = vunpack.c.l.b16 %v8976
  %v10694 = vunpack.c.h.b16 %v8976
  %v10695 = vunpack.c.l.b16 %v8977
  %v10696 = vunpack.c.h.b16 %v8977
  %v10697 = vunpack.c.l.b16 %v8978
  %v10698 = vunpack.c.l.b16 %v8979
  %v10699 = vunpack.c.h.b16 %v8979
  %v10700 = vunpack.c.l.b16 %v8980
  %v10701 = vunpack.c.h.b16 %v8980
  %v10702 = vunpack.c.l.b16 %v8981
  %v10703 = vunpack.c.h.b16 %v8981
  %v10704 = vunpack.c.l.b16 %v8982
  %v10705 = vunpack.c.l.b16 %v8983
  %v10706 = vunpack.c.h.b16 %v8983
  %v10707 = vunpack.c.l.b16 %v8984
  %v10708 = vunpack.c.h.b16 %v8984
  %v10709 = vunpack.c.l.b16 %v8985
  %v10710 = vunpack.c.h.b16 %v8985
  %v10711 = vunpack.c.l.b16 %v8986
  %v10712 = vunpack.c.l.b16 %v8987
  %v10713 = vunpack.c.h.b16 %v8987
  %v10714 = vunpack.c.l.b16 %v8988
  %v10715 = vunpack.c.h.b16 %v8988
  %v10716 = vunpack.c.l.b16 %v8989
  %v10717 = vunpack.c.h.b16 %v8989
  %v10718 = vunpack.c.l.b16 %v8990
  %v10719 = vunpack.c.l.b16 %v8991
  %v10720 = vunpack.c.h.b16 %v8991
  %v10721 = vunpack.c.l.b16 %v8992
  %v10722 = vunpack.c.h.b16 %v8992
  %v10723 = vunpack.c.l.b16 %v8993
  %v10724 = vunpack.c.h.b16 %v8993
  %v10725 = vunpack.c.l.b16 %v8994
  %v10726 = vunpack.c.l.b16 %v8995
  %v10727 = vunpack.c.h.b16 %v8995
  %v10728 = vunpack.c.l.b16 %v8996
  %v10729 = vunpack.c.h.b16 %v8996
  %v10730 = vunpack.c.l.b16 %v8997
  %v10731 = vunpack.c.h.b16 %v8997
  %v10732 = vunpack.c.l.b16 %v8998
  %v10733 = vunpack.c.l.b16 %v8999
  %v10734 = vunpack.c.h.b16 %v8999
  %v10735 = vunpack.c.l.b16 %v9000
  %v10736 = vunpack.c.h.b16 %v9000
  %v10737 = vunpack.c.l.b16 %v9001
  %v10738 = vunpack.c.h.b16 %v9001
  %v10739 = vunpack.c.l.b16 %v9002
  %v10740 = vunpack.c.l.b16 %v9003
  %v10741 = vunpack.c.h.b16 %v9003
  %v10742 = vunpack.c.l.b16 %v9004
  %v10743 = vunpack.c.h.b16 %v9004
  %v10744 = vunpack.c.l.b16 %v9005
  %v10745 = vunpack.c.h.b16 %v9005
  %v10746 = vunpack.c.l.b16 %v9006
  %v10747 = vunpack.c.l.b16 %v9007
  %v10748 = vunpack.c.h.b16 %v9007
  %v10749 = vunpack.c.l.b16 %v9008
  %v10750 = vunpack.c.h.b16 %v9008
  %v10751 = vunpack.c.l.b16 %v9009
  %v10752 = vunpack.c.h.b16 %v9009
  %v10753 = vunpack.c.l.b16 %v9010
  %v10754 = vunpack.c.l.b16 %v9011
  %v10755 = vunpack.c.h.b16 %v9011
  %v10756 = vunpack.c.l.b16 %v9012
  %v10757 = vunpack.c.h.b16 %v9012
  %v10758 = vunpack.c.l.b16 %v9013
  %v10759 = vunpack.c.h.b16 %v9013
  %v10760 = vunpack.c.l.b16 %v9014
  %v10761 = vunpack.c.l.b16 %v9015
  %v10762 = vunpack.c.h.b16 %v9015
  %v10763 = vunpack.c.l.b16 %v9016
  %v10764 = vunpack.c.h.b16 %v9016
  %v10765 = vunpack.c.l.b16 %v9017
  %v10766 = vunpack.c.h.b16 %v9017
  %v10767 = vunpack.c.l.b16 %v9018
  %v10768 = vunpack.c.l.b16 %v9019
  %v10769 = vunpack.c.h.b16 %v9019
  %v10770 = vunpack.c.l.b16 %v9020
  %v10771 = vunpack.c.h.b16 %v9020
  %v10772 = vunpack.c.l.b16 %v9021
  %v10773 = vunpack.c.h.b16 %v9021
  %v10774 = vunpack.c.l.b16 %v9022
  %v10775 = vunpack.c.l.b16 %v9023
  %v10776 = vunpack.c.h.b16 %v9023
  %v10777 = vunpack.c.l.b16 %v9024
  %v10778 = vunpack.c.h.b16 %v9024
  %v10779 = vunpack.c.l.b16 %v9025
  %v10780 = vunpack.c.h.b16 %v9025
  %v10781 = vunpack.c.l.b16 %v9026
  %v10782 = vunpack.c.l.b16 %v9027
  %v10783 = vunpack.c.h.b16 %v9027
  %v10784 = vunpack.c.l.b16 %v9028
  %v10785 = vunpack.c.h.b16 %v9028
  %v10786 = vunpack.c.l.b16 %v9029
  %v10787 = vunpack.c.h.b16 %v9029
  %v10788 = vunpack.c.l.b16 %v9030
  %v10789 = vunpack.c.l.b16 %v9031
  %v10790 = vunpack.c.h.b16 %v9031
  %v10791 = vunpack.c.l.b16 %v9032
  %v10792 = vunpack.c.h.b16 %v9032
  %v10793 = vunpack.c.l.b16 %v9033
  %v10794 = vunpack.c.h.b16 %v9033
  %v10795 = vunpack.c.l.b16 %v9034
  %v10796 = vunpack.c.l.b16 %v9035
  %v10797 = vunpack.c.h.b16 %v9035
  %v10798 = vunpack.c.l.b16 %v9036
  %v10799 = vunpack.c.h.b16 %v9036
  %v10800 = vunpack.c.l.b16 %v9037
  %v10801 = vunpack.c.h.b16 %v9037
  %v10802 = vunpack.c.l.b16 %v9038
  %v10803 = vunpack.c.l.b16 %v9039
  %v10804 = vunpack.c.h.b16 %v9039
  %v10805 = vunpack.c.l.b16 %v9040
  %v10806 = vunpack.c.h.b16 %v9040
  %v10807 = vunpack.c.l.b16 %v9041
  %v10808 = vunpack.c.h.b16 %v9041
  %v10809 = vunpack.c.l.b16 %v9042
  %v10810 = vunpack.c.l.b16 %v9043
  %v10811 = vunpack.c.h.b16 %v9043
  %v10812 = vunpack.c.l.b16 %v9044
  %v10813 = vunpack.c.h.b16 %v9044
  %v10814 = vunpack.c.l.b16 %v9045
  %v10815 = vunpack.c.h.b16 %v9045
  %v10816 = vunpack.c.l.b16 %v9046
  %v10817 = vunpack.c.l.b16 %v9047
  %v10818 = vunpack.c.h.b16 %v9047
  %v10819 = vunpack.c.l.b16 %v9048
  %v10820 = vunpack.c.h.b16 %v9048
  %v10821 = vunpack.c.l.b16 %v9049
  %v10822 = vunpack.c.h.b16 %v9049
  %v10823 = vunpack.c.l.b16 %v9050
  %v10824 = vunpack.c.l.b16 %v9051
  %v10825 = vunpack.c.h.b16 %v9051
  %v10826 = vunpack.c.l.b16 %v9052
  %v10827 = vunpack.c.h.b16 %v9052
  %v10828 = vunpack.c.l.b16 %v9053
  %v10829 = vunpack.c.h.b16 %v9053
  %v10830 = vunpack.c.l.b16 %v9054
  %v10831 = vunpack.c.l.b16 %v9055
  %v10832 = vunpack.c.h.b16 %v9055
  %v10833 = vunpack.c.l.b16 %v9056
  %v10834 = vunpack.c.h.b16 %v9056
  %v10835 = vunpack.c.l.b16 %v9057
  %v10836 = vunpack.c.h.b16 %v9057
  %v10837 = vunpack.c.l.b16 %v9058
  %v10838 = vunpack.c.l.b16 %v9059
  %v10839 = vunpack.c.h.b16 %v9059
  %v10840 = vunpack.c.l.b16 %v9060
  %v10841 = vunpack.c.h.b16 %v9060
  %v10842 = vunpack.c.l.b16 %v9061
  %v10843 = vunpack.c.h.b16 %v9061
  %v10844 = vunpack.c.l.b16 %v9062
  %v10845 = vunpack.c.l.b16 %v9063
  %v10846 = vunpack.c.h.b16 %v9063
  %v10847 = vunpack.c.l.b16 %v9064
  %v10848 = vunpack.c.h.b16 %v9064
  %v10849 = vunpack.c.l.b16 %v9065
  %v10850 = vunpack.c.h.b16 %v9065
  %v10851 = vunpack.c.l.b16 %v9066
  %v10852 = vunpack.c.l.b16 %v9067
  %v10853 = vunpack.c.h.b16 %v9067
  %v10854 = vunpack.c.l.b16 %v9068
  %v10855 = vunpack.c.h.b16 %v9068
  %v10856 = vunpack.c.l.b16 %v9069
  %v10857 = vunpack.c.h.b16 %v9069
  %v10858 = vunpack.c.l.b16 %v9070
  %v10859 = vunpack.c.l.b16 %v9071
  %v10860 = vunpack.c.h.b16 %v9071
  %v10861 = vunpack.c.l.b16 %v9072
  %v10862 = vunpack.c.h.b16 %v9072
  %v10863 = vunpack.c.l.b16 %v9073
  %v10864 = vunpack.c.h.b16 %v9073
  %v10865 = vunpack.c.l.b16 %v9074
  %v10866 = vunpack.c.l.b16 %v9075
  %v10867 = vunpack.c.h.b16 %v9075
  %v10868 = vunpack.c.l.b16 %v9076
  %v10869 = vunpack.c.h.b16 %v9076
  %v10870 = vunpack.c.l.b16 %v9077
  %v10871 = vunpack.c.h.b16 %v9077
  %v10872 = vunpack.c.l.b16 %v9078
  %v10873 = vunpack.c.l.b16 %v9079
  %v10874 = vunpack.c.h.b16 %v9079
  %v10875 = vunpack.c.l.b16 %v9080
  %v10876 = vunpack.c.h.b16 %v9080
  %v10877 = vunpack.c.l.b16 %v9081
  %v10878 = vunpack.c.h.b16 %v9081
  %v10879 = vunpack.c.l.b16 %v9082
  %v10880 = vunpack.c.l.b16 %v9083
  %v10881 = vunpack.c.h.b16 %v9083
  %v10882 = vunpack.c.l.b16 %v9084
  %v10883 = vunpack.c.h.b16 %v9084
  %v10884 = vunpack.c.l.b16 %v9085
  %v10885 = vunpack.c.h.b16 %v9085
  %v10886 = vunpack.c.l.b16 %v9086
  %v10887 = vunpack.c.l.b16 %v9087
  %v10888 = vunpack.c.h.b16 %v9087
  %v10889 = vunpack.c.l.b16 %v9088
  %v10890 = vunpack.c.h.b16 %v9088
  %v10891 = vunpack.c.l.b16 %v9089
  %v10892 = vunpack.c.h.b16 %v9089
  %v10893 = vunpack.c.l.b16 %v9090
  %v10894 = vunpack.c.l.b16 %v9091
  %v10895 = vunpack.c.h.b16 %v9091
  %v10896 = vunpack.c.l.b16 %v9092
  %v10897 = vunpack.c.h.b16 %v9092
  %v10898 = vunpack.c.l.b16 %v9093
  %v10899 = vunpack.c.h.b16 %v9093
  %v10900 = vunpack.c.l.b16 %v9094
  %v10901 = vunpack.c.l.b16 %v9095
  %v10902 = vunpack.c.h.b16 %v9095
  %v10903 = vunpack.c.l.b16 %v9096
  %v10904 = vunpack.c.h.b16 %v9096
  %v10905 = vunpack.c.l.b16 %v9097
  %v10906 = vunpack.c.h.b16 %v9097
  %v10907 = vunpack.c.l.b16 %v9098
  %v10908 = vunpack.c.l.b16 %v9099
  %v10909 = vunpack.c.h.b16 %v9099
  %v10910 = vunpack.c.l.b16 %v9100
  %v10911 = vunpack.c.h.b16 %v9100
  %v10912 = vunpack.c.l.b16 %v9101
  %v10913 = vunpack.c.h.b16 %v9101
  %v10914 = vunpack.c.l.b16 %v9102
  %v10915 = vunpack.c.l.b16 %v9103
  %v10916 = vunpack.c.h.b16 %v9103
  %v10917 = vunpack.c.l.b16 %v9104
  %v10918 = vunpack.c.h.b16 %v9104
  %v10919 = vunpack.c.l.b16 %v9105
  %v10920 = vunpack.c.h.b16 %v9105
  %v10921 = vunpack.c.l.b16 %v9106
  %v10922 = vunpack.c.l.b16 %v9107
  %v10923 = vunpack.c.h.b16 %v9107
  %v10924 = vunpack.c.l.b16 %v9108
  %v10925 = vunpack.c.h.b16 %v9108
  %v10926 = vunpack.c.l.b16 %v9109
  %v10927 = vunpack.c.h.b16 %v9109
  %v10928 = vunpack.c.l.b16 %v9110
  %v10929 = vunpack.c.l.b16 %v9111
  %v10930 = vunpack.c.h.b16 %v9111
  %v10931 = vunpack.c.l.b16 %v9112
  %v10932 = vunpack.c.h.b16 %v9112
  %v10933 = vunpack.c.l.b16 %v9113
  %v10934 = vunpack.c.h.b16 %v9113
  %v10935 = vunpack.c.l.b16 %v9114
  %v10936 = vunpack.c.l.b16 %v9115
  %v10937 = vunpack.c.h.b16 %v9115
  %v10938 = vunpack.c.l.b16 %v9116
  %v10939 = vunpack.c.h.b16 %v9116
  %v10940 = vunpack.c.l.b16 %v9117
  %v10941 = vunpack.c.h.b16 %v9117
  %v10942 = vunpack.c.l.b16 %v9118
  %v10943 = vunpack.c.l.b16 %v9119
  %v10944 = vunpack.c.h.b16 %v9119
  %v10945 = vunpack.c.l.b16 %v9120
  %v10946 = vunpack.c.h.b16 %v9120
  %v10947 = vunpack.c.l.b16 %v9121
  %v10948 = vunpack.c.h.b16 %v9121
  %v10949 = vunpack.c.l.b16 %v9122
  %v10950 = vunpack.c.l.b16 %v9123
  %v10951 = vunpack.c.h.b16 %v9123
  %v10952 = vunpack.c.l.b16 %v9124
  %v10953 = vunpack.c.h.b16 %v9124
  %v10954 = vunpack.c.l.b16 %v9125
  %v10955 = vunpack.c.h.b16 %v9125
  %v10956 = vunpack.c.l.b16 %v9126
  %v10957 = vunpack.c.l.b16 %v9127
  %v10958 = vunpack.c.h.b16 %v9127
  %v10959 = vunpack.c.l.b16 %v9128
  %v10960 = vunpack.c.h.b16 %v9128
  %v10961 = vunpack.c.l.b16 %v9129
  %v10962 = vunpack.c.h.b16 %v9129
  %v10963 = vunpack.c.l.b16 %v9130
  %v10964 = vunpack.c.l.b16 %v9131
  %v10965 = vunpack.c.h.b16 %v9131
  %v10966 = vunpack.c.l.b16 %v9132
  %v10967 = vunpack.c.h.b16 %v9132
  %v10968 = vunpack.c.l.b16 %v9133
  %v10969 = vunpack.c.h.b16 %v9133
  %v10970 = vunpack.c.l.b16 %v9134
  %v10971 = vunpack.c.l.b16 %v9135
  %v10972 = vunpack.c.h.b16 %v9135
  %v10973 = vunpack.c.l.b16 %v9136
  %v10974 = vunpack.c.h.b16 %v9136
  %v10975 = vunpack.c.l.b16 %v9137
  %v10976 = vunpack.c.h.b16 %v9137
  %v10977 = vunpack.c.l.b16 %v9138
  %v10978 = vunpack.c.l.b16 %v9139
  %v10979 = vunpack.c.h.b16 %v9139
  %v10980 = vunpack.c.l.b16 %v9140
  %v10981 = vunpack.c.h.b16 %v9140
  %v10982 = vunpack.c.l.b16 %v9141
  %v10983 = vunpack.c.h.b16 %v9141
  %v10984 = vunpack.c.l.b16 %v9142
  %v10985 = vunpack.c.l.b16 %v9143
  %v10986 = vunpack.c.h.b16 %v9143
  %v10987 = vunpack.c.l.b16 %v9144
  %v10988 = vunpack.c.h.b16 %v9144
  %v10989 = vunpack.c.l.b16 %v9145
  %v10990 = vunpack.c.h.b16 %v9145
  %v10991 = vunpack.c.l.b16 %v9146
  %v10992 = vunpack.c.l.b16 %v9147
  %v10993 = vunpack.c.h.b16 %v9147
  %v10994 = vunpack.c.l.b16 %v9148
  %v10995 = vunpack.c.h.b16 %v9148
  %v10996 = vunpack.c.l.b16 %v9149
  %v10997 = vunpack.c.h.b16 %v9149
  %v10998 = vunpack.c.l.b16 %v9150
  %v10999 = vunpack.c.l.b16 %v9151
  %v11000 = vunpack.c.h.b16 %v9151
  %v11001 = vunpack.c.l.b16 %v9152
  %v11002 = vunpack.c.h.b16 %v9152
  %v11003 = vunpack.c.l.b16 %v9153
  %v11004 = vunpack.c.h.b16 %v9153
  %v11005 = vunpack.c.l.b16 %v9154
  %v11006 = vunpack.c.l.b16 %v9155
  %v11007 = vunpack.c.h.b16 %v9155
  %v11008 = vunpack.c.l.b16 %v9156
  %v11009 = vunpack.c.h.b16 %v9156
  %v11010 = vunpack.c.l.b16 %v9157
  %v11011 = vunpack.c.h.b16 %v9157
  %v11012 = vunpack.c.l.b16 %v9158
  %v11013 = vunpack.c.l.b16 %v9159
  %v11014 = vunpack.c.h.b16 %v9159
  %v11015 = vunpack.c.l.b16 %v9160
  %v11016 = vunpack.c.h.b16 %v9160
  %v11017 = vunpack.c.l.b16 %v9161
  %v11018 = vunpack.c.h.b16 %v9161
  %v11019 = vunpack.c.l.b16 %v9162
  %v11020 = vunpack.c.l.b16 %v9163
  %v11021 = vunpack.c.h.b16 %v9163
  %v11022 = vunpack.c.l.b16 %v9164
  %v11023 = vunpack.c.h.b16 %v9164
  %v11024 = vunpack.c.l.b16 %v9165
  %v11025 = vunpack.c.h.b16 %v9165
  %v11026 = vunpack.c.l.b16 %v9166
  %v11027 = vunpack.c.l.b16 %v9167
  %v11028 = vunpack.c.h.b16 %v9167
  %v11029 = vunpack.c.l.b16 %v9168
  %v11030 = vunpack.c.h.b16 %v9168
  %v11031 = vunpack.c.l.b16 %v9169
  %v11032 = vunpack.c.h.b16 %v9169
  %v11033 = vunpack.c.l.b16 %v9170
  %v11034 = vunpack.c.l.b16 %v9171
  %v11035 = vunpack.c.h.b16 %v9171
  %v11036 = vunpack.c.l.b16 %v9172
  %v11037 = vunpack.c.h.b16 %v9172
  %v11038 = vunpack.c.l.b16 %v9173
  %v11039 = vunpack.c.h.b16 %v9173
  %v11040 = vunpack.c.l.b16 %v9174
  %v11041 = vunpack.c.l.b16 %v9175
  %v11042 = vunpack.c.h.b16 %v9175
  %v11043 = vunpack.c.l.b16 %v9176
  %v11044 = vunpack.c.h.b16 %v9176
  %v11045 = vunpack.c.l.b16 %v9177
  %v11046 = vunpack.c.h.b16 %v9177
  %v11047 = vunpack.c.l.b16 %v9178
  %v11048 = vunpack.c.l.b16 %v9179
  %v11049 = vunpack.c.h.b16 %v9179
  %v11050 = vunpack.c.l.b16 %v9180
  %v11051 = vunpack.c.h.b16 %v9180
  %v11052 = vunpack.c.l.b16 %v9181
  %v11053 = vunpack.c.h.b16 %v9181
  %v11054 = vunpack.c.l.b16 %v9182
  %v11055 = vunpack.c.l.b16 %v9183
  %v11056 = vunpack.c.h.b16 %v9183
  %v11057 = vunpack.c.l.b16 %v9184
  %v11058 = vunpack.c.h.b16 %v9184
  %v11059 = vunpack.c.l.b16 %v9185
  %v11060 = vunpack.c.h.b16 %v9185
  %v11061 = vunpack.c.l.b16 %v9186
  %v11062 = vunpack.c.l.b16 %v9187
  %v11063 = vunpack.c.h.b16 %v9187
  %v11064 = vunpack.c.l.b16 %v9188
  %v11065 = vunpack.c.h.b16 %v9188
  %v11066 = vunpack.c.l.b16 %v9189
  %v11067 = vunpack.c.h.b16 %v9189
  %v11068 = vunpack.c.l.b16 %v9190
  %v11069 = vunpack.c.l.b16 %v9191
  %v11070 = vunpack.c.h.b16 %v9191
  %v11071 = vunpack.c.l.b16 %v9192
  %v11072 = vunpack.c.h.b16 %v9192
  %v11073 = vunpack.c.l.b16 %v9193
  %v11074 = vunpack.c.h.b16 %v9193
  %v11075 = vunpack.c.l.b16 %v9194
  %v11076 = vunpack.c.l.b16 %v9195
  %v11077 = vunpack.c.h.b16 %v9195
  %v11078 = vunpack.c.l.b16 %v9196
  %v11079 = vunpack.c.h.b16 %v9196
  %v11080 = vunpack.c.l.b16 %v9197
  %v11081 = vunpack.c.h.b16 %v9197
  %v11082 = vunpack.c.l.b16 %v9198
  %v11083 = vunpack.c.l.b16 %v9199
  %v11084 = vunpack.c.h.b16 %v9199
  %v11085 = vunpack.c.l.b16 %v9200
  %v11086 = vunpack.c.h.b16 %v9200
  %v11087 = vunpack.c.l.b16 %v9201
  %v11088 = vunpack.c.h.b16 %v9201
  %v11089 = vunpack.c.l.b16 %v9202
  %v11090 = vunpack.c.l.b16 %v9203
  %v11091 = vunpack.c.h.b16 %v9203
  %v11092 = vunpack.c.l.b16 %v9204
  %v11093 = vunpack.c.h.b16 %v9204
  %v11094 = vunpack.c.l.b16 %v9205
  %v11095 = vunpack.c.h.b16 %v9205
  %v11096 = vunpack.c.l.b16 %v9206
  %v11097 = vunpack.c.l.b16 %v9207
  %v11098 = vunpack.c.h.b16 %v9207
  %v11099 = vunpack.c.l.b16 %v9208
  %v11100 = vunpack.c.h.b16 %v9208
  %v11101 = vunpack.c.l.b16 %v9209
  %v11102 = vunpack.c.h.b16 %v9209
  %v11103 = vunpack.c.l.b16 %v9210
  %v11104 = vunpack.c.l.b16 %v9211
  %v11105 = vunpack.c.h.b16 %v9211
  %v11106 = vunpack.c.l.b16 %v9212
  %v11107 = vunpack.c.h.b16 %v9212
  %v11108 = vunpack.c.l.b16 %v9213
  %v11109 = vunpack.c.h.b16 %v9213
  %v11110 = vunpack.c.l.b16 %v9214
  %v11111 = vunpack.c.l.b16 %v9215
  %v11112 = vunpack.c.h.b16 %v9215
  %v11113 = vunpack.c.l.b16 %v9216
  %v11114 = vunpack.c.h.b16 %v9216
  %v11115 = vunpack.c.l.b16 %v9217
  %v11116 = vunpack.c.h.b16 %v9217
  %v11117 = vunpack.c.l.b16 %v9218
  %v11118 = vunpack.c.l.b16 %v9219
  %v11119 = vunpack.c.h.b16 %v9219
  %v11120 = vunpack.c.l.b16 %v9220
  %v11121 = vunpack.c.h.b16 %v9220
  %v11122 = vunpack.c.l.b16 %v9221
  %v11123 = vunpack.c.h.b16 %v9221
  %v11124 = vunpack.c.l.b16 %v9222
  %v11125 = vunpack.c.l.b16 %v9223
  %v11126 = vunpack.c.h.b16 %v9223
  %v11127 = vunpack.c.l.b16 %v9224
  %v11128 = vunpack.c.h.b16 %v9224
  %v11129 = vunpack.c.l.b16 %v9225
  %v11130 = vunpack.c.h.b16 %v9225
  %v11131 = vunpack.c.l.b16 %v9226
  %v11132 = vunpack.c.l.b16 %v9227
  %v11133 = vunpack.c.h.b16 %v9227
  %v11134 = vunpack.c.l.b16 %v9228
  %v11135 = vunpack.c.h.b16 %v9228
  %v11136 = vunpack.c.l.b16 %v9229
  %v11137 = vunpack.c.h.b16 %v9229
  %v11138 = vunpack.c.l.b16 %v9230
  %v11139 = vunpack.c.l.b16 %v9231
  %v11140 = vunpack.c.h.b16 %v9231
  %v11141 = vunpack.c.l.b16 %v9232
  %v11142 = vunpack.c.h.b16 %v9232
  %v11143 = vunpack.c.l.b16 %v9233
  %v11144 = vunpack.c.h.b16 %v9233
  %v11145 = vunpack.c.l.b16 %v9234
  %v11146 = vunpack.c.l.b16 %v9235
  %v11147 = vunpack.c.h.b16 %v9235
  %v11148 = vunpack.c.l.b16 %v9236
  %v11149 = vunpack.c.h.b16 %v9236
  %v11150 = vunpack.c.l.b16 %v9237
  %v11151 = vunpack.c.h.b16 %v9237
  %v11152 = vunpack.c.l.b16 %v9238
  %v11153 = vunpack.c.l.b16 %v9239
  %v11154 = vunpack.c.h.b16 %v9239
  %v11155 = vunpack.c.l.b16 %v9240
  %v11156 = vunpack.c.h.b16 %v9240
  %v11157 = vunpack.c.l.b16 %v9241
  %v11158 = vunpack.c.h.b16 %v9241
  %v11159 = vunpack.c.l.b16 %v9242
  %v11160 = vunpack.c.l.b16 %v9243
  %v11161 = vunpack.c.h.b16 %v9243
  %v11162 = vunpack.c.l.b16 %v9244
  %v11163 = vunpack.c.h.b16 %v9244
  %v11164 = vunpack.c.l.b16 %v9245
  %v11165 = vunpack.c.h.b16 %v9245
  %v11166 = vunpack.c.l.b16 %v9246
  %v11167 = vunpack.c.l.b16 %v9247
  %v11168 = vunpack.c.h.b16 %v9247
  %v11169 = vunpack.c.l.b16 %v9248
  %v11170 = vunpack.c.h.b16 %v9248
  %v11171 = vunpack.c.l.b16 %v9249
  %v11172 = vunpack.c.h.b16 %v9249
  %v11173 = vunpack.c.l.b16 %v9250
  %v11174 = vunpack.c.l.b16 %v9251
  %v11175 = vunpack.c.h.b16 %v9251
  %v11176 = vunpack.c.l.b16 %v9252
  %v11177 = vunpack.c.h.b16 %v9252
  %v11178 = vunpack.c.l.b16 %v9253
  %v11179 = vunpack.c.h.b16 %v9253
  %v11180 = vunpack.c.l.b16 %v9254
  %v11181 = vunpack.c.l.b16 %v9255
  %v11182 = vunpack.c.h.b16 %v9255
  %v11183 = vunpack.c.l.b16 %v9256
  %v11184 = vunpack.c.h.b16 %v9256
  %v11185 = vunpack.c.l.b16 %v9257
  %v11186 = vunpack.c.h.b16 %v9257
  %v11187 = vunpack.c.l.b16 %v9258
  %v11188 = vunpack.c.l.b16 %v9259
  %v11189 = vunpack.c.h.b16 %v9259
  %v11190 = vunpack.c.l.b16 %v9260
  %v11191 = vunpack.c.h.b16 %v9260
  %v11192 = vunpack.c.l.b16 %v9261
  %v11193 = vunpack.c.h.b16 %v9261
  %v11194 = vunpack.c.l.b16 %v9262
  %v11195 = vunpack.c.l.b16 %v9263
  %v11196 = vunpack.c.h.b16 %v9263
  %v11197 = vunpack.c.l.b16 %v9264
  %v11198 = vunpack.c.h.b16 %v9264
  %v11199 = vunpack.c.l.b16 %v9265
  %v11200 = vunpack.c.h.b16 %v9265
  %v11201 = vunpack.c.l.b16 %v9266
  %v11202 = vunpack.c.l.b16 %v9267
  %v11203 = vunpack.c.h.b16 %v9267
  %v11204 = vunpack.c.l.b16 %v9268
  %v11205 = vunpack.c.h.b16 %v9268
  %v11206 = vunpack.c.l.b16 %v9269
  %v11207 = vunpack.c.h.b16 %v9269
  %v11208 = vunpack.c.l.b16 %v9270
  %v11209 = vunpack.c.l.b16 %v9271
  %v11210 = vunpack.c.h.b16 %v9271
  %v11211 = vunpack.c.l.b16 %v9272
  %v11212 = vunpack.c.h.b16 %v9272
  %v11213 = vunpack.c.l.b16 %v9273
  %v11214 = vunpack.c.h.b16 %v9273
  %v11215 = vunpack.c.l.b16 %v9274
  %v11216 = vunpack.c.l.b16 %v9275
  %v11217 = vunpack.c.h.b16 %v9275
  %v11218 = vunpack.c.l.b16 %v9276
  %v11219 = vunpack.c.h.b16 %v9276
  %v11220 = vunpack.c.l.b16 %v9277
  %v11221 = vunpack.c.h.b16 %v9277
  %v11222 = vunpack.c.l.b16 %v9278
  %v11223 = vunpack.c.l.b16 %v9279
  %v11224 = vunpack.c.h.b16 %v9279
  %v11225 = vunpack.c.l.b16 %v9280
  %v11226 = vunpack.c.h.b16 %v9280
  %v11227 = vunpack.c.l.b16 %v9281
  %v11228 = vunpack.c.h.b16 %v9281
  %v11229 = vunpack.c.l.b16 %v9282
  %v11230 = vunpack.c.l.b16 %v9283
  %v11231 = vunpack.c.h.b16 %v9283
  %v11232 = vunpack.c.l.b16 %v9284
  %v11233 = vunpack.c.h.b16 %v9284
  %v11234 = vunpack.c.l.b16 %v9285
  %v11235 = vunpack.c.h.b16 %v9285
  %v11236 = vunpack.c.l.b16 %v9286
  %v11237 = vunpack.c.l.b16 %v9287
  %v11238 = vunpack.c.h.b16 %v9287
  %v11239 = vunpack.c.l.b16 %v9288
  %v11240 = vunpack.c.h.b16 %v9288
  %v11241 = vunpack.c.l.b16 %v9289
  %v11242 = vunpack.c.h.b16 %v9289
  %v11243 = vunpack.c.l.b16 %v9290
  %v11244 = vunpack.c.l.b16 %v9291
  %v11245 = vunpack.c.h.b16 %v9291
  %v11246 = vunpack.c.l.b16 %v9292
  %v11247 = vunpack.c.h.b16 %v9292
  %v11248 = vunpack.c.l.b16 %v9293
  %v11249 = vunpack.c.h.b16 %v9293
  %v11250 = vunpack.c.l.b16 %v9294
  %v11251 = vunpack.c.l.b16 %v9295
  %v11252 = vunpack.c.h.b16 %v9295
  %v11253 = vunpack.c.l.b16 %v9296
  %v11254 = vunpack.c.h.b16 %v9296
  %v11255 = vunpack.c.l.b16 %v9297
  %v11256 = vunpack.c.h.b16 %v9297
  %v11257 = vunpack.c.l.b16 %v9298
  %v11258 = vunpack.c.l.b16 %v9299
  %v11259 = vunpack.c.h.b16 %v9299
  %v11260 = vunpack.c.l.b16 %v9300
  %v11261 = vunpack.c.h.b16 %v9300
  %v11262 = vunpack.c.l.b16 %v9301
  %v11263 = vunpack.c.h.b16 %v9301
  %v11264 = vunpack.c.l.b16 %v9302
  %v11265 = vunpack.c.l.b16 %v9303
  %v11266 = vunpack.c.h.b16 %v9303
  %v11267 = vunpack.c.l.b16 %v9304
  %v11268 = vunpack.c.h.b16 %v9304
  %v11269 = vunpack.c.l.b16 %v9305
  %v11270 = vunpack.c.h.b16 %v9305
  %v11271 = vunpack.c.l.b16 %v9306
  %v11272 = vunpack.c.l.b16 %v9307
  %v11273 = vunpack.c.h.b16 %v9307
  %v11274 = vunpack.c.l.b16 %v9308
  %v11275 = vunpack.c.h.b16 %v9308
  %v11276 = vunpack.c.l.b16 %v9309
  %v11277 = vunpack.c.h.b16 %v9309
  %v11278 = vunpack.c.l.b16 %v9310
  %v11279 = vunpack.c.l.b16 %v9311
  %v11280 = vunpack.c.h.b16 %v9311
  %v11281 = vunpack.c.l.b16 %v9312
  %v11282 = vunpack.c.h.b16 %v9312
  %v11283 = vunpack.c.l.b16 %v9313
  %v11284 = vunpack.c.h.b16 %v9313
  %v11285 = vunpack.c.l.b16 %v9314
  %v11286 = vunpack.c.l.b16 %v9315
  %v11287 = vunpack.c.h.b16 %v9315
  %v11288 = vunpack.c.l.b16 %v9316
  %v11289 = vunpack.c.h.b16 %v9316
  %v11290 = vunpack.c.l.b16 %v9317
  %v11291 = vunpack.c.h.b16 %v9317
  %v11292 = vunpack.c.l.b16 %v9318
  %v11293 = vunpack.c.l.b16 %v9319
  %v11294 = vunpack.c.h.b16 %v9319
  %v11295 = vunpack.c.l.b16 %v9320
  %v11296 = vunpack.c.h.b16 %v9320
  %v11297 = vunpack.c.l.b16 %v9321
  %v11298 = vunpack.c.h.b16 %v9321
  %v11299 = vunpack.c.l.b16 %v9322
  %v11300 = vunpack.c.l.b16 %v9323
  %v11301 = vunpack.c.h.b16 %v9323
  %v11302 = vunpack.c.l.b16 %v9324
  %v11303 = vunpack.c.h.b16 %v9324
  %v11304 = vunpack.c.l.b16 %v9325
  %v11305 = vunpack.c.h.b16 %v9325
  %v11306 = vunpack.c.l.b16 %v9326
  %v11307 = vunpack.c.l.b16 %v9327
  %v11308 = vunpack.c.h.b16 %v9327
  %v11309 = vunpack.c.l.b16 %v9328
  %v11310 = vunpack.c.h.b16 %v9328
  %v11311 = vunpack.c.l.b16 %v9329
  %v11312 = vunpack.c.h.b16 %v9329
  %v11313 = vunpack.c.l.b16 %v9330
  %v11314 = vunpack.c.l.b16 %v9331
  %v11315 = vunpack.c.h.b16 %v9331
  %v11316 = vunpack.c.l.b16 %v9332
  %v11317 = vunpack.c.h.b16 %v9332
  %v11318 = vunpack.c.l.b16 %v9333
  %v11319 = vunpack.c.h.b16 %v9333
  %v11320 = vunpack.c.l.b16 %v9334
  %v11321 = vunpack.c.l.b16 %v9335
  %v11322 = vunpack.c.h.b16 %v9335
  %v11323 = vunpack.c.l.b16 %v9336
  %v11324 = vunpack.c.h.b16 %v9336
  %v11325 = vunpack.c.l.b16 %v9337
  %v11326 = vunpack.c.h.b16 %v9337
  %v11327 = vunpack.c.l.b16 %v9338
  %v11328 = vunpack.c.l.b16 %v9339
  %v11329 = vunpack.c.h.b16 %v9339
  %v11330 = vunpack.c.l.b16 %v9340
  %v11331 = vunpack.c.h.b16 %v9340
  %v11332 = vunpack.c.l.b16 %v9341
  %v11333 = vunpack.c.h.b16 %v9341
  %v11334 = vunpack.c.l.b16 %v9342
  %v11335 = vunpack.c.l.b16 %v9343
  %v11336 = vunpack.c.h.b16 %v9343
  %v11337 = vunpack.c.l.b16 %v9344
  %v11338 = vunpack.c.h.b16 %v9344
  %v11339 = vunpack.c.l.b16 %v9345
  %v11340 = vunpack.c.h.b16 %v9345
  %v11341 = vunpack.c.l.b16 %v9346
  %v11342 = vunpack.c.l.b16 %v9347
  %v11343 = vunpack.c.h.b16 %v9347
  %v11344 = vunpack.c.l.b16 %v9348
  %v11345 = vunpack.c.h.b16 %v9348
  %v11346 = vunpack.c.l.b16 %v9349
  %v11347 = vunpack.c.h.b16 %v9349
  %v11348 = vunpack.c.l.b16 %v9350
  %v11349 = vunpack.c.l.b16 %v9351
  %v11350 = vunpack.c.h.b16 %v9351
  %v11351 = vunpack.c.l.b16 %v9352
  %v11352 = vunpack.c.h.b16 %v9352
  %v11353 = vunpack.c.l.b16 %v9353
  %v11354 = vunpack.c.h.b16 %v9353
  %v11355 = vunpack.c.l.b16 %v9354
  %v11356 = vunpack.c.l.b16 %v9355
  %v11357 = vunpack.c.h.b16 %v9355
  %v11358 = vunpack.c.l.b16 %v9356
  %v11359 = vunpack.c.h.b16 %v9356
  %v11360 = vunpack.c.l.b16 %v9357
  %v11361 = vunpack.c.h.b16 %v9357
  %v11362 = vunpack.c.l.b16 %v9358
  %v11363 = vunpack.c.l.b16 %v9359
  %v11364 = vunpack.c.h.b16 %v9359
  %v11365 = vunpack.c.l.b16 %v9360
  %v11366 = vunpack.c.h.b16 %v9360
  %v11367 = vunpack.c.l.b16 %v9361
  %v11368 = vunpack.c.h.b16 %v9361
  %v11369 = vunpack.c.l.b16 %v9362
  %v11370 = vunpack.c.l.b16 %v9363
  %v11371 = vunpack.c.h.b16 %v9363
  %v11372 = vunpack.c.l.b16 %v9364
  %v11373 = vunpack.c.h.b16 %v9364
  %v11374 = vunpack.c.l.b16 %v9365
  %v11375 = vunpack.c.h.b16 %v9365
  %v11376 = vunpack.c.l.b16 %v9366
  %v11377 = vunpack.c.l.b16 %v9367
  %v11378 = vunpack.c.h.b16 %v9367
  %v11379 = vunpack.c.l.b16 %v9368
  %v11380 = vunpack.c.h.b16 %v9368
  %v11381 = vunpack.c.l.b16 %v9369
  %v11382 = vunpack.c.h.b16 %v9369
  %v11383 = vunpack.c.l.b16 %v9370
  %v11384 = vunpack.c.l.b16 %v9371
  %v11385 = vunpack.c.h.b16 %v9371
  %v11386 = vunpack.c.l.b16 %v9372
  %v11387 = vunpack.c.h.b16 %v9372
  %v11388 = vunpack.c.l.b16 %v9373
  %v11389 = vunpack.c.h.b16 %v9373
  %v11390 = vunpack.c.l.b16 %v9374
  %v11391 = vunpack.c.l.b16 %v9375
  %v11392 = vunpack.c.h.b16 %v9375
  %v11393 = vunpack.c.l.b16 %v9376
  %v11394 = vunpack.c.h.b16 %v9376
  %v11395 = vunpack.c.l.b16 %v9377
  %v11396 = vunpack.c.h.b16 %v9377
  %v11397 = vunpack.c.l.b16 %v9378
  %v11398 = vunpack.c.l.b16 %v9379
  %v11399 = vunpack.c.h.b16 %v9379
  %v11400 = vunpack.c.l.b16 %v9380
  %v11401 = vunpack.c.h.b16 %v9380
  %v11402 = vunpack.c.l.b16 %v9381
  %v11403 = vunpack.c.h.b16 %v9381
  %v11404 = vunpack.c.l.b16 %v9382
  %v11405 = vunpack.c.l.b16 %v9383
  %v11406 = vunpack.c.h.b16 %v9383
  %v11407 = vunpack.c.l.b16 %v9384
  %v11408 = vunpack.c.h.b16 %v9384
  %v11409 = vunpack.c.l.b16 %v9385
  %v11410 = vunpack.c.h.b16 %v9385
  %v11411 = vunpack.c.l.b16 %v9386
  %v11412 = vunpack.c.l.b16 %v9387
  %v11413 = vunpack.c.h.b16 %v9387
  %v11414 = vunpack.c.l.b16 %v9388
  %v11415 = vunpack.c.h.b16 %v9388
  %v11416 = vunpack.c.l.b16 %v9389
  %v11417 = vunpack.c.h.b16 %v9389
  %v11418 = vunpack.c.l.b16 %v9390
  %v11419 = vunpack.c.l.b16 %v9391
  %v11420 = vunpack.c.h.b16 %v9391
  %v11421 = vunpack.c.l.b16 %v9392
  %v11422 = vunpack.c.h.b16 %v9392
  %v11423 = vunpack.c.l.b16 %v9393
  %v11424 = vunpack.c.h.b16 %v9393
  %v11425 = vunpack.c.l.b16 %v9394
  %v11426 = vunpack.c.l.b16 %v9395
  %v11427 = vunpack.c.h.b16 %v9395
  %v11428 = vunpack.c.l.b16 %v9396
  %v11429 = vunpack.c.h.b16 %v9396
  %v11430 = vunpack.c.l.b16 %v9397
  %v11431 = vunpack.c.h.b16 %v9397
  %v11432 = vunpack.c.l.b16 %v9398
  %v11433 = vunpack.c.l.b16 %v9399
  %v11434 = vunpack.c.h.b16 %v9399
  %v11435 = vunpack.c.l.b16 %v9400
  %v11436 = vunpack.c.h.b16 %v9400
  %v11437 = vunpack.c.l.b16 %v9401
  %v11438 = vunpack.c.h.b16 %v9401
  %v11439 = vunpack.c.l.b16 %v9402
  %v11440 = vunpack.c.l.b16 %v9403
  %v11441 = vunpack.c.h.b16 %v9403
  %v11442 = vunpack.c.l.b16 %v9404
  %v11443 = vunpack.c.h.b16 %v9404
  %v11444 = vunpack.c.l.b16 %v9405
  %v11445 = vunpack.c.h.b16 %v9405
  %v11446 = vunpack.c.l.b16 %v9406
  %v11447 = vunpack.c.l.b16 %v9407
  %v11448 = vunpack.c.h.b16 %v9407
  %v11449 = vunpack.c.l.b16 %v9408
  %v11450 = vunpack.c.h.b16 %v9408
  %v11451 = vunpack.c.l.b16 %v9409
  %v11452 = vunpack.c.h.b16 %v9409
  %v11453 = vunpack.c.l.b16 %v9410
  %v11454 = vunpack.c.l.b16 %v9411
  %v11455 = vunpack.c.h.b16 %v9411
  %v11456 = vunpack.c.l.b16 %v9412
  %v11457 = vunpack.c.h.b16 %v9412
  %v11458 = vunpack.c.l.b16 %v9413
  %v11459 = vunpack.c.h.b16 %v9413
  %v11460 = vunpack.c.l.b16 %v9414
  %v11461 = vunpack.c.l.b16 %v9415
  %v11462 = vunpack.c.h.b16 %v9415
  %v11463 = vunpack.c.l.b16 %v9416
  %v11464 = vunpack.c.h.b16 %v9416
  %v11465 = vunpack.c.l.b16 %v9417
  %v11466 = vunpack.c.h.b16 %v9417
  %v11467 = vunpack.c.l.b16 %v9418
  %v11468 = vunpack.c.l.b16 %v9419
  %v11469 = vunpack.c.h.b16 %v9419
  %v11470 = vunpack.c.l.b16 %v9420
  %v11471 = vunpack.c.h.b16 %v9420
  %v11472 = vunpack.c.l.b16 %v9421
  %v11473 = vunpack.c.h.b16 %v9421
  %v11474 = vunpack.c.l.b16 %v9422
  %v11475 = vunpack.c.l.b16 %v9423
  %v11476 = vunpack.c.h.b16 %v9423
  %v11477 = vunpack.c.l.b16 %v9424
  %v11478 = vunpack.c.h.b16 %v9424
  %v11479 = vunpack.c.l.b16 %v9425
  %v11480 = vunpack.c.h.b16 %v9425
  %v11481 = vunpack.c.l.b16 %v9426
  %v11482 = vunpack.c.l.b16 %v9427
  %v11483 = vunpack.c.h.b16 %v9427
  %v11484 = vunpack.c.l.b16 %v9428
  %v11485 = vunpack.c.h.b16 %v9428
  %v11486 = vunpack.c.l.b16 %v9429
  %v11487 = vunpack.c.h.b16 %v9429
  %v11488 = vunpack.c.l.b16 %v9430
  %v11489 = vunpack.c.l.b16 %v9431
  %v11490 = vunpack.c.h.b16 %v9431
  %v11491 = vunpack.c.l.b16 %v9432
  %v11492 = vunpack.c.h.b16 %v9432
  %v11493 = vunpack.c.l.b16 %v9433
  %v11494 = vunpack.c.h.b16 %v9433
  %v11495 = vunpack.c.l.b16 %v9434
  %v11496 = vunpack.c.l.b16 %v9435
  %v11497 = vunpack.c.h.b16 %v9435
  %v11498 = vunpack.c.l.b16 %v9436
  %v11499 = vunpack.c.h.b16 %v9436
  %v11500 = vunpack.c.l.b16 %v9437
  %v11501 = vunpack.c.h.b16 %v9437
  %v11502 = vunpack.c.l.b16 %v9438
  %v11503 = vunpack.c.l.b16 %v9439
  %v11504 = vunpack.c.h.b16 %v9439
  %v11505 = vunpack.c.l.b16 %v9440
  %v11506 = vunpack.c.h.b16 %v9440
  %v11507 = vunpack.c.l.b16 %v9441
  %v11508 = vunpack.c.h.b16 %v9441
  %v11509 = vunpack.c.l.b16 %v9442
  %v11510 = vunpack.c.l.b16 %v9443
  %v11511 = vunpack.c.h.b16 %v9443
  %v11512 = vunpack.c.l.b16 %v9444
  %v11513 = vunpack.c.h.b16 %v9444
  %v11514 = vunpack.c.l.b16 %v9445
  %v11515 = vunpack.c.h.b16 %v9445
  %v11516 = vunpack.c.l.b16 %v9446
  %v11517 = vunpack.c.l.b16 %v9447
  %v11518 = vunpack.c.h.b16 %v9447
  %v11519 = vunpack.c.l.b16 %v9448
  %v11520 = vunpack.c.h.b16 %v9448
  %v11521 = vunpack.c.l.b16 %v9449
  %v11522 = vunpack.c.h.b16 %v9449
  %v11523 = vunpack.c.l.b16 %v9450
  %v11524 = vunpack.c.l.b16 %v9451
  %v11525 = vunpack.c.h.b16 %v9451
  %v11526 = vunpack.c.l.b16 %v9452
  %v11527 = vunpack.c.h.b16 %v9452
  %v11528 = vunpack.c.l.b16 %v9453
  %v11529 = vunpack.c.h.b16 %v9453
  %v11530 = vunpack.c.l.b16 %v9454
  %v11531 = vunpack.c.l.b16 %v9455
  %v11532 = vunpack.c.h.b16 %v9455
  %v11533 = vunpack.c.l.b16 %v9456
  %v11534 = vunpack.c.h.b16 %v9456
  %v11535 = vunpack.c.l.b16 %v9457
  %v11536 = vunpack.c.h.b16 %v9457
  %v11537 = vunpack.c.l.b16 %v9458
  %v11538 = vunpack.c.l.b16 %v9459
  %v11539 = vunpack.c.h.b16 %v9459
  %v11540 = vunpack.c.l.b16 %v9460
  %v11541 = vunpack.c.h.b16 %v9460
  %v11542 = vunpack.c.l.b16 %v9461
  %v11543 = vunpack.c.h.b16 %v9461
  %v11544 = vunpack.c.l.b16 %v9462
  %v11545 = vunpack.c.l.b16 %v9463
  %v11546 = vunpack.c.h.b16 %v9463
  %v11547 = vunpack.c.l.b16 %v9464
  %v11548 = vunpack.c.h.b16 %v9464
  %v11549 = vunpack.c.l.b16 %v9465
  %v11550 = vunpack.c.h.b16 %v9465
  %v11551 = vunpack.c.l.b16 %v9466
  %v11552 = vunpack.c.l.b16 %v9467
  %v11553 = vunpack.c.h.b16 %v9467
  %v11554 = vunpack.c.l.b16 %v9468
  %v11555 = vunpack.c.h.b16 %v9468
  %v11556 = vunpack.c.l.b16 %v9469
  %v11557 = vunpack.c.h.b16 %v9469
  %v11558 = vunpack.c.l.b16 %v9470
  %v11559 = vunpack.c.l.b16 %v9471
  %v11560 = vunpack.c.h.b16 %v9471
  %v11561 = vunpack.c.l.b16 %v9472
  %v11562 = vunpack.c.h.b16 %v9472
  %v11563 = vunpack.c.l.b16 %v9473
  %v11564 = vunpack.c.h.b16 %v9473
  %v11565 = vunpack.c.l.b16 %v9474
  %v11566 = vunpack.c.l.b16 %v9475
  %v11567 = vunpack.c.h.b16 %v9475
  %v11568 = vunpack.c.l.b16 %v9476
  %v11569 = vunpack.c.h.b16 %v9476
  %v11570 = vunpack.c.l.b16 %v9477
  %v11571 = vunpack.c.h.b16 %v9477
  %v11572 = vunpack.c.l.b16 %v9478
  %v11573 = vunpack.c.l.b16 %v9479
  %v11574 = vunpack.c.h.b16 %v9479
  %v11575 = vunpack.c.l.b16 %v9480
  %v11576 = vunpack.c.h.b16 %v9480
  %v11577 = vunpack.c.l.b16 %v9481
  %v11578 = vunpack.c.h.b16 %v9481
  %v11579 = vunpack.c.l.b16 %v9482
  %v11580 = vunpack.c.l.b16 %v9483
  %v11581 = vunpack.c.h.b16 %v9483
  %v11582 = vunpack.c.l.b16 %v9484
  %v11583 = vunpack.c.h.b16 %v9484
  %v11584 = vunpack.c.l.b16 %v9485
  %v11585 = vunpack.c.h.b16 %v9485
  %v11586 = vunpack.c.l.b16 %v9486
  %v11587 = vunpack.c.l.b16 %v9487
  %v11588 = vunpack.c.h.b16 %v9487
  %v11589 = vunpack.c.l.b16 %v9488
  %v11590 = vunpack.c.h.b16 %v9488
  %v11591 = vunpack.c.l.b16 %v9489
  %v11592 = vunpack.c.h.b16 %v9489
  %v11593 = vunpack.c.l.b16 %v9490
  %v11594 = vunpack.c.l.b16 %v9491
  %v11595 = vunpack.c.h.b16 %v9491
  %v11596 = vunpack.c.l.b16 %v9492
  %v11597 = vunpack.c.h.b16 %v9492
  %v11598 = vunpack.c.l.b16 %v9493
  %v11599 = vunpack.c.h.b16 %v9493
  %v11600 = vunpack.c.l.b16 %v9494
  %v11601 = vunpack.c.l.b16 %v9495
  %v11602 = vunpack.c.h.b16 %v9495
  %v11603 = vunpack.c.l.b16 %v9496
  %v11604 = vunpack.c.h.b16 %v9496
  %v11605 = vunpack.c.l.b16 %v9497
  %v11606 = vunpack.c.h.b16 %v9497
  %v11607 = vunpack.c.l.b16 %v9498
  %v11608 = vunpack.c.l.b16 %v9499
  %v11609 = vunpack.c.h.b16 %v9499
  %v11610 = vunpack.c.l.b16 %v9500
  %v11611 = vunpack.c.h.b16 %v9500
  %v11612 = vunpack.c.l.b16 %v9501
  %v11613 = vunpack.c.h.b16 %v9501
  %v11614 = vunpack.c.l.b16 %v9502
  %v11615 = vunpack.c.l.b16 %v9503
  %v11616 = vunpack.c.h.b16 %v9503
  %v11617 = vunpack.c.l.b16 %v9504
  %v11618 = vunpack.c.h.b16 %v9504
  %v11619 = vunpack.c.l.b16 %v9505
  %v11620 = vunpack.c.h.b16 %v9505
  %v11621 = vunpack.c.l.b16 %v9506
  %v11622 = vunpack.c.l.b16 %v9507
  %v11623 = vunpack.c.h.b16 %v9507
  %v11624 = vunpack.c.l.b16 %v9508
  %v11625 = vunpack.c.h.b16 %v9508
  %v11626 = vunpack.c.l.b16 %v9509
  %v11627 = vunpack.c.h.b16 %v9509
  %v11628 = vunpack.c.l.b16 %v9510
  %v11629 = vunpack.c.l.b16 %v9511
  %v11630 = vunpack.c.h.b16 %v9511
  %v11631 = vunpack.c.l.b16 %v9512
  %v11632 = vunpack.c.h.b16 %v9512
  %v11633 = vunpack.c.l.b16 %v9513
  %v11634 = vunpack.c.h.b16 %v9513
  %v11635 = vunpack.c.l.b16 %v9514
  %v11636 = vunpack.c.l.b16 %v9515
  %v11637 = vunpack.c.h.b16 %v9515
  %v11638 = vunpack.c.l.b16 %v9516
  %v11639 = vunpack.c.h.b16 %v9516
  %v11640 = vunpack.c.l.b16 %v9517
  %v11641 = vunpack.c.h.b16 %v9517
  %v11642 = vunpack.c.l.b16 %v9518
  %v11643 = vunpack.c.l.b16 %v9519
  %v11644 = vunpack.c.h.b16 %v9519
  %v11645 = vunpack.c.l.b16 %v9520
  %v11646 = vunpack.c.h.b16 %v9520
  %v11647 = vunpack.c.l.b16 %v9521
  %v11648 = vunpack.c.h.b16 %v9521
  %v11649 = vunpack.c.l.b16 %v9522
  %v11650 = vunpack.c.l.b16 %v9523
  %v11651 = vunpack.c.h.b16 %v9523
  %v11652 = vunpack.c.l.b16 %v9524
  %v11653 = vunpack.c.h.b16 %v9524
  %v11654 = vunpack.c.l.b16 %v9525
  %v11655 = vunpack.c.h.b16 %v9525
  %v11656 = vunpack.c.l.b16 %v9526
  %v11657 = vunpack.c.l.b16 %v9527
  %v11658 = vunpack.c.h.b16 %v9527
  %v11659 = vunpack.c.l.b16 %v9528
  %v11660 = vunpack.c.h.b16 %v9528
  %v11661 = vunpack.c.l.b16 %v9529
  %v11662 = vunpack.c.h.b16 %v9529
  %v11663 = vunpack.c.l.b16 %v9530
  %v11664 = vunpack.c.l.b16 %v9531
  %v11665 = vunpack.c.h.b16 %v9531
  %v11666 = vunpack.c.l.b16 %v9532
  %v11667 = vunpack.c.h.b16 %v9532
  %v11668 = vunpack.c.l.b16 %v9533
  %v11669 = vunpack.c.h.b16 %v9533
  %v11670 = vunpack.c.l.b16 %v9534
  %v11671 = vunpack.c.l.b16 %v9535
  %v11672 = vunpack.c.h.b16 %v9535
  %v11673 = vunpack.c.l.b16 %v9536
  %v11674 = vunpack.c.h.b16 %v9536
  %v11675 = vunpack.c.l.b16 %v9537
  %v11676 = vunpack.c.h.b16 %v9537
  %v11677 = vunpack.c.l.b16 %v9538
  %v11678 = vunpack.c.l.b16 %v9539
  %v11679 = vunpack.c.h.b16 %v9539
  %v11680 = vunpack.c.l.b16 %v9540
  %v11681 = vunpack.c.h.b16 %v9540
  %v11682 = vunpack.c.l.b16 %v9541
  %v11683 = vunpack.c.h.b16 %v9541
  %v11684 = vunpack.c.l.b16 %v9542
  %v11685 = vunpack.c.l.b16 %v9543
  %v11686 = vunpack.c.h.b16 %v9543
  %v11687 = vunpack.c.l.b16 %v9544
  %v11688 = vunpack.c.h.b16 %v9544
  %v11689 = vunpack.c.l.b16 %v9545
  %v11690 = vunpack.c.h.b16 %v9545
  %v11691 = vunpack.c.l.b16 %v9546
  %v11692 = vunpack.c.l.b16 %v9547
  %v11693 = vunpack.c.h.b16 %v9547
  %v11694 = vunpack.c.l.b16 %v9548
  %v11695 = vunpack.c.h.b16 %v9548
  %v11696 = vunpack.c.l.b16 %v9549
  %v11697 = vunpack.c.h.b16 %v9549
  %v11698 = vunpack.c.l.b16 %v9550
  %v11699 = vunpack.c.l.b16 %v9551
  %v11700 = vunpack.c.h.b16 %v9551
  %v11701 = vunpack.c.l.b16 %v9552
  %v11702 = vunpack.c.h.b16 %v9552
  %v11703 = vunpack.c.l.b16 %v9553
  %v11704 = vunpack.c.h.b16 %v9553
  %v11705 = vunpack.c.l.b16 %v9554
  %v11706 = vunpack.c.l.b16 %v9555
  %v11707 = vunpack.c.h.b16 %v9555
  %v11708 = vunpack.c.l.b16 %v9556
  %v11709 = vunpack.c.h.b16 %v9556
  %v11710 = vunpack.c.l.b16 %v9557
  %v11711 = vunpack.c.h.b16 %v9557
  %v11712 = vunpack.c.l.b16 %v9558
  %v11713 = vunpack.c.l.b16 %v9559
  %v11714 = vunpack.c.h.b16 %v9559
  %v11715 = vunpack.c.l.b16 %v9560
  %v11716 = vunpack.c.h.b16 %v9560
  %v11717 = vunpack.c.l.b16 %v9561
  %v11718 = vunpack.c.h.b16 %v9561
  %v11719 = vunpack.c.l.b16 %v9562
  %v11720 = vunpack.c.l.b16 %v9563
  %v11721 = vunpack.c.h.b16 %v9563
  %v11722 = vunpack.c.l.b16 %v9564
  %v11723 = vunpack.c.h.b16 %v9564
  %v11724 = vunpack.c.l.b16 %v9565
  %v11725 = vunpack.c.h.b16 %v9565
  %v11726 = vunpack.c.l.b16 %v9566
  %v11727 = vunpack.c.l.b16 %v9567
  %v11728 = vunpack.c.h.b16 %v9567
  %v11729 = vunpack.c.l.b16 %v9568
  %v11730 = vunpack.c.h.b16 %v9568
  %v11731 = vunpack.c.l.b16 %v9569
  %v11732 = vunpack.c.h.b16 %v9569
  %v11733 = vunpack.c.l.b16 %v9570
  %v11734 = vunpack.c.l.b16 %v9571
  %v11735 = vunpack.c.h.b16 %v9571
  %v11736 = vunpack.c.l.b16 %v9572
  %v11737 = vunpack.c.h.b16 %v9572
  %v11738 = vunpack.c.l.b16 %v9573
  %v11739 = vunpack.c.h.b16 %v9573
  %v11740 = vunpack.c.l.b16 %v9574
  %v11741 = vunpack.c.l.b16 %v9575
  %v11742 = vunpack.c.h.b16 %v9575
  %v11743 = vunpack.c.l.b16 %v9576
  %v11744 = vunpack.c.h.b16 %v9576
  %v11745 = vunpack.c.l.b16 %v9577
  %v11746 = vunpack.c.h.b16 %v9577
  %v11747 = vunpack.c.l.b16 %v9578
  %v11748 = vunpack.c.l.b16 %v9579
  %v11749 = vunpack.c.h.b16 %v9579
  %v11750 = vunpack.c.l.b16 %v9580
  %v11751 = vunpack.c.h.b16 %v9580
  %v11752 = vunpack.c.l.b16 %v9581
  %v11753 = vunpack.c.h.b16 %v9581
  %v11754 = vunpack.c.l.b16 %v9582
  %v11755 = vpack.c.b16 %v10390, %v10383
  %v11756 = vpack.c.b16 %v10391, %v10384
  %v11757 = vpack.c.b16 %v10392, %v10385
  %v11758 = vpack.c.b16 %v10393, %v10386
  %v11759 = vpack.c.b16 %v10394, %v10387
  %v11760 = vpack.c.b16 %v10395, %v10388
  %v11761 = vpack.c.b16 %v10396, %v10389
  %v11762 = vpack.c.b16 %v10404, %v10397
  %v11763 = vpack.c.b16 %v10405, %v10398
  %v11764 = vpack.c.b16 %v10406, %v10399
  %v11765 = vpack.c.b16 %v10407, %v10400
  %v11766 = vpack.c.b16 %v10408, %v10401
  %v11767 = vpack.c.b16 %v10409, %v10402
  %v11768 = vpack.c.b16 %v10410, %v10403
  %v11769 = vpack.c.b16 %v10418, %v10411
  %v11770 = vpack.c.b16 %v10419, %v10412
  %v11771 = vpack.c.b16 %v10420, %v10413
  %v11772 = vpack.c.b16 %v10421, %v10414
  %v11773 = vpack.c.b16 %v10422, %v10415
  %v11774 = vpack.c.b16 %v10423, %v10416
  %v11775 = vpack.c.b16 %v10424, %v10417
  %v11776 = vpack.c.b16 %v10432, %v10425
  %v11777 = vpack.c.b16 %v10433, %v10426
  %v11778 = vpack.c.b16 %v10434, %v10427
  %v11779 = vpack.c.b16 %v10435, %v10428
  %v11780 = vpack.c.b16 %v10436, %v10429
  %v11781 = vpack.c.b16 %v10437, %v10430
  %v11782 = vpack.c.b16 %v10438, %v10431
  %v11783 = vpack.c.b16 %v10446, %v10439
  %v11784 = vpack.c.b16 %v10447, %v10440
  %v11785 = vpack.c.b16 %v10448, %v10441
  %v11786 = vpack.c.b16 %v10449, %v10442
  %v11787 = vpack.c.b16 %v10450, %v10443
  %v11788 = vpack.c.b16 %v10451, %v10444
  %v11789 = vpack.c.b16 %v10452, %v10445
  %v11790 = vpack.c.b16 %v10460, %v10453
  %v11791 = vpack.c.b16 %v10461, %v10454
  %v11792 = vpack.c.b16 %v10462, %v10455
  %v11793 = vpack.c.b16 %v10463, %v10456
  %v11794 = vpack.c.b16 %v10464, %v10457
  %v11795 = vpack.c.b16 %v10465, %v10458
  %v11796 = vpack.c.b16 %v10466, %v10459
  %v11797 = vpack.c.b16 %v10474, %v10467
  %v11798 = vpack.c.b16 %v10475, %v10468
  %v11799 = vpack.c.b16 %v10476, %v10469
  %v11800 = vpack.c.b16 %v10477, %v10470
  %v11801 = vpack.c.b16 %v10478, %v10471
  %v11802 = vpack.c.b16 %v10479, %v10472
  %v11803 = vpack.c.b16 %v10480, %v10473
  %v11804 = vpack.c.b16 %v10488, %v10481
  %v11805 = vpack.c.b16 %v10489, %v10482
  %v11806 = vpack.c.b16 %v10490, %v10483
  %v11807 = vpack.c.b16 %v10491, %v10484
  %v11808 = vpack.c.b16 %v10492, %v10485
  %v11809 = vpack.c.b16 %v10493, %v10486
  %v11810 = vpack.c.b16 %v10494, %v10487
  %v11811 = vpack.c.b16 %v10502, %v10495
  %v11812 = vpack.c.b16 %v10503, %v10496
  %v11813 = vpack.c.b16 %v10504, %v10497
  %v11814 = vpack.c.b16 %v10505, %v10498
  %v11815 = vpack.c.b16 %v10506, %v10499
  %v11816 = vpack.c.b16 %v10507, %v10500
  %v11817 = vpack.c.b16 %v10508, %v10501
  %v11818 = vpack.c.b16 %v10516, %v10509
  %v11819 = vpack.c.b16 %v10517, %v10510
  %v11820 = vpack.c.b16 %v10518, %v10511
  %v11821 = vpack.c.b16 %v10519, %v10512
  %v11822 = vpack.c.b16 %v10520, %v10513
  %v11823 = vpack.c.b16 %v10521, %v10514
  %v11824 = vpack.c.b16 %v10522, %v10515
  %v11825 = vpack.c.b16 %v10530, %v10523
  %v11826 = vpack.c.b16 %v10531, %v10524
  %v11827 = vpack.c.b16 %v10532, %v10525
  %v11828 = vpack.c.b16 %v10533, %v10526
  %v11829 = vpack.c.b16 %v10534, %v10527
  %v11830 = vpack.c.b16 %v10535, %v10528
  %v11831 = vpack.c.b16 %v10536, %v10529
  %v11832 = vpack.c.b16 %v10544, %v10537
  %v11833 = vpack.c.b16 %v10545, %v10538
  %v11834 = vpack.c.b16 %v10546, %v10539
  %v11835 = vpack.c.b16 %v10547, %v10540
  %v11836 = vpack.c.b16 %v10548, %v10541
  %v11837 = vpack.c.b16 %v10549, %v10542
  %v11838 = vpack.c.b16 %v10550, %v10543
  %v11839 = vpack.c.b16 %v10558, %v10551
  %v11840 = vpack.c.b16 %v10559, %v10552
  %v11841 = vpack.c.b16 %v10560, %v10553
  %v11842 = vpack.c.b16 %v10561, %v10554
  %v11843 = vpack.c.b16 %v10562, %v10555
  %v11844 = vpack.c.b16 %v10563, %v10556
  %v11845 = vpack.c.b16 %v10564, %v10557
  %v11846 = vpack.c.b16 %v10572, %v10565
  %v11847 = vpack.c.b16 %v10573, %v10566
  %v11848 = vpack.c.b16 %v10574, %v10567
  %v11849 = vpack.c.b16 %v10575, %v10568
  %v11850 = vpack.c.b16 %v10576, %v10569
  %v11851 = vpack.c.b16 %v10577, %v10570
  %v11852 = vpack.c.b16 %v10578, %v10571
  %v11853 = vpack.c.b16 %v10586, %v10579
  %v11854 = vpack.c.b16 %v10587, %v10580
  %v11855 = vpack.c.b16 %v10588, %v10581
  %v11856 = vpack.c.b16 %v10589, %v10582
  %v11857 = vpack.c.b16 %v10590, %v10583
  %v11858 = vpack.c.b16 %v10591, %v10584
  %v11859 = vpack.c.b16 %v10592, %v10585
  %v11860 = vpack.c.b16 %v10600, %v10593
  %v11861 = vpack.c.b16 %v10601, %v10594
  %v11862 = vpack.c.b16 %v10602, %v10595
  %v11863 = vpack.c.b16 %v10603, %v10596
  %v11864 = vpack.c.b16 %v10604, %v10597
  %v11865 = vpack.c.b16 %v10605, %v10598
  %v11866 = vpack.c.b16 %v10606, %v10599
  %v11867 = vpack.c.b16 %v10614, %v10607
  %v11868 = vpack.c.b16 %v10615, %v10608
  %v11869 = vpack.c.b16 %v10616, %v10609
  %v11870 = vpack.c.b16 %v10617, %v10610
  %v11871 = vpack.c.b16 %v10618, %v10611
  %v11872 = vpack.c.b16 %v10619, %v10612
  %v11873 = vpack.c.b16 %v10620, %v10613
  %v11874 = vpack.c.b16 %v10628, %v10621
  %v11875 = vpack.c.b16 %v10629, %v10622
  %v11876 = vpack.c.b16 %v10630, %v10623
  %v11877 = vpack.c.b16 %v10631, %v10624
  %v11878 = vpack.c.b16 %v10632, %v10625
  %v11879 = vpack.c.b16 %v10633, %v10626
  %v11880 = vpack.c.b16 %v10634, %v10627
  %v11881 = vpack.c.b16 %v10642, %v10635
  %v11882 = vpack.c.b16 %v10643, %v10636
  %v11883 = vpack.c.b16 %v10644, %v10637
  %v11884 = vpack.c.b16 %v10645, %v10638
  %v11885 = vpack.c.b16 %v10646, %v10639
  %v11886 = vpack.c.b16 %v10647, %v10640
  %v11887 = vpack.c.b16 %v10648, %v10641
  %v11888 = vpack.c.b16 %v10656, %v10649
  %v11889 = vpack.c.b16 %v10657, %v10650
  %v11890 = vpack.c.b16 %v10658, %v10651
  %v11891 = vpack.c.b16 %v10659, %v10652
  %v11892 = vpack.c.b16 %v10660, %v10653
  %v11893 = vpack.c.b16 %v10661, %v10654
  %v11894 = vpack.c.b16 %v10662, %v10655
  %v11895 = vpack.c.b16 %v10670, %v10663
  %v11896 = vpack.c.b16 %v10671, %v10664
  %v11897 = vpack.c.b16 %v10672, %v10665
  %v11898 = vpack.c.b16 %v10673, %v10666
  %v11899 = vpack.c.b16 %v10674, %v10667
  %v11900 = vpack.c.b16 %v10675, %v10668
  %v11901 = vpack.c.b16 %v10676, %v10669
  %v11902 = vpack.c.b16 %v10684, %v10677
  %v11903 = vpack.c.b16 %v10685, %v10678
  %v11904 = vpack.c.b16 %v10686, %v10679
  %v11905 = vpack.c.b16 %v10687, %v10680
  %v11906 = vpack.c.b16 %v10688, %v10681
  %v11907 = vpack.c.b16 %v10689, %v10682
  %v11908 = vpack.c.b16 %v10690, %v10683
  %v11909 = vpack.c.b16 %v10698, %v10691
  %v11910 = vpack.c.b16 %v10699, %v10692
  %v11911 = vpack.c.b16 %v10700, %v10693
  %v11912 = vpack.c.b16 %v10701, %v10694
  %v11913 = vpack.c.b16 %v10702, %v10695
  %v11914 = vpack.c.b16 %v10703, %v10696
  %v11915 = vpack.c.b16 %v10704, %v10697
  %v11916 = vpack.c.b16 %v10712, %v10705
  %v11917 = vpack.c.b16 %v10713, %v10706
  %v11918 = vpack.c.b16 %v10714, %v10707
  %v11919 = vpack.c.b16 %v10715, %v10708
  %v11920 = vpack.c.b16 %v10716, %v10709
  %v11921 = vpack.c.b16 %v10717, %v10710
  %v11922 = vpack.c.b16 %v10718, %v10711
  %v11923 = vpack.c.b16 %v10726, %v10719
  %v11924 = vpack.c.b16 %v10727, %v10720
  %v11925 = vpack.c.b16 %v10728, %v10721
  %v11926 = vpack.c.b16 %v10729, %v10722
  %v11927 = vpack.c.b16 %v10730, %v10723
  %v11928 = vpack.c.b16 %v10731, %v10724
  %v11929 = vpack.c.b16 %v10732, %v10725
  %v11930 = vpack.c.b16 %v10740, %v10733
  %v11931 = vpack.c.b16 %v10741, %v10734
  %v11932 = vpack.c.b16 %v10742, %v10735
  %v11933 = vpack.c.b16 %v10743, %v10736
  %v11934 = vpack.c.b16 %v10744, %v10737
  %v11935 = vpack.c.b16 %v10745, %v10738
  %v11936 = vpack.c.b16 %v10746, %v10739
  %v11937 = vpack.c.b16 %v10754, %v10747
  %v11938 = vpack.c.b16 %v10755, %v10748
  %v11939 = vpack.c.b16 %v10756, %v10749
  %v11940 = vpack.c.b16 %v10757, %v10750
  %v11941 = vpack.c.b16 %v10758, %v10751
  %v11942 = vpack.c.b16 %v10759, %v10752
  %v11943 = vpack.c.b16 %v10760, %v10753
  %v11944 = vpack.c.b16 %v10768, %v10761
  %v11945 = vpack.c.b16 %v10769, %v10762
  %v11946 = vpack.c.b16 %v10770, %v10763
  %v11947 = vpack.c.b16 %v10771, %v10764
  %v11948 = vpack.c.b16 %v10772, %v10765
  %v11949 = vpack.c.b16 %v10773, %v10766
  %v11950 = vpack.c.b16 %v10774, %v10767
  %v11951 = vpack.c.b16 %v10782, %v10775
  %v11952 = vpack.c.b16 %v10783, %v10776
  %v11953 = vpack.c.b16 %v10784, %v10777
  %v11954 = vpack.c.b16 %v10785, %v10778
  %v11955 = vpack.c.b16 %v10786, %v10779
  %v11956 = vpack.c.b16 %v10787, %v10780
  %v11957 = vpack.c.b16 %v10788, %v10781
  %v11958 = vpack.c.b16 %v10796, %v10789
  %v11959 = vpack.c.b16 %v10797, %v10790
  %v11960 = vpack.c.b16 %v10798, %v10791
  %v11961 = vpack.c.b16 %v10799, %v10792
  %v11962 = vpack.c.b16 %v10800, %v10793
  %v11963 = vpack.c.b16 %v10801, %v10794
  %v11964 = vpack.c.b16 %v10802, %v10795
  %v11965 = vpack.c.b16 %v10810, %v10803
  %v11966 = vpack.c.b16 %v10811, %v10804
  %v11967 = vpack.c.b16 %v10812, %v10805
  %v11968 = vpack.c.b16 %v10813, %v10806
  %v11969 = vpack.c.b16 %v10814, %v10807
  %v11970 = vpack.c.b16 %v10815, %v10808
  %v11971 = vpack.c.b16 %v10816, %v10809
  %v11972 = vpack.c.b16 %v10824, %v10817
  %v11973 = vpack.c.b16 %v10825, %v10818
  %v11974 = vpack.c.b16 %v10826, %v10819
  %v11975 = vpack.c.b16 %v10827, %v10820
  %v11976 = vpack.c.b16 %v10828, %v10821
  %v11977 = vpack.c.b16 %v10829, %v10822
  %v11978 = vpack.c.b16 %v10830, %v10823
  %v11979 = vpack.c.b16 %v10838, %v10831
  %v11980 = vpack.c.b16 %v10839, %v10832
  %v11981 = vpack.c.b16 %v10840, %v10833
  %v11982 = vpack.c.b16 %v10841, %v10834
  %v11983 = vpack.c.b16 %v10842, %v10835
  %v11984 = vpack.c.b16 %v10843, %v10836
  %v11985 = vpack.c.b16 %v10844, %v10837
  %v11986 = vpack.c.b16 %v10852, %v10845
  %v11987 = vpack.c.b16 %v10853, %v10846
  %v11988 = vpack.c.b16 %v10854, %v10847
  %v11989 = vpack.c.b16 %v10855, %v10848
  %v11990 = vpack.c.b16 %v10856, %v10849
  %v11991 = vpack.c.b16 %v10857, %v10850
  %v11992 = vpack.c.b16 %v10858, %v10851
  %v11993 = vpack.c.b16 %v10866, %v10859
  %v11994 = vpack.c.b16 %v10867, %v10860
  %v11995 = vpack.c.b16 %v10868, %v10861
  %v11996 = vpack.c.b16 %v10869, %v10862
  %v11997 = vpack.c.b16 %v10870, %v10863
  %v11998 = vpack.c.b16 %v10871, %v10864
  %v11999 = vpack.c.b16 %v10872, %v10865
  %v12000 = vpack.c.b16 %v10880, %v10873
  %v12001 = vpack.c.b16 %v10881, %v10874
  %v12002 = vpack.c.b16 %v10882, %v10875
  %v12003 = vpack.c.b16 %v10883, %v10876
  %v12004 = vpack.c.b16 %v10884, %v10877
  %v12005 = vpack.c.b16 %v10885, %v10878
  %v12006 = vpack.c.b16 %v10886, %v10879
  %v12007 = vpack.c.b16 %v10894, %v10887
  %v12008 = vpack.c.b16 %v10895, %v10888
  %v12009 = vpack.c.b16 %v10896, %v10889
  %v12010 = vpack.c.b16 %v10897, %v10890
  %v12011 = vpack.c.b16 %v10898, %v10891
  %v12012 = vpack.c.b16 %v10899, %v10892
  %v12013 = vpack.c.b16 %v10900, %v10893
  %v12014 = vpack.c.b16 %v10908, %v10901
  %v12015 = vpack.c.b16 %v10909, %v10902
  %v12016 = vpack.c.b16 %v10910, %v10903
  %v12017 = vpack.c.b16 %v10911, %v10904
  %v12018 = vpack.c.b16 %v10912, %v10905
  %v12019 = vpack.c.b16 %v10913, %v10906
  %v12020 = vpack.c.b16 %v10914, %v10907
  %v12021 = vpack.c.b16 %v10922, %v10915
  %v12022 = vpack.c.b16 %v10923, %v10916
  %v12023 = vpack.c.b16 %v10924, %v10917
  %v12024 = vpack.c.b16 %v10925, %v10918
  %v12025 = vpack.c.b16 %v10926, %v10919
  %v12026 = vpack.c.b16 %v10927, %v10920
  %v12027 = vpack.c.b16 %v10928, %v10921
  %v12028 = vpack.c.b16 %v10936, %v10929
  %v12029 = vpack.c.b16 %v10937, %v10930
  %v12030 = vpack.c.b16 %v10938, %v10931
  %v12031 = vpack.c.b16 %v10939, %v10932
  %v12032 = vpack.c.b16 %v10940, %v10933
  %v12033 = vpack.c.b16 %v10941, %v10934
  %v12034 = vpack.c.b16 %v10942, %v10935
  %v12035 = vpack.c.b16 %v10950, %v10943
  %v12036 = vpack.c.b16 %v10951, %v10944
  %v12037 = vpack.c.b16 %v10952, %v10945
  %v12038 = vpack.c.b16 %v10953, %v10946
  %v12039 = vpack.c.b16 %v10954, %v10947
  %v12040 = vpack.c.b16 %v10955, %v10948
  %v12041 = vpack.c.b16 %v10956, %v10949
  %v12042 = vpack.c.b16 %v10964, %v10957
  %v12043 = vpack.c.b16 %v10965, %v10958
  %v12044 = vpack.c.b16 %v10966, %v10959
  %v12045 = vpack.c.b16 %v10967, %v10960
  %v12046 = vpack.c.b16 %v10968, %v10961
  %v12047 = vpack.c.b16 %v10969, %v10962
  %v12048 = vpack.c.b16 %v10970, %v10963
  %v12049 = vpack.c.b16 %v10978, %v10971
  %v12050 = vpack.c.b16 %v10979, %v10972
  %v12051 = vpack.c.b16 %v10980, %v10973
  %v12052 = vpack.c.b16 %v10981, %v10974
  %v12053 = vpack.c.b16 %v10982, %v10975
  %v12054 = vpack.c.b16 %v10983, %v10976
  %v12055 = vpack.c.b16 %v10984, %v10977
  %v12056 = vpack.c.b16 %v10992, %v10985
  %v12057 = vpack.c.b16 %v10993, %v10986
  %v12058 = vpack.c.b16 %v10994, %v10987
  %v12059 = vpack.c.b16 %v10995, %v10988
  %v12060 = vpack.c.b16 %v10996, %v10989
  %v12061 = vpack.c.b16 %v10997, %v10990
  %v12062 = vpack.c.b16 %v10998, %v10991
  %v12063 = vpack.c.b16 %v11006, %v10999
  %v12064 = vpack.c.b16 %v11007, %v11000
  %v12065 = vpack.c.b16 %v11008, %v11001
  %v12066 = vpack.c.b16 %v11009, %v11002
  %v12067 = vpack.c.b16 %v11010, %v11003
  %v12068 = vpack.c.b16 %v11011, %v11004
  %v12069 = vpack.c.b16 %v11012, %v11005
  %v12070 = vpack.c.b16 %v11020, %v11013
  %v12071 = vpack.c.b16 %v11021, %v11014
  %v12072 = vpack.c.b16 %v11022, %v11015
  %v12073 = vpack.c.b16 %v11023, %v11016
  %v12074 = vpack.c.b16 %v11024, %v11017
  %v12075 = vpack.c.b16 %v11025, %v11018
  %v12076 = vpack.c.b16 %v11026, %v11019
  %v12077 = vpack.c.b16 %v11034, %v11027
  %v12078 = vpack.c.b16 %v11035, %v11028
  %v12079 = vpack.c.b16 %v11036, %v11029
  %v12080 = vpack.c.b16 %v11037, %v11030
  %v12081 = vpack.c.b16 %v11038, %v11031
  %v12082 = vpack.c.b16 %v11039, %v11032
  %v12083 = vpack.c.b16 %v11040, %v11033
  %v12084 = vpack.c.b16 %v11048, %v11041
  %v12085 = vpack.c.b16 %v11049, %v11042
  %v12086 = vpack.c.b16 %v11050, %v11043
  %v12087 = vpack.c.b16 %v11051, %v11044
  %v12088 = vpack.c.b16 %v11052, %v11045
  %v12089 = vpack.c.b16 %v11053, %v11046
  %v12090 = vpack.c.b16 %v11054, %v11047
  %v12091 = vpack.c.b16 %v11062, %v11055
  %v12092 = vpack.c.b16 %v11063, %v11056
  %v12093 = vpack.c.b16 %v11064, %v11057
  %v12094 = vpack.c.b16 %v11065, %v11058
  %v12095 = vpack.c.b16 %v11066, %v11059
  %v12096 = vpack.c.b16 %v11067, %v11060
  %v12097 = vpack.c.b16 %v11068, %v11061
  %v12098 = vpack.c.b16 %v11076, %v11069
  %v12099 = vpack.c.b16 %v11077, %v11070
  %v12100 = vpack.c.b16 %v11078, %v11071
  %v12101 = vpack.c.b16 %v11079, %v11072
  %v12102 = vpack.c.b16 %v11080, %v11073
  %v12103 = vpack.c.b16 %v11081, %v11074
  %v12104 = vpack.c.b16 %v11082, %v11075
  %v12105 = vpack.c.b16 %v11090, %v11083
  %v12106 = vpack.c.b16 %v11091, %v11084
  %v12107 = vpack.c.b16 %v11092, %v11085
  %v12108 = vpack.c.b16 %v11093, %v11086
  %v12109 = vpack.c.b16 %v11094, %v11087
  %v12110 = vpack.c.b16 %v11095, %v11088
  %v12111 = vpack.c.b16 %v11096, %v11089
  %v12112 = vpack.c.b16 %v11104, %v11097
  %v12113 = vpack.c.b16 %v11105, %v11098
  %v12114 = vpack.c.b16 %v11106, %v11099
  %v12115 = vpack.c.b16 %v11107, %v11100
  %v12116 = vpack.c.b16 %v11108, %v11101
  %v12117 = vpack.c.b16 %v11109, %v11102
  %v12118 = vpack.c.b16 %v11110, %v11103
  %v12119 = vpack.c.b16 %v11118, %v11111
  %v12120 = vpack.c.b16 %v11119, %v11112
  %v12121 = vpack.c.b16 %v11120, %v11113
  %v12122 = vpack.c.b16 %v11121, %v11114
  %v12123 = vpack.c.b16 %v11122, %v11115
  %v12124 = vpack.c.b16 %v11123, %v11116
  %v12125 = vpack.c.b16 %v11124, %v11117
  %v12126 = vpack.c.b16 %v11132, %v11125
  %v12127 = vpack.c.b16 %v11133, %v11126
  %v12128 = vpack.c.b16 %v11134, %v11127
  %v12129 = vpack.c.b16 %v11135, %v11128
  %v12130 = vpack.c.b16 %v11136, %v11129
  %v12131 = vpack.c.b16 %v11137, %v11130
  %v12132 = vpack.c.b16 %v11138, %v11131
  %v12133 = vpack.c.b16 %v11146, %v11139
  %v12134 = vpack.c.b16 %v11147, %v11140
  %v12135 = vpack.c.b16 %v11148, %v11141
  %v12136 = vpack.c.b16 %v11149, %v11142
  %v12137 = vpack.c.b16 %v11150, %v11143
  %v12138 = vpack.c.b16 %v11151, %v11144
  %v12139 = vpack.c.b16 %v11152, %v11145
  %v12140 = vpack.c.b16 %v11160, %v11153
  %v12141 = vpack.c.b16 %v11161, %v11154
  %v12142 = vpack.c.b16 %v11162, %v11155
  %v12143 = vpack.c.b16 %v11163, %v11156
  %v12144 = vpack.c.b16 %v11164, %v11157
  %v12145 = vpack.c.b16 %v11165, %v11158
  %v12146 = vpack.c.b16 %v11166, %v11159
  %v12147 = vpack.c.b16 %v11174, %v11167
  %v12148 = vpack.c.b16 %v11175, %v11168
  %v12149 = vpack.c.b16 %v11176, %v11169
  %v12150 = vpack.c.b16 %v11177, %v11170
  %v12151 = vpack.c.b16 %v11178, %v11171
  %v12152 = vpack.c.b16 %v11179, %v11172
  %v12153 = vpack.c.b16 %v11180, %v11173
  %v12154 = vpack.c.b16 %v11188, %v11181
  %v12155 = vpack.c.b16 %v11189, %v11182
  %v12156 = vpack.c.b16 %v11190, %v11183
  %v12157 = vpack.c.b16 %v11191, %v11184
  %v12158 = vpack.c.b16 %v11192, %v11185
  %v12159 = vpack.c.b16 %v11193, %v11186
  %v12160 = vpack.c.b16 %v11194, %v11187
  %v12161 = vpack.c.b16 %v11202, %v11195
  %v12162 = vpack.c.b16 %v11203, %v11196
  %v12163 = vpack.c.b16 %v11204, %v11197
  %v12164 = vpack.c.b16 %v11205, %v11198
  %v12165 = vpack.c.b16 %v11206, %v11199
  %v12166 = vpack.c.b16 %v11207, %v11200
  %v12167 = vpack.c.b16 %v11208, %v11201
  %v12168 = vpack.c.b16 %v11216, %v11209
  %v12169 = vpack.c.b16 %v11217, %v11210
  %v12170 = vpack.c.b16 %v11218, %v11211
  %v12171 = vpack.c.b16 %v11219, %v11212
  %v12172 = vpack.c.b16 %v11220, %v11213
  %v12173 = vpack.c.b16 %v11221, %v11214
  %v12174 = vpack.c.b16 %v11222, %v11215
  %v12175 = vpack.c.b16 %v11230, %v11223
  %v12176 = vpack.c.b16 %v11231, %v11224
  %v12177 = vpack.c.b16 %v11232, %v11225
  %v12178 = vpack.c.b16 %v11233, %v11226
  %v12179 = vpack.c.b16 %v11234, %v11227
  %v12180 = vpack.c.b16 %v11235, %v11228
  %v12181 = vpack.c.b16 %v11236, %v11229
  %v12182 = vpack.c.b16 %v11244, %v11237
  %v12183 = vpack.c.b16 %v11245, %v11238
  %v12184 = vpack.c.b16 %v11246, %v11239
  %v12185 = vpack.c.b16 %v11247, %v11240
  %v12186 = vpack.c.b16 %v11248, %v11241
  %v12187 = vpack.c.b16 %v11249, %v11242
  %v12188 = vpack.c.b16 %v11250, %v11243
  %v12189 = vpack.c.b16 %v11258, %v11251
  %v12190 = vpack.c.b16 %v11259, %v11252
  %v12191 = vpack.c.b16 %v11260, %v11253
  %v12192 = vpack.c.b16 %v11261, %v11254
  %v12193 = vpack.c.b16 %v11262, %v11255
  %v12194 = vpack.c.b16 %v11263, %v11256
  %v12195 = vpack.c.b16 %v11264, %v11257
  %v12196 = vpack.c.b16 %v11272, %v11265
  %v12197 = vpack.c.b16 %v11273, %v11266
  %v12198 = vpack.c.b16 %v11274, %v11267
  %v12199 = vpack.c.b16 %v11275, %v11268
  %v12200 = vpack.c.b16 %v11276, %v11269
  %v12201 = vpack.c.b16 %v11277, %v11270
  %v12202 = vpack.c.b16 %v11278, %v11271
  %v12203 = vpack.c.b16 %v11286, %v11279
  %v12204 = vpack.c.b16 %v11287, %v11280
  %v12205 = vpack.c.b16 %v11288, %v11281
  %v12206 = vpack.c.b16 %v11289, %v11282
  %v12207 = vpack.c.b16 %v11290, %v11283
  %v12208 = vpack.c.b16 %v11291, %v11284
  %v12209 = vpack.c.b16 %v11292, %v11285
  %v12210 = vpack.c.b16 %v11300, %v11293
  %v12211 = vpack.c.b16 %v11301, %v11294
  %v12212 = vpack.c.b16 %v11302, %v11295
  %v12213 = vpack.c.b16 %v11303, %v11296
  %v12214 = vpack.c.b16 %v11304, %v11297
  %v12215 = vpack.c.b16 %v11305, %v11298
  %v12216 = vpack.c.b16 %v11306, %v11299
  %v12217 = vpack.c.b16 %v11314, %v11307
  %v12218 = vpack.c.b16 %v11315, %v11308
  %v12219 = vpack.c.b16 %v11316, %v11309
  %v12220 = vpack.c.b16 %v11317, %v11310
  %v12221 = vpack.c.b16 %v11318, %v11311
  %v12222 = vpack.c.b16 %v11319, %v11312
  %v12223 = vpack.c.b16 %v11320, %v11313
  %v12224 = vpack.c.b16 %v11328, %v11321
  %v12225 = vpack.c.b16 %v11329, %v11322
  %v12226 = vpack.c.b16 %v11330, %v11323
  %v12227 = vpack.c.b16 %v11331, %v11324
  %v12228 = vpack.c.b16 %v11332, %v11325
  %v12229 = vpack.c.b16 %v11333, %v11326
  %v12230 = vpack.c.b16 %v11334, %v11327
  %v12231 = vpack.c.b16 %v11342, %v11335
  %v12232 = vpack.c.b16 %v11343, %v11336
  %v12233 = vpack.c.b16 %v11344, %v11337
  %v12234 = vpack.c.b16 %v11345, %v11338
  %v12235 = vpack.c.b16 %v11346, %v11339
  %v12236 = vpack.c.b16 %v11347, %v11340
  %v12237 = vpack.c.b16 %v11348, %v11341
  %v12238 = vpack.c.b16 %v11356, %v11349
  %v12239 = vpack.c.b16 %v11357, %v11350
  %v12240 = vpack.c.b16 %v11358, %v11351
  %v12241 = vpack.c.b16 %v11359, %v11352
  %v12242 = vpack.c.b16 %v11360, %v11353
  %v12243 = vpack.c.b16 %v11361, %v11354
  %v12244 = vpack.c.b16 %v11362, %v11355
  %v12245 = vpack.c.b16 %v11370, %v11363
  %v12246 = vpack.c.b16 %v11371, %v11364
  %v12247 = vpack.c.b16 %v11372, %v11365
  %v12248 = vpack.c.b16 %v11373, %v11366
  %v12249 = vpack.c.b16 %v11374, %v11367
  %v12250 = vpack.c.b16 %v11375, %v11368
  %v12251 = vpack.c.b16 %v11376, %v11369
  %v12252 = vpack.c.b16 %v11384, %v11377
  %v12253 = vpack.c.b16 %v11385, %v11378
  %v12254 = vpack.c.b16 %v11386, %v11379
  %v12255 = vpack.c.b16 %v11387, %v11380
  %v12256 = vpack.c.b16 %v11388, %v11381
  %v12257 = vpack.c.b16 %v11389, %v11382
  %v12258 = vpack.c.b16 %v11390, %v11383
  %v12259 = vpack.c.b16 %v11398, %v11391
  %v12260 = vpack.c.b16 %v11399, %v11392
  %v12261 = vpack.c.b16 %v11400, %v11393
  %v12262 = vpack.c.b16 %v11401, %v11394
  %v12263 = vpack.c.b16 %v11402, %v11395
  %v12264 = vpack.c.b16 %v11403, %v11396
  %v12265 = vpack.c.b16 %v11404, %v11397
  %v12266 = vpack.c.b16 %v11412, %v11405
  %v12267 = vpack.c.b16 %v11413, %v11406
  %v12268 = vpack.c.b16 %v11414, %v11407
  %v12269 = vpack.c.b16 %v11415, %v11408
  %v12270 = vpack.c.b16 %v11416, %v11409
  %v12271 = vpack.c.b16 %v11417, %v11410
  %v12272 = vpack.c.b16 %v11418, %v11411
  %v12273 = vpack.c.b16 %v11426, %v11419
  %v12274 = vpack.c.b16 %v11427, %v11420
  %v12275 = vpack.c.b16 %v11428, %v11421
  %v12276 = vpack.c.b16 %v11429, %v11422
  %v12277 = vpack.c.b16 %v11430, %v11423
  %v12278 = vpack.c.b16 %v11431, %v11424
  %v12279 = vpack.c.b16 %v11432, %v11425
  %v12280 = vpack.c.b16 %v11440, %v11433
  %v12281 = vpack.c.b16 %v11441, %v11434
  %v12282 = vpack.c.b16 %v11442, %v11435
  %v12283 = vpack.c.b16 %v11443, %v11436
  %v12284 = vpack.c.b16 %v11444, %v11437
  %v12285 = vpack.c.b16 %v11445, %v11438
  %v12286 = vpack.c.b16 %v11446, %v11439
  %v12287 = vpack.c.b16 %v11454, %v11447
  %v12288 = vpack.c.b16 %v11455, %v11448
  %v12289 = vpack.c.b16 %v11456, %v11449
  %v12290 = vpack.c.b16 %v11457, %v11450
  %v12291 = vpack.c.b16 %v11458, %v11451
  %v12292 = vpack.c.b16 %v11459, %v11452
  %v12293 = vpack.c.b16 %v11460, %v11453
  %v12294 = vpack.c.b16 %v11468, %v11461
  %v12295 = vpack.c.b16 %v11469, %v11462
  %v12296 = vpack.c.b16 %v11470, %v11463
  %v12297 = vpack.c.b16 %v11471, %v11464
  %v12298 = vpack.c.b16 %v11472, %v11465
  %v12299 = vpack.c.b16 %v11473, %v11466
  %v12300 = vpack.c.b16 %v11474, %v11467
  %v12301 = vpack.c.b16 %v11482, %v11475
  %v12302 = vpack.c.b16 %v11483, %v11476
  %v12303 = vpack.c.b16 %v11484, %v11477
  %v12304 = vpack.c.b16 %v11485, %v11478
  %v12305 = vpack.c.b16 %v11486, %v11479
  %v12306 = vpack.c.b16 %v11487, %v11480
  %v12307 = vpack.c.b16 %v11488, %v11481
  %v12308 = vpack.c.b16 %v11496, %v11489
  %v12309 = vpack.c.b16 %v11497, %v11490
  %v12310 = vpack.c.b16 %v11498, %v11491
  %v12311 = vpack.c.b16 %v11499, %v11492
  %v12312 = vpack.c.b16 %v11500, %v11493
  %v12313 = vpack.c.b16 %v11501, %v11494
  %v12314 = vpack.c.b16 %v11502, %v11495
  %v12315 = vpack.c.b16 %v11510, %v11503
  %v12316 = vpack.c.b16 %v11511, %v11504
  %v12317 = vpack.c.b16 %v11512, %v11505
  %v12318 = vpack.c.b16 %v11513, %v11506
  %v12319 = vpack.c.b16 %v11514, %v11507
  %v12320 = vpack.c.b16 %v11515, %v11508
  %v12321 = vpack.c.b16 %v11516, %v11509
  %v12322 = vpack.c.b16 %v11524, %v11517
  %v12323 = vpack.c.b16 %v11525, %v11518
  %v12324 = vpack.c.b16 %v11526, %v11519
  %v12325 = vpack.c.b16 %v11527, %v11520
  %v12326 = vpack.c.b16 %v11528, %v11521
  %v12327 = vpack.c.b16 %v11529, %v11522
  %v12328 = vpack.c.b16 %v11530, %v11523
  %v12329 = vpack.c.b16 %v11538, %v11531
  %v12330 = vpack.c.b16 %v11539, %v11532
  %v12331 = vpack.c.b16 %v11540, %v11533
  %v12332 = vpack.c.b16 %v11541, %v11534
  %v12333 = vpack.c.b16 %v11542, %v11535
  %v12334 = vpack.c.b16 %v11543, %v11536
  %v12335 = vpack.c.b16 %v11544, %v11537
  %v12336 = vpack.c.b16 %v11552, %v11545
  %v12337 = vpack.c.b16 %v11553, %v11546
  %v12338 = vpack.c.b16 %v11554, %v11547
  %v12339 = vpack.c.b16 %v11555, %v11548
  %v12340 = vpack.c.b16 %v11556, %v11549
  %v12341 = vpack.c.b16 %v11557, %v11550
  %v12342 = vpack.c.b16 %v11558, %v11551
  %v12343 = vpack.c.b16 %v11566, %v11559
  %v12344 = vpack.c.b16 %v11567, %v11560
  %v12345 = vpack.c.b16 %v11568, %v11561
  %v12346 = vpack.c.b16 %v11569, %v11562
  %v12347 = vpack.c.b16 %v11570, %v11563
  %v12348 = vpack.c.b16 %v11571, %v11564
  %v12349 = vpack.c.b16 %v11572, %v11565
  %v12350 = vpack.c.b16 %v11580, %v11573
  %v12351 = vpack.c.b16 %v11581, %v11574
  %v12352 = vpack.c.b16 %v11582, %v11575
  %v12353 = vpack.c.b16 %v11583, %v11576
  %v12354 = vpack.c.b16 %v11584, %v11577
  %v12355 = vpack.c.b16 %v11585, %v11578
  %v12356 = vpack.c.b16 %v11586, %v11579
  %v12357 = vpack.c.b16 %v11594, %v11587
  %v12358 = vpack.c.b16 %v11595, %v11588
  %v12359 = vpack.c.b16 %v11596, %v11589
  %v12360 = vpack.c.b16 %v11597, %v11590
  %v12361 = vpack.c.b16 %v11598, %v11591
  %v12362 = vpack.c.b16 %v11599, %v11592
  %v12363 = vpack.c.b16 %v11600, %v11593
  %v12364 = vpack.c.b16 %v11608, %v11601
  %v12365 = vpack.c.b16 %v11609, %v11602
  %v12366 = vpack.c.b16 %v11610, %v11603
  %v12367 = vpack.c.b16 %v11611, %v11604
  %v12368 = vpack.c.b16 %v11612, %v11605
  %v12369 = vpack.c.b16 %v11613, %v11606
  %v12370 = vpack.c.b16 %v11614, %v11607
  %v12371 = vpack.c.b16 %v11622, %v11615
  %v12372 = vpack.c.b16 %v11623, %v11616
  %v12373 = vpack.c.b16 %v11624, %v11617
  %v12374 = vpack.c.b16 %v11625, %v11618
  %v12375 = vpack.c.b16 %v11626, %v11619
  %v12376 = vpack.c.b16 %v11627, %v11620
  %v12377 = vpack.c.b16 %v11628, %v11621
  %v12378 = vpack.c.b16 %v11636, %v11629
  %v12379 = vpack.c.b16 %v11637, %v11630
  %v12380 = vpack.c.b16 %v11638, %v11631
  %v12381 = vpack.c.b16 %v11639, %v11632
  %v12382 = vpack.c.b16 %v11640, %v11633
  %v12383 = vpack.c.b16 %v11641, %v11634
  %v12384 = vpack.c.b16 %v11642, %v11635
  %v12385 = vpack.c.b16 %v11650, %v11643
  %v12386 = vpack.c.b16 %v11651, %v11644
  %v12387 = vpack.c.b16 %v11652, %v11645
  %v12388 = vpack.c.b16 %v11653, %v11646
  %v12389 = vpack.c.b16 %v11654, %v11647
  %v12390 = vpack.c.b16 %v11655, %v11648
  %v12391 = vpack.c.b16 %v11656, %v11649
  %v12392 = vpack.c.b16 %v11664, %v11657
  %v12393 = vpack.c.b16 %v11665, %v11658
  %v12394 = vpack.c.b16 %v11666, %v11659
  %v12395 = vpack.c.b16 %v11667, %v11660
  %v12396 = vpack.c.b16 %v11668, %v11661
  %v12397 = vpack.c.b16 %v11669, %v11662
  %v12398 = vpack.c.b16 %v11670, %v11663
  %v12399 = vpack.c.b16 %v11678, %v11671
  %v12400 = vpack.c.b16 %v11679, %v11672
  %v12401 = vpack.c.b16 %v11680, %v11673
  %v12402 = vpack.c.b16 %v11681, %v11674
  %v12403 = vpack.c.b16 %v11682, %v11675
  %v12404 = vpack.c.b16 %v11683, %v11676
  %v12405 = vpack.c.b16 %v11684, %v11677
  %v12406 = vpack.c.b16 %v11692, %v11685
  %v12407 = vpack.c.b16 %v11693, %v11686
  %v12408 = vpack.c.b16 %v11694, %v11687
  %v12409 = vpack.c.b16 %v11695, %v11688
  %v12410 = vpack.c.b16 %v11696, %v11689
  %v12411 = vpack.c.b16 %v11697, %v11690
  %v12412 = vpack.c.b16 %v11698, %v11691
  %v12413 = vpack.c.b16 %v11706, %v11699
  %v12414 = vpack.c.b16 %v11707, %v11700
  %v12415 = vpack.c.b16 %v11708, %v11701
  %v12416 = vpack.c.b16 %v11709, %v11702
  %v12417 = vpack.c.b16 %v11710, %v11703
  %v12418 = vpack.c.b16 %v11711, %v11704
  %v12419 = vpack.c.b16 %v11712, %v11705
  %v12420 = vpack.c.b16 %v11720, %v11713
  %v12421 = vpack.c.b16 %v11721, %v11714
  %v12422 = vpack.c.b16 %v11722, %v11715
  %v12423 = vpack.c.b16 %v11723, %v11716
  %v12424 = vpack.c.b16 %v11724, %v11717
  %v12425 = vpack.c.b16 %v11725, %v11718
  %v12426 = vpack.c.b16 %v11726, %v11719
  %v12427 = vpack.c.b16 %v11734, %v11727
  %v12428 = vpack.c.b16 %v11735, %v11728
  %v12429 = vpack.c.b16 %v11736, %v11729
  %v12430 = vpack.c.b16 %v11737, %v11730
  %v12431 = vpack.c.b16 %v11738, %v11731
  %v12432 = vpack.c.b16 %v11739, %v11732
  %v12433 = vpack.c.b16 %v11740, %v11733
  %v12434 = vpack.c.b16 %v11748, %v11741
  %v12435 = vpack.c.b16 %v11749, %v11742
  %v12436 = vpack.c.b16 %v11750, %v11743
  %v12437 = vpack.c.b16 %v11751, %v11744
  %v12438 = vpack.c.b16 %v11752, %v11745
  %v12439 = vpack.c.b16 %v11753, %v11746
  %v12440 = vpack.c.b16 %v11754, %v11747
  %v13128 = vsel %vm1006, %v8798, 0
  %13130 = vmatpush.bf16.msra.mxu0 %v11804
  %13131 = vmatpush.bf16.msra.mxu0 %v11797
  %13132 = vmatpush.bf16.msra.mxu0 %v11790
  %13133 = vmatpush.bf16.msra.mxu0 %v11783
  %13134 = vmatpush.bf16.msra.mxu0 %v11776
  %13135 = vmatpush.bf16.msra.mxu0 %v11769
  %13136 = vmatpush.bf16.msra.mxu0 %v11762
  %13137 = vmatpush.bf16.msra.mxu0 %v11755
  %13138 = vmatmul.bf16.gmra.mxu0 %v8786
  %v13139 = vpop.f32.mrf.mxu0
  %v13140 = vadd.f32 %v9585, %v13139
  %v13141 = vpop.f32.mrf.mxu0
  %13142 = vdwg.mxu0
  %13143 = vmatpush.bf16.msra.mxu0 %v11860
  %13144 = vmatpush.bf16.msra.mxu0 %v11853
  %13145 = vmatpush.bf16.msra.mxu0 %v11846
  %13146 = vmatpush.bf16.msra.mxu0 %v11839
  %13147 = vmatpush.bf16.msra.mxu0 %v11832
  %13148 = vmatpush.bf16.msra.mxu0 %v11825
  %13149 = vmatpush.bf16.msra.mxu0 %v11818
  %13150 = vmatpush.bf16.msra.mxu0 %v11811
  %13151 = vmatmul.bf16.gmra.mxu0 %v8787
  %v13152 = vpop.f32.mrf.mxu0
  %v13153 = vadd.f32 %v13140, %v13152
  %v13154 = vpop.f32.mrf.mxu0
  %13155 = vdwg.mxu0
  %13156 = vmatpush.bf16.msra.mxu0 %v11916
  %13157 = vmatpush.bf16.msra.mxu0 %v11909
  %13158 = vmatpush.bf16.msra.mxu0 %v11902
  %13159 = vmatpush.bf16.msra.mxu0 %v11895
  %13160 = vmatpush.bf16.msra.mxu0 %v11888
  %13161 = vmatpush.bf16.msra.mxu0 %v11881
  %13162 = vmatpush.bf16.msra.mxu0 %v11874
  %13163 = vmatpush.bf16.msra.mxu0 %v11867
  %13164 = vmatmul.bf16.gmra.mxu0 %v8788
  %v13165 = vpop.f32.mrf.mxu0
  %v13166 = vadd.f32 %v13153, %v13165
  %v13167 = vpop.f32.mrf.mxu0
  %13168 = vdwg.mxu0
  %13169 = vmatpush.bf16.msra.mxu0 %v11972
  %13170 = vmatpush.bf16.msra.mxu0 %v11965
  %13171 = vmatpush.bf16.msra.mxu0 %v11958
  %13172 = vmatpush.bf16.msra.mxu0 %v11951
  %13173 = vmatpush.bf16.msra.mxu0 %v11944
  %13174 = vmatpush.bf16.msra.mxu0 %v11937
  %13175 = vmatpush.bf16.msra.mxu0 %v11930
  %13176 = vmatpush.bf16.msra.mxu0 %v11923
  %13177 = vmatmul.bf16.gmra.mxu0 %v8789
  %v13178 = vpop.f32.mrf.mxu0
  %v13179 = vadd.f32 %v13166, %v13178
  %v13180 = vpop.f32.mrf.mxu0
  %13181 = vdwg.mxu0
  %13182 = vmatpush.bf16.msra.mxu0 %v12028
  %13183 = vmatpush.bf16.msra.mxu0 %v12021
  %13184 = vmatpush.bf16.msra.mxu0 %v12014
  %13185 = vmatpush.bf16.msra.mxu0 %v12007
  %13186 = vmatpush.bf16.msra.mxu0 %v12000
  %13187 = vmatpush.bf16.msra.mxu0 %v11993
  %13188 = vmatpush.bf16.msra.mxu0 %v11986
  %13189 = vmatpush.bf16.msra.mxu0 %v11979
  %13190 = vmatmul.bf16.gmra.mxu0 %v8790
  %v13191 = vpop.f32.mrf.mxu0
  %v13192 = vadd.f32 %v13179, %v13191
  %v13193 = vpop.f32.mrf.mxu0
  %13194 = vdwg.mxu0
  %13195 = vmatpush.bf16.msra.mxu0 %v12084
  %13196 = vmatpush.bf16.msra.mxu0 %v12077
  %13197 = vmatpush.bf16.msra.mxu0 %v12070
  %13198 = vmatpush.bf16.msra.mxu0 %v12063
  %13199 = vmatpush.bf16.msra.mxu0 %v12056
  %13200 = vmatpush.bf16.msra.mxu0 %v12049
  %13201 = vmatpush.bf16.msra.mxu0 %v12042
  %13202 = vmatpush.bf16.msra.mxu0 %v12035
  %13203 = vmatmul.bf16.gmra.mxu0 %v8791
  %v13204 = vpop.f32.mrf.mxu0
  %v13205 = vadd.f32 %v13192, %v13204
  %v13206 = vpop.f32.mrf.mxu0
  %13207 = vdwg.mxu0
  %13208 = vmatpush.bf16.msra.mxu0 %v12140
  %13209 = vmatpush.bf16.msra.mxu0 %v12133
  %13210 = vmatpush.bf16.msra.mxu0 %v12126
  %13211 = vmatpush.bf16.msra.mxu0 %v12119
  %13212 = vmatpush.bf16.msra.mxu0 %v12112
  %13213 = vmatpush.bf16.msra.mxu0 %v12105
  %13214 = vmatpush.bf16.msra.mxu0 %v12098
  %13215 = vmatpush.bf16.msra.mxu0 %v12091
  %13216 = vmatmul.bf16.gmra.mxu0 %v8792
  %v13217 = vpop.f32.mrf.mxu0
  %v13218 = vadd.f32 %v13205, %v13217
  %v13219 = vpop.f32.mrf.mxu0
  %13220 = vdwg.mxu0
  %13221 = vmatpush.bf16.msra.mxu0 %v12196
  %13222 = vmatpush.bf16.msra.mxu0 %v12189
  %13223 = vmatpush.bf16.msra.mxu0 %v12182
  %13224 = vmatpush.bf16.msra.mxu0 %v12175
  %13225 = vmatpush.bf16.msra.mxu0 %v12168
  %13226 = vmatpush.bf16.msra.mxu0 %v12161
  %13227 = vmatpush.bf16.msra.mxu0 %v12154
  %13228 = vmatpush.bf16.msra.mxu0 %v12147
  %13229 = vmatmul.bf16.gmra.mxu0 %v8793
  %v13230 = vpop.f32.mrf.mxu0
  %v13231 = vadd.f32 %v13218, %v13230
  %v13232 = vpop.f32.mrf.mxu0
  %13233 = vdwg.mxu0
  %13234 = vmatpush.bf16.msra.mxu0 %v12252
  %13235 = vmatpush.bf16.msra.mxu0 %v12245
  %13236 = vmatpush.bf16.msra.mxu0 %v12238
  %13237 = vmatpush.bf16.msra.mxu0 %v12231
  %13238 = vmatpush.bf16.msra.mxu0 %v12224
  %13239 = vmatpush.bf16.msra.mxu0 %v12217
  %13240 = vmatpush.bf16.msra.mxu0 %v12210
  %13241 = vmatpush.bf16.msra.mxu0 %v12203
  %13242 = vmatmul.bf16.gmra.mxu0 %v8794
  %v13243 = vpop.f32.mrf.mxu0
  %v13244 = vadd.f32 %v13231, %v13243
  %v13245 = vpop.f32.mrf.mxu0
  %13246 = vdwg.mxu0
  %13247 = vmatpush.bf16.msra.mxu0 %v12308
  %13248 = vmatpush.bf16.msra.mxu0 %v12301
  %13249 = vmatpush.bf16.msra.mxu0 %v12294
  %13250 = vmatpush.bf16.msra.mxu0 %v12287
  %13251 = vmatpush.bf16.msra.mxu0 %v12280
  %13252 = vmatpush.bf16.msra.mxu0 %v12273
  %13253 = vmatpush.bf16.msra.mxu0 %v12266
  %13254 = vmatpush.bf16.msra.mxu0 %v12259
  %13255 = vmatmul.bf16.gmra.mxu0 %v8795
  %v13256 = vpop.f32.mrf.mxu0
  %v13257 = vadd.f32 %v13244, %v13256
  %v13258 = vpop.f32.mrf.mxu0
  %13259 = vdwg.mxu0
  %13260 = vmatpush.bf16.msra.mxu0 %v12364
  %13261 = vmatpush.bf16.msra.mxu0 %v12357
  %13262 = vmatpush.bf16.msra.mxu0 %v12350
  %13263 = vmatpush.bf16.msra.mxu0 %v12343
  %13264 = vmatpush.bf16.msra.mxu0 %v12336
  %13265 = vmatpush.bf16.msra.mxu0 %v12329
  %13266 = vmatpush.bf16.msra.mxu0 %v12322
  %13267 = vmatpush.bf16.msra.mxu0 %v12315
  %13268 = vmatmul.bf16.gmra.mxu0 %v8796
  %v13269 = vpop.f32.mrf.mxu0
  %v13270 = vadd.f32 %v13257, %v13269
  %v13271 = vpop.f32.mrf.mxu0
  %13272 = vdwg.mxu0
  %13273 = vmatpush.bf16.msra.mxu0 %v12420
  %13274 = vmatpush.bf16.msra.mxu0 %v12413
  %13275 = vmatpush.bf16.msra.mxu0 %v12406
  %13276 = vmatpush.bf16.msra.mxu0 %v12399
  %13277 = vmatpush.bf16.msra.mxu0 %v12392
  %13278 = vmatpush.bf16.msra.mxu0 %v12385
  %13279 = vmatpush.bf16.msra.mxu0 %v12378
  %13280 = vmatpush.bf16.msra.mxu0 %v12371
  %13281 = vmatmul.bf16.gmra.mxu0 %v8797
  %v13282 = vpop.f32.mrf.mxu0
  %v13283 = vadd.f32 %v13270, %v13282
  %v13284 = vpop.f32.mrf.mxu0
  %13285 = vdwg.mxu0
  %13286 = vmatpush.bf16.msra.mxu0 0
  %13287 = vmatpush.bf16.msra.mxu0 0
  %13288 = vmatpush.bf16.msra.mxu0 0
  %13289 = vmatpush.bf16.msra.mxu0 0
  %13290 = vmatpush.bf16.msra.mxu0 0
  %13291 = vmatpush.bf16.msra.mxu0 0
  %13292 = vmatpush.bf16.msra.mxu0 %v12434
  %13293 = vmatpush.bf16.msra.mxu0 %v12427
  %13294 = vmatmul.bf16.gmra.mxu0 %v13128
  %v13295 = vpop.f32.mrf.mxu0
  %v13296 = vadd.f32 %v13283, %v13295
  %v13297 = vpop.f32.mrf.mxu0
  %13298 = vdwg.mxu0
  %13299 = vmatpush.bf16.msra.mxu0 %v11805
  %13300 = vmatpush.bf16.msra.mxu0 %v11798
  %13301 = vmatpush.bf16.msra.mxu0 %v11791
  %13302 = vmatpush.bf16.msra.mxu0 %v11784
  %13303 = vmatpush.bf16.msra.mxu0 %v11777
  %13304 = vmatpush.bf16.msra.mxu0 %v11770
  %13305 = vmatpush.bf16.msra.mxu0 %v11763
  %13306 = vmatpush.bf16.msra.mxu0 %v11756
  %13307 = vmatmul.bf16.gmra.mxu0 %v8786
  %v13308 = vpop.f32.mrf.mxu0
  %v13309 = vadd.f32 %v9586, %v13308
  %v13310 = vpop.f32.mrf.mxu0
  %13311 = vdwg.mxu0
  %13312 = vmatpush.bf16.msra.mxu0 %v11861
  %13313 = vmatpush.bf16.msra.mxu0 %v11854
  %13314 = vmatpush.bf16.msra.mxu0 %v11847
  %13315 = vmatpush.bf16.msra.mxu0 %v11840
  %13316 = vmatpush.bf16.msra.mxu0 %v11833
  %13317 = vmatpush.bf16.msra.mxu0 %v11826
  %13318 = vmatpush.bf16.msra.mxu0 %v11819
  %13319 = vmatpush.bf16.msra.mxu0 %v11812
  %13320 = vmatmul.bf16.gmra.mxu0 %v8787
  %v13321 = vpop.f32.mrf.mxu0
  %v13322 = vadd.f32 %v13309, %v13321
  %v13323 = vpop.f32.mrf.mxu0
  %13324 = vdwg.mxu0
  %13325 = vmatpush.bf16.msra.mxu0 %v11917
  %13326 = vmatpush.bf16.msra.mxu0 %v11910
  %13327 = vmatpush.bf16.msra.mxu0 %v11903
  %13328 = vmatpush.bf16.msra.mxu0 %v11896
  %13329 = vmatpush.bf16.msra.mxu0 %v11889
  %13330 = vmatpush.bf16.msra.mxu0 %v11882
  %13331 = vmatpush.bf16.msra.mxu0 %v11875
  %13332 = vmatpush.bf16.msra.mxu0 %v11868
  %13333 = vmatmul.bf16.gmra.mxu0 %v8788
  %v13334 = vpop.f32.mrf.mxu0
  %v13335 = vadd.f32 %v13322, %v13334
  %v13336 = vpop.f32.mrf.mxu0
  %13337 = vdwg.mxu0
  %13338 = vmatpush.bf16.msra.mxu0 %v11973
  %13339 = vmatpush.bf16.msra.mxu0 %v11966
  %13340 = vmatpush.bf16.msra.mxu0 %v11959
  %13341 = vmatpush.bf16.msra.mxu0 %v11952
  %13342 = vmatpush.bf16.msra.mxu0 %v11945
  %13343 = vmatpush.bf16.msra.mxu0 %v11938
  %13344 = vmatpush.bf16.msra.mxu0 %v11931
  %13345 = vmatpush.bf16.msra.mxu0 %v11924
  %13346 = vmatmul.bf16.gmra.mxu0 %v8789
  %v13347 = vpop.f32.mrf.mxu0
  %v13348 = vadd.f32 %v13335, %v13347
  %v13349 = vpop.f32.mrf.mxu0
  %13350 = vdwg.mxu0
  %13351 = vmatpush.bf16.msra.mxu0 %v12029
  %13352 = vmatpush.bf16.msra.mxu0 %v12022
  %13353 = vmatpush.bf16.msra.mxu0 %v12015
  %13354 = vmatpush.bf16.msra.mxu0 %v12008
  %13355 = vmatpush.bf16.msra.mxu0 %v12001
  %13356 = vmatpush.bf16.msra.mxu0 %v11994
  %13357 = vmatpush.bf16.msra.mxu0 %v11987
  %13358 = vmatpush.bf16.msra.mxu0 %v11980
  %13359 = vmatmul.bf16.gmra.mxu0 %v8790
  %v13360 = vpop.f32.mrf.mxu0
  %v13361 = vadd.f32 %v13348, %v13360
  %v13362 = vpop.f32.mrf.mxu0
  %13363 = vdwg.mxu0
  %13364 = vmatpush.bf16.msra.mxu0 %v12085
  %13365 = vmatpush.bf16.msra.mxu0 %v12078
  %13366 = vmatpush.bf16.msra.mxu0 %v12071
  %13367 = vmatpush.bf16.msra.mxu0 %v12064
  %13368 = vmatpush.bf16.msra.mxu0 %v12057
  %13369 = vmatpush.bf16.msra.mxu0 %v12050
  %13370 = vmatpush.bf16.msra.mxu0 %v12043
  %13371 = vmatpush.bf16.msra.mxu0 %v12036
  %13372 = vmatmul.bf16.gmra.mxu0 %v8791
  %v13373 = vpop.f32.mrf.mxu0
  %v13374 = vadd.f32 %v13361, %v13373
  %v13375 = vpop.f32.mrf.mxu0
  %13376 = vdwg.mxu0
  %13377 = vmatpush.bf16.msra.mxu0 %v12141
  %13378 = vmatpush.bf16.msra.mxu0 %v12134
  %13379 = vmatpush.bf16.msra.mxu0 %v12127
  %13380 = vmatpush.bf16.msra.mxu0 %v12120
  %13381 = vmatpush.bf16.msra.mxu0 %v12113
  %13382 = vmatpush.bf16.msra.mxu0 %v12106
  %13383 = vmatpush.bf16.msra.mxu0 %v12099
  %13384 = vmatpush.bf16.msra.mxu0 %v12092
  %13385 = vmatmul.bf16.gmra.mxu0 %v8792
  %v13386 = vpop.f32.mrf.mxu0
  %v13387 = vadd.f32 %v13374, %v13386
  %v13388 = vpop.f32.mrf.mxu0
  %13389 = vdwg.mxu0
  %13390 = vmatpush.bf16.msra.mxu0 %v12197
  %13391 = vmatpush.bf16.msra.mxu0 %v12190
  %13392 = vmatpush.bf16.msra.mxu0 %v12183
  %13393 = vmatpush.bf16.msra.mxu0 %v12176
  %13394 = vmatpush.bf16.msra.mxu0 %v12169
  %13395 = vmatpush.bf16.msra.mxu0 %v12162
  %13396 = vmatpush.bf16.msra.mxu0 %v12155
  %13397 = vmatpush.bf16.msra.mxu0 %v12148
  %13398 = vmatmul.bf16.gmra.mxu0 %v8793
  %v13399 = vpop.f32.mrf.mxu0
  %v13400 = vadd.f32 %v13387, %v13399
  %v13401 = vpop.f32.mrf.mxu0
  %13402 = vdwg.mxu0
  %13403 = vmatpush.bf16.msra.mxu0 %v12253
  %13404 = vmatpush.bf16.msra.mxu0 %v12246
  %13405 = vmatpush.bf16.msra.mxu0 %v12239
  %13406 = vmatpush.bf16.msra.mxu0 %v12232
  %13407 = vmatpush.bf16.msra.mxu0 %v12225
  %13408 = vmatpush.bf16.msra.mxu0 %v12218
  %13409 = vmatpush.bf16.msra.mxu0 %v12211
  %13410 = vmatpush.bf16.msra.mxu0 %v12204
  %13411 = vmatmul.bf16.gmra.mxu0 %v8794
  %v13412 = vpop.f32.mrf.mxu0
  %v13413 = vadd.f32 %v13400, %v13412
  %v13414 = vpop.f32.mrf.mxu0
  %13415 = vdwg.mxu0
  %13416 = vmatpush.bf16.msra.mxu0 %v12309
  %13417 = vmatpush.bf16.msra.mxu0 %v12302
  %13418 = vmatpush.bf16.msra.mxu0 %v12295
  %13419 = vmatpush.bf16.msra.mxu0 %v12288
  %13420 = vmatpush.bf16.msra.mxu0 %v12281
  %13421 = vmatpush.bf16.msra.mxu0 %v12274
  %13422 = vmatpush.bf16.msra.mxu0 %v12267
  %13423 = vmatpush.bf16.msra.mxu0 %v12260
  %13424 = vmatmul.bf16.gmra.mxu0 %v8795
  %v13425 = vpop.f32.mrf.mxu0
  %v13426 = vadd.f32 %v13413, %v13425
  %v13427 = vpop.f32.mrf.mxu0
  %13428 = vdwg.mxu0
  %13429 = vmatpush.bf16.msra.mxu0 %v12365
  %13430 = vmatpush.bf16.msra.mxu0 %v12358
  %13431 = vmatpush.bf16.msra.mxu0 %v12351
  %13432 = vmatpush.bf16.msra.mxu0 %v12344
  %13433 = vmatpush.bf16.msra.mxu0 %v12337
  %13434 = vmatpush.bf16.msra.mxu0 %v12330
  %13435 = vmatpush.bf16.msra.mxu0 %v12323
  %13436 = vmatpush.bf16.msra.mxu0 %v12316
  %13437 = vmatmul.bf16.gmra.mxu0 %v8796
  %v13438 = vpop.f32.mrf.mxu0
  %v13439 = vadd.f32 %v13426, %v13438
  %v13440 = vpop.f32.mrf.mxu0
  %13441 = vdwg.mxu0
  %13442 = vmatpush.bf16.msra.mxu0 %v12421
  %13443 = vmatpush.bf16.msra.mxu0 %v12414
  %13444 = vmatpush.bf16.msra.mxu0 %v12407
  %13445 = vmatpush.bf16.msra.mxu0 %v12400
  %13446 = vmatpush.bf16.msra.mxu0 %v12393
  %13447 = vmatpush.bf16.msra.mxu0 %v12386
  %13448 = vmatpush.bf16.msra.mxu0 %v12379
  %13449 = vmatpush.bf16.msra.mxu0 %v12372
  %13450 = vmatmul.bf16.gmra.mxu0 %v8797
  %v13451 = vpop.f32.mrf.mxu0
  %v13452 = vadd.f32 %v13439, %v13451
  %v13453 = vpop.f32.mrf.mxu0
  %13454 = vdwg.mxu0
  %13455 = vmatpush.bf16.msra.mxu0 0
  %13456 = vmatpush.bf16.msra.mxu0 0
  %13457 = vmatpush.bf16.msra.mxu0 0
  %13458 = vmatpush.bf16.msra.mxu0 0
  %13459 = vmatpush.bf16.msra.mxu0 0
  %13460 = vmatpush.bf16.msra.mxu0 0
  %13461 = vmatpush.bf16.msra.mxu0 %v12435
  %13462 = vmatpush.bf16.msra.mxu0 %v12428
  %13463 = vmatmul.bf16.gmra.mxu0 %v13128
  %v13464 = vpop.f32.mrf.mxu0
  %v13465 = vadd.f32 %v13452, %v13464
  %v13466 = vpop.f32.mrf.mxu0
  %13467 = vdwg.mxu0
  %13468 = vmatpush.bf16.msra.mxu0 %v11806
  %13469 = vmatpush.bf16.msra.mxu0 %v11799
  %13470 = vmatpush.bf16.msra.mxu0 %v11792
  %13471 = vmatpush.bf16.msra.mxu0 %v11785
  %13472 = vmatpush.bf16.msra.mxu0 %v11778
  %13473 = vmatpush.bf16.msra.mxu0 %v11771
  %13474 = vmatpush.bf16.msra.mxu0 %v11764
  %13475 = vmatpush.bf16.msra.mxu0 %v11757
  %13476 = vmatmul.bf16.gmra.mxu0 %v8786
  %v13477 = vpop.f32.mrf.mxu0
  %v13478 = vadd.f32 %v9587, %v13477
  %v13479 = vpop.f32.mrf.mxu0
  %13480 = vdwg.mxu0
  %13481 = vmatpush.bf16.msra.mxu0 %v11862
  %13482 = vmatpush.bf16.msra.mxu0 %v11855
  %13483 = vmatpush.bf16.msra.mxu0 %v11848
  %13484 = vmatpush.bf16.msra.mxu0 %v11841
  %13485 = vmatpush.bf16.msra.mxu0 %v11834
  %13486 = vmatpush.bf16.msra.mxu0 %v11827
  %13487 = vmatpush.bf16.msra.mxu0 %v11820
  %13488 = vmatpush.bf16.msra.mxu0 %v11813
  %13489 = vmatmul.bf16.gmra.mxu0 %v8787
  %v13490 = vpop.f32.mrf.mxu0
  %v13491 = vadd.f32 %v13478, %v13490
  %v13492 = vpop.f32.mrf.mxu0
  %13493 = vdwg.mxu0
  %13494 = vmatpush.bf16.msra.mxu0 %v11918
  %13495 = vmatpush.bf16.msra.mxu0 %v11911
  %13496 = vmatpush.bf16.msra.mxu0 %v11904
  %13497 = vmatpush.bf16.msra.mxu0 %v11897
  %13498 = vmatpush.bf16.msra.mxu0 %v11890
  %13499 = vmatpush.bf16.msra.mxu0 %v11883
  %13500 = vmatpush.bf16.msra.mxu0 %v11876
  %13501 = vmatpush.bf16.msra.mxu0 %v11869
  %13502 = vmatmul.bf16.gmra.mxu0 %v8788
  %v13503 = vpop.f32.mrf.mxu0
  %v13504 = vadd.f32 %v13491, %v13503
  %v13505 = vpop.f32.mrf.mxu0
  %13506 = vdwg.mxu0
  %13507 = vmatpush.bf16.msra.mxu0 %v11974
  %13508 = vmatpush.bf16.msra.mxu0 %v11967
  %13509 = vmatpush.bf16.msra.mxu0 %v11960
  %13510 = vmatpush.bf16.msra.mxu0 %v11953
  %13511 = vmatpush.bf16.msra.mxu0 %v11946
  %13512 = vmatpush.bf16.msra.mxu0 %v11939
  %13513 = vmatpush.bf16.msra.mxu0 %v11932
  %13514 = vmatpush.bf16.msra.mxu0 %v11925
  %13515 = vmatmul.bf16.gmra.mxu0 %v8789
  %v13516 = vpop.f32.mrf.mxu0
  %v13517 = vadd.f32 %v13504, %v13516
  %v13518 = vpop.f32.mrf.mxu0
  %13519 = vdwg.mxu0
  %13520 = vmatpush.bf16.msra.mxu0 %v12030
  %13521 = vmatpush.bf16.msra.mxu0 %v12023
  %13522 = vmatpush.bf16.msra.mxu0 %v12016
  %13523 = vmatpush.bf16.msra.mxu0 %v12009
  %13524 = vmatpush.bf16.msra.mxu0 %v12002
  %13525 = vmatpush.bf16.msra.mxu0 %v11995
  %13526 = vmatpush.bf16.msra.mxu0 %v11988
  %13527 = vmatpush.bf16.msra.mxu0 %v11981
  %13528 = vmatmul.bf16.gmra.mxu0 %v8790
  %v13529 = vpop.f32.mrf.mxu0
  %v13530 = vadd.f32 %v13517, %v13529
  %v13531 = vpop.f32.mrf.mxu0
  %13532 = vdwg.mxu0
  %13533 = vmatpush.bf16.msra.mxu0 %v12086
  %13534 = vmatpush.bf16.msra.mxu0 %v12079
  %13535 = vmatpush.bf16.msra.mxu0 %v12072
  %13536 = vmatpush.bf16.msra.mxu0 %v12065
  %13537 = vmatpush.bf16.msra.mxu0 %v12058
  %13538 = vmatpush.bf16.msra.mxu0 %v12051
  %13539 = vmatpush.bf16.msra.mxu0 %v12044
  %13540 = vmatpush.bf16.msra.mxu0 %v12037
  %13541 = vmatmul.bf16.gmra.mxu0 %v8791
  %v13542 = vpop.f32.mrf.mxu0
  %v13543 = vadd.f32 %v13530, %v13542
  %v13544 = vpop.f32.mrf.mxu0
  %13545 = vdwg.mxu0
  %13546 = vmatpush.bf16.msra.mxu0 %v12142
  %13547 = vmatpush.bf16.msra.mxu0 %v12135
  %13548 = vmatpush.bf16.msra.mxu0 %v12128
  %13549 = vmatpush.bf16.msra.mxu0 %v12121
  %13550 = vmatpush.bf16.msra.mxu0 %v12114
  %13551 = vmatpush.bf16.msra.mxu0 %v12107
  %13552 = vmatpush.bf16.msra.mxu0 %v12100
  %13553 = vmatpush.bf16.msra.mxu0 %v12093
  %13554 = vmatmul.bf16.gmra.mxu0 %v8792
  %v13555 = vpop.f32.mrf.mxu0
  %v13556 = vadd.f32 %v13543, %v13555
  %v13557 = vpop.f32.mrf.mxu0
  %13558 = vdwg.mxu0
  %13559 = vmatpush.bf16.msra.mxu0 %v12198
  %13560 = vmatpush.bf16.msra.mxu0 %v12191
  %13561 = vmatpush.bf16.msra.mxu0 %v12184
  %13562 = vmatpush.bf16.msra.mxu0 %v12177
  %13563 = vmatpush.bf16.msra.mxu0 %v12170
  %13564 = vmatpush.bf16.msra.mxu0 %v12163
  %13565 = vmatpush.bf16.msra.mxu0 %v12156
  %13566 = vmatpush.bf16.msra.mxu0 %v12149
  %13567 = vmatmul.bf16.gmra.mxu0 %v8793
  %v13568 = vpop.f32.mrf.mxu0
  %v13569 = vadd.f32 %v13556, %v13568
  %v13570 = vpop.f32.mrf.mxu0
  %13571 = vdwg.mxu0
  %13572 = vmatpush.bf16.msra.mxu0 %v12254
  %13573 = vmatpush.bf16.msra.mxu0 %v12247
  %13574 = vmatpush.bf16.msra.mxu0 %v12240
  %13575 = vmatpush.bf16.msra.mxu0 %v12233
  %13576 = vmatpush.bf16.msra.mxu0 %v12226
  %13577 = vmatpush.bf16.msra.mxu0 %v12219
  %13578 = vmatpush.bf16.msra.mxu0 %v12212
  %13579 = vmatpush.bf16.msra.mxu0 %v12205
  %13580 = vmatmul.bf16.gmra.mxu0 %v8794
  %v13581 = vpop.f32.mrf.mxu0
  %v13582 = vadd.f32 %v13569, %v13581
  %v13583 = vpop.f32.mrf.mxu0
  %13584 = vdwg.mxu0
  %13585 = vmatpush.bf16.msra.mxu0 %v12310
  %13586 = vmatpush.bf16.msra.mxu0 %v12303
  %13587 = vmatpush.bf16.msra.mxu0 %v12296
  %13588 = vmatpush.bf16.msra.mxu0 %v12289
  %13589 = vmatpush.bf16.msra.mxu0 %v12282
  %13590 = vmatpush.bf16.msra.mxu0 %v12275
  %13591 = vmatpush.bf16.msra.mxu0 %v12268
  %13592 = vmatpush.bf16.msra.mxu0 %v12261
  %13593 = vmatmul.bf16.gmra.mxu0 %v8795
  %v13594 = vpop.f32.mrf.mxu0
  %v13595 = vadd.f32 %v13582, %v13594
  %v13596 = vpop.f32.mrf.mxu0
  %13597 = vdwg.mxu0
  %13598 = vmatpush.bf16.msra.mxu0 %v12366
  %13599 = vmatpush.bf16.msra.mxu0 %v12359
  %13600 = vmatpush.bf16.msra.mxu0 %v12352
  %13601 = vmatpush.bf16.msra.mxu0 %v12345
  %13602 = vmatpush.bf16.msra.mxu0 %v12338
  %13603 = vmatpush.bf16.msra.mxu0 %v12331
  %13604 = vmatpush.bf16.msra.mxu0 %v12324
  %13605 = vmatpush.bf16.msra.mxu0 %v12317
  %13606 = vmatmul.bf16.gmra.mxu0 %v8796
  %v13607 = vpop.f32.mrf.mxu0
  %v13608 = vadd.f32 %v13595, %v13607
  %v13609 = vpop.f32.mrf.mxu0
  %13610 = vdwg.mxu0
  %13611 = vmatpush.bf16.msra.mxu0 %v12422
  %13612 = vmatpush.bf16.msra.mxu0 %v12415
  %13613 = vmatpush.bf16.msra.mxu0 %v12408
  %13614 = vmatpush.bf16.msra.mxu0 %v12401
  %13615 = vmatpush.bf16.msra.mxu0 %v12394
  %13616 = vmatpush.bf16.msra.mxu0 %v12387
  %13617 = vmatpush.bf16.msra.mxu0 %v12380
  %13618 = vmatpush.bf16.msra.mxu0 %v12373
  %13619 = vmatmul.bf16.gmra.mxu0 %v8797
  %v13620 = vpop.f32.mrf.mxu0
  %v13621 = vadd.f32 %v13608, %v13620
  %v13622 = vpop.f32.mrf.mxu0
  %13623 = vdwg.mxu0
  %13624 = vmatpush.bf16.msra.mxu0 0
  %13625 = vmatpush.bf16.msra.mxu0 0
  %13626 = vmatpush.bf16.msra.mxu0 0
  %13627 = vmatpush.bf16.msra.mxu0 0
  %13628 = vmatpush.bf16.msra.mxu0 0
  %13629 = vmatpush.bf16.msra.mxu0 0
  %13630 = vmatpush.bf16.msra.mxu0 %v12436
  %13631 = vmatpush.bf16.msra.mxu0 %v12429
  %13632 = vmatmul.bf16.gmra.mxu0 %v13128
  %v13633 = vpop.f32.mrf.mxu0
  %v13634 = vadd.f32 %v13621, %v13633
  %v13635 = vpop.f32.mrf.mxu0
  %13636 = vdwg.mxu0
  %13637 = vmatpush.bf16.msra.mxu0 %v11807
  %13638 = vmatpush.bf16.msra.mxu0 %v11800
  %13639 = vmatpush.bf16.msra.mxu0 %v11793
  %13640 = vmatpush.bf16.msra.mxu0 %v11786
  %13641 = vmatpush.bf16.msra.mxu0 %v11779
  %13642 = vmatpush.bf16.msra.mxu0 %v11772
  %13643 = vmatpush.bf16.msra.mxu0 %v11765
  %13644 = vmatpush.bf16.msra.mxu0 %v11758
  %13645 = vmatmul.bf16.gmra.mxu0 %v8786
  %v13646 = vpop.f32.mrf.mxu0
  %v13647 = vadd.f32 %v9588, %v13646
  %v13648 = vpop.f32.mrf.mxu0
  %13649 = vdwg.mxu0
  %13650 = vmatpush.bf16.msra.mxu0 %v11863
  %13651 = vmatpush.bf16.msra.mxu0 %v11856
  %13652 = vmatpush.bf16.msra.mxu0 %v11849
  %13653 = vmatpush.bf16.msra.mxu0 %v11842
  %13654 = vmatpush.bf16.msra.mxu0 %v11835
  %13655 = vmatpush.bf16.msra.mxu0 %v11828
  %13656 = vmatpush.bf16.msra.mxu0 %v11821
  %13657 = vmatpush.bf16.msra.mxu0 %v11814
  %13658 = vmatmul.bf16.gmra.mxu0 %v8787
  %v13659 = vpop.f32.mrf.mxu0
  %v13660 = vadd.f32 %v13647, %v13659
  %v13661 = vpop.f32.mrf.mxu0
  %13662 = vdwg.mxu0
  %13663 = vmatpush.bf16.msra.mxu0 %v11919
  %13664 = vmatpush.bf16.msra.mxu0 %v11912
  %13665 = vmatpush.bf16.msra.mxu0 %v11905
  %13666 = vmatpush.bf16.msra.mxu0 %v11898
  %13667 = vmatpush.bf16.msra.mxu0 %v11891
  %13668 = vmatpush.bf16.msra.mxu0 %v11884
  %13669 = vmatpush.bf16.msra.mxu0 %v11877
  %13670 = vmatpush.bf16.msra.mxu0 %v11870
  %13671 = vmatmul.bf16.gmra.mxu0 %v8788
  %v13672 = vpop.f32.mrf.mxu0
  %v13673 = vadd.f32 %v13660, %v13672
  %v13674 = vpop.f32.mrf.mxu0
  %13675 = vdwg.mxu0
  %13676 = vmatpush.bf16.msra.mxu0 %v11975
  %13677 = vmatpush.bf16.msra.mxu0 %v11968
  %13678 = vmatpush.bf16.msra.mxu0 %v11961
  %13679 = vmatpush.bf16.msra.mxu0 %v11954
  %13680 = vmatpush.bf16.msra.mxu0 %v11947
  %13681 = vmatpush.bf16.msra.mxu0 %v11940
  %13682 = vmatpush.bf16.msra.mxu0 %v11933
  %13683 = vmatpush.bf16.msra.mxu0 %v11926
  %13684 = vmatmul.bf16.gmra.mxu0 %v8789
  %v13685 = vpop.f32.mrf.mxu0
  %v13686 = vadd.f32 %v13673, %v13685
  %v13687 = vpop.f32.mrf.mxu0
  %13688 = vdwg.mxu0
  %13689 = vmatpush.bf16.msra.mxu0 %v12031
  %13690 = vmatpush.bf16.msra.mxu0 %v12024
  %13691 = vmatpush.bf16.msra.mxu0 %v12017
  %13692 = vmatpush.bf16.msra.mxu0 %v12010
  %13693 = vmatpush.bf16.msra.mxu0 %v12003
  %13694 = vmatpush.bf16.msra.mxu0 %v11996
  %13695 = vmatpush.bf16.msra.mxu0 %v11989
  %13696 = vmatpush.bf16.msra.mxu0 %v11982
  %13697 = vmatmul.bf16.gmra.mxu0 %v8790
  %v13698 = vpop.f32.mrf.mxu0
  %v13699 = vadd.f32 %v13686, %v13698
  %v13700 = vpop.f32.mrf.mxu0
  %13701 = vdwg.mxu0
  %13702 = vmatpush.bf16.msra.mxu0 %v12087
  %13703 = vmatpush.bf16.msra.mxu0 %v12080
  %13704 = vmatpush.bf16.msra.mxu0 %v12073
  %13705 = vmatpush.bf16.msra.mxu0 %v12066
  %13706 = vmatpush.bf16.msra.mxu0 %v12059
  %13707 = vmatpush.bf16.msra.mxu0 %v12052
  %13708 = vmatpush.bf16.msra.mxu0 %v12045
  %13709 = vmatpush.bf16.msra.mxu0 %v12038
  %13710 = vmatmul.bf16.gmra.mxu0 %v8791
  %v13711 = vpop.f32.mrf.mxu0
  %v13712 = vadd.f32 %v13699, %v13711
  %v13713 = vpop.f32.mrf.mxu0
  %13714 = vdwg.mxu0
  %13715 = vmatpush.bf16.msra.mxu0 %v12143
  %13716 = vmatpush.bf16.msra.mxu0 %v12136
  %13717 = vmatpush.bf16.msra.mxu0 %v12129
  %13718 = vmatpush.bf16.msra.mxu0 %v12122
  %13719 = vmatpush.bf16.msra.mxu0 %v12115
  %13720 = vmatpush.bf16.msra.mxu0 %v12108
  %13721 = vmatpush.bf16.msra.mxu0 %v12101
  %13722 = vmatpush.bf16.msra.mxu0 %v12094
  %13723 = vmatmul.bf16.gmra.mxu0 %v8792
  %v13724 = vpop.f32.mrf.mxu0
  %v13725 = vadd.f32 %v13712, %v13724
  %v13726 = vpop.f32.mrf.mxu0
  %13727 = vdwg.mxu0
  %13728 = vmatpush.bf16.msra.mxu0 %v12199
  %13729 = vmatpush.bf16.msra.mxu0 %v12192
  %13730 = vmatpush.bf16.msra.mxu0 %v12185
  %13731 = vmatpush.bf16.msra.mxu0 %v12178
  %13732 = vmatpush.bf16.msra.mxu0 %v12171
  %13733 = vmatpush.bf16.msra.mxu0 %v12164
  %13734 = vmatpush.bf16.msra.mxu0 %v12157
  %13735 = vmatpush.bf16.msra.mxu0 %v12150
  %13736 = vmatmul.bf16.gmra.mxu0 %v8793
  %v13737 = vpop.f32.mrf.mxu0
  %v13738 = vadd.f32 %v13725, %v13737
  %v13739 = vpop.f32.mrf.mxu0
  %13740 = vdwg.mxu0
  %13741 = vmatpush.bf16.msra.mxu0 %v12255
  %13742 = vmatpush.bf16.msra.mxu0 %v12248
  %13743 = vmatpush.bf16.msra.mxu0 %v12241
  %13744 = vmatpush.bf16.msra.mxu0 %v12234
  %13745 = vmatpush.bf16.msra.mxu0 %v12227
  %13746 = vmatpush.bf16.msra.mxu0 %v12220
  %13747 = vmatpush.bf16.msra.mxu0 %v12213
  %13748 = vmatpush.bf16.msra.mxu0 %v12206
  %13749 = vmatmul.bf16.gmra.mxu0 %v8794
  %v13750 = vpop.f32.mrf.mxu0
  %v13751 = vadd.f32 %v13738, %v13750
  %v13752 = vpop.f32.mrf.mxu0
  %13753 = vdwg.mxu0
  %13754 = vmatpush.bf16.msra.mxu0 %v12311
  %13755 = vmatpush.bf16.msra.mxu0 %v12304
  %13756 = vmatpush.bf16.msra.mxu0 %v12297
  %13757 = vmatpush.bf16.msra.mxu0 %v12290
  %13758 = vmatpush.bf16.msra.mxu0 %v12283
  %13759 = vmatpush.bf16.msra.mxu0 %v12276
  %13760 = vmatpush.bf16.msra.mxu0 %v12269
  %13761 = vmatpush.bf16.msra.mxu0 %v12262
  %13762 = vmatmul.bf16.gmra.mxu0 %v8795
  %v13763 = vpop.f32.mrf.mxu0
  %v13764 = vadd.f32 %v13751, %v13763
  %v13765 = vpop.f32.mrf.mxu0
  %13766 = vdwg.mxu0
  %13767 = vmatpush.bf16.msra.mxu0 %v12367
  %13768 = vmatpush.bf16.msra.mxu0 %v12360
  %13769 = vmatpush.bf16.msra.mxu0 %v12353
  %13770 = vmatpush.bf16.msra.mxu0 %v12346
  %13771 = vmatpush.bf16.msra.mxu0 %v12339
  %13772 = vmatpush.bf16.msra.mxu0 %v12332
  %13773 = vmatpush.bf16.msra.mxu0 %v12325
  %13774 = vmatpush.bf16.msra.mxu0 %v12318
  %13775 = vmatmul.bf16.gmra.mxu0 %v8796
  %v13776 = vpop.f32.mrf.mxu0
  %v13777 = vadd.f32 %v13764, %v13776
  %v13778 = vpop.f32.mrf.mxu0
  %13779 = vdwg.mxu0
  %13780 = vmatpush.bf16.msra.mxu0 %v12423
  %13781 = vmatpush.bf16.msra.mxu0 %v12416
  %13782 = vmatpush.bf16.msra.mxu0 %v12409
  %13783 = vmatpush.bf16.msra.mxu0 %v12402
  %13784 = vmatpush.bf16.msra.mxu0 %v12395
  %13785 = vmatpush.bf16.msra.mxu0 %v12388
  %13786 = vmatpush.bf16.msra.mxu0 %v12381
  %13787 = vmatpush.bf16.msra.mxu0 %v12374
  %13788 = vmatmul.bf16.gmra.mxu0 %v8797
  %v13789 = vpop.f32.mrf.mxu0
  %v13790 = vadd.f32 %v13777, %v13789
  %v13791 = vpop.f32.mrf.mxu0
  %13792 = vdwg.mxu0
  %13793 = vmatpush.bf16.msra.mxu0 0
  %13794 = vmatpush.bf16.msra.mxu0 0
  %13795 = vmatpush.bf16.msra.mxu0 0
  %13796 = vmatpush.bf16.msra.mxu0 0
  %13797 = vmatpush.bf16.msra.mxu0 0
  %13798 = vmatpush.bf16.msra.mxu0 0
  %13799 = vmatpush.bf16.msra.mxu0 %v12437
  %13800 = vmatpush.bf16.msra.mxu0 %v12430
  %13801 = vmatmul.bf16.gmra.mxu0 %v13128
  %v13802 = vpop.f32.mrf.mxu0
  %v13803 = vadd.f32 %v13790, %v13802
  %v13804 = vpop.f32.mrf.mxu0
  %13805 = vdwg.mxu0
  %13806 = vmatpush.bf16.msra.mxu0 %v11808
  %13807 = vmatpush.bf16.msra.mxu0 %v11801
  %13808 = vmatpush.bf16.msra.mxu0 %v11794
  %13809 = vmatpush.bf16.msra.mxu0 %v11787
  %13810 = vmatpush.bf16.msra.mxu0 %v11780
  %13811 = vmatpush.bf16.msra.mxu0 %v11773
  %13812 = vmatpush.bf16.msra.mxu0 %v11766
  %13813 = vmatpush.bf16.msra.mxu0 %v11759
  %13814 = vmatmul.bf16.gmra.mxu0 %v8786
  %v13815 = vpop.f32.mrf.mxu0
  %v13816 = vadd.f32 %v9589, %v13815
  %v13817 = vpop.f32.mrf.mxu0
  %13818 = vdwg.mxu0
  %13819 = vmatpush.bf16.msra.mxu0 %v11864
  %13820 = vmatpush.bf16.msra.mxu0 %v11857
  %13821 = vmatpush.bf16.msra.mxu0 %v11850
  %13822 = vmatpush.bf16.msra.mxu0 %v11843
  %13823 = vmatpush.bf16.msra.mxu0 %v11836
  %13824 = vmatpush.bf16.msra.mxu0 %v11829
  %13825 = vmatpush.bf16.msra.mxu0 %v11822
  %13826 = vmatpush.bf16.msra.mxu0 %v11815
  %13827 = vmatmul.bf16.gmra.mxu0 %v8787
  %v13828 = vpop.f32.mrf.mxu0
  %v13829 = vadd.f32 %v13816, %v13828
  %v13830 = vpop.f32.mrf.mxu0
  %13831 = vdwg.mxu0
  %13832 = vmatpush.bf16.msra.mxu0 %v11920
  %13833 = vmatpush.bf16.msra.mxu0 %v11913
  %13834 = vmatpush.bf16.msra.mxu0 %v11906
  %13835 = vmatpush.bf16.msra.mxu0 %v11899
  %13836 = vmatpush.bf16.msra.mxu0 %v11892
  %13837 = vmatpush.bf16.msra.mxu0 %v11885
  %13838 = vmatpush.bf16.msra.mxu0 %v11878
  %13839 = vmatpush.bf16.msra.mxu0 %v11871
  %13840 = vmatmul.bf16.gmra.mxu0 %v8788
  %v13841 = vpop.f32.mrf.mxu0
  %v13842 = vadd.f32 %v13829, %v13841
  %v13843 = vpop.f32.mrf.mxu0
  %13844 = vdwg.mxu0
  %13845 = vmatpush.bf16.msra.mxu0 %v11976
  %13846 = vmatpush.bf16.msra.mxu0 %v11969
  %13847 = vmatpush.bf16.msra.mxu0 %v11962
  %13848 = vmatpush.bf16.msra.mxu0 %v11955
  %13849 = vmatpush.bf16.msra.mxu0 %v11948
  %13850 = vmatpush.bf16.msra.mxu0 %v11941
  %13851 = vmatpush.bf16.msra.mxu0 %v11934
  %13852 = vmatpush.bf16.msra.mxu0 %v11927
  %13853 = vmatmul.bf16.gmra.mxu0 %v8789
  %v13854 = vpop.f32.mrf.mxu0
  %v13855 = vadd.f32 %v13842, %v13854
  %v13856 = vpop.f32.mrf.mxu0
  %13857 = vdwg.mxu0
  %13858 = vmatpush.bf16.msra.mxu0 %v12032
  %13859 = vmatpush.bf16.msra.mxu0 %v12025
  %13860 = vmatpush.bf16.msra.mxu0 %v12018
  %13861 = vmatpush.bf16.msra.mxu0 %v12011
  %13862 = vmatpush.bf16.msra.mxu0 %v12004
  %13863 = vmatpush.bf16.msra.mxu0 %v11997
  %13864 = vmatpush.bf16.msra.mxu0 %v11990
  %13865 = vmatpush.bf16.msra.mxu0 %v11983
  %13866 = vmatmul.bf16.gmra.mxu0 %v8790
  %v13867 = vpop.f32.mrf.mxu0
  %v13868 = vadd.f32 %v13855, %v13867
  %v13869 = vpop.f32.mrf.mxu0
  %13870 = vdwg.mxu0
  %13871 = vmatpush.bf16.msra.mxu0 %v12088
  %13872 = vmatpush.bf16.msra.mxu0 %v12081
  %13873 = vmatpush.bf16.msra.mxu0 %v12074
  %13874 = vmatpush.bf16.msra.mxu0 %v12067
  %13875 = vmatpush.bf16.msra.mxu0 %v12060
  %13876 = vmatpush.bf16.msra.mxu0 %v12053
  %13877 = vmatpush.bf16.msra.mxu0 %v12046
  %13878 = vmatpush.bf16.msra.mxu0 %v12039
  %13879 = vmatmul.bf16.gmra.mxu0 %v8791
  %v13880 = vpop.f32.mrf.mxu0
  %v13881 = vadd.f32 %v13868, %v13880
  %v13882 = vpop.f32.mrf.mxu0
  %13883 = vdwg.mxu0
  %13884 = vmatpush.bf16.msra.mxu0 %v12144
  %13885 = vmatpush.bf16.msra.mxu0 %v12137
  %13886 = vmatpush.bf16.msra.mxu0 %v12130
  %13887 = vmatpush.bf16.msra.mxu0 %v12123
  %13888 = vmatpush.bf16.msra.mxu0 %v12116
  %13889 = vmatpush.bf16.msra.mxu0 %v12109
  %13890 = vmatpush.bf16.msra.mxu0 %v12102
  %13891 = vmatpush.bf16.msra.mxu0 %v12095
  %13892 = vmatmul.bf16.gmra.mxu0 %v8792
  %v13893 = vpop.f32.mrf.mxu0
  %v13894 = vadd.f32 %v13881, %v13893
  %v13895 = vpop.f32.mrf.mxu0
  %13896 = vdwg.mxu0
  %13897 = vmatpush.bf16.msra.mxu0 %v12200
  %13898 = vmatpush.bf16.msra.mxu0 %v12193
  %13899 = vmatpush.bf16.msra.mxu0 %v12186
  %13900 = vmatpush.bf16.msra.mxu0 %v12179
  %13901 = vmatpush.bf16.msra.mxu0 %v12172
  %13902 = vmatpush.bf16.msra.mxu0 %v12165
  %13903 = vmatpush.bf16.msra.mxu0 %v12158
  %13904 = vmatpush.bf16.msra.mxu0 %v12151
  %13905 = vmatmul.bf16.gmra.mxu0 %v8793
  %v13906 = vpop.f32.mrf.mxu0
  %v13907 = vadd.f32 %v13894, %v13906
  %v13908 = vpop.f32.mrf.mxu0
  %13909 = vdwg.mxu0
  %13910 = vmatpush.bf16.msra.mxu0 %v12256
  %13911 = vmatpush.bf16.msra.mxu0 %v12249
  %13912 = vmatpush.bf16.msra.mxu0 %v12242
  %13913 = vmatpush.bf16.msra.mxu0 %v12235
  %13914 = vmatpush.bf16.msra.mxu0 %v12228
  %13915 = vmatpush.bf16.msra.mxu0 %v12221
  %13916 = vmatpush.bf16.msra.mxu0 %v12214
  %13917 = vmatpush.bf16.msra.mxu0 %v12207
  %13918 = vmatmul.bf16.gmra.mxu0 %v8794
  %v13919 = vpop.f32.mrf.mxu0
  %v13920 = vadd.f32 %v13907, %v13919
  %v13921 = vpop.f32.mrf.mxu0
  %13922 = vdwg.mxu0
  %13923 = vmatpush.bf16.msra.mxu0 %v12312
  %13924 = vmatpush.bf16.msra.mxu0 %v12305
  %13925 = vmatpush.bf16.msra.mxu0 %v12298
  %13926 = vmatpush.bf16.msra.mxu0 %v12291
  %13927 = vmatpush.bf16.msra.mxu0 %v12284
  %13928 = vmatpush.bf16.msra.mxu0 %v12277
  %13929 = vmatpush.bf16.msra.mxu0 %v12270
  %13930 = vmatpush.bf16.msra.mxu0 %v12263
  %13931 = vmatmul.bf16.gmra.mxu0 %v8795
  %v13932 = vpop.f32.mrf.mxu0
  %v13933 = vadd.f32 %v13920, %v13932
  %v13934 = vpop.f32.mrf.mxu0
  %13935 = vdwg.mxu0
  %13936 = vmatpush.bf16.msra.mxu0 %v12368
  %13937 = vmatpush.bf16.msra.mxu0 %v12361
  %13938 = vmatpush.bf16.msra.mxu0 %v12354
  %13939 = vmatpush.bf16.msra.mxu0 %v12347
  %13940 = vmatpush.bf16.msra.mxu0 %v12340
  %13941 = vmatpush.bf16.msra.mxu0 %v12333
  %13942 = vmatpush.bf16.msra.mxu0 %v12326
  %13943 = vmatpush.bf16.msra.mxu0 %v12319
  %13944 = vmatmul.bf16.gmra.mxu0 %v8796
  %v13945 = vpop.f32.mrf.mxu0
  %v13946 = vadd.f32 %v13933, %v13945
  %v13947 = vpop.f32.mrf.mxu0
  %13948 = vdwg.mxu0
  %13949 = vmatpush.bf16.msra.mxu0 %v12424
  %13950 = vmatpush.bf16.msra.mxu0 %v12417
  %13951 = vmatpush.bf16.msra.mxu0 %v12410
  %13952 = vmatpush.bf16.msra.mxu0 %v12403
  %13953 = vmatpush.bf16.msra.mxu0 %v12396
  %13954 = vmatpush.bf16.msra.mxu0 %v12389
  %13955 = vmatpush.bf16.msra.mxu0 %v12382
  %13956 = vmatpush.bf16.msra.mxu0 %v12375
  %13957 = vmatmul.bf16.gmra.mxu0 %v8797
  %v13958 = vpop.f32.mrf.mxu0
  %v13959 = vadd.f32 %v13946, %v13958
  %v13960 = vpop.f32.mrf.mxu0
  %13961 = vdwg.mxu0
  %13962 = vmatpush.bf16.msra.mxu0 0
  %13963 = vmatpush.bf16.msra.mxu0 0
  %13964 = vmatpush.bf16.msra.mxu0 0
  %13965 = vmatpush.bf16.msra.mxu0 0
  %13966 = vmatpush.bf16.msra.mxu0 0
  %13967 = vmatpush.bf16.msra.mxu0 0
  %13968 = vmatpush.bf16.msra.mxu0 %v12438
  %13969 = vmatpush.bf16.msra.mxu0 %v12431
  %13970 = vmatmul.bf16.gmra.mxu0 %v13128
  %v13971 = vpop.f32.mrf.mxu0
  %v13972 = vadd.f32 %v13959, %v13971
  %v13973 = vpop.f32.mrf.mxu0
  %13974 = vdwg.mxu0
  %13975 = vmatpush.bf16.msra.mxu0 %v11809
  %13976 = vmatpush.bf16.msra.mxu0 %v11802
  %13977 = vmatpush.bf16.msra.mxu0 %v11795
  %13978 = vmatpush.bf16.msra.mxu0 %v11788
  %13979 = vmatpush.bf16.msra.mxu0 %v11781
  %13980 = vmatpush.bf16.msra.mxu0 %v11774
  %13981 = vmatpush.bf16.msra.mxu0 %v11767
  %13982 = vmatpush.bf16.msra.mxu0 %v11760
  %13983 = vmatmul.bf16.gmra.mxu0 %v8786
  %v13984 = vpop.f32.mrf.mxu0
  %v13985 = vadd.f32 %v9590, %v13984
  %v13986 = vpop.f32.mrf.mxu0
  %13987 = vdwg.mxu0
  %13988 = vmatpush.bf16.msra.mxu0 %v11865
  %13989 = vmatpush.bf16.msra.mxu0 %v11858
  %13990 = vmatpush.bf16.msra.mxu0 %v11851
  %13991 = vmatpush.bf16.msra.mxu0 %v11844
  %13992 = vmatpush.bf16.msra.mxu0 %v11837
  %13993 = vmatpush.bf16.msra.mxu0 %v11830
  %13994 = vmatpush.bf16.msra.mxu0 %v11823
  %13995 = vmatpush.bf16.msra.mxu0 %v11816
  %13996 = vmatmul.bf16.gmra.mxu0 %v8787
  %v13997 = vpop.f32.mrf.mxu0
  %v13998 = vadd.f32 %v13985, %v13997
  %v13999 = vpop.f32.mrf.mxu0
  %14000 = vdwg.mxu0
  %14001 = vmatpush.bf16.msra.mxu0 %v11921
  %14002 = vmatpush.bf16.msra.mxu0 %v11914
  %14003 = vmatpush.bf16.msra.mxu0 %v11907
  %14004 = vmatpush.bf16.msra.mxu0 %v11900
  %14005 = vmatpush.bf16.msra.mxu0 %v11893
  %14006 = vmatpush.bf16.msra.mxu0 %v11886
  %14007 = vmatpush.bf16.msra.mxu0 %v11879
  %14008 = vmatpush.bf16.msra.mxu0 %v11872
  %14009 = vmatmul.bf16.gmra.mxu0 %v8788
  %v14010 = vpop.f32.mrf.mxu0
  %v14011 = vadd.f32 %v13998, %v14010
  %v14012 = vpop.f32.mrf.mxu0
  %14013 = vdwg.mxu0
  %14014 = vmatpush.bf16.msra.mxu0 %v11977
  %14015 = vmatpush.bf16.msra.mxu0 %v11970
  %14016 = vmatpush.bf16.msra.mxu0 %v11963
  %14017 = vmatpush.bf16.msra.mxu0 %v11956
  %14018 = vmatpush.bf16.msra.mxu0 %v11949
  %14019 = vmatpush.bf16.msra.mxu0 %v11942
  %14020 = vmatpush.bf16.msra.mxu0 %v11935
  %14021 = vmatpush.bf16.msra.mxu0 %v11928
  %14022 = vmatmul.bf16.gmra.mxu0 %v8789
  %v14023 = vpop.f32.mrf.mxu0
  %v14024 = vadd.f32 %v14011, %v14023
  %v14025 = vpop.f32.mrf.mxu0
  %14026 = vdwg.mxu0
  %14027 = vmatpush.bf16.msra.mxu0 %v12033
  %14028 = vmatpush.bf16.msra.mxu0 %v12026
  %14029 = vmatpush.bf16.msra.mxu0 %v12019
  %14030 = vmatpush.bf16.msra.mxu0 %v12012
  %14031 = vmatpush.bf16.msra.mxu0 %v12005
  %14032 = vmatpush.bf16.msra.mxu0 %v11998
  %14033 = vmatpush.bf16.msra.mxu0 %v11991
  %14034 = vmatpush.bf16.msra.mxu0 %v11984
  %14035 = vmatmul.bf16.gmra.mxu0 %v8790
  %v14036 = vpop.f32.mrf.mxu0
  %v14037 = vadd.f32 %v14024, %v14036
  %v14038 = vpop.f32.mrf.mxu0
  %14039 = vdwg.mxu0
  %14040 = vmatpush.bf16.msra.mxu0 %v12089
  %14041 = vmatpush.bf16.msra.mxu0 %v12082
  %14042 = vmatpush.bf16.msra.mxu0 %v12075
  %14043 = vmatpush.bf16.msra.mxu0 %v12068
  %14044 = vmatpush.bf16.msra.mxu0 %v12061
  %14045 = vmatpush.bf16.msra.mxu0 %v12054
  %14046 = vmatpush.bf16.msra.mxu0 %v12047
  %14047 = vmatpush.bf16.msra.mxu0 %v12040
  %14048 = vmatmul.bf16.gmra.mxu0 %v8791
  %v14049 = vpop.f32.mrf.mxu0
  %v14050 = vadd.f32 %v14037, %v14049
  %v14051 = vpop.f32.mrf.mxu0
  %14052 = vdwg.mxu0
  %14053 = vmatpush.bf16.msra.mxu0 %v12145
  %14054 = vmatpush.bf16.msra.mxu0 %v12138
  %14055 = vmatpush.bf16.msra.mxu0 %v12131
  %14056 = vmatpush.bf16.msra.mxu0 %v12124
  %14057 = vmatpush.bf16.msra.mxu0 %v12117
  %14058 = vmatpush.bf16.msra.mxu0 %v12110
  %14059 = vmatpush.bf16.msra.mxu0 %v12103
  %14060 = vmatpush.bf16.msra.mxu0 %v12096
  %14061 = vmatmul.bf16.gmra.mxu0 %v8792
  %v14062 = vpop.f32.mrf.mxu0
  %v14063 = vadd.f32 %v14050, %v14062
  %v14064 = vpop.f32.mrf.mxu0
  %14065 = vdwg.mxu0
  %14066 = vmatpush.bf16.msra.mxu0 %v12201
  %14067 = vmatpush.bf16.msra.mxu0 %v12194
  %14068 = vmatpush.bf16.msra.mxu0 %v12187
  %14069 = vmatpush.bf16.msra.mxu0 %v12180
  %14070 = vmatpush.bf16.msra.mxu0 %v12173
  %14071 = vmatpush.bf16.msra.mxu0 %v12166
  %14072 = vmatpush.bf16.msra.mxu0 %v12159
  %14073 = vmatpush.bf16.msra.mxu0 %v12152
  %14074 = vmatmul.bf16.gmra.mxu0 %v8793
  %v14075 = vpop.f32.mrf.mxu0
  %v14076 = vadd.f32 %v14063, %v14075
  %v14077 = vpop.f32.mrf.mxu0
  %14078 = vdwg.mxu0
  %14079 = vmatpush.bf16.msra.mxu0 %v12257
  %14080 = vmatpush.bf16.msra.mxu0 %v12250
  %14081 = vmatpush.bf16.msra.mxu0 %v12243
  %14082 = vmatpush.bf16.msra.mxu0 %v12236
  %14083 = vmatpush.bf16.msra.mxu0 %v12229
  %14084 = vmatpush.bf16.msra.mxu0 %v12222
  %14085 = vmatpush.bf16.msra.mxu0 %v12215
  %14086 = vmatpush.bf16.msra.mxu0 %v12208
  %14087 = vmatmul.bf16.gmra.mxu0 %v8794
  %v14088 = vpop.f32.mrf.mxu0
  %v14089 = vadd.f32 %v14076, %v14088
  %v14090 = vpop.f32.mrf.mxu0
  %14091 = vdwg.mxu0
  %14092 = vmatpush.bf16.msra.mxu0 %v12313
  %14093 = vmatpush.bf16.msra.mxu0 %v12306
  %14094 = vmatpush.bf16.msra.mxu0 %v12299
  %14095 = vmatpush.bf16.msra.mxu0 %v12292
  %14096 = vmatpush.bf16.msra.mxu0 %v12285
  %14097 = vmatpush.bf16.msra.mxu0 %v12278
  %14098 = vmatpush.bf16.msra.mxu0 %v12271
  %14099 = vmatpush.bf16.msra.mxu0 %v12264
  %14100 = vmatmul.bf16.gmra.mxu0 %v8795
  %v14101 = vpop.f32.mrf.mxu0
  %v14102 = vadd.f32 %v14089, %v14101
  %v14103 = vpop.f32.mrf.mxu0
  %14104 = vdwg.mxu0
  %14105 = vmatpush.bf16.msra.mxu0 %v12369
  %14106 = vmatpush.bf16.msra.mxu0 %v12362
  %14107 = vmatpush.bf16.msra.mxu0 %v12355
  %14108 = vmatpush.bf16.msra.mxu0 %v12348
  %14109 = vmatpush.bf16.msra.mxu0 %v12341
  %14110 = vmatpush.bf16.msra.mxu0 %v12334
  %14111 = vmatpush.bf16.msra.mxu0 %v12327
  %14112 = vmatpush.bf16.msra.mxu0 %v12320
  %14113 = vmatmul.bf16.gmra.mxu0 %v8796
  %v14114 = vpop.f32.mrf.mxu0
  %v14115 = vadd.f32 %v14102, %v14114
  %v14116 = vpop.f32.mrf.mxu0
  %14117 = vdwg.mxu0
  %14118 = vmatpush.bf16.msra.mxu0 %v12425
  %14119 = vmatpush.bf16.msra.mxu0 %v12418
  %14120 = vmatpush.bf16.msra.mxu0 %v12411
  %14121 = vmatpush.bf16.msra.mxu0 %v12404
  %14122 = vmatpush.bf16.msra.mxu0 %v12397
  %14123 = vmatpush.bf16.msra.mxu0 %v12390
  %14124 = vmatpush.bf16.msra.mxu0 %v12383
  %14125 = vmatpush.bf16.msra.mxu0 %v12376
  %14126 = vmatmul.bf16.gmra.mxu0 %v8797
  %v14127 = vpop.f32.mrf.mxu0
  %v14128 = vadd.f32 %v14115, %v14127
  %v14129 = vpop.f32.mrf.mxu0
  %14130 = vdwg.mxu0
  %14131 = vmatpush.bf16.msra.mxu0 0
  %14132 = vmatpush.bf16.msra.mxu0 0
  %14133 = vmatpush.bf16.msra.mxu0 0
  %14134 = vmatpush.bf16.msra.mxu0 0
  %14135 = vmatpush.bf16.msra.mxu0 0
  %14136 = vmatpush.bf16.msra.mxu0 0
  %14137 = vmatpush.bf16.msra.mxu0 %v12439
  %14138 = vmatpush.bf16.msra.mxu0 %v12432
  %14139 = vmatmul.bf16.gmra.mxu0 %v13128
  %v14140 = vpop.f32.mrf.mxu0
  %v14141 = vadd.f32 %v14128, %v14140
  %v14142 = vpop.f32.mrf.mxu0
  %14143 = vdwg.mxu0
  %14144 = vmatpush.bf16.msra.mxu0 %v11810
  %14145 = vmatpush.bf16.msra.mxu0 %v11803
  %14146 = vmatpush.bf16.msra.mxu0 %v11796
  %14147 = vmatpush.bf16.msra.mxu0 %v11789
  %14148 = vmatpush.bf16.msra.mxu0 %v11782
  %14149 = vmatpush.bf16.msra.mxu0 %v11775
  %14150 = vmatpush.bf16.msra.mxu0 %v11768
  %14151 = vmatpush.bf16.msra.mxu0 %v11761
  %14152 = vmatmul.bf16.gmra.mxu0 %v8786
  %v14153 = vpop.f32.mrf.mxu0
  %v14154 = vadd.f32 %v9591, %v14153
  %v14155 = vpop.f32.mrf.mxu0
  %14156 = vdwg.mxu0
  %14157 = vmatpush.bf16.msra.mxu0 %v11866
  %14158 = vmatpush.bf16.msra.mxu0 %v11859
  %14159 = vmatpush.bf16.msra.mxu0 %v11852
  %14160 = vmatpush.bf16.msra.mxu0 %v11845
  %14161 = vmatpush.bf16.msra.mxu0 %v11838
  %14162 = vmatpush.bf16.msra.mxu0 %v11831
  %14163 = vmatpush.bf16.msra.mxu0 %v11824
  %14164 = vmatpush.bf16.msra.mxu0 %v11817
  %14165 = vmatmul.bf16.gmra.mxu0 %v8787
  %v14166 = vpop.f32.mrf.mxu0
  %v14167 = vadd.f32 %v14154, %v14166
  %v14168 = vpop.f32.mrf.mxu0
  %14169 = vdwg.mxu0
  %14170 = vmatpush.bf16.msra.mxu0 %v11922
  %14171 = vmatpush.bf16.msra.mxu0 %v11915
  %14172 = vmatpush.bf16.msra.mxu0 %v11908
  %14173 = vmatpush.bf16.msra.mxu0 %v11901
  %14174 = vmatpush.bf16.msra.mxu0 %v11894
  %14175 = vmatpush.bf16.msra.mxu0 %v11887
  %14176 = vmatpush.bf16.msra.mxu0 %v11880
  %14177 = vmatpush.bf16.msra.mxu0 %v11873
  %14178 = vmatmul.bf16.gmra.mxu0 %v8788
  %v14179 = vpop.f32.mrf.mxu0
  %v14180 = vadd.f32 %v14167, %v14179
  %v14181 = vpop.f32.mrf.mxu0
  %14182 = vdwg.mxu0
  %14183 = vmatpush.bf16.msra.mxu0 %v11978
  %14184 = vmatpush.bf16.msra.mxu0 %v11971
  %14185 = vmatpush.bf16.msra.mxu0 %v11964
  %14186 = vmatpush.bf16.msra.mxu0 %v11957
  %14187 = vmatpush.bf16.msra.mxu0 %v11950
  %14188 = vmatpush.bf16.msra.mxu0 %v11943
  %14189 = vmatpush.bf16.msra.mxu0 %v11936
  %14190 = vmatpush.bf16.msra.mxu0 %v11929
  %14191 = vmatmul.bf16.gmra.mxu0 %v8789
  %v14192 = vpop.f32.mrf.mxu0
  %v14193 = vadd.f32 %v14180, %v14192
  %v14194 = vpop.f32.mrf.mxu0
  %14195 = vdwg.mxu0
  %14196 = vmatpush.bf16.msra.mxu0 %v12034
  %14197 = vmatpush.bf16.msra.mxu0 %v12027
  %14198 = vmatpush.bf16.msra.mxu0 %v12020
  %14199 = vmatpush.bf16.msra.mxu0 %v12013
  %14200 = vmatpush.bf16.msra.mxu0 %v12006
  %14201 = vmatpush.bf16.msra.mxu0 %v11999
  %14202 = vmatpush.bf16.msra.mxu0 %v11992
  %14203 = vmatpush.bf16.msra.mxu0 %v11985
  %14204 = vmatmul.bf16.gmra.mxu0 %v8790
  %v14205 = vpop.f32.mrf.mxu0
  %v14206 = vadd.f32 %v14193, %v14205
  %v14207 = vpop.f32.mrf.mxu0
  %14208 = vdwg.mxu0
  %14209 = vmatpush.bf16.msra.mxu0 %v12090
  %14210 = vmatpush.bf16.msra.mxu0 %v12083
  %14211 = vmatpush.bf16.msra.mxu0 %v12076
  %14212 = vmatpush.bf16.msra.mxu0 %v12069
  %14213 = vmatpush.bf16.msra.mxu0 %v12062
  %14214 = vmatpush.bf16.msra.mxu0 %v12055
  %14215 = vmatpush.bf16.msra.mxu0 %v12048
  %14216 = vmatpush.bf16.msra.mxu0 %v12041
  %14217 = vmatmul.bf16.gmra.mxu0 %v8791
  %v14218 = vpop.f32.mrf.mxu0
  %v14219 = vadd.f32 %v14206, %v14218
  %v14220 = vpop.f32.mrf.mxu0
  %14221 = vdwg.mxu0
  %14222 = vmatpush.bf16.msra.mxu0 %v12146
  %14223 = vmatpush.bf16.msra.mxu0 %v12139
  %14224 = vmatpush.bf16.msra.mxu0 %v12132
  %14225 = vmatpush.bf16.msra.mxu0 %v12125
  %14226 = vmatpush.bf16.msra.mxu0 %v12118
  %14227 = vmatpush.bf16.msra.mxu0 %v12111
  %14228 = vmatpush.bf16.msra.mxu0 %v12104
  %14229 = vmatpush.bf16.msra.mxu0 %v12097
  %14230 = vmatmul.bf16.gmra.mxu0 %v8792
  %v14231 = vpop.f32.mrf.mxu0
  %v14232 = vadd.f32 %v14219, %v14231
  %v14233 = vpop.f32.mrf.mxu0
  %14234 = vdwg.mxu0
  %14235 = vmatpush.bf16.msra.mxu0 %v12202
  %14236 = vmatpush.bf16.msra.mxu0 %v12195
  %14237 = vmatpush.bf16.msra.mxu0 %v12188
  %14238 = vmatpush.bf16.msra.mxu0 %v12181
  %14239 = vmatpush.bf16.msra.mxu0 %v12174
  %14240 = vmatpush.bf16.msra.mxu0 %v12167
  %14241 = vmatpush.bf16.msra.mxu0 %v12160
  %14242 = vmatpush.bf16.msra.mxu0 %v12153
  %14243 = vmatmul.bf16.gmra.mxu0 %v8793
  %v14244 = vpop.f32.mrf.mxu0
  %v14245 = vadd.f32 %v14232, %v14244
  %v14246 = vpop.f32.mrf.mxu0
  %14247 = vdwg.mxu0
  %14248 = vmatpush.bf16.msra.mxu0 %v12258
  %14249 = vmatpush.bf16.msra.mxu0 %v12251
  %14250 = vmatpush.bf16.msra.mxu0 %v12244
  %14251 = vmatpush.bf16.msra.mxu0 %v12237
  %14252 = vmatpush.bf16.msra.mxu0 %v12230
  %14253 = vmatpush.bf16.msra.mxu0 %v12223
  %14254 = vmatpush.bf16.msra.mxu0 %v12216
  %14255 = vmatpush.bf16.msra.mxu0 %v12209
  %14256 = vmatmul.bf16.gmra.mxu0 %v8794
  %v14257 = vpop.f32.mrf.mxu0
  %v14258 = vadd.f32 %v14245, %v14257
  %v14259 = vpop.f32.mrf.mxu0
  %14260 = vdwg.mxu0
  %14261 = vmatpush.bf16.msra.mxu0 %v12314
  %14262 = vmatpush.bf16.msra.mxu0 %v12307
  %14263 = vmatpush.bf16.msra.mxu0 %v12300
  %14264 = vmatpush.bf16.msra.mxu0 %v12293
  %14265 = vmatpush.bf16.msra.mxu0 %v12286
  %14266 = vmatpush.bf16.msra.mxu0 %v12279
  %14267 = vmatpush.bf16.msra.mxu0 %v12272
  %14268 = vmatpush.bf16.msra.mxu0 %v12265
  %14269 = vmatmul.bf16.gmra.mxu0 %v8795
  %v14270 = vpop.f32.mrf.mxu0
  %v14271 = vadd.f32 %v14258, %v14270
  %v14272 = vpop.f32.mrf.mxu0
  %14273 = vdwg.mxu0
  %14274 = vmatpush.bf16.msra.mxu0 %v12370
  %14275 = vmatpush.bf16.msra.mxu0 %v12363
  %14276 = vmatpush.bf16.msra.mxu0 %v12356
  %14277 = vmatpush.bf16.msra.mxu0 %v12349
  %14278 = vmatpush.bf16.msra.mxu0 %v12342
  %14279 = vmatpush.bf16.msra.mxu0 %v12335
  %14280 = vmatpush.bf16.msra.mxu0 %v12328
  %14281 = vmatpush.bf16.msra.mxu0 %v12321
  %14282 = vmatmul.bf16.gmra.mxu0 %v8796
  %v14283 = vpop.f32.mrf.mxu0
  %v14284 = vadd.f32 %v14271, %v14283
  %v14285 = vpop.f32.mrf.mxu0
  %14286 = vdwg.mxu0
  %14287 = vmatpush.bf16.msra.mxu0 %v12426
  %14288 = vmatpush.bf16.msra.mxu0 %v12419
  %14289 = vmatpush.bf16.msra.mxu0 %v12412
  %14290 = vmatpush.bf16.msra.mxu0 %v12405
  %14291 = vmatpush.bf16.msra.mxu0 %v12398
  %14292 = vmatpush.bf16.msra.mxu0 %v12391
  %14293 = vmatpush.bf16.msra.mxu0 %v12384
  %14294 = vmatpush.bf16.msra.mxu0 %v12377
  %14295 = vmatmul.bf16.gmra.mxu0 %v8797
  %v14296 = vpop.f32.mrf.mxu0
  %v14297 = vadd.f32 %v14284, %v14296
  %v14298 = vpop.f32.mrf.mxu0
  %14299 = vdwg.mxu0
  %14300 = vmatpush.bf16.msra.mxu0 0
  %14301 = vmatpush.bf16.msra.mxu0 0
  %14302 = vmatpush.bf16.msra.mxu0 0
  %14303 = vmatpush.bf16.msra.mxu0 0
  %14304 = vmatpush.bf16.msra.mxu0 0
  %14305 = vmatpush.bf16.msra.mxu0 0
  %14306 = vmatpush.bf16.msra.mxu0 %v12440
  %14307 = vmatpush.bf16.msra.mxu0 %v12433
  %14308 = vmatmul.bf16.gmra.mxu0 %v13128
  %v14309 = vpop.f32.mrf.mxu0
  %v14310 = vadd.f32 %v14297, %v14309
  %v14311 = vpop.f32.mrf.mxu0
  %14312 = vdwg.mxu0
  %v14313 = vsub.f32 0.0, %v13296
  %v14314 = vsub.f32 0.0, %v13465
  %v14315 = vsub.f32 0.0, %v13634
  %v14316 = vsub.f32 0.0, %v13803
  %v14317 = vsub.f32 0.0, %v13972
  %v14318 = vsub.f32 0.0, %v14141
  %v14319 = vsub.f32 0.0, %v14310
  %v14320 = vmul.f32 %v14313, 1.442695
  %v14321 = vpow.pop %v14320
  %v14322 = vmul.f32 %v14314, 1.442695
  %v14323 = vpow.pop %v14322
  %v14324 = vmul.f32 %v14315, 1.442695
  %v14325 = vpow.pop %v14324
  %v14326 = vmul.f32 %v14316, 1.442695
  %v14327 = vpow.pop %v14326
  %v14328 = vmul.f32 %v14317, 1.442695
  %v14329 = vpow.pop %v14328
  %v14330 = vmul.f32 %v14318, 1.442695
  %v14331 = vpow.pop %v14330
  %v14332 = vmul.f32 %v14319, 1.442695
  %v14333 = vpow.pop %v14332
  %v14334 = vadd.f32 %v14321, 1.0
  %v14335 = vadd.f32 %v14323, 1.0
  %v14336 = vadd.f32 %v14325, 1.0
  %v14337 = vadd.f32 %v14327, 1.0
  %v14338 = vadd.f32 %v14329, 1.0
  %v14339 = vadd.f32 %v14331, 1.0
  %v14340 = vadd.f32 %v14333, 1.0
  %v14341 = vrcp.pop %v14334
  %v14342 = vrcp.pop %v14335
  %v14343 = vrcp.pop %v14336
  %v14344 = vrcp.pop %v14337
  %v14345 = vrcp.pop %v14338
  %v14346 = vrcp.pop %v14339
  %v14347 = vrcp.pop %v14340
  %v14355 = vrot.slane %v14342, 6
  %v14356 = vrot.slane %v14343, 4
  %v14357 = vrot.slane %v14344, 2
  %v14358 = vrot.slane %v14346, 6
  %v14359 = vrot.slane %v14347, 4
  %v14360 = vsel %vm1283, %v14341, %v14355
  %vm14361 = vcmask 1045508
  %v14362 = vsel %vm14361, %v14356, %v14357
  %v14363 = vsel %vm67, %v14360, %v14362
  %v14364 = vsel %vm1283, %v14345, %v14358
  %v14365 = vsel %vm67, %v14364, %v14359
  %14368 = vst [vmem:[%s17] sm:$0xff] %v14363
  %vm14369 = vcmask 1043458
  %vm14370 = vmor %vm14369, %vm1283
  %vm14371 = vcmask 128004
  %vm14372 = vmor %vm14371, %vm14370
  %14373 = vst.msk [vmem:[%s17 + $0x8] sm:$0x3f] %vm14372, %v14365
  // Predicated region
  $region70: #{decoder_forward.1} parent=0 // pred_check
    _
  $region71: #{decoder_forward.1} parent=0 // pred_check_branch
    %14375 = sbr.rel (0) target = $region73
  $region72: #{decoder_forward.1} parent=0 // pred_region
    _
  $region73: #{decoder_forward.1} parent=0 // pred_fallthru
    _
  // Predicated region
  $region74: #{decoder_forward.1} parent=0 // pred_check
    _
  $region75: #{decoder_forward.1} parent=0 // pred_check_branch
    %14377 = sbr.rel (0) target = $region77
  $region76: #{decoder_forward.1} parent=0 // pred_region
    _
  $region77: #{decoder_forward.1} parent=0 // pred_fallthru
    _

</llo_original>
